<compile_context>
chip_gen: v7x
topology: tpu7x:2x2x1
jax: 0.10.0
libtpu: 0.0.40
codegen_flags: <defaults>
</compile_context>

<pallas_src>
import functools

import jax
import jax.numpy as jnp
from jax.experimental import pallas as pl
from jax.experimental.pallas import tpu as pltpu

_HIGHEST = jax.lax.Precision.HIGHEST


# ----------------------------------------------------------------------------
# Kernel: one (batch-block, time-chunk) grid step.
# ----------------------------------------------------------------------------
def _encoder_z0_kernel(x_ref,                       # (Tc, Bb, D_in)
                       wi_ref, wh_ref, bi_ref, bh_ref,
                       w1_ref, b1_ref, w2_ref, b2_ref,
                       out_ref,                     # (Bb, 2*latent)
                       si_ref, h_ref,               # VMEM scratch
                       *, T, Tc, Hp, Bb, D_in,
                       reverse_in_chunk, needs_mask, unroll):
    k = pl.program_id(1)
    nk = pl.num_programs(1)

    # Init hidden state at the start of each batch block's time sweep.
    @pl.when(k == 0)
    def _():
        h_ref[...] = jnp.zeros_like(h_ref)

    # ---- Hoisted input projection: one big MXU matmul per chunk ----
    xc = x_ref[...].reshape(Tc * Bb, D_in)
    si = jnp.dot(xc, wi_ref[...], preferred_element_type=jnp.float32,
                 precision=_HIGHEST)
    si_ref[...] = si + bi_ref[...]                  # (Tc*Bb, 3*Hp)

    # Hoist the recurrent-bias broadcast out of the time loop.
    bh = jnp.broadcast_to(bh_ref[...], (Bb, 3 * Hp))

    def step(t, h):
        row = (Tc - 1 - t) if reverse_in_chunk else t
        base = pl.multiple_of(row * Bb, Bb)
        s_i = si_ref[pl.ds(base, Bb), :]            # (Bb, 3*Hp) aligned slab
        s_h = jnp.dot(h, wh_ref[...], preferred_element_type=jnp.float32,
                      precision=_HIGHEST) + bh
        # Gate g occupies lanes [g*Hp, (g+1)*Hp): vreg-aligned slices.
        rz = jax.nn.sigmoid(s_i[:, :2 * Hp] + s_h[:, :2 * Hp])
        r = rz[:, :Hp]
        z = rz[:, Hp:]
        # PyTorch GRU: n = tanh(Win x + bin + r * (Whn h + bhn))
        n = jnp.tanh(s_i[:, 2 * Hp:] + r * s_h[:, 2 * Hp:])
        h_new = (1.0 - z) * n + z * h
        if needs_mask:                              # skip padded time steps
            h_new = jnp.where((k * Tc + t) < T, h_new, h)
        return h_new

    h = jax.lax.fori_loop(0, Tc, step, h_ref[...], unroll=unroll)
    h_ref[...] = h

    # ---- hiddens_to_z0 head on the final hidden state (last chunk only) ----
    @pl.when(k == nk - 1)
    def _():
        hid = jnp.tanh(jnp.dot(h, w1_ref[...],
                               preferred_element_type=jnp.float32,
                               precision=_HIGHEST) + b1_ref[...])
        out_ref[...] = (jnp.dot(hid, w2_ref[...],
                                preferred_element_type=jnp.float32,
                                precision=_HIGHEST) + b2_ref[...])


# ----------------------------------------------------------------------------
# Pallas wrapper: weight fusion + lane padding + chunked grid.
# ----------------------------------------------------------------------------
def encoder_z0_rnn_pallas(x_tbd, params, latent_dim, *, reverse=True,
                          time_chunk=32, batch_block=8):
    """x_tbd: (T, B, D_in) float32 in ORIGINAL time order (reversal is done
    inside the kernel via the index_map when reverse=True)."""
    T, B, D_in = x_tbd.shape
    H = params["whr"].shape[0]
    Hp = -(-H // 128) * 128                     # lane-aligned gate width
    L2 = 2 * latent_dim
    f32 = jnp.float32

    pad_cols = lambda w: jnp.pad(w.astype(f32), ((0, 0), (0, Hp - H)))
    pad_both = lambda w: jnp.pad(w.astype(f32), ((0, Hp - H), (0, Hp - H)))

    # Fused, lane-padded GRU weights (gate order r | z | n).
    wi = jnp.concatenate([pad_cols(params["wir"]), pad_cols(params["wiz"]),
                          pad_cols(params["win"])], axis=1)      # (D_in, 3*Hp)
    wh = jnp.concatenate([pad_both(params["whr"]), pad_both(params["whz"]),
                          pad_both(params["whn"])], axis=1)      # (Hp, 3*Hp)
    bi = jnp.concatenate([pad_cols(params["bir"]), pad_cols(params["biz"]),
                          pad_cols(params["bin"])], axis=1)      # (1, 3*Hp)
    bh = jnp.concatenate([pad_cols(params["bhr"]), pad_cols(params["bhz"]),
                          pad_cols(params["bhn"])], axis=1)
    w1 = jnp.pad(params["w1"].astype(f32), ((0, Hp - H), (0, 0)))  # (Hp, 50)
    b1 = params["b1"].astype(f32)
    w2 = params["w2"].astype(f32)
    b2 = params["b2"].astype(f32)

    # Batch blocks (sublane multiple) and time chunks.
    Bb = batch_block
    Bp = max(Bb, -(-B // Bb) * Bb)
    nb = Bp // Bb
    Tc = max(1, min(time_chunk, T))
    nk = -(-T // Tc)
    Tp = nk * Tc

    # Time padding goes at the FRONT for the reversed path so the padded rows
    # are the LAST reversed steps (masked in-kernel); at the END otherwise.
    t_pad = (Tp - T, 0) if reverse else (0, Tp - T)
    x_p = jnp.pad(x_tbd.astype(f32), (t_pad, (0, Bp - B), (0, 0)))

    if reverse:
        x_index = lambda i, k, _nk=nk: (_nk - 1 - k, i, 0)
    else:
        x_index = lambda i, k: (k, i, 0)

    def _full_spec(shape):
        nd = len(shape)
        return pl.BlockSpec(shape, lambda i, k, _nd=nd: (0,) * _nd)

    weights = [wi, wh, bi, bh, w1, b1, w2, b2]

    kernel = functools.partial(
        _encoder_z0_kernel, T=T, Tc=Tc, Hp=Hp, Bb=Bb, D_in=D_in,
        reverse_in_chunk=reverse, needs_mask=(Tp != T),
        unroll=max(1, min(4, Tc)))

    out = pl.pallas_call(
        kernel,
        out_shape=jax.ShapeDtypeStruct((Bp, L2), f32),
        grid_spec=pltpu.PrefetchScalarGridSpec(
            num_scalar_prefetch=0,
            grid=(nb, nk),
            in_specs=[pl.BlockSpec((Tc, Bb, D_in), x_index)]
                     + [_full_spec(w.shape) for w in weights],
            out_specs=pl.BlockSpec((Bb, L2), lambda i, k: (i, 0)),
            scratch_shapes=[
                pltpu.VMEM((Tc * Bb, 3 * Hp), f32),   # per-chunk input proj
                pltpu.VMEM((Bb, Hp), f32),            # carried hidden state
            ]),
        compiler_params=pltpu.CompilerParams(
            dimension_semantics=("parallel", "arbitrary")),
    )(x_p, *weights)

    out = out[:B]
    mean = out[:, :latent_dim]
    std = jnp.abs(out[:, latent_dim:])
    return mean, std


# ----------------------------------------------------------------------------
# Forward wrapper reproducing Encoder_z0_RNN.forward glue.
# ----------------------------------------------------------------------------
def encoder_z0_rnn_forward(data, time_steps, params, latent_dim,
                           run_backwards=True, use_delta_t=True,
                           time_chunk=32, batch_block=8):
    # data: (n_traj, n_tp, input_dim), time_steps: (n_tp,)
    n_traj, n_tp, _ = data.shape
    # Keep x in ORIGINAL time order; reversal is folded into the kernel, which
    # saves a full HBM pass over the sequence in the wrapper.
    x = jnp.transpose(data, (1, 0, 2)).astype(jnp.float32)       # (T, B, D)
    if use_delta_t:
        dt = (time_steps[1:] - time_steps[:-1]).astype(jnp.float32)
        if run_backwards:
            # delta_t of the reversed sequence, expressed in original order:
            # original step j gets t[j] - t[j-1] (0 at j == 0).
            dt_orig = jnp.concatenate([jnp.zeros((1,), jnp.float32), dt])
        else:
            dt_orig = jnp.concatenate([dt, jnp.zeros((1,), jnp.float32)])
        dt_feat = jnp.broadcast_to(dt_orig[:, None, None], (n_tp, n_traj, 1))
        x = jnp.concatenate([dt_feat, x], axis=-1)               # (T, B, D+1)

    mean, std = encoder_z0_rnn_pallas(
        x, params, latent_dim, reverse=run_backwards,
        time_chunk=time_chunk, batch_block=batch_block)
    return mean[None], std[None]                                 # unsqueeze(0)


# ----------------------------------------------------------------------------
# Pure-JAX reference (mirrors the PyTorch forward exactly).
# ----------------------------------------------------------------------------
def encoder_z0_rnn_reference(data, time_steps, params, latent_dim,
                             run_backwards=True, use_delta_t=True):
    n_traj = data.shape[0]
    x = jnp.transpose(data, (1, 0, 2))
    if run_backwards:
        x = x[::-1]
    if use_delta_t:
        delta_t = time_steps[1:] - time_steps[:-1]
        if run_backwards:
            delta_t = delta_t[::-1]
        delta_t = jnp.concatenate(
            [delta_t, jnp.zeros((1,), dtype=time_steps.dtype)])
        delta_t = jnp.tile(delta_t[:, None], (1, n_traj))[..., None]
        x = jnp.concatenate([delta_t, x], axis=-1)

    H = params["whr"].shape[0]
    h = jnp.zeros((n_traj, H), jnp.float32)

    def mm(a, b):
        return jnp.dot(a, b, precision=_HIGHEST)

    def step(h, xt):
        r = jax.nn.sigmoid(mm(xt, params["wir"]) + params["bir"] +
                           mm(h, params["whr"]) + params["bhr"])
        z = jax.nn.sigmoid(mm(xt, params["wiz"]) + params["biz"] +
                           mm(h, params["whz"]) + params["bhz"])
        n = jnp.tanh(mm(xt, params["win"]) + params["bin"] +
                     r * (mm(h, params["whn"]) + params["bhn"]))
        return (1.0 - z) * n + z * h, None

    h_last, _ = jax.lax.scan(step, h, x.astype(jnp.float32))
    hid = jnp.tanh(mm(h_last, params["w1"]) + params["b1"])
    out = mm(hid, params["w2"]) + params["b2"]
    mean, std = out[:, :latent_dim], jnp.abs(out[:, latent_dim:])
    return mean[None], std[None]


# ----------------------------------------------------------------------------
# Deterministic parameter construction (mirrors __init__ shapes).
# ----------------------------------------------------------------------------
def make_params(key, input_dim_with_dt, hidden, latent_dim):
    ks = jax.random.split(key, 10)
    s = 0.1
    p = {
        # GRU weights, split by gate, stored transposed for x @ W.
        "wir": s * jax.random.normal(ks[0], (input_dim_with_dt, hidden), jnp.float32),
        "wiz": s * jax.random.normal(ks[1], (input_dim_with_dt, hidden), jnp.float32),
        "win": s * jax.random.normal(ks[2], (input_dim_with_dt, hidden), jnp.float32),
        "whr": s * jax.random.normal(ks[3], (hidden, hidden), jnp.float32),
        "whz": s * jax.random.normal(ks[4], (hidden, hidden), jnp.float32),
        "whn": s * jax.random.normal(ks[5], (hidden, hidden), jnp.float32),
        "bir": s * jax.random.normal(ks[6], (1, hidden), jnp.float32),
        "biz": s * jax.random.normal(ks[7], (1, hidden), jnp.float32),
        "bin": s * jax.random.normal(ks[8], (1, hidden), jnp.float32),
        "bhr": jnp.zeros((1, hidden), jnp.float32),
        "bhz": jnp.zeros((1, hidden), jnp.float32),
        "bhn": jnp.zeros((1, hidden), jnp.float32),
        # hiddens_to_z0: Linear(hidden,50) -> Tanh -> Linear(50, 2*latent)
        "w1": s * jax.random.normal(ks[9], (hidden, 50), jnp.float32),
        "b1": jnp.zeros((1, 50), jnp.float32),
        "w2": s * jax.random.normal(jax.random.fold_in(key, 99),
                                    (50, 2 * latent_dim), jnp.float32),
        "b2": jnp.zeros((1, 2 * latent_dim), jnp.float32),
    }
    return p


if __name__ == "__main__":
    key = jax.random.PRNGKey(0)

    n_traj = 4          # batch of trajectories
    n_tp = 11           # time points (deliberately not a chunk multiple)
    input_dim = 3       # observation dim
    latent_dim = 6
    hidden = 20         # lstm_output_size default
    d_in = input_dim + 1  # + delta_t feature

    k_data, k_time, k_param = jax.random.split(key, 3)
    data = jax.random.normal(k_data, (n_traj, n_tp, input_dim), jnp.float32)
    time_steps = jnp.sort(jax.random.uniform(k_time, (n_tp,), jnp.float32))
    params = make_params(k_param, d_in, hidden, latent_dim)

    # run_backwards=True (module default), small time chunk to exercise the
    # chunked grid + front-padding + in-kernel reversal paths.
    mean, std = encoder_z0_rnn_forward(
        data, time_steps, params, latent_dim,
        run_backwards=True, use_delta_t=True, time_chunk=4)
    jax.block_until_ready((mean, std))

    mean_ref, std_ref = encoder_z0_rnn_reference(
        data, time_steps, params, latent_dim,
        run_backwards=True, use_delta_t=True)

    assert mean.shape == (1, n_traj, latent_dim)
    assert std.shape == (1, n_traj, latent_dim)
    assert jnp.allclose(mean, mean_ref, atol=1e-5, rtol=1e-5)
    assert jnp.allclose(std, std_ref, atol=1e-5, rtol=1e-5)

    # Forward (non-reversed) path as well.
    mean_f, std_f = encoder_z0_rnn_forward(
        data, time_steps, params, latent_dim,
        run_backwards=False, use_delta_t=True, time_chunk=4)
    mean_fr, std_fr = encoder_z0_rnn_reference(
        data, time_steps, params, latent_dim,
        run_backwards=False, use_delta_t=True)
    assert jnp.allclose(mean_f, mean_fr, atol=1e-5, rtol=1e-5)
    assert jnp.allclose(std_f, std_fr, atol=1e-5, rtol=1e-5)

    print("KERNEL_OK")
</pallas_src>

<mosaic_0001>
module attributes {stable_mosaic.version = 11 : i64} {
  func.func @_encoder_z0_kernel(%arg0: i32, %arg1: i32, %arg2: memref<4x8x4xf32, #tpu.memory_space<vmem>>, %arg3: memref<4x384xf32, #tpu.memory_space<vmem>>, %arg4: memref<128x384xf32, #tpu.memory_space<vmem>>, %arg5: memref<1x384xf32, #tpu.memory_space<vmem>>, %arg6: memref<1x384xf32, #tpu.memory_space<vmem>>, %arg7: memref<128x50xf32, #tpu.memory_space<vmem>>, %arg8: memref<1x50xf32, #tpu.memory_space<vmem>>, %arg9: memref<50x12xf32, #tpu.memory_space<vmem>>, %arg10: memref<1x12xf32, #tpu.memory_space<vmem>>, %arg11: memref<8x12xf32, #tpu.memory_space<vmem>>, %arg12: memref<32x384xf32, #tpu.memory_space<vmem>>, %arg13: memref<8x128xf32, #tpu.memory_space<vmem>>) attributes {dimension_semantics = [#tpu.dimension_semantics<parallel>, #tpu.dimension_semantics<arbitrary>], iteration_bounds = array<i64: 1, 3>, scalar_prefetch = 0 : i64, scratch_operands = 2 : i64, tpu.core_type = #tpu.core_type<tc>, window_params = [{transform_indices = @transform_0, window_bounds = array<i64: 4, 8, 4>}, {pipeline_mode = #tpu.pipeline_mode<synchronous>, transform_indices = @transform_1, window_bounds = array<i64: 4, 384>}, {pipeline_mode = #tpu.pipeline_mode<synchronous>, transform_indices = @transform_2, window_bounds = array<i64: 128, 384>}, {pipeline_mode = #tpu.pipeline_mode<synchronous>, transform_indices = @transform_3, window_bounds = array<i64: 1, 384>}, {pipeline_mode = #tpu.pipeline_mode<synchronous>, transform_indices = @transform_4, window_bounds = array<i64: 1, 384>}, {pipeline_mode = #tpu.pipeline_mode<synchronous>, transform_indices = @transform_5, window_bounds = array<i64: 128, 50>}, {pipeline_mode = #tpu.pipeline_mode<synchronous>, transform_indices = @transform_6, window_bounds = array<i64: 1, 50>}, {pipeline_mode = #tpu.pipeline_mode<synchronous>, transform_indices = @transform_7, window_bounds = array<i64: 50, 12>}, {pipeline_mode = #tpu.pipeline_mode<synchronous>, transform_indices = @transform_8, window_bounds = array<i64: 1, 12>}, {transform_indices = @transform_9, window_bounds = array<i64: 8, 12>}]} {
    %c0_i32 = arith.constant 0 : i32
    %0 = arith.cmpi eq, %arg1, %c0_i32 : i32
    %1 = arith.extui %0 : i1 to i32
    %c0_i32_0 = arith.constant 0 : i32
    %2 = arith.cmpi ne, %1, %c0_i32_0 : i32
    scf.if %2 {
      %cst_56 = arith.constant 0.000000e+00 : f32
      %147 = vector.broadcast %cst_56 : f32 to vector<8x128xf32>
      %c0_57 = arith.constant 0 : index
      %c0_58 = arith.constant 0 : index
      %148 = vector.load %arg13[%c0_57, %c0_58] : memref<8x128xf32, #tpu.memory_space<vmem>>, vector<8x128xf32>
      tpu.vector_store %arg13[%c0_57, %c0_58], %147 {strides = array<i32>} : memref<8x128xf32, #tpu.memory_space<vmem>>, vector<8x128xf32>,
    } else {
    }
    %c0 = arith.constant 0 : index
    %c0_1 = arith.constant 0 : index
    %c0_2 = arith.constant 0 : index
    %3 = vector.load %arg2[%c0, %c0_1, %c0_2] : memref<4x8x4xf32, #tpu.memory_space<vmem>>, vector<4x8x4xf32>
    %4 = vector.shape_cast %3 : vector<4x8x4xf32> to vector<32x4xf32>
    %c0_3 = arith.constant 0 : index
    %c0_4 = arith.constant 0 : index
    %5 = vector.load %arg3[%c0_3, %c0_4] : memref<4x384xf32, #tpu.memory_space<vmem>>, vector<4x384xf32>
    %cst = arith.constant dense<0.000000e+00> : vector<32x384xf32>
    %6 = tpu.matmul %4, %5, %cst {dimension_numbers = #tpu.dot_dimension_numbers<[1], [0], [0], [1], [0, 0, 1, 1], [], []>, precision = #tpu.contract_precision<fp32>} : vector<32x4xf32>, vector<4x384xf32>, vector<32x384xf32> -> vector<32x384xf32>
    %c0_5 = arith.constant 0 : index
    %c0_6 = arith.constant 0 : index
    %7 = vector.load %arg5[%c0_5, %c0_6] : memref<1x384xf32, #tpu.memory_space<vmem>>, vector<1x384xf32>
    %8 = vector.broadcast %7 : vector<1x384xf32> to vector<32x384xf32>
    %9 = arith.addf %6, %8 : vector<32x384xf32>
    %c0_7 = arith.constant 0 : index
    %c0_8 = arith.constant 0 : index
    %10 = vector.load %arg12[%c0_7, %c0_8] : memref<32x384xf32, #tpu.memory_space<vmem>>, vector<32x384xf32>
    tpu.vector_store %arg12[%c0_7, %c0_8], %9 {strides = array<i32>} : memref<32x384xf32, #tpu.memory_space<vmem>>, vector<32x384xf32>,
    %c0_9 = arith.constant 0 : index
    %c0_10 = arith.constant 0 : index
    %11 = vector.load %arg6[%c0_9, %c0_10] : memref<1x384xf32, #tpu.memory_space<vmem>>, vector<1x384xf32>
    %12 = vector.shape_cast %11 : vector<1x384xf32> to vector<1x384xf32>
    %13 = vector.broadcast %12 : vector<1x384xf32> to vector<8x384xf32>
    %c0_11 = arith.constant 0 : index
    %c0_12 = arith.constant 0 : index
    %14 = vector.load %arg13[%c0_11, %c0_12] : memref<8x128xf32, #tpu.memory_space<vmem>>, vector<8x128xf32>
    %c0_i32_13 = arith.constant 0 : i32
    %c3_i32 = arith.constant 3 : i32
    %15 = arith.subi %c3_i32, %c0_i32_13 : i32
    %c8_i32 = arith.constant 8 : i32
    %16 = arith.muli %15, %c8_i32 : i32
    %17 = tpu.assume_multiple %16, 8 : i32
    %18 = arith.index_cast %17 : i32 to index
    %c0_14 = arith.constant 0 : index
    %19 = vector.load %arg12[%18, %c0_14] : memref<32x384xf32, #tpu.memory_space<vmem>>, vector<8x384xf32>
    %c0_15 = arith.constant 0 : index
    %c0_16 = arith.constant 0 : index
    %20 = vector.load %arg4[%c0_15, %c0_16] : memref<128x384xf32, #tpu.memory_space<vmem>>, vector<128x384xf32>
    %cst_17 = arith.constant dense<0.000000e+00> : vector<8x384xf32>
    %21 = tpu.matmul %14, %20, %cst_17 {dimension_numbers = #tpu.dot_dimension_numbers<[1], [0], [0], [1], [0, 0, 1, 1], [], []>, precision = #tpu.contract_precision<fp32>} : vector<8x128xf32>, vector<128x384xf32>, vector<8x384xf32> -> vector<8x384xf32>
    %22 = arith.addf %21, %13 : vector<8x384xf32>
    %23 = vector.extract_strided_slice %19 {offsets = [0, 0], sizes = [8, 256], strides = [1, 1]} : vector<8x384xf32> to vector<8x256xf32>
    %24 = vector.extract_strided_slice %22 {offsets = [0, 0], sizes = [8, 256], strides = [1, 1]} : vector<8x384xf32> to vector<8x256xf32>
    %25 = arith.addf %23, %24 : vector<8x256xf32>
    %26 = arith.negf %25 : vector<8x256xf32>
    %27 = math.exp %26 : vector<8x256xf32>
    %cst_18 = arith.constant 1.000000e+00 : f32
    %28 = vector.broadcast %cst_18 : f32 to vector<8x256xf32>
    %29 = arith.addf %28, %27 : vector<8x256xf32>
    %30 = arith.divf %28, %29 : vector<8x256xf32>
    %31 = vector.extract_strided_slice %30 {offsets = [0, 0], sizes = [8, 128], strides = [1, 1]} : vector<8x256xf32> to vector<8x128xf32>
    %32 = vector.extract_strided_slice %30 {offsets = [0, 128], sizes = [8, 128], strides = [1, 1]} : vector<8x256xf32> to vector<8x128xf32>
    %33 = vector.extract_strided_slice %19 {offsets = [0, 256], sizes = [8, 128], strides = [1, 1]} : vector<8x384xf32> to vector<8x128xf32>
    %34 = vector.extract_strided_slice %22 {offsets = [0, 256], sizes = [8, 128], strides = [1, 1]} : vector<8x384xf32> to vector<8x128xf32>
    %35 = arith.mulf %31, %34 : vector<8x128xf32>
    %36 = arith.addf %33, %35 : vector<8x128xf32>
    %37 = math.tanh %36 : vector<8x128xf32>
    %cst_19 = arith.constant 1.000000e+00 : f32
    %38 = vector.broadcast %cst_19 : f32 to vector<8x128xf32>
    %39 = arith.subf %38, %32 : vector<8x128xf32>
    %40 = arith.mulf %39, %37 : vector<8x128xf32>
    %41 = arith.mulf %32, %14 : vector<8x128xf32>
    %42 = arith.addf %40, %41 : vector<8x128xf32>
    %c4_i32 = arith.constant 4 : i32
    %43 = arith.muli %arg1, %c4_i32 : i32
    %44 = arith.addi %43, %c0_i32_13 : i32
    %c11_i32 = arith.constant 11 : i32
    %45 = arith.cmpi slt, %44, %c11_i32 : i32
    %46 = arith.select %45, %42, %14 : vector<8x128xf32>
    %c1_i32 = arith.constant 1 : i32
    %c3_i32_20 = arith.constant 3 : i32
    %47 = arith.subi %c3_i32_20, %c1_i32 : i32
    %c8_i32_21 = arith.constant 8 : i32
    %48 = arith.muli %47, %c8_i32_21 : i32
    %49 = tpu.assume_multiple %48, 8 : i32
    %50 = arith.index_cast %49 : i32 to index
    %c0_22 = arith.constant 0 : index
    %51 = vector.load %arg12[%50, %c0_22] : memref<32x384xf32, #tpu.memory_space<vmem>>, vector<8x384xf32>
    %c0_23 = arith.constant 0 : index
    %c0_24 = arith.constant 0 : index
    %52 = vector.load %arg4[%c0_23, %c0_24] : memref<128x384xf32, #tpu.memory_space<vmem>>, vector<128x384xf32>
    %cst_25 = arith.constant dense<0.000000e+00> : vector<8x384xf32>
    %53 = tpu.matmul %46, %52, %cst_25 {dimension_numbers = #tpu.dot_dimension_numbers<[1], [0], [0], [1], [0, 0, 1, 1], [], []>, precision = #tpu.contract_precision<fp32>} : vector<8x128xf32>, vector<128x384xf32>, vector<8x384xf32> -> vector<8x384xf32>
    %54 = arith.addf %53, %13 : vector<8x384xf32>
    %55 = vector.extract_strided_slice %51 {offsets = [0, 0], sizes = [8, 256], strides = [1, 1]} : vector<8x384xf32> to vector<8x256xf32>
    %56 = vector.extract_strided_slice %54 {offsets = [0, 0], sizes = [8, 256], strides = [1, 1]} : vector<8x384xf32> to vector<8x256xf32>
    %57 = arith.addf %55, %56 : vector<8x256xf32>
    %58 = arith.negf %57 : vector<8x256xf32>
    %59 = math.exp %58 : vector<8x256xf32>
    %cst_26 = arith.constant 1.000000e+00 : f32
    %60 = vector.broadcast %cst_26 : f32 to vector<8x256xf32>
    %61 = arith.addf %60, %59 : vector<8x256xf32>
    %62 = arith.divf %60, %61 : vector<8x256xf32>
    %63 = vector.extract_strided_slice %62 {offsets = [0, 0], sizes = [8, 128], strides = [1, 1]} : vector<8x256xf32> to vector<8x128xf32>
    %64 = vector.extract_strided_slice %62 {offsets = [0, 128], sizes = [8, 128], strides = [1, 1]} : vector<8x256xf32> to vector<8x128xf32>
    %65 = vector.extract_strided_slice %51 {offsets = [0, 256], sizes = [8, 128], strides = [1, 1]} : vector<8x384xf32> to vector<8x128xf32>
    %66 = vector.extract_strided_slice %54 {offsets = [0, 256], sizes = [8, 128], strides = [1, 1]} : vector<8x384xf32> to vector<8x128xf32>
    %67 = arith.mulf %63, %66 : vector<8x128xf32>
    %68 = arith.addf %65, %67 : vector<8x128xf32>
    %69 = math.tanh %68 : vector<8x128xf32>
    %cst_27 = arith.constant 1.000000e+00 : f32
    %70 = vector.broadcast %cst_27 : f32 to vector<8x128xf32>
    %71 = arith.subf %70, %64 : vector<8x128xf32>
    %72 = arith.mulf %71, %69 : vector<8x128xf32>
    %73 = arith.mulf %64, %46 : vector<8x128xf32>
    %74 = arith.addf %72, %73 : vector<8x128xf32>
    %c4_i32_28 = arith.constant 4 : i32
    %75 = arith.muli %arg1, %c4_i32_28 : i32
    %76 = arith.addi %75, %c1_i32 : i32
    %c11_i32_29 = arith.constant 11 : i32
    %77 = arith.cmpi slt, %76, %c11_i32_29 : i32
    %78 = arith.select %77, %74, %46 : vector<8x128xf32>
    %c2_i32 = arith.constant 2 : i32
    %c3_i32_30 = arith.constant 3 : i32
    %79 = arith.subi %c3_i32_30, %c2_i32 : i32
    %c8_i32_31 = arith.constant 8 : i32
    %80 = arith.muli %79, %c8_i32_31 : i32
    %81 = tpu.assume_multiple %80, 8 : i32
    %82 = arith.index_cast %81 : i32 to index
    %c0_32 = arith.constant 0 : index
    %83 = vector.load %arg12[%82, %c0_32] : memref<32x384xf32, #tpu.memory_space<vmem>>, vector<8x384xf32>
    %c0_33 = arith.constant 0 : index
    %c0_34 = arith.constant 0 : index
    %84 = vector.load %arg4[%c0_33, %c0_34] : memref<128x384xf32, #tpu.memory_space<vmem>>, vector<128x384xf32>
    %cst_35 = arith.constant dense<0.000000e+00> : vector<8x384xf32>
    %85 = tpu.matmul %78, %84, %cst_35 {dimension_numbers = #tpu.dot_dimension_numbers<[1], [0], [0], [1], [0, 0, 1, 1], [], []>, precision = #tpu.contract_precision<fp32>} : vector<8x128xf32>, vector<128x384xf32>, vector<8x384xf32> -> vector<8x384xf32>
    %86 = arith.addf %85, %13 : vector<8x384xf32>
    %87 = vector.extract_strided_slice %83 {offsets = [0, 0], sizes = [8, 256], strides = [1, 1]} : vector<8x384xf32> to vector<8x256xf32>
    %88 = vector.extract_strided_slice %86 {offsets = [0, 0], sizes = [8, 256], strides = [1, 1]} : vector<8x384xf32> to vector<8x256xf32>
    %89 = arith.addf %87, %88 : vector<8x256xf32>
    %90 = arith.negf %89 : vector<8x256xf32>
    %91 = math.exp %90 : vector<8x256xf32>
    %cst_36 = arith.constant 1.000000e+00 : f32
    %92 = vector.broadcast %cst_36 : f32 to vector<8x256xf32>
    %93 = arith.addf %92, %91 : vector<8x256xf32>
    %94 = arith.divf %92, %93 : vector<8x256xf32>
    %95 = vector.extract_strided_slice %94 {offsets = [0, 0], sizes = [8, 128], strides = [1, 1]} : vector<8x256xf32> to vector<8x128xf32>
    %96 = vector.extract_strided_slice %94 {offsets = [0, 128], sizes = [8, 128], strides = [1, 1]} : vector<8x256xf32> to vector<8x128xf32>
    %97 = vector.extract_strided_slice %83 {offsets = [0, 256], sizes = [8, 128], strides = [1, 1]} : vector<8x384xf32> to vector<8x128xf32>
    %98 = vector.extract_strided_slice %86 {offsets = [0, 256], sizes = [8, 128], strides = [1, 1]} : vector<8x384xf32> to vector<8x128xf32>
    %99 = arith.mulf %95, %98 : vector<8x128xf32>
    %100 = arith.addf %97, %99 : vector<8x128xf32>
    %101 = math.tanh %100 : vector<8x128xf32>
    %cst_37 = arith.constant 1.000000e+00 : f32
    %102 = vector.broadcast %cst_37 : f32 to vector<8x128xf32>
    %103 = arith.subf %102, %96 : vector<8x128xf32>
    %104 = arith.mulf %103, %101 : vector<8x128xf32>
    %105 = arith.mulf %96, %78 : vector<8x128xf32>
    %106 = arith.addf %104, %105 : vector<8x128xf32>
    %c4_i32_38 = arith.constant 4 : i32
    %107 = arith.muli %arg1, %c4_i32_38 : i32
    %108 = arith.addi %107, %c2_i32 : i32
    %c11_i32_39 = arith.constant 11 : i32
    %109 = arith.cmpi slt, %108, %c11_i32_39 : i32
    %110 = arith.select %109, %106, %78 : vector<8x128xf32>
    %c3_i32_40 = arith.constant 3 : i32
    %c3_i32_41 = arith.constant 3 : i32
    %111 = arith.subi %c3_i32_41, %c3_i32_40 : i32
    %c8_i32_42 = arith.constant 8 : i32
    %112 = arith.muli %111, %c8_i32_42 : i32
    %113 = tpu.assume_multiple %112, 8 : i32
    %114 = arith.index_cast %113 : i32 to index
    %c0_43 = arith.constant 0 : index
    %115 = vector.load %arg12[%114, %c0_43] : memref<32x384xf32, #tpu.memory_space<vmem>>, vector<8x384xf32>
    %c0_44 = arith.constant 0 : index
    %c0_45 = arith.constant 0 : index
    %116 = vector.load %arg4[%c0_44, %c0_45] : memref<128x384xf32, #tpu.memory_space<vmem>>, vector<128x384xf32>
    %cst_46 = arith.constant dense<0.000000e+00> : vector<8x384xf32>
    %117 = tpu.matmul %110, %116, %cst_46 {dimension_numbers = #tpu.dot_dimension_numbers<[1], [0], [0], [1], [0, 0, 1, 1], [], []>, precision = #tpu.contract_precision<fp32>} : vector<8x128xf32>, vector<128x384xf32>, vector<8x384xf32> -> vector<8x384xf32>
    %118 = arith.addf %117, %13 : vector<8x384xf32>
    %119 = vector.extract_strided_slice %115 {offsets = [0, 0], sizes = [8, 256], strides = [1, 1]} : vector<8x384xf32> to vector<8x256xf32>
    %120 = vector.extract_strided_slice %118 {offsets = [0, 0], sizes = [8, 256], strides = [1, 1]} : vector<8x384xf32> to vector<8x256xf32>
    %121 = arith.addf %119, %120 : vector<8x256xf32>
    %122 = arith.negf %121 : vector<8x256xf32>
    %123 = math.exp %122 : vector<8x256xf32>
    %cst_47 = arith.constant 1.000000e+00 : f32
    %124 = vector.broadcast %cst_47 : f32 to vector<8x256xf32>
    %125 = arith.addf %124, %123 : vector<8x256xf32>
    %126 = arith.divf %124, %125 : vector<8x256xf32>
    %127 = vector.extract_strided_slice %126 {offsets = [0, 0], sizes = [8, 128], strides = [1, 1]} : vector<8x256xf32> to vector<8x128xf32>
    %128 = vector.extract_strided_slice %126 {offsets = [0, 128], sizes = [8, 128], strides = [1, 1]} : vector<8x256xf32> to vector<8x128xf32>
    %129 = vector.extract_strided_slice %115 {offsets = [0, 256], sizes = [8, 128], strides = [1, 1]} : vector<8x384xf32> to vector<8x128xf32>
    %130 = vector.extract_strided_slice %118 {offsets = [0, 256], sizes = [8, 128], strides = [1, 1]} : vector<8x384xf32> to vector<8x128xf32>
    %131 = arith.mulf %127, %130 : vector<8x128xf32>
    %132 = arith.addf %129, %131 : vector<8x128xf32>
    %133 = math.tanh %132 : vector<8x128xf32>
    %cst_48 = arith.constant 1.000000e+00 : f32
    %134 = vector.broadcast %cst_48 : f32 to vector<8x128xf32>
    %135 = arith.subf %134, %128 : vector<8x128xf32>
    %136 = arith.mulf %135, %133 : vector<8x128xf32>
    %137 = arith.mulf %128, %110 : vector<8x128xf32>
    %138 = arith.addf %136, %137 : vector<8x128xf32>
    %c4_i32_49 = arith.constant 4 : i32
    %139 = arith.muli %arg1, %c4_i32_49 : i32
    %140 = arith.addi %139, %c3_i32_40 : i32
    %c11_i32_50 = arith.constant 11 : i32
    %141 = arith.cmpi slt, %140, %c11_i32_50 : i32
    %142 = arith.select %141, %138, %110 : vector<8x128xf32>
    %c4_i32_51 = arith.constant 4 : i32
    %c0_52 = arith.constant 0 : index
    %c0_53 = arith.constant 0 : index
    %143 = vector.load %arg13[%c0_52, %c0_53] : memref<8x128xf32, #tpu.memory_space<vmem>>, vector<8x128xf32>
    tpu.vector_store %arg13[%c0_52, %c0_53], %142 {strides = array<i32>} : memref<8x128xf32, #tpu.memory_space<vmem>>, vector<8x128xf32>,
    %c2_i32_54 = arith.constant 2 : i32
    %144 = arith.cmpi eq, %arg1, %c2_i32_54 : i32
    %145 = arith.extui %144 : i1 to i32
    %c0_i32_55 = arith.constant 0 : i32
    %146 = arith.cmpi ne, %145, %c0_i32_55 : i32
    scf.if %146 {
      %c0_56 = arith.constant 0 : index
      %c0_57 = arith.constant 0 : index
      %147 = vector.load %arg7[%c0_56, %c0_57] : memref<128x50xf32, #tpu.memory_space<vmem>>, vector<128x50xf32>
      %cst_58 = arith.constant dense<0.000000e+00> : vector<8x50xf32>
      %148 = tpu.matmul %142, %147, %cst_58 {dimension_numbers = #tpu.dot_dimension_numbers<[1], [0], [0], [1], [0, 0, 1, 1], [], []>, precision = #tpu.contract_precision<fp32>} : vector<8x128xf32>, vector<128x50xf32>, vector<8x50xf32> -> vector<8x50xf32>
      %c0_59 = arith.constant 0 : index
      %c0_60 = arith.constant 0 : index
      %149 = vector.load %arg8[%c0_59, %c0_60] : memref<1x50xf32, #tpu.memory_space<vmem>>, vector<1x50xf32>
      %150 = vector.broadcast %149 : vector<1x50xf32> to vector<8x50xf32>
      %151 = arith.addf %148, %150 : vector<8x50xf32>
      %152 = math.tanh %151 : vector<8x50xf32>
      %c0_61 = arith.constant 0 : index
      %c0_62 = arith.constant 0 : index
      %153 = vector.load %arg9[%c0_61, %c0_62] : memref<50x12xf32, #tpu.memory_space<vmem>>, vector<50x12xf32>
      %cst_63 = arith.constant dense<0.000000e+00> : vector<8x12xf32>
      %154 = tpu.matmul %152, %153, %cst_63 {dimension_numbers = #tpu.dot_dimension_numbers<[1], [0], [0], [1], [0, 0, 1, 1], [], []>, precision = #tpu.contract_precision<fp32>} : vector<8x50xf32>, vector<50x12xf32>, vector<8x12xf32> -> vector<8x12xf32>
      %c0_64 = arith.constant 0 : index
      %c0_65 = arith.constant 0 : index
      %155 = vector.load %arg10[%c0_64, %c0_65] : memref<1x12xf32, #tpu.memory_space<vmem>>, vector<1x12xf32>
      %156 = vector.broadcast %155 : vector<1x12xf32> to vector<8x12xf32>
      %157 = arith.addf %154, %156 : vector<8x12xf32>
      %c0_66 = arith.constant 0 : index
      %c0_67 = arith.constant 0 : index
      %158 = vector.load %arg11[%c0_66, %c0_67] : memref<8x12xf32, #tpu.memory_space<vmem>>, vector<8x12xf32>
      tpu.vector_store %arg11[%c0_66, %c0_67], %157 {strides = array<i32>} : memref<8x12xf32, #tpu.memory_space<vmem>>, vector<8x12xf32>,
    } else {
    }
    return
  }
  func.func @transform_0(%arg0: i32, %arg1: i32) -> (i32, i32, i32) {
    %c2_i32 = arith.constant 2 : i32
    %0 = arith.subi %c2_i32, %arg1 : i32
    %c0_i32 = arith.constant 0 : i32
    %c0_i32_0 = arith.constant 0 : i32
    return %0, %arg0, %c0_i32 : i32, i32, i32
  }
  func.func @transform_1(%arg0: i32, %arg1: i32) -> (i32, i32) {
    %c0_i32 = arith.constant 0 : i32
    %c0_i32_0 = arith.constant 0 : i32
    %c0_i32_1 = arith.constant 0 : i32
    return %c0_i32, %c0_i32_0 : i32, i32
  }
  func.func @transform_2(%arg0: i32, %arg1: i32) -> (i32, i32) {
    %c0_i32 = arith.constant 0 : i32
    %c0_i32_0 = arith.constant 0 : i32
    %c0_i32_1 = arith.constant 0 : i32
    return %c0_i32, %c0_i32_0 : i32, i32
  }
  func.func @transform_3(%arg0: i32, %arg1: i32) -> (i32, i32) {
    %c0_i32 = arith.constant 0 : i32
    %c0_i32_0 = arith.constant 0 : i32
    %c0_i32_1 = arith.constant 0 : i32
    return %c0_i32, %c0_i32_0 : i32, i32
  }
  func.func @transform_4(%arg0: i32, %arg1: i32) -> (i32, i32) {
    %c0_i32 = arith.constant 0 : i32
    %c0_i32_0 = arith.constant 0 : i32
    %c0_i32_1 = arith.constant 0 : i32
    return %c0_i32, %c0_i32_0 : i32, i32
  }
  func.func @transform_5(%arg0: i32, %arg1: i32) -> (i32, i32) {
    %c0_i32 = arith.constant 0 : i32
    %c0_i32_0 = arith.constant 0 : i32
    %c0_i32_1 = arith.constant 0 : i32
    return %c0_i32, %c0_i32_0 : i32, i32
  }
  func.func @transform_6(%arg0: i32, %arg1: i32) -> (i32, i32) {
    %c0_i32 = arith.constant 0 : i32
    %c0_i32_0 = arith.constant 0 : i32
    %c0_i32_1 = arith.constant 0 : i32
    return %c0_i32, %c0_i32_0 : i32, i32
  }
  func.func @transform_7(%arg0: i32, %arg1: i32) -> (i32, i32) {
    %c0_i32 = arith.constant 0 : i32
    %c0_i32_0 = arith.constant 0 : i32
    %c0_i32_1 = arith.constant 0 : i32
    return %c0_i32, %c0_i32_0 : i32, i32
  }
  func.func @transform_8(%arg0: i32, %arg1: i32) -> (i32, i32) {
    %c0_i32 = arith.constant 0 : i32
    %c0_i32_0 = arith.constant 0 : i32
    %c0_i32_1 = arith.constant 0 : i32
    return %c0_i32, %c0_i32_0 : i32, i32
  }
  func.func @transform_9(%arg0: i32, %arg1: i32) -> (i32, i32) {
    %c0_i32 = arith.constant 0 : i32
    %c0_i32_0 = arith.constant 0 : i32
    return %arg0, %c0_i32 : i32, i32
  }
}

</mosaic_0001>

<llo_original>
// kernel: tpu_custom_call.1
$region0: #{tpu_custom_call.1}
  #allocation0 [shape = 'u32[]', space=smem, size = 0x4, offset = 0x4, fixed_abs, tag = 'smem constant byte address 0x4 - core index']
  #allocation1 [shape = 'u32[144,128]{1,0:T(1,128)}', space=vmem, size = 0x12000, scoped, tag = 'internal scratch']
  #allocation2 [shape = 'f32[32,384]{1,0:T(8,128)}', space=vmem, size = 0xc000, scoped, tag = 'scratch operand']
  #allocation3 [shape = 'f32[8,128]{1,0:T(8,128)}', space=vmem, size = 0x1000, scoped, tag = 'scratch operand']
  %s0 = inlined_call_operand.vmem [shape: f32[12,8,4], index: 0, kind: input, shape index: {}]
  %s1 = inlined_call_operand.hbm [shape: f32[4,384], index: 1, kind: input, shape index: {}]
  %s2 = inlined_call_operand.vmem [shape: f32[128,384], index: 2, kind: input, shape index: {}]
  %s3 = inlined_call_operand.vmem [shape: f32[1,384], index: 3, kind: input, shape index: {}]
  %s4 = inlined_call_operand.vmem [shape: f32[1,384], index: 4, kind: input, shape index: {}]
  %s5 = inlined_call_operand.vmem [shape: f32[128,50], index: 5, kind: input, shape index: {}]
  %s6 = inlined_call_operand.vmem [shape: f32[1,50], index: 6, kind: input, shape index: {}]
  %s7 = inlined_call_operand.vmem [shape: f32[50,12], index: 7, kind: input, shape index: {}]
  %s8 = inlined_call_operand.vmem [shape: f32[1,12], index: 8, kind: input, shape index: {}]
  %s9 = inlined_call_operand.hbm [shape: f32[8,12], index: 9, kind: output, shape index: {}]
  %s10 = sld [smem:[#allocation0]]
  $region81: #{tpu_custom_call.1} parent=0
    _
  %s12 = ssub.s32 1, %s10
  %s13 = scalar_select 0, %s12, %s10
  $region1: #{tpu_custom_call.1} parent=0
    #allocation4 [shape = 'u8[6144]{0}', space=vmem, size = 0x1800, scoped, tag = 'input window, operand 1, single buffered']
    #allocation5 [shape = 's32[2]{0}', space=sflag, size = 0x8, scoped, tag = 'scoped memory for tpu_custom_call.1']
    #allocation6 [shape = 's32[2]{0}', space=sflag, size = 0x8, scoped, tag = 'scoped memory for tpu_custom_call.1']
    #allocation7 [shape = 'u8[4096]{0}', space=vmem, size = 0x1000, scoped, tag = 'output window, operand 0, single buffered']
    %14 = vsyncpa [#allocation5], 0
    %15 = vsyncpa [#allocation6], 0
    loop: start=0, step=1, limit=5
    $region2: #{tpu_custom_call.1} parent=1 // loop_pre_header
      _
    $region3: #{tpu_custom_call.1} parent=1 // loop_header
      %s17 = sphi 0, %s21
      %p18 = scmp.ge.s32.totalorder %s17, 5
      %s24 = sphi 0, %s36
      %s25 = sphi 0, %s32
      %s26 = sphi 0, %s24
      %s27 = sphi 0, %s25
      %s28 = sphi 0, %s26
      %s29 = sphi 0, %s27
      %s43 = sphi 0, %s45
      %s46 = sphi 0, %s43
      %s47 = sphi 0, %s46
      %s63 = sphi 0, %s47
      %s67 = sphi 0, %s67
      %s69 = sphi 0, %s67
      %s70 = sphi 0, %s69
      %s84 = sphi 0, %s70
      %s88 = sphi 0, %s88
      %s90 = sphi 0, %s88
      %s91 = sphi 0, %s90
      %s105 = sphi 0, %s91
      %s109 = sphi 0, %s109
      %s111 = sphi 0, %s109
      %s112 = sphi 0, %s111
      %s126 = sphi 0, %s112
      %s130 = sphi 0, %s130
      %s132 = sphi 0, %s130
      %s133 = sphi 0, %s132
      %s147 = sphi 0, %s133
      %s151 = sphi 0, %s151
      %s153 = sphi 0, %s151
      %s154 = sphi 0, %s153
      %s168 = sphi 0, %s154
      %s172 = sphi 0, %s172
      %s174 = sphi 0, %s172
      %s175 = sphi 0, %s174
      %s189 = sphi 0, %s175
      %s193 = sphi 0, %s193
      %s195 = sphi 0, %s193
      %s196 = sphi 0, %s195
      %s210 = sphi 0, %s196
      %s214 = sphi 0, %s214
      %s216 = sphi 0, %s214
      %s217 = sphi 0, %s216
      %s231 = sphi 0, %s217
      %s237 = sphi 0, %s239
      %s240 = sphi 0, %s237
      %s241 = sphi 0, %s240
      %s257 = sphi 0, %s241
    $region4: #{tpu_custom_call.1} parent=1 // loop_header_branch
      %20 = sbr.rel (%p18) target = $region8
    $region5: #{tpu_custom_call.1} parent=1 // loop_body
      %s22 = ssub.s32 %s17, 1
      %s23 = ssub.s32 %s17, 2
      %s30 = sadd.s32 1, %s25
      %p31 = scmp.ge.s32.totalorder %s30, 3
      %s32 = scalar_select %p31, 0, %s30
      %s33 = sadd.s32 1, %s24
      %s34 = scalar_select %p31, %s33, %s24
      %p35 = scmp.ge.s32.totalorder %s34, 1
      %s36 = scalar_select %p35, 0, %s34
      %s37 = ssub.s32 2, %s25
      %s38 = ssub.s32 2, %s32
      %s39 = ssub.s32 %s37, %s38
      %s40 = ssub.s32 %s24, %s36
      %s41 = sor.u32 %s39, %s40
      %p42 = scmp.eq.s32.totalorder %s41, 0
      %s44 = sadd.s32 %s43, 1
      %s45 = scalar_select %p42, %s43, %s44
      %p48 = pneg %p42
      %p49 = scmp.eq.s32.totalorder %s17, 2
      %p50 = por %p48, %p49
      %p51 = scmp.ne.s32.totalorder %s43, %s46
      %p52 = scmp.eq.s32.totalorder %s17, 0
      %p53 = por %p51, %p52
      %p54 = scmp.ne.s32.totalorder %s43, %s46
      %p55 = scmp.eq.s32.totalorder %s22, 2
      %p56 = por %p54, %p55
      %p57 = scmp.ne.s32.totalorder %s46, %s47
      %p58 = scmp.eq.s32.totalorder %s22, 0
      %p59 = por %p57, %p58
      %p60 = scmp.ne.s32.totalorder %s46, %s47
      %p61 = scmp.eq.s32.totalorder %s23, 2
      %p62 = por %p60, %p61
      %p64 = scmp.ne.s32.totalorder %s47, %s63
      %p65 = scmp.eq.s32.totalorder %s23, 0
      %p66 = por %p64, %p65
      %s68 = sadd.s32 %s67, 1
      %p71 = scmp.eq.s32.totalorder %s17, 2
      %p72 = scmp.ne.s32.totalorder %s67, %s69
      %p73 = scmp.eq.s32.totalorder %s17, 0
      %p74 = por %p72, %p73
      %p75 = scmp.ne.s32.totalorder %s67, %s69
      %p76 = scmp.eq.s32.totalorder %s22, 2
      %p77 = por %p75, %p76
      %p78 = scmp.ne.s32.totalorder %s69, %s70
      %p79 = scmp.eq.s32.totalorder %s22, 0
      %p80 = por %p78, %p79
      %p81 = scmp.ne.s32.totalorder %s69, %s70
      %p82 = scmp.eq.s32.totalorder %s23, 2
      %p83 = por %p81, %p82
      %p85 = scmp.ne.s32.totalorder %s70, %s84
      %p86 = scmp.eq.s32.totalorder %s23, 0
      %p87 = por %p85, %p86
      %s89 = sadd.s32 %s88, 1
      %p92 = scmp.eq.s32.totalorder %s17, 2
      %p93 = scmp.ne.s32.totalorder %s88, %s90
      %p94 = scmp.eq.s32.totalorder %s17, 0
      %p95 = por %p93, %p94
      %p96 = scmp.ne.s32.totalorder %s88, %s90
      %p97 = scmp.eq.s32.totalorder %s22, 2
      %p98 = por %p96, %p97
      %p99 = scmp.ne.s32.totalorder %s90, %s91
      %p100 = scmp.eq.s32.totalorder %s22, 0
      %p101 = por %p99, %p100
      %p102 = scmp.ne.s32.totalorder %s90, %s91
      %p103 = scmp.eq.s32.totalorder %s23, 2
      %p104 = por %p102, %p103
      %p106 = scmp.ne.s32.totalorder %s91, %s105
      %p107 = scmp.eq.s32.totalorder %s23, 0
      %p108 = por %p106, %p107
      %s110 = sadd.s32 %s109, 1
      %p113 = scmp.eq.s32.totalorder %s17, 2
      %p114 = scmp.ne.s32.totalorder %s109, %s111
      %p115 = scmp.eq.s32.totalorder %s17, 0
      %p116 = por %p114, %p115
      %p117 = scmp.ne.s32.totalorder %s109, %s111
      %p118 = scmp.eq.s32.totalorder %s22, 2
      %p119 = por %p117, %p118
      %p120 = scmp.ne.s32.totalorder %s111, %s112
      %p121 = scmp.eq.s32.totalorder %s22, 0
      %p122 = por %p120, %p121
      %p123 = scmp.ne.s32.totalorder %s111, %s112
      %p124 = scmp.eq.s32.totalorder %s23, 2
      %p125 = por %p123, %p124
      %p127 = scmp.ne.s32.totalorder %s112, %s126
      %p128 = scmp.eq.s32.totalorder %s23, 0
      %p129 = por %p127, %p128
      %s131 = sadd.s32 %s130, 1
      %p134 = scmp.eq.s32.totalorder %s17, 2
      %p135 = scmp.ne.s32.totalorder %s130, %s132
      %p136 = scmp.eq.s32.totalorder %s17, 0
      %p137 = por %p135, %p136
      %p138 = scmp.ne.s32.totalorder %s130, %s132
      %p139 = scmp.eq.s32.totalorder %s22, 2
      %p140 = por %p138, %p139
      %p141 = scmp.ne.s32.totalorder %s132, %s133
      %p142 = scmp.eq.s32.totalorder %s22, 0
      %p143 = por %p141, %p142
      %p144 = scmp.ne.s32.totalorder %s132, %s133
      %p145 = scmp.eq.s32.totalorder %s23, 2
      %p146 = por %p144, %p145
      %p148 = scmp.ne.s32.totalorder %s133, %s147
      %p149 = scmp.eq.s32.totalorder %s23, 0
      %p150 = por %p148, %p149
      %s152 = sadd.s32 %s151, 1
      %p155 = scmp.eq.s32.totalorder %s17, 2
      %p156 = scmp.ne.s32.totalorder %s151, %s153
      %p157 = scmp.eq.s32.totalorder %s17, 0
      %p158 = por %p156, %p157
      %p159 = scmp.ne.s32.totalorder %s151, %s153
      %p160 = scmp.eq.s32.totalorder %s22, 2
      %p161 = por %p159, %p160
      %p162 = scmp.ne.s32.totalorder %s153, %s154
      %p163 = scmp.eq.s32.totalorder %s22, 0
      %p164 = por %p162, %p163
      %p165 = scmp.ne.s32.totalorder %s153, %s154
      %p166 = scmp.eq.s32.totalorder %s23, 2
      %p167 = por %p165, %p166
      %p169 = scmp.ne.s32.totalorder %s154, %s168
      %p170 = scmp.eq.s32.totalorder %s23, 0
      %p171 = por %p169, %p170
      %s173 = sadd.s32 %s172, 1
      %p176 = scmp.eq.s32.totalorder %s17, 2
      %p177 = scmp.ne.s32.totalorder %s172, %s174
      %p178 = scmp.eq.s32.totalorder %s17, 0
      %p179 = por %p177, %p178
      %p180 = scmp.ne.s32.totalorder %s172, %s174
      %p181 = scmp.eq.s32.totalorder %s22, 2
      %p182 = por %p180, %p181
      %p183 = scmp.ne.s32.totalorder %s174, %s175
      %p184 = scmp.eq.s32.totalorder %s22, 0
      %p185 = por %p183, %p184
      %p186 = scmp.ne.s32.totalorder %s174, %s175
      %p187 = scmp.eq.s32.totalorder %s23, 2
      %p188 = por %p186, %p187
      %p190 = scmp.ne.s32.totalorder %s175, %s189
      %p191 = scmp.eq.s32.totalorder %s23, 0
      %p192 = por %p190, %p191
      %s194 = sadd.s32 %s193, 1
      %p197 = scmp.eq.s32.totalorder %s17, 2
      %p198 = scmp.ne.s32.totalorder %s193, %s195
      %p199 = scmp.eq.s32.totalorder %s17, 0
      %p200 = por %p198, %p199
      %p201 = scmp.ne.s32.totalorder %s193, %s195
      %p202 = scmp.eq.s32.totalorder %s22, 2
      %p203 = por %p201, %p202
      %p204 = scmp.ne.s32.totalorder %s195, %s196
      %p205 = scmp.eq.s32.totalorder %s22, 0
      %p206 = por %p204, %p205
      %p207 = scmp.ne.s32.totalorder %s195, %s196
      %p208 = scmp.eq.s32.totalorder %s23, 2
      %p209 = por %p207, %p208
      %p211 = scmp.ne.s32.totalorder %s196, %s210
      %p212 = scmp.eq.s32.totalorder %s23, 0
      %p213 = por %p211, %p212
      %s215 = sadd.s32 %s214, 1
      %p218 = scmp.eq.s32.totalorder %s17, 2
      %p219 = scmp.ne.s32.totalorder %s214, %s216
      %p220 = scmp.eq.s32.totalorder %s17, 0
      %p221 = por %p219, %p220
      %p222 = scmp.ne.s32.totalorder %s214, %s216
      %p223 = scmp.eq.s32.totalorder %s22, 2
      %p224 = por %p222, %p223
      %p225 = scmp.ne.s32.totalorder %s216, %s217
      %p226 = scmp.eq.s32.totalorder %s22, 0
      %p227 = por %p225, %p226
      %p228 = scmp.ne.s32.totalorder %s216, %s217
      %p229 = scmp.eq.s32.totalorder %s23, 2
      %p230 = por %p228, %p229
      %p232 = scmp.ne.s32.totalorder %s217, %s231
      %p233 = scmp.eq.s32.totalorder %s23, 0
      %p234 = por %p232, %p233
      %s235 = ssub.s32 %s24, %s36
      %p236 = scmp.eq.s32.totalorder %s235, 0
      %s238 = sadd.s32 %s237, 1
      %s239 = scalar_select %p236, %s237, %s238
      %p242 = pneg %p236
      %p243 = scmp.eq.s32.totalorder %s17, 2
      %p244 = por %p242, %p243
      %p245 = scmp.ne.s32.totalorder %s237, %s240
      %p246 = scmp.eq.s32.totalorder %s17, 0
      %p247 = por %p245, %p246
      %p248 = scmp.ne.s32.totalorder %s237, %s240
      %p249 = scmp.eq.s32.totalorder %s22, 2
      %p250 = por %p248, %p249
      %p251 = scmp.ne.s32.totalorder %s240, %s241
      %p252 = scmp.eq.s32.totalorder %s22, 0
      %p253 = por %p251, %p252
      %p254 = scmp.ne.s32.totalorder %s240, %s241
      %p255 = scmp.eq.s32.totalorder %s23, 2
      %p256 = por %p254, %p255
      %p258 = scmp.ne.s32.totalorder %s241, %s257
      %p259 = scmp.eq.s32.totalorder %s23, 0
      %p260 = por %p258, %p259
      %p261 = scmp.le.s32.totalorder 1, %s17
      %p262 = scmp.lt.s32.totalorder %s17, 4
      %p263 = pnand %p261, %p262
      %p264 = pneg %p263
      // Predicated region
      $region9: #{tpu_custom_call.1} parent=5 // pred_check
        _
      $region10: #{tpu_custom_call.1} parent=5 // pred_check_branch
        %266 = sbr.rel (%p263) target = $region12
      $region11: #{tpu_custom_call.1} parent=5 // pred_region
        %s267 = ssub.s32 %s17, 1
        // Predicated region
        $region13: #{tpu_custom_call.1} parent=11 // pred_check
          %p268 = pneg %p80
        $region14: #{tpu_custom_call.1} parent=11 // pred_check_branch
          %270 = sbr.rel (%p268) target = $region16
        $region15: #{tpu_custom_call.1} parent=11 // pred_region
          %s272 = ssub.s32 192, 192
          %273 = vsyncadd [#allocation5], %s272
          %s275 = sshll.u32 [#allocation4], 4
          %s276 = int_to_ptr.vmem [resolvable:$true] %s275
          %278 = dma.hbm_to_vmem [thread:$0]  %s1, 192, %s276, [#allocation5]
        $region16: #{tpu_custom_call.1} parent=11 // pred_fallthru
          _
        // Predicated region
        $region17: #{tpu_custom_call.1} parent=11 // pred_check
          %p279 = pneg %p101
        $region18: #{tpu_custom_call.1} parent=11 // pred_check_branch
          %281 = sbr.rel (%p279) target = $region20
        $region19: #{tpu_custom_call.1} parent=11 // pred_region
          _
        $region20: #{tpu_custom_call.1} parent=11 // pred_fallthru
          _
        // Predicated region
        $region21: #{tpu_custom_call.1} parent=11 // pred_check
          %p282 = pneg %p122
        $region22: #{tpu_custom_call.1} parent=11 // pred_check_branch
          %284 = sbr.rel (%p282) target = $region24
        $region23: #{tpu_custom_call.1} parent=11 // pred_region
          _
        $region24: #{tpu_custom_call.1} parent=11 // pred_fallthru
          _
        // Predicated region
        $region25: #{tpu_custom_call.1} parent=11 // pred_check
          %p285 = pneg %p143
        $region26: #{tpu_custom_call.1} parent=11 // pred_check_branch
          %287 = sbr.rel (%p285) target = $region28
        $region27: #{tpu_custom_call.1} parent=11 // pred_region
          _
        $region28: #{tpu_custom_call.1} parent=11 // pred_fallthru
          _
        // Predicated region
        $region29: #{tpu_custom_call.1} parent=11 // pred_check
          %p288 = pneg %p164
        $region30: #{tpu_custom_call.1} parent=11 // pred_check_branch
          %290 = sbr.rel (%p288) target = $region32
        $region31: #{tpu_custom_call.1} parent=11 // pred_region
          _
        $region32: #{tpu_custom_call.1} parent=11 // pred_fallthru
          _
        // Predicated region
        $region33: #{tpu_custom_call.1} parent=11 // pred_check
          %p291 = pneg %p185
        $region34: #{tpu_custom_call.1} parent=11 // pred_check_branch
          %293 = sbr.rel (%p291) target = $region36
        $region35: #{tpu_custom_call.1} parent=11 // pred_region
          _
        $region36: #{tpu_custom_call.1} parent=11 // pred_fallthru
          _
        // Predicated region
        $region37: #{tpu_custom_call.1} parent=11 // pred_check
          %p294 = pneg %p206
        $region38: #{tpu_custom_call.1} parent=11 // pred_check_branch
          %296 = sbr.rel (%p294) target = $region40
        $region39: #{tpu_custom_call.1} parent=11 // pred_region
          _
        $region40: #{tpu_custom_call.1} parent=11 // pred_fallthru
          _
        // Predicated region
        $region41: #{tpu_custom_call.1} parent=11 // pred_check
          %p297 = pneg %p227
        $region42: #{tpu_custom_call.1} parent=11 // pred_check_branch
          %299 = sbr.rel (%p297) target = $region44
        $region43: #{tpu_custom_call.1} parent=11 // pred_region
          _
        $region44: #{tpu_custom_call.1} parent=11 // pred_fallthru
          _
      $region12: #{tpu_custom_call.1} parent=5 // pred_fallthru
        _
      %p300 = scmp.lt.s32.totalorder %s17, 3
      // Predicated region
      $region45: #{tpu_custom_call.1} parent=5 // pred_check
        %p301 = pneg %p300
      $region46: #{tpu_custom_call.1} parent=5 // pred_check_branch
        %303 = sbr.rel (%p301) target = $region48
      $region47: #{tpu_custom_call.1} parent=5 // pred_region
        // Predicated region
        $region49: #{tpu_custom_call.1} parent=47 // pred_check
          %p304 = pneg %p53
        $region50: #{tpu_custom_call.1} parent=47 // pred_check_branch
          %306 = sbr.rel (%p304) target = $region52
        $region51: #{tpu_custom_call.1} parent=47 // pred_region
          %s307 = ssub.s32 2, %s25
          %s308 = smul.u32 4, %s307
          %p309 = scmp.lt.s32.totalorder %s308, 11
          %s310 = scalar_select %p309, %s308, 11
          %p311 = scmp.lt.s32.totalorder %s24, 0
          %s312 = scalar_select %p311, %s24, 0
          %s313 = sadd.s32 %s312, %s310
          %s314 = smul.addr %s313, 8
          %s315 = scalar_lea.vmem %s0, %s314
          %s316 = ssub.s32 2, %s25
          %s317 = smul.u32 4, %s316
        $region52: #{tpu_custom_call.1} parent=47 // pred_fallthru
          _
      $region48: #{tpu_custom_call.1} parent=5 // pred_fallthru
        _
      %p318 = scmp.le.s32.totalorder 1, %s17
      %p319 = scmp.lt.s32.totalorder %s17, 4
      %p320 = pnand %p318, %p319
      %p321 = pneg %p320
      // Predicated region
      $region53: #{tpu_custom_call.1} parent=5 // pred_check
        _
      $region54: #{tpu_custom_call.1} parent=5 // pred_check_branch
        %323 = sbr.rel (%p320) target = $region56
      $region55: #{tpu_custom_call.1} parent=5 // pred_region
        %s324 = ssub.s32 %s17, 1
        // Predicated region
        $region57: #{tpu_custom_call.1} parent=55 // pred_check
          %p325 = pneg %p80
        $region58: #{tpu_custom_call.1} parent=55 // pred_check_branch
          %327 = sbr.rel (%p325) target = $region60
        $region59: #{tpu_custom_call.1} parent=55 // pred_region
          %328 = dma.done [#allocation5], 192
        $region60: #{tpu_custom_call.1} parent=55 // pred_fallthru
          _
        %s329 = ssub.s32 2, %s27
        %s330 = smul.u32 4, %s329
        %p331 = scmp.lt.s32.totalorder %s330, 11
        %s332 = scalar_select %p331, %s330, 11
        %p333 = scmp.lt.s32.totalorder %s26, 0
        %s334 = scalar_select %p333, %s26, 0
        %s335 = sadd.s32 %s334, %s332
        %s336 = smul.addr %s335, 8
        %s337 = scalar_lea.vmem %s0, %s336
        %p338 = pneg %p59
        %p339 = pneg %p56
        %p340 = pneg %p80
        %p341 = pneg %p77
        %p342 = pneg %p101
        %p343 = pneg %p98
        %p344 = pneg %p122
        %p345 = pneg %p119
        %p346 = pneg %p143
        %p347 = pneg %p140
        %p348 = pneg %p164
        %p349 = pneg %p161
        %p350 = pneg %p185
        %p351 = pneg %p182
        %p352 = pneg %p206
        %p353 = pneg %p203
        %p354 = pneg %p227
        %p355 = pneg %p224
        %p356 = pneg %p253
        %p357 = pneg %p250
        %s358 = ssub.s32 2, %s27
        %s359 = smul.u32 4, %s358
        %p360 = scmp.lt.s32.totalorder %s359, 11
        %s361 = scalar_select %p360, %s359, 11
        %p362 = scmp.lt.s32.totalorder %s26, 0
        %s363 = scalar_select %p362, %s26, 0
        %s364 = sadd.s32 %s363, %s361
        %s365 = smul.addr %s364, 8
        %s366 = scalar_lea.vmem %s0, %s365
        %s367 = ssub.s32 2, %s27
        %s368 = smul.u32 4, %s367
        %p369 = scmp.eq.s32.totalorder %s27, 0
        // Predicated region
        $region61: #{tpu_custom_call.1} parent=55 // pred_check
          %p370 = pneg %p369
        $region62: #{tpu_custom_call.1} parent=55 // pred_check_branch
          %372 = sbr.rel (%p370) target = $region64
        $region63: #{tpu_custom_call.1} parent=55 // pred_region
          %373 = vst [vmem:[#allocation3] sm:$0xff] 0.0
        $region64: #{tpu_custom_call.1} parent=55 // pred_fallthru
          _
        %v374 = vld [vmem:[%s366] sm:$0xff]
        %v375 = vld [vmem:[%s366 + $0x8] sm:$0xff]
        %v376 = vld [vmem:[%s366 + $0x10] sm:$0xff]
        %v377 = vld [vmem:[%s366 + $0x18] sm:$0xff]
        %v378 = vld [vmem:[#allocation4] sm:$0xff]
        %v379 = vld [vmem:[#allocation4 + $0x8] sm:$0xf]
        %v380 = vld [vmem:[%s3] sm:$0x7]
        %v382 = vlaneseq
        %v383 = vshrl.u32 %v382, 7
        %v384 = vsub.s32 0, %v383
        %v385 = vrot.slane %v380, %v384
        %v386 = vlaneseq
        %v387 = vshrl.u32 %v386, 7
        %v388 = vsub.s32 1, %v387
        %v389 = vrot.slane %v380, %v388
        %v390 = vlaneseq
        %v391 = vshrl.u32 %v390, 7
        %v392 = vsub.s32 2, %v391
        %v393 = vrot.slane %v380, %v392
        %v399 = vcombine.high %v378, %v378
        %vm400 = vcmask 31744
        %v402 = vsel %vm400, %v374, 0
        %v405 = vsel %vm400, %v375, 0
        %v408 = vsel %vm400, %v376, 0
        %v411 = vsel %vm400, %v377, 0
        %vm413 = vcmask 1043456
        %v414 = vsel %vm413, %v378, 0
        %v416 = vsel %vm413, %v399, 0
        %v418 = vsel %vm413, %v379, 0
        %v420 = vand.u32 %v416, 4294901760
        %421 = vmatprep.subr.mxu0 %v420
        %v422 = vand.u32 %v414, 4294901760
        %423 = vmatpush1.msra.mxu0 %v422
        %424 = vmatprep.subr.mxu0 0.0
        %425 = vmatpush1.msra.mxu0 0.0
        %426 = vmatprep.subr.mxu0 0.0
        %427 = vmatpush1.msra.mxu0 0.0
        %428 = vmatprep.subr.mxu0 0.0
        %429 = vmatpush1.msra.mxu0 0.0
        %430 = vmatprep.subr.mxu0 0.0
        %431 = vmatpush1.msra.mxu0 0.0
        %432 = vmatprep.subr.mxu0 0.0
        %433 = vmatpush1.msra.mxu0 0.0
        %434 = vmatprep.subr.mxu0 0.0
        %435 = vmatpush1.msra.mxu0 0.0
        %436 = vmatprep.subr.mxu0 0.0
        %437 = vmatpush1.msra.mxu0 0.0
        %438 = vmatprep.subr.mxu0 0.0
        %439 = vmatpush1.msra.mxu0 0.0
        %440 = vmatprep.subr.mxu0 0.0
        %441 = vmatpush1.msra.mxu0 0.0
        %442 = vmatprep.subr.mxu0 0.0
        %443 = vmatpush1.msra.mxu0 0.0
        %444 = vmatprep.subr.mxu0 0.0
        %445 = vmatpush1.msra.mxu0 0.0
        %446 = vmatprep.subr.mxu0 0.0
        %447 = vmatpush1.msra.mxu0 0.0
        %448 = vmatprep.subr.mxu0 0.0
        %449 = vmatpush1.msra.mxu0 0.0
        %450 = vmatprep.subr.mxu0 0.0
        %451 = vmatpush1.msra.mxu0 0.0
        %452 = vmatprep.subr.mxu0 0.0
        %453 = vmatpush1.msra.mxu0 0.0
        %454 = vmatprep.subr.mxu0 0.0
        %455 = vmatpush1.msra.mxu0 0.0
        %456 = vmatprep.subr.mxu0 0.0
        %457 = vmatpush1.msra.mxu0 0.0
        %458 = vmatprep.subr.mxu0 0.0
        %459 = vmatpush1.msra.mxu0 0.0
        %460 = vmatprep.subr.mxu0 0.0
        %461 = vmatpush1.msra.mxu0 0.0
        %462 = vmatprep.subr.mxu0 0.0
        %463 = vmatpush1.msra.mxu0 0.0
        %464 = vmatprep.subr.mxu0 0.0
        %465 = vmatpush1.msra.mxu0 0.0
        %466 = vmatprep.subr.mxu0 0.0
        %467 = vmatpush1.msra.mxu0 0.0
        %468 = vmatprep.subr.mxu0 0.0
        %469 = vmatpush1.msra.mxu0 0.0
        %470 = vmatprep.subr.mxu0 0.0
        %471 = vmatpush1.msra.mxu0 0.0
        %472 = vmatprep.subr.mxu0 0.0
        %473 = vmatpush1.msra.mxu0 0.0
        %474 = vmatprep.subr.mxu0 0.0
        %475 = vmatpush1.msra.mxu0 0.0
        %476 = vmatprep.subr.mxu0 0.0
        %477 = vmatpush1.msra.mxu0 0.0
        %478 = vmatprep.subr.mxu0 0.0
        %479 = vmatpush1.msra.mxu0 0.0
        %480 = vmatprep.subr.mxu0 0.0
        %481 = vmatpush1.msra.mxu0 0.0
        %482 = vmatprep.subr.mxu0 0.0
        %483 = vmatpush1.msra.mxu0 0.0
        %484 = vmatprep.subr.mxu0 0.0
        %485 = vmatpush1.msra.mxu0 0.0
        %486 = vmatprep.mubr.f32.mxu0 0.0
        %v487 = vand.u32 %v402, 4294901760
        %v488 = vsub.f32 %v402, %v487
        %v489 = vand.u32 %v488, 4294901760
        %v490 = vsub.f32 %v488, %v489
        %v491 = vand.u32 %v490, 4294901760
        %492 = vmatmul.mubr.f32.gmra.mrb[0].mxu0 %v491
        %v493 = vpop.f32.mrb[0].mxu0
        %v494 = vadd.f32 %v385, %v493
        %v495 = vpop.f32.mrb[0].mxu0
        %v496 = vadd.f32 %v389, %v495
        %497 = vmatprep.mubr.f32.mxu0 0.0
        %v498 = vand.u32 %v405, 4294901760
        %v499 = vsub.f32 %v405, %v498
        %v500 = vand.u32 %v499, 4294901760
        %v501 = vsub.f32 %v499, %v500
        %v502 = vand.u32 %v501, 4294901760
        %503 = vmatmul.mubr.f32.gmra.mrb[0].mxu0 %v502
        %v504 = vpop.f32.mrb[0].mxu0
        %v505 = vadd.f32 %v385, %v504
        %v506 = vpop.f32.mrb[0].mxu0
        %v507 = vadd.f32 %v389, %v506
        %508 = vmatprep.mubr.f32.mxu0 0.0
        %v509 = vand.u32 %v408, 4294901760
        %v510 = vsub.f32 %v408, %v509
        %v511 = vand.u32 %v510, 4294901760
        %v512 = vsub.f32 %v510, %v511
        %v513 = vand.u32 %v512, 4294901760
        %514 = vmatmul.mubr.f32.gmra.mrb[0].mxu0 %v513
        %v515 = vpop.f32.mrb[0].mxu0
        %v516 = vadd.f32 %v385, %v515
        %v517 = vpop.f32.mrb[0].mxu0
        %v518 = vadd.f32 %v389, %v517
        %519 = vmatprep.mubr.f32.mxu0 0.0
        %v520 = vand.u32 %v411, 4294901760
        %v521 = vsub.f32 %v411, %v520
        %v522 = vand.u32 %v521, 4294901760
        %v523 = vsub.f32 %v521, %v522
        %v524 = vand.u32 %v523, 4294901760
        %525 = vmatmul.mubr.f32.gmra.mrb[0].mxu0 %v524
        %v526 = vpop.f32.mrb[0].mxu0
        %v527 = vadd.f32 %v385, %v526
        %v528 = vpop.f32.mrb[0].mxu0
        %v529 = vadd.f32 %v389, %v528
        %530 = vdwg.mxu0
        %v531 = vand.u32 %v416, 4294901760
        %v532 = vsub.f32 %v416, %v531
        %v533 = vand.u32 %v532, 4294901760
        %v534 = vsub.f32 %v532, %v533
        %v535 = vand.u32 %v534, 4294901760
        %536 = vmatprep.subr.mxu0 %v535
        %v537 = vand.u32 %v414, 4294901760
        %v538 = vsub.f32 %v414, %v537
        %v539 = vand.u32 %v538, 4294901760
        %v540 = vsub.f32 %v538, %v539
        %v541 = vand.u32 %v540, 4294901760
        %542 = vmatpush1.msra.mxu0 %v541
        %543 = vmatprep.subr.mxu0 0.0
        %544 = vmatpush1.msra.mxu0 0.0
        %545 = vmatprep.subr.mxu0 0.0
        %546 = vmatpush1.msra.mxu0 0.0
        %547 = vmatprep.subr.mxu0 0.0
        %548 = vmatpush1.msra.mxu0 0.0
        %549 = vmatprep.subr.mxu0 0.0
        %550 = vmatpush1.msra.mxu0 0.0
        %551 = vmatprep.subr.mxu0 0.0
        %552 = vmatpush1.msra.mxu0 0.0
        %553 = vmatprep.subr.mxu0 0.0
        %554 = vmatpush1.msra.mxu0 0.0
        %555 = vmatprep.subr.mxu0 0.0
        %556 = vmatpush1.msra.mxu0 0.0
        %557 = vmatprep.subr.mxu0 0.0
        %558 = vmatpush1.msra.mxu0 0.0
        %559 = vmatprep.subr.mxu0 0.0
        %560 = vmatpush1.msra.mxu0 0.0
        %561 = vmatprep.subr.mxu0 0.0
        %562 = vmatpush1.msra.mxu0 0.0
        %563 = vmatprep.subr.mxu0 0.0
        %564 = vmatpush1.msra.mxu0 0.0
        %565 = vmatprep.subr.mxu0 0.0
        %566 = vmatpush1.msra.mxu0 0.0
        %567 = vmatprep.subr.mxu0 0.0
        %568 = vmatpush1.msra.mxu0 0.0
        %569 = vmatprep.subr.mxu0 0.0
        %570 = vmatpush1.msra.mxu0 0.0
        %571 = vmatprep.subr.mxu0 0.0
        %572 = vmatpush1.msra.mxu0 0.0
        %573 = vmatprep.subr.mxu0 0.0
        %574 = vmatpush1.msra.mxu0 0.0
        %575 = vmatprep.subr.mxu0 0.0
        %576 = vmatpush1.msra.mxu0 0.0
        %577 = vmatprep.subr.mxu0 0.0
        %578 = vmatpush1.msra.mxu0 0.0
        %579 = vmatprep.subr.mxu0 0.0
        %580 = vmatpush1.msra.mxu0 0.0
        %581 = vmatprep.subr.mxu0 0.0
        %582 = vmatpush1.msra.mxu0 0.0
        %583 = vmatprep.subr.mxu0 0.0
        %584 = vmatpush1.msra.mxu0 0.0
        %585 = vmatprep.subr.mxu0 0.0
        %586 = vmatpush1.msra.mxu0 0.0
        %587 = vmatprep.subr.mxu0 0.0
        %588 = vmatpush1.msra.mxu0 0.0
        %589 = vmatprep.subr.mxu0 0.0
        %590 = vmatpush1.msra.mxu0 0.0
        %591 = vmatprep.subr.mxu0 0.0
        %592 = vmatpush1.msra.mxu0 0.0
        %593 = vmatprep.subr.mxu0 0.0
        %594 = vmatpush1.msra.mxu0 0.0
        %595 = vmatprep.subr.mxu0 0.0
        %596 = vmatpush1.msra.mxu0 0.0
        %597 = vmatprep.subr.mxu0 0.0
        %598 = vmatpush1.msra.mxu0 0.0
        %599 = vmatprep.subr.mxu0 0.0
        %600 = vmatpush1.msra.mxu0 0.0
        %601 = vmatprep.subr.mxu0 0.0
        %602 = vmatpush1.msra.mxu0 0.0
        %603 = vmatprep.subr.mxu0 0.0
        %604 = vmatpush1.msra.mxu0 0.0
        %605 = vmatprep.mubr.f32.mxu0 0.0
        %v606 = vand.u32 %v402, 4294901760
        %607 = vmatmul.mubr.f32.gmra.mrb[0].mxu0 %v606
        %v608 = vpop.f32.mrb[0].mxu0
        %v609 = vadd.f32 %v494, %v608
        %v610 = vpop.f32.mrb[0].mxu0
        %v611 = vadd.f32 %v496, %v610
        %612 = vmatprep.mubr.f32.mxu0 0.0
        %v613 = vand.u32 %v405, 4294901760
        %614 = vmatmul.mubr.f32.gmra.mrb[0].mxu0 %v613
        %v615 = vpop.f32.mrb[0].mxu0
        %v616 = vadd.f32 %v505, %v615
        %v617 = vpop.f32.mrb[0].mxu0
        %v618 = vadd.f32 %v507, %v617
        %619 = vmatprep.mubr.f32.mxu0 0.0
        %v620 = vand.u32 %v408, 4294901760
        %621 = vmatmul.mubr.f32.gmra.mrb[0].mxu0 %v620
        %v622 = vpop.f32.mrb[0].mxu0
        %v623 = vadd.f32 %v516, %v622
        %v624 = vpop.f32.mrb[0].mxu0
        %v625 = vadd.f32 %v518, %v624
        %626 = vmatprep.mubr.f32.mxu0 0.0
        %v627 = vand.u32 %v411, 4294901760
        %628 = vmatmul.mubr.f32.gmra.mrb[0].mxu0 %v627
        %v629 = vpop.f32.mrb[0].mxu0
        %v630 = vadd.f32 %v527, %v629
        %v631 = vpop.f32.mrb[0].mxu0
        %v632 = vadd.f32 %v529, %v631
        %633 = vdwg.mxu0
        %v634 = vand.u32 %v416, 4294901760
        %v635 = vsub.f32 %v416, %v634
        %636 = vmatprep.subr.mxu0 %v635
        %v637 = vand.u32 %v414, 4294901760
        %v638 = vsub.f32 %v414, %v637
        %639 = vmatpush1.msra.mxu0 %v638
        %640 = vmatprep.subr.mxu0 0.0
        %641 = vmatpush1.msra.mxu0 0.0
        %642 = vmatprep.subr.mxu0 0.0
        %643 = vmatpush1.msra.mxu0 0.0
        %644 = vmatprep.subr.mxu0 0.0
        %645 = vmatpush1.msra.mxu0 0.0
        %646 = vmatprep.subr.mxu0 0.0
        %647 = vmatpush1.msra.mxu0 0.0
        %648 = vmatprep.subr.mxu0 0.0
        %649 = vmatpush1.msra.mxu0 0.0
        %650 = vmatprep.subr.mxu0 0.0
        %651 = vmatpush1.msra.mxu0 0.0
        %652 = vmatprep.subr.mxu0 0.0
        %653 = vmatpush1.msra.mxu0 0.0
        %654 = vmatprep.subr.mxu0 0.0
        %655 = vmatpush1.msra.mxu0 0.0
        %656 = vmatprep.subr.mxu0 0.0
        %657 = vmatpush1.msra.mxu0 0.0
        %658 = vmatprep.subr.mxu0 0.0
        %659 = vmatpush1.msra.mxu0 0.0
        %660 = vmatprep.subr.mxu0 0.0
        %661 = vmatpush1.msra.mxu0 0.0
        %662 = vmatprep.subr.mxu0 0.0
        %663 = vmatpush1.msra.mxu0 0.0
        %664 = vmatprep.subr.mxu0 0.0
        %665 = vmatpush1.msra.mxu0 0.0
        %666 = vmatprep.subr.mxu0 0.0
        %667 = vmatpush1.msra.mxu0 0.0
        %668 = vmatprep.subr.mxu0 0.0
        %669 = vmatpush1.msra.mxu0 0.0
        %670 = vmatprep.subr.mxu0 0.0
        %671 = vmatpush1.msra.mxu0 0.0
        %672 = vmatprep.subr.mxu0 0.0
        %673 = vmatpush1.msra.mxu0 0.0
        %674 = vmatprep.subr.mxu0 0.0
        %675 = vmatpush1.msra.mxu0 0.0
        %676 = vmatprep.subr.mxu0 0.0
        %677 = vmatpush1.msra.mxu0 0.0
        %678 = vmatprep.subr.mxu0 0.0
        %679 = vmatpush1.msra.mxu0 0.0
        %680 = vmatprep.subr.mxu0 0.0
        %681 = vmatpush1.msra.mxu0 0.0
        %682 = vmatprep.subr.mxu0 0.0
        %683 = vmatpush1.msra.mxu0 0.0
        %684 = vmatprep.subr.mxu0 0.0
        %685 = vmatpush1.msra.mxu0 0.0
        %686 = vmatprep.subr.mxu0 0.0
        %687 = vmatpush1.msra.mxu0 0.0
        %688 = vmatprep.subr.mxu0 0.0
        %689 = vmatpush1.msra.mxu0 0.0
        %690 = vmatprep.subr.mxu0 0.0
        %691 = vmatpush1.msra.mxu0 0.0
        %692 = vmatprep.subr.mxu0 0.0
        %693 = vmatpush1.msra.mxu0 0.0
        %694 = vmatprep.subr.mxu0 0.0
        %695 = vmatpush1.msra.mxu0 0.0
        %696 = vmatprep.subr.mxu0 0.0
        %697 = vmatpush1.msra.mxu0 0.0
        %698 = vmatprep.subr.mxu0 0.0
        %699 = vmatpush1.msra.mxu0 0.0
        %700 = vmatprep.subr.mxu0 0.0
        %701 = vmatpush1.msra.mxu0 0.0
        %702 = vmatprep.mubr.f32.mxu0 0.0
        %v703 = vand.u32 %v402, 4294901760
        %v704 = vsub.f32 %v402, %v703
        %705 = vmatmul.mubr.f32.gmra.mrb[0].mxu0 %v704
        %v706 = vpop.f32.mrb[0].mxu0
        %v707 = vadd.f32 %v609, %v706
        %v708 = vpop.f32.mrb[0].mxu0
        %v709 = vadd.f32 %v611, %v708
        %710 = vmatprep.mubr.f32.mxu0 0.0
        %v711 = vand.u32 %v405, 4294901760
        %v712 = vsub.f32 %v405, %v711
        %713 = vmatmul.mubr.f32.gmra.mrb[0].mxu0 %v712
        %v714 = vpop.f32.mrb[0].mxu0
        %v715 = vadd.f32 %v616, %v714
        %v716 = vpop.f32.mrb[0].mxu0
        %v717 = vadd.f32 %v618, %v716
        %718 = vmatprep.mubr.f32.mxu0 0.0
        %v719 = vand.u32 %v408, 4294901760
        %v720 = vsub.f32 %v408, %v719
        %721 = vmatmul.mubr.f32.gmra.mrb[0].mxu0 %v720
        %v722 = vpop.f32.mrb[0].mxu0
        %v723 = vadd.f32 %v623, %v722
        %v724 = vpop.f32.mrb[0].mxu0
        %v725 = vadd.f32 %v625, %v724
        %726 = vmatprep.mubr.f32.mxu0 0.0
        %v727 = vand.u32 %v411, 4294901760
        %v728 = vsub.f32 %v411, %v727
        %729 = vmatmul.mubr.f32.gmra.mrb[0].mxu0 %v728
        %v730 = vpop.f32.mrb[0].mxu0
        %v731 = vadd.f32 %v630, %v730
        %v732 = vpop.f32.mrb[0].mxu0
        %v733 = vadd.f32 %v632, %v732
        %734 = vdwg.mxu0
        %v735 = vand.u32 %v416, 4294901760
        %736 = vmatprep.subr.mxu0 %v735
        %v737 = vand.u32 %v414, 4294901760
        %738 = vmatpush1.msra.mxu0 %v737
        %739 = vmatprep.subr.mxu0 0.0
        %740 = vmatpush1.msra.mxu0 0.0
        %741 = vmatprep.subr.mxu0 0.0
        %742 = vmatpush1.msra.mxu0 0.0
        %743 = vmatprep.subr.mxu0 0.0
        %744 = vmatpush1.msra.mxu0 0.0
        %745 = vmatprep.subr.mxu0 0.0
        %746 = vmatpush1.msra.mxu0 0.0
        %747 = vmatprep.subr.mxu0 0.0
        %748 = vmatpush1.msra.mxu0 0.0
        %749 = vmatprep.subr.mxu0 0.0
        %750 = vmatpush1.msra.mxu0 0.0
        %751 = vmatprep.subr.mxu0 0.0
        %752 = vmatpush1.msra.mxu0 0.0
        %753 = vmatprep.subr.mxu0 0.0
        %754 = vmatpush1.msra.mxu0 0.0
        %755 = vmatprep.subr.mxu0 0.0
        %756 = vmatpush1.msra.mxu0 0.0
        %757 = vmatprep.subr.mxu0 0.0
        %758 = vmatpush1.msra.mxu0 0.0
        %759 = vmatprep.subr.mxu0 0.0
        %760 = vmatpush1.msra.mxu0 0.0
        %761 = vmatprep.subr.mxu0 0.0
        %762 = vmatpush1.msra.mxu0 0.0
        %763 = vmatprep.subr.mxu0 0.0
        %764 = vmatpush1.msra.mxu0 0.0
        %765 = vmatprep.subr.mxu0 0.0
        %766 = vmatpush1.msra.mxu0 0.0
        %767 = vmatprep.subr.mxu0 0.0
        %768 = vmatpush1.msra.mxu0 0.0
        %769 = vmatprep.subr.mxu0 0.0
        %770 = vmatpush1.msra.mxu0 0.0
        %771 = vmatprep.subr.mxu0 0.0
        %772 = vmatpush1.msra.mxu0 0.0
        %773 = vmatprep.subr.mxu0 0.0
        %774 = vmatpush1.msra.mxu0 0.0
        %775 = vmatprep.subr.mxu0 0.0
        %776 = vmatpush1.msra.mxu0 0.0
        %777 = vmatprep.subr.mxu0 0.0
        %778 = vmatpush1.msra.mxu0 0.0
        %779 = vmatprep.subr.mxu0 0.0
        %780 = vmatpush1.msra.mxu0 0.0
        %781 = vmatprep.subr.mxu0 0.0
        %782 = vmatpush1.msra.mxu0 0.0
        %783 = vmatprep.subr.mxu0 0.0
        %784 = vmatpush1.msra.mxu0 0.0
        %785 = vmatprep.subr.mxu0 0.0
        %786 = vmatpush1.msra.mxu0 0.0
        %787 = vmatprep.subr.mxu0 0.0
        %788 = vmatpush1.msra.mxu0 0.0
        %789 = vmatprep.subr.mxu0 0.0
        %790 = vmatpush1.msra.mxu0 0.0
        %791 = vmatprep.subr.mxu0 0.0
        %792 = vmatpush1.msra.mxu0 0.0
        %793 = vmatprep.subr.mxu0 0.0
        %794 = vmatpush1.msra.mxu0 0.0
        %795 = vmatprep.subr.mxu0 0.0
        %796 = vmatpush1.msra.mxu0 0.0
        %797 = vmatprep.subr.mxu0 0.0
        %798 = vmatpush1.msra.mxu0 0.0
        %799 = vmatprep.subr.mxu0 0.0
        %800 = vmatpush1.msra.mxu0 0.0
        %801 = vmatprep.mubr.f32.mxu0 0.0
        %v802 = vand.u32 %v402, 4294901760
        %v803 = vsub.f32 %v402, %v802
        %v804 = vand.u32 %v803, 4294901760
        %805 = vmatmul.mubr.f32.gmra.mrb[0].mxu0 %v804
        %v806 = vpop.f32.mrb[0].mxu0
        %v807 = vadd.f32 %v707, %v806
        %v808 = vpop.f32.mrb[0].mxu0
        %v809 = vadd.f32 %v709, %v808
        %810 = vmatprep.mubr.f32.mxu0 0.0
        %v811 = vand.u32 %v405, 4294901760
        %v812 = vsub.f32 %v405, %v811
        %v813 = vand.u32 %v812, 4294901760
        %814 = vmatmul.mubr.f32.gmra.mrb[0].mxu0 %v813
        %v815 = vpop.f32.mrb[0].mxu0
        %v816 = vadd.f32 %v715, %v815
        %v817 = vpop.f32.mrb[0].mxu0
        %v818 = vadd.f32 %v717, %v817
        %819 = vmatprep.mubr.f32.mxu0 0.0
        %v820 = vand.u32 %v408, 4294901760
        %v821 = vsub.f32 %v408, %v820
        %v822 = vand.u32 %v821, 4294901760
        %823 = vmatmul.mubr.f32.gmra.mrb[0].mxu0 %v822
        %v824 = vpop.f32.mrb[0].mxu0
        %v825 = vadd.f32 %v723, %v824
        %v826 = vpop.f32.mrb[0].mxu0
        %v827 = vadd.f32 %v725, %v826
        %828 = vmatprep.mubr.f32.mxu0 0.0
        %v829 = vand.u32 %v411, 4294901760
        %v830 = vsub.f32 %v411, %v829
        %v831 = vand.u32 %v830, 4294901760
        %832 = vmatmul.mubr.f32.gmra.mrb[0].mxu0 %v831
        %v833 = vpop.f32.mrb[0].mxu0
        %v834 = vadd.f32 %v731, %v833
        %v835 = vpop.f32.mrb[0].mxu0
        %v836 = vadd.f32 %v733, %v835
        %837 = vdwg.mxu0
        %v838 = vand.u32 %v416, 4294901760
        %v839 = vsub.f32 %v416, %v838
        %v840 = vand.u32 %v839, 4294901760
        %841 = vmatprep.subr.mxu0 %v840
        %v842 = vand.u32 %v414, 4294901760
        %v843 = vsub.f32 %v414, %v842
        %v844 = vand.u32 %v843, 4294901760
        %845 = vmatpush1.msra.mxu0 %v844
        %846 = vmatprep.subr.mxu0 0.0
        %847 = vmatpush1.msra.mxu0 0.0
        %848 = vmatprep.subr.mxu0 0.0
        %849 = vmatpush1.msra.mxu0 0.0
        %850 = vmatprep.subr.mxu0 0.0
        %851 = vmatpush1.msra.mxu0 0.0
        %852 = vmatprep.subr.mxu0 0.0
        %853 = vmatpush1.msra.mxu0 0.0
        %854 = vmatprep.subr.mxu0 0.0
        %855 = vmatpush1.msra.mxu0 0.0
        %856 = vmatprep.subr.mxu0 0.0
        %857 = vmatpush1.msra.mxu0 0.0
        %858 = vmatprep.subr.mxu0 0.0
        %859 = vmatpush1.msra.mxu0 0.0
        %860 = vmatprep.subr.mxu0 0.0
        %861 = vmatpush1.msra.mxu0 0.0
        %862 = vmatprep.subr.mxu0 0.0
        %863 = vmatpush1.msra.mxu0 0.0
        %864 = vmatprep.subr.mxu0 0.0
        %865 = vmatpush1.msra.mxu0 0.0
        %866 = vmatprep.subr.mxu0 0.0
        %867 = vmatpush1.msra.mxu0 0.0
        %868 = vmatprep.subr.mxu0 0.0
        %869 = vmatpush1.msra.mxu0 0.0
        %870 = vmatprep.subr.mxu0 0.0
        %871 = vmatpush1.msra.mxu0 0.0
        %872 = vmatprep.subr.mxu0 0.0
        %873 = vmatpush1.msra.mxu0 0.0
        %874 = vmatprep.subr.mxu0 0.0
        %875 = vmatpush1.msra.mxu0 0.0
        %876 = vmatprep.subr.mxu0 0.0
        %877 = vmatpush1.msra.mxu0 0.0
        %878 = vmatprep.subr.mxu0 0.0
        %879 = vmatpush1.msra.mxu0 0.0
        %880 = vmatprep.subr.mxu0 0.0
        %881 = vmatpush1.msra.mxu0 0.0
        %882 = vmatprep.subr.mxu0 0.0
        %883 = vmatpush1.msra.mxu0 0.0
        %884 = vmatprep.subr.mxu0 0.0
        %885 = vmatpush1.msra.mxu0 0.0
        %886 = vmatprep.subr.mxu0 0.0
        %887 = vmatpush1.msra.mxu0 0.0
        %888 = vmatprep.subr.mxu0 0.0
        %889 = vmatpush1.msra.mxu0 0.0
        %890 = vmatprep.subr.mxu0 0.0
        %891 = vmatpush1.msra.mxu0 0.0
        %892 = vmatprep.subr.mxu0 0.0
        %893 = vmatpush1.msra.mxu0 0.0
        %894 = vmatprep.subr.mxu0 0.0
        %895 = vmatpush1.msra.mxu0 0.0
        %896 = vmatprep.subr.mxu0 0.0
        %897 = vmatpush1.msra.mxu0 0.0
        %898 = vmatprep.subr.mxu0 0.0
        %899 = vmatpush1.msra.mxu0 0.0
        %900 = vmatprep.subr.mxu0 0.0
        %901 = vmatpush1.msra.mxu0 0.0
        %902 = vmatprep.subr.mxu0 0.0
        %903 = vmatpush1.msra.mxu0 0.0
        %904 = vmatprep.subr.mxu0 0.0
        %905 = vmatpush1.msra.mxu0 0.0
        %906 = vmatprep.subr.mxu0 0.0
        %907 = vmatpush1.msra.mxu0 0.0
        %908 = vmatprep.mubr.f32.mxu0 0.0
        %v909 = vand.u32 %v402, 4294901760
        %910 = vmatmul.mubr.f32.gmra.mrb[0].mxu0 %v909
        %v911 = vpop.f32.mrb[0].mxu0
        %v912 = vadd.f32 %v807, %v911
        %v913 = vpop.f32.mrb[0].mxu0
        %v914 = vadd.f32 %v809, %v913
        %915 = vmatprep.mubr.f32.mxu0 0.0
        %v916 = vand.u32 %v405, 4294901760
        %917 = vmatmul.mubr.f32.gmra.mrb[0].mxu0 %v916
        %v918 = vpop.f32.mrb[0].mxu0
        %v919 = vadd.f32 %v816, %v918
        %v920 = vpop.f32.mrb[0].mxu0
        %v921 = vadd.f32 %v818, %v920
        %922 = vmatprep.mubr.f32.mxu0 0.0
        %v923 = vand.u32 %v408, 4294901760
        %924 = vmatmul.mubr.f32.gmra.mrb[0].mxu0 %v923
        %v925 = vpop.f32.mrb[0].mxu0
        %v926 = vadd.f32 %v825, %v925
        %v927 = vpop.f32.mrb[0].mxu0
        %v928 = vadd.f32 %v827, %v927
        %929 = vmatprep.mubr.f32.mxu0 0.0
        %v930 = vand.u32 %v411, 4294901760
        %931 = vmatmul.mubr.f32.gmra.mrb[0].mxu0 %v930
        %v932 = vpop.f32.mrb[0].mxu0
        %v933 = vadd.f32 %v834, %v932
        %v934 = vpop.f32.mrb[0].mxu0
        %v935 = vadd.f32 %v836, %v934
        %936 = vdwg.mxu0
        %v937 = vand.u32 %v416, 4294901760
        %938 = vmatprep.subr.mxu0 %v937
        %v939 = vand.u32 %v414, 4294901760
        %940 = vmatpush1.msra.mxu0 %v939
        %941 = vmatprep.subr.mxu0 0.0
        %942 = vmatpush1.msra.mxu0 0.0
        %943 = vmatprep.subr.mxu0 0.0
        %944 = vmatpush1.msra.mxu0 0.0
        %945 = vmatprep.subr.mxu0 0.0
        %946 = vmatpush1.msra.mxu0 0.0
        %947 = vmatprep.subr.mxu0 0.0
        %948 = vmatpush1.msra.mxu0 0.0
        %949 = vmatprep.subr.mxu0 0.0
        %950 = vmatpush1.msra.mxu0 0.0
        %951 = vmatprep.subr.mxu0 0.0
        %952 = vmatpush1.msra.mxu0 0.0
        %953 = vmatprep.subr.mxu0 0.0
        %954 = vmatpush1.msra.mxu0 0.0
        %955 = vmatprep.subr.mxu0 0.0
        %956 = vmatpush1.msra.mxu0 0.0
        %957 = vmatprep.subr.mxu0 0.0
        %958 = vmatpush1.msra.mxu0 0.0
        %959 = vmatprep.subr.mxu0 0.0
        %960 = vmatpush1.msra.mxu0 0.0
        %961 = vmatprep.subr.mxu0 0.0
        %962 = vmatpush1.msra.mxu0 0.0
        %963 = vmatprep.subr.mxu0 0.0
        %964 = vmatpush1.msra.mxu0 0.0
        %965 = vmatprep.subr.mxu0 0.0
        %966 = vmatpush1.msra.mxu0 0.0
        %967 = vmatprep.subr.mxu0 0.0
        %968 = vmatpush1.msra.mxu0 0.0
        %969 = vmatprep.subr.mxu0 0.0
        %970 = vmatpush1.msra.mxu0 0.0
        %971 = vmatprep.subr.mxu0 0.0
        %972 = vmatpush1.msra.mxu0 0.0
        %973 = vmatprep.subr.mxu0 0.0
        %974 = vmatpush1.msra.mxu0 0.0
        %975 = vmatprep.subr.mxu0 0.0
        %976 = vmatpush1.msra.mxu0 0.0
        %977 = vmatprep.subr.mxu0 0.0
        %978 = vmatpush1.msra.mxu0 0.0
        %979 = vmatprep.subr.mxu0 0.0
        %980 = vmatpush1.msra.mxu0 0.0
        %981 = vmatprep.subr.mxu0 0.0
        %982 = vmatpush1.msra.mxu0 0.0
        %983 = vmatprep.subr.mxu0 0.0
        %984 = vmatpush1.msra.mxu0 0.0
        %985 = vmatprep.subr.mxu0 0.0
        %986 = vmatpush1.msra.mxu0 0.0
        %987 = vmatprep.subr.mxu0 0.0
        %988 = vmatpush1.msra.mxu0 0.0
        %989 = vmatprep.subr.mxu0 0.0
        %990 = vmatpush1.msra.mxu0 0.0
        %991 = vmatprep.subr.mxu0 0.0
        %992 = vmatpush1.msra.mxu0 0.0
        %993 = vmatprep.subr.mxu0 0.0
        %994 = vmatpush1.msra.mxu0 0.0
        %995 = vmatprep.subr.mxu0 0.0
        %996 = vmatpush1.msra.mxu0 0.0
        %997 = vmatprep.subr.mxu0 0.0
        %998 = vmatpush1.msra.mxu0 0.0
        %999 = vmatprep.subr.mxu0 0.0
        %1000 = vmatpush1.msra.mxu0 0.0
        %1001 = vmatprep.subr.mxu0 0.0
        %1002 = vmatpush1.msra.mxu0 0.0
        %1003 = vmatprep.mubr.f32.mxu0 0.0
        %v1004 = vand.u32 %v402, 4294901760
        %1005 = vmatmul.mubr.f32.gmra.mrb[0].mxu0 %v1004
        %v1006 = vpop.f32.mrb[0].mxu0
        %v1007 = vadd.f32 %v912, %v1006
        %v1008 = vpop.f32.mrb[0].mxu0
        %v1009 = vadd.f32 %v914, %v1008
        %1010 = vmatprep.mubr.f32.mxu0 0.0
        %v1011 = vand.u32 %v405, 4294901760
        %1012 = vmatmul.mubr.f32.gmra.mrb[0].mxu0 %v1011
        %v1013 = vpop.f32.mrb[0].mxu0
        %v1014 = vadd.f32 %v919, %v1013
        %v1015 = vpop.f32.mrb[0].mxu0
        %v1016 = vadd.f32 %v921, %v1015
        %1017 = vmatprep.mubr.f32.mxu0 0.0
        %v1018 = vand.u32 %v408, 4294901760
        %1019 = vmatmul.mubr.f32.gmra.mrb[0].mxu0 %v1018
        %v1020 = vpop.f32.mrb[0].mxu0
        %v1021 = vadd.f32 %v926, %v1020
        %v1022 = vpop.f32.mrb[0].mxu0
        %v1023 = vadd.f32 %v928, %v1022
        %1024 = vmatprep.mubr.f32.mxu0 0.0
        %v1025 = vand.u32 %v411, 4294901760
        %1026 = vmatmul.mubr.f32.gmra.mrb[0].mxu0 %v1025
        %v1027 = vpop.f32.mrb[0].mxu0
        %v1028 = vadd.f32 %v933, %v1027
        %v1029 = vpop.f32.mrb[0].mxu0
        %v1030 = vadd.f32 %v935, %v1029
        %1031 = vdwg.mxu0
        %1032 = vmatprep.subr.mxu0 0.0
        %v1033 = vand.u32 %v418, 4294901760
        %1034 = vmatpush1.msra.mxu0 %v1033
        %1035 = vmatprep.subr.mxu0 0.0
        %1036 = vmatpush1.msra.mxu0 0.0
        %1037 = vmatprep.subr.mxu0 0.0
        %1038 = vmatpush1.msra.mxu0 0.0
        %1039 = vmatprep.subr.mxu0 0.0
        %1040 = vmatpush1.msra.mxu0 0.0
        %1041 = vmatprep.subr.mxu0 0.0
        %1042 = vmatpush1.msra.mxu0 0.0
        %1043 = vmatprep.subr.mxu0 0.0
        %1044 = vmatpush1.msra.mxu0 0.0
        %1045 = vmatprep.subr.mxu0 0.0
        %1046 = vmatpush1.msra.mxu0 0.0
        %1047 = vmatprep.subr.mxu0 0.0
        %1048 = vmatpush1.msra.mxu0 0.0
        %1049 = vmatprep.subr.mxu0 0.0
        %1050 = vmatpush1.msra.mxu0 0.0
        %1051 = vmatprep.subr.mxu0 0.0
        %1052 = vmatpush1.msra.mxu0 0.0
        %1053 = vmatprep.subr.mxu0 0.0
        %1054 = vmatpush1.msra.mxu0 0.0
        %1055 = vmatprep.subr.mxu0 0.0
        %1056 = vmatpush1.msra.mxu0 0.0
        %1057 = vmatprep.subr.mxu0 0.0
        %1058 = vmatpush1.msra.mxu0 0.0
        %1059 = vmatprep.subr.mxu0 0.0
        %1060 = vmatpush1.msra.mxu0 0.0
        %1061 = vmatprep.subr.mxu0 0.0
        %1062 = vmatpush1.msra.mxu0 0.0
        %1063 = vmatprep.subr.mxu0 0.0
        %1064 = vmatpush1.msra.mxu0 0.0
        %1065 = vmatprep.subr.mxu0 0.0
        %1066 = vmatpush1.msra.mxu0 0.0
        %1067 = vmatprep.subr.mxu0 0.0
        %1068 = vmatpush1.msra.mxu0 0.0
        %1069 = vmatprep.subr.mxu0 0.0
        %1070 = vmatpush1.msra.mxu0 0.0
        %1071 = vmatprep.subr.mxu0 0.0
        %1072 = vmatpush1.msra.mxu0 0.0
        %1073 = vmatprep.subr.mxu0 0.0
        %1074 = vmatpush1.msra.mxu0 0.0
        %1075 = vmatprep.subr.mxu0 0.0
        %1076 = vmatpush1.msra.mxu0 0.0
        %1077 = vmatprep.subr.mxu0 0.0
        %1078 = vmatpush1.msra.mxu0 0.0
        %1079 = vmatprep.subr.mxu0 0.0
        %1080 = vmatpush1.msra.mxu0 0.0
        %1081 = vmatprep.subr.mxu0 0.0
        %1082 = vmatpush1.msra.mxu0 0.0
        %1083 = vmatprep.subr.mxu0 0.0
        %1084 = vmatpush1.msra.mxu0 0.0
        %1085 = vmatprep.subr.mxu0 0.0
        %1086 = vmatpush1.msra.mxu0 0.0
        %1087 = vmatprep.subr.mxu0 0.0
        %1088 = vmatpush1.msra.mxu0 0.0
        %1089 = vmatprep.subr.mxu0 0.0
        %1090 = vmatpush1.msra.mxu0 0.0
        %1091 = vmatprep.subr.mxu0 0.0
        %1092 = vmatpush1.msra.mxu0 0.0
        %1093 = vmatprep.subr.mxu0 0.0
        %1094 = vmatpush1.msra.mxu0 0.0
        %1095 = vmatprep.subr.mxu0 0.0
        %1096 = vmatpush1.msra.mxu0 0.0
        %1097 = vmatprep.mubr.f32.mxu0 0.0
        %v1098 = vand.u32 %v402, 4294901760
        %v1099 = vsub.f32 %v402, %v1098
        %v1100 = vand.u32 %v1099, 4294901760
        %v1101 = vsub.f32 %v1099, %v1100
        %v1102 = vand.u32 %v1101, 4294901760
        %1103 = vmatmul.mubr.f32.gmra.mrb[0].mxu0 %v1102
        %v1104 = vpop.f32.mrb[0].mxu0
        %v1105 = vadd.f32 %v393, %v1104
        %v1106 = vpop.f32.mrb[0].mxu0
        %1107 = vmatprep.mubr.f32.mxu0 0.0
        %v1108 = vand.u32 %v405, 4294901760
        %v1109 = vsub.f32 %v405, %v1108
        %v1110 = vand.u32 %v1109, 4294901760
        %v1111 = vsub.f32 %v1109, %v1110
        %v1112 = vand.u32 %v1111, 4294901760
        %1113 = vmatmul.mubr.f32.gmra.mrb[0].mxu0 %v1112
        %v1114 = vpop.f32.mrb[0].mxu0
        %v1115 = vadd.f32 %v393, %v1114
        %v1116 = vpop.f32.mrb[0].mxu0
        %1117 = vmatprep.mubr.f32.mxu0 0.0
        %v1118 = vand.u32 %v408, 4294901760
        %v1119 = vsub.f32 %v408, %v1118
        %v1120 = vand.u32 %v1119, 4294901760
        %v1121 = vsub.f32 %v1119, %v1120
        %v1122 = vand.u32 %v1121, 4294901760
        %1123 = vmatmul.mubr.f32.gmra.mrb[0].mxu0 %v1122
        %v1124 = vpop.f32.mrb[0].mxu0
        %v1125 = vadd.f32 %v393, %v1124
        %v1126 = vpop.f32.mrb[0].mxu0
        %1127 = vmatprep.mubr.f32.mxu0 0.0
        %v1128 = vand.u32 %v411, 4294901760
        %v1129 = vsub.f32 %v411, %v1128
        %v1130 = vand.u32 %v1129, 4294901760
        %v1131 = vsub.f32 %v1129, %v1130
        %v1132 = vand.u32 %v1131, 4294901760
        %1133 = vmatmul.mubr.f32.gmra.mrb[0].mxu0 %v1132
        %v1134 = vpop.f32.mrb[0].mxu0
        %v1135 = vadd.f32 %v393, %v1134
        %v1136 = vpop.f32.mrb[0].mxu0
        %1137 = vdwg.mxu0
        %1138 = vmatprep.subr.mxu0 0.0
        %v1139 = vand.u32 %v418, 4294901760
        %v1140 = vsub.f32 %v418, %v1139
        %v1141 = vand.u32 %v1140, 4294901760
        %v1142 = vsub.f32 %v1140, %v1141
        %v1143 = vand.u32 %v1142, 4294901760
        %1144 = vmatpush1.msra.mxu0 %v1143
        %1145 = vmatprep.subr.mxu0 0.0
        %1146 = vmatpush1.msra.mxu0 0.0
        %1147 = vmatprep.subr.mxu0 0.0
        %1148 = vmatpush1.msra.mxu0 0.0
        %1149 = vmatprep.subr.mxu0 0.0
        %1150 = vmatpush1.msra.mxu0 0.0
        %1151 = vmatprep.subr.mxu0 0.0
        %1152 = vmatpush1.msra.mxu0 0.0
        %1153 = vmatprep.subr.mxu0 0.0
        %1154 = vmatpush1.msra.mxu0 0.0
        %1155 = vmatprep.subr.mxu0 0.0
        %1156 = vmatpush1.msra.mxu0 0.0
        %1157 = vmatprep.subr.mxu0 0.0
        %1158 = vmatpush1.msra.mxu0 0.0
        %1159 = vmatprep.subr.mxu0 0.0
        %1160 = vmatpush1.msra.mxu0 0.0
        %1161 = vmatprep.subr.mxu0 0.0
        %1162 = vmatpush1.msra.mxu0 0.0
        %1163 = vmatprep.subr.mxu0 0.0
        %1164 = vmatpush1.msra.mxu0 0.0
        %1165 = vmatprep.subr.mxu0 0.0
        %1166 = vmatpush1.msra.mxu0 0.0
        %1167 = vmatprep.subr.mxu0 0.0
        %1168 = vmatpush1.msra.mxu0 0.0
        %1169 = vmatprep.subr.mxu0 0.0
        %1170 = vmatpush1.msra.mxu0 0.0
        %1171 = vmatprep.subr.mxu0 0.0
        %1172 = vmatpush1.msra.mxu0 0.0
        %1173 = vmatprep.subr.mxu0 0.0
        %1174 = vmatpush1.msra.mxu0 0.0
        %1175 = vmatprep.subr.mxu0 0.0
        %1176 = vmatpush1.msra.mxu0 0.0
        %1177 = vmatprep.subr.mxu0 0.0
        %1178 = vmatpush1.msra.mxu0 0.0
        %1179 = vmatprep.subr.mxu0 0.0
        %1180 = vmatpush1.msra.mxu0 0.0
        %1181 = vmatprep.subr.mxu0 0.0
        %1182 = vmatpush1.msra.mxu0 0.0
        %1183 = vmatprep.subr.mxu0 0.0
        %1184 = vmatpush1.msra.mxu0 0.0
        %1185 = vmatprep.subr.mxu0 0.0
        %1186 = vmatpush1.msra.mxu0 0.0
        %1187 = vmatprep.subr.mxu0 0.0
        %1188 = vmatpush1.msra.mxu0 0.0
        %1189 = vmatprep.subr.mxu0 0.0
        %1190 = vmatpush1.msra.mxu0 0.0
        %1191 = vmatprep.subr.mxu0 0.0
        %1192 = vmatpush1.msra.mxu0 0.0
        %1193 = vmatprep.subr.mxu0 0.0
        %1194 = vmatpush1.msra.mxu0 0.0
        %1195 = vmatprep.subr.mxu0 0.0
        %1196 = vmatpush1.msra.mxu0 0.0
        %1197 = vmatprep.subr.mxu0 0.0
        %1198 = vmatpush1.msra.mxu0 0.0
        %1199 = vmatprep.subr.mxu0 0.0
        %1200 = vmatpush1.msra.mxu0 0.0
        %1201 = vmatprep.subr.mxu0 0.0
        %1202 = vmatpush1.msra.mxu0 0.0
        %1203 = vmatprep.subr.mxu0 0.0
        %1204 = vmatpush1.msra.mxu0 0.0
        %1205 = vmatprep.subr.mxu0 0.0
        %1206 = vmatpush1.msra.mxu0 0.0
        %1207 = vmatprep.mubr.f32.mxu0 0.0
        %v1208 = vand.u32 %v402, 4294901760
        %1209 = vmatmul.mubr.f32.gmra.mrb[0].mxu0 %v1208
        %v1210 = vpop.f32.mrb[0].mxu0
        %v1211 = vadd.f32 %v1105, %v1210
        %v1212 = vpop.f32.mrb[0].mxu0
        %1213 = vmatprep.mubr.f32.mxu0 0.0
        %v1214 = vand.u32 %v405, 4294901760
        %1215 = vmatmul.mubr.f32.gmra.mrb[0].mxu0 %v1214
        %v1216 = vpop.f32.mrb[0].mxu0
        %v1217 = vadd.f32 %v1115, %v1216
        %v1218 = vpop.f32.mrb[0].mxu0
        %1219 = vmatprep.mubr.f32.mxu0 0.0
        %v1220 = vand.u32 %v408, 4294901760
        %1221 = vmatmul.mubr.f32.gmra.mrb[0].mxu0 %v1220
        %v1222 = vpop.f32.mrb[0].mxu0
        %v1223 = vadd.f32 %v1125, %v1222
        %v1224 = vpop.f32.mrb[0].mxu0
        %1225 = vmatprep.mubr.f32.mxu0 0.0
        %v1226 = vand.u32 %v411, 4294901760
        %1227 = vmatmul.mubr.f32.gmra.mrb[0].mxu0 %v1226
        %v1228 = vpop.f32.mrb[0].mxu0
        %v1229 = vadd.f32 %v1135, %v1228
        %v1230 = vpop.f32.mrb[0].mxu0
        %1231 = vdwg.mxu0
        %1232 = vmatprep.subr.mxu0 0.0
        %v1233 = vand.u32 %v418, 4294901760
        %v1234 = vsub.f32 %v418, %v1233
        %1235 = vmatpush1.msra.mxu0 %v1234
        %1236 = vmatprep.subr.mxu0 0.0
        %1237 = vmatpush1.msra.mxu0 0.0
        %1238 = vmatprep.subr.mxu0 0.0
        %1239 = vmatpush1.msra.mxu0 0.0
        %1240 = vmatprep.subr.mxu0 0.0
        %1241 = vmatpush1.msra.mxu0 0.0
        %1242 = vmatprep.subr.mxu0 0.0
        %1243 = vmatpush1.msra.mxu0 0.0
        %1244 = vmatprep.subr.mxu0 0.0
        %1245 = vmatpush1.msra.mxu0 0.0
        %1246 = vmatprep.subr.mxu0 0.0
        %1247 = vmatpush1.msra.mxu0 0.0
        %1248 = vmatprep.subr.mxu0 0.0
        %1249 = vmatpush1.msra.mxu0 0.0
        %1250 = vmatprep.subr.mxu0 0.0
        %1251 = vmatpush1.msra.mxu0 0.0
        %1252 = vmatprep.subr.mxu0 0.0
        %1253 = vmatpush1.msra.mxu0 0.0
        %1254 = vmatprep.subr.mxu0 0.0
        %1255 = vmatpush1.msra.mxu0 0.0
        %1256 = vmatprep.subr.mxu0 0.0
        %1257 = vmatpush1.msra.mxu0 0.0
        %1258 = vmatprep.subr.mxu0 0.0
        %1259 = vmatpush1.msra.mxu0 0.0
        %1260 = vmatprep.subr.mxu0 0.0
        %1261 = vmatpush1.msra.mxu0 0.0
        %1262 = vmatprep.subr.mxu0 0.0
        %1263 = vmatpush1.msra.mxu0 0.0
        %1264 = vmatprep.subr.mxu0 0.0
        %1265 = vmatpush1.msra.mxu0 0.0
        %1266 = vmatprep.subr.mxu0 0.0
        %1267 = vmatpush1.msra.mxu0 0.0
        %1268 = vmatprep.subr.mxu0 0.0
        %1269 = vmatpush1.msra.mxu0 0.0
        %1270 = vmatprep.subr.mxu0 0.0
        %1271 = vmatpush1.msra.mxu0 0.0
        %1272 = vmatprep.subr.mxu0 0.0
        %1273 = vmatpush1.msra.mxu0 0.0
        %1274 = vmatprep.subr.mxu0 0.0
        %1275 = vmatpush1.msra.mxu0 0.0
        %1276 = vmatprep.subr.mxu0 0.0
        %1277 = vmatpush1.msra.mxu0 0.0
        %1278 = vmatprep.subr.mxu0 0.0
        %1279 = vmatpush1.msra.mxu0 0.0
        %1280 = vmatprep.subr.mxu0 0.0
        %1281 = vmatpush1.msra.mxu0 0.0
        %1282 = vmatprep.subr.mxu0 0.0
        %1283 = vmatpush1.msra.mxu0 0.0
        %1284 = vmatprep.subr.mxu0 0.0
        %1285 = vmatpush1.msra.mxu0 0.0
        %1286 = vmatprep.subr.mxu0 0.0
        %1287 = vmatpush1.msra.mxu0 0.0
        %1288 = vmatprep.subr.mxu0 0.0
        %1289 = vmatpush1.msra.mxu0 0.0
        %1290 = vmatprep.subr.mxu0 0.0
        %1291 = vmatpush1.msra.mxu0 0.0
        %1292 = vmatprep.subr.mxu0 0.0
        %1293 = vmatpush1.msra.mxu0 0.0
        %1294 = vmatprep.subr.mxu0 0.0
        %1295 = vmatpush1.msra.mxu0 0.0
        %1296 = vmatprep.subr.mxu0 0.0
        %1297 = vmatpush1.msra.mxu0 0.0
        %1298 = vmatprep.mubr.f32.mxu0 0.0
        %v1299 = vand.u32 %v402, 4294901760
        %v1300 = vsub.f32 %v402, %v1299
        %1301 = vmatmul.mubr.f32.gmra.mrb[0].mxu0 %v1300
        %v1302 = vpop.f32.mrb[0].mxu0
        %v1303 = vadd.f32 %v1211, %v1302
        %v1304 = vpop.f32.mrb[0].mxu0
        %1305 = vmatprep.mubr.f32.mxu0 0.0
        %v1306 = vand.u32 %v405, 4294901760
        %v1307 = vsub.f32 %v405, %v1306
        %1308 = vmatmul.mubr.f32.gmra.mrb[0].mxu0 %v1307
        %v1309 = vpop.f32.mrb[0].mxu0
        %v1310 = vadd.f32 %v1217, %v1309
        %v1311 = vpop.f32.mrb[0].mxu0
        %1312 = vmatprep.mubr.f32.mxu0 0.0
        %v1313 = vand.u32 %v408, 4294901760
        %v1314 = vsub.f32 %v408, %v1313
        %1315 = vmatmul.mubr.f32.gmra.mrb[0].mxu0 %v1314
        %v1316 = vpop.f32.mrb[0].mxu0
        %v1317 = vadd.f32 %v1223, %v1316
        %v1318 = vpop.f32.mrb[0].mxu0
        %1319 = vmatprep.mubr.f32.mxu0 0.0
        %v1320 = vand.u32 %v411, 4294901760
        %v1321 = vsub.f32 %v411, %v1320
        %1322 = vmatmul.mubr.f32.gmra.mrb[0].mxu0 %v1321
        %v1323 = vpop.f32.mrb[0].mxu0
        %v1324 = vadd.f32 %v1229, %v1323
        %v1325 = vpop.f32.mrb[0].mxu0
        %1326 = vdwg.mxu0
        %1327 = vmatprep.subr.mxu0 0.0
        %v1328 = vand.u32 %v418, 4294901760
        %1329 = vmatpush1.msra.mxu0 %v1328
        %1330 = vmatprep.subr.mxu0 0.0
        %1331 = vmatpush1.msra.mxu0 0.0
        %1332 = vmatprep.subr.mxu0 0.0
        %1333 = vmatpush1.msra.mxu0 0.0
        %1334 = vmatprep.subr.mxu0 0.0
        %1335 = vmatpush1.msra.mxu0 0.0
        %1336 = vmatprep.subr.mxu0 0.0
        %1337 = vmatpush1.msra.mxu0 0.0
        %1338 = vmatprep.subr.mxu0 0.0
        %1339 = vmatpush1.msra.mxu0 0.0
        %1340 = vmatprep.subr.mxu0 0.0
        %1341 = vmatpush1.msra.mxu0 0.0
        %1342 = vmatprep.subr.mxu0 0.0
        %1343 = vmatpush1.msra.mxu0 0.0
        %1344 = vmatprep.subr.mxu0 0.0
        %1345 = vmatpush1.msra.mxu0 0.0
        %1346 = vmatprep.subr.mxu0 0.0
        %1347 = vmatpush1.msra.mxu0 0.0
        %1348 = vmatprep.subr.mxu0 0.0
        %1349 = vmatpush1.msra.mxu0 0.0
        %1350 = vmatprep.subr.mxu0 0.0
        %1351 = vmatpush1.msra.mxu0 0.0
        %1352 = vmatprep.subr.mxu0 0.0
        %1353 = vmatpush1.msra.mxu0 0.0
        %1354 = vmatprep.subr.mxu0 0.0
        %1355 = vmatpush1.msra.mxu0 0.0
        %1356 = vmatprep.subr.mxu0 0.0
        %1357 = vmatpush1.msra.mxu0 0.0
        %1358 = vmatprep.subr.mxu0 0.0
        %1359 = vmatpush1.msra.mxu0 0.0
        %1360 = vmatprep.subr.mxu0 0.0
        %1361 = vmatpush1.msra.mxu0 0.0
        %1362 = vmatprep.subr.mxu0 0.0
        %1363 = vmatpush1.msra.mxu0 0.0
        %1364 = vmatprep.subr.mxu0 0.0
        %1365 = vmatpush1.msra.mxu0 0.0
        %1366 = vmatprep.subr.mxu0 0.0
        %1367 = vmatpush1.msra.mxu0 0.0
        %1368 = vmatprep.subr.mxu0 0.0
        %1369 = vmatpush1.msra.mxu0 0.0
        %1370 = vmatprep.subr.mxu0 0.0
        %1371 = vmatpush1.msra.mxu0 0.0
        %1372 = vmatprep.subr.mxu0 0.0
        %1373 = vmatpush1.msra.mxu0 0.0
        %1374 = vmatprep.subr.mxu0 0.0
        %1375 = vmatpush1.msra.mxu0 0.0
        %1376 = vmatprep.subr.mxu0 0.0
        %1377 = vmatpush1.msra.mxu0 0.0
        %1378 = vmatprep.subr.mxu0 0.0
        %1379 = vmatpush1.msra.mxu0 0.0
        %1380 = vmatprep.subr.mxu0 0.0
        %1381 = vmatpush1.msra.mxu0 0.0
        %1382 = vmatprep.subr.mxu0 0.0
        %1383 = vmatpush1.msra.mxu0 0.0
        %1384 = vmatprep.subr.mxu0 0.0
        %1385 = vmatpush1.msra.mxu0 0.0
        %1386 = vmatprep.subr.mxu0 0.0
        %1387 = vmatpush1.msra.mxu0 0.0
        %1388 = vmatprep.subr.mxu0 0.0
        %1389 = vmatpush1.msra.mxu0 0.0
        %1390 = vmatprep.subr.mxu0 0.0
        %1391 = vmatpush1.msra.mxu0 0.0
        %1392 = vmatprep.mubr.f32.mxu0 0.0
        %v1393 = vand.u32 %v402, 4294901760
        %v1394 = vsub.f32 %v402, %v1393
        %v1395 = vand.u32 %v1394, 4294901760
        %1396 = vmatmul.mubr.f32.gmra.mrb[0].mxu0 %v1395
        %v1397 = vpop.f32.mrb[0].mxu0
        %v1398 = vadd.f32 %v1303, %v1397
        %v1399 = vpop.f32.mrb[0].mxu0
        %1400 = vmatprep.mubr.f32.mxu0 0.0
        %v1401 = vand.u32 %v405, 4294901760
        %v1402 = vsub.f32 %v405, %v1401
        %v1403 = vand.u32 %v1402, 4294901760
        %1404 = vmatmul.mubr.f32.gmra.mrb[0].mxu0 %v1403
        %v1405 = vpop.f32.mrb[0].mxu0
        %v1406 = vadd.f32 %v1310, %v1405
        %v1407 = vpop.f32.mrb[0].mxu0
        %1408 = vmatprep.mubr.f32.mxu0 0.0
        %v1409 = vand.u32 %v408, 4294901760
        %v1410 = vsub.f32 %v408, %v1409
        %v1411 = vand.u32 %v1410, 4294901760
        %1412 = vmatmul.mubr.f32.gmra.mrb[0].mxu0 %v1411
        %v1413 = vpop.f32.mrb[0].mxu0
        %v1414 = vadd.f32 %v1317, %v1413
        %v1415 = vpop.f32.mrb[0].mxu0
        %1416 = vmatprep.mubr.f32.mxu0 0.0
        %v1417 = vand.u32 %v411, 4294901760
        %v1418 = vsub.f32 %v411, %v1417
        %v1419 = vand.u32 %v1418, 4294901760
        %1420 = vmatmul.mubr.f32.gmra.mrb[0].mxu0 %v1419
        %v1421 = vpop.f32.mrb[0].mxu0
        %v1422 = vadd.f32 %v1324, %v1421
        %v1423 = vpop.f32.mrb[0].mxu0
        %1424 = vdwg.mxu0
        %1425 = vmatprep.subr.mxu0 0.0
        %v1426 = vand.u32 %v418, 4294901760
        %v1427 = vsub.f32 %v418, %v1426
        %v1428 = vand.u32 %v1427, 4294901760
        %1429 = vmatpush1.msra.mxu0 %v1428
        %1430 = vmatprep.subr.mxu0 0.0
        %1431 = vmatpush1.msra.mxu0 0.0
        %1432 = vmatprep.subr.mxu0 0.0
        %1433 = vmatpush1.msra.mxu0 0.0
        %1434 = vmatprep.subr.mxu0 0.0
        %1435 = vmatpush1.msra.mxu0 0.0
        %1436 = vmatprep.subr.mxu0 0.0
        %1437 = vmatpush1.msra.mxu0 0.0
        %1438 = vmatprep.subr.mxu0 0.0
        %1439 = vmatpush1.msra.mxu0 0.0
        %1440 = vmatprep.subr.mxu0 0.0
        %1441 = vmatpush1.msra.mxu0 0.0
        %1442 = vmatprep.subr.mxu0 0.0
        %1443 = vmatpush1.msra.mxu0 0.0
        %1444 = vmatprep.subr.mxu0 0.0
        %1445 = vmatpush1.msra.mxu0 0.0
        %1446 = vmatprep.subr.mxu0 0.0
        %1447 = vmatpush1.msra.mxu0 0.0
        %1448 = vmatprep.subr.mxu0 0.0
        %1449 = vmatpush1.msra.mxu0 0.0
        %1450 = vmatprep.subr.mxu0 0.0
        %1451 = vmatpush1.msra.mxu0 0.0
        %1452 = vmatprep.subr.mxu0 0.0
        %1453 = vmatpush1.msra.mxu0 0.0
        %1454 = vmatprep.subr.mxu0 0.0
        %1455 = vmatpush1.msra.mxu0 0.0
        %1456 = vmatprep.subr.mxu0 0.0
        %1457 = vmatpush1.msra.mxu0 0.0
        %1458 = vmatprep.subr.mxu0 0.0
        %1459 = vmatpush1.msra.mxu0 0.0
        %1460 = vmatprep.subr.mxu0 0.0
        %1461 = vmatpush1.msra.mxu0 0.0
        %1462 = vmatprep.subr.mxu0 0.0
        %1463 = vmatpush1.msra.mxu0 0.0
        %1464 = vmatprep.subr.mxu0 0.0
        %1465 = vmatpush1.msra.mxu0 0.0
        %1466 = vmatprep.subr.mxu0 0.0
        %1467 = vmatpush1.msra.mxu0 0.0
        %1468 = vmatprep.subr.mxu0 0.0
        %1469 = vmatpush1.msra.mxu0 0.0
        %1470 = vmatprep.subr.mxu0 0.0
        %1471 = vmatpush1.msra.mxu0 0.0
        %1472 = vmatprep.subr.mxu0 0.0
        %1473 = vmatpush1.msra.mxu0 0.0
        %1474 = vmatprep.subr.mxu0 0.0
        %1475 = vmatpush1.msra.mxu0 0.0
        %1476 = vmatprep.subr.mxu0 0.0
        %1477 = vmatpush1.msra.mxu0 0.0
        %1478 = vmatprep.subr.mxu0 0.0
        %1479 = vmatpush1.msra.mxu0 0.0
        %1480 = vmatprep.subr.mxu0 0.0
        %1481 = vmatpush1.msra.mxu0 0.0
        %1482 = vmatprep.subr.mxu0 0.0
        %1483 = vmatpush1.msra.mxu0 0.0
        %1484 = vmatprep.subr.mxu0 0.0
        %1485 = vmatpush1.msra.mxu0 0.0
        %1486 = vmatprep.subr.mxu0 0.0
        %1487 = vmatpush1.msra.mxu0 0.0
        %1488 = vmatprep.subr.mxu0 0.0
        %1489 = vmatpush1.msra.mxu0 0.0
        %1490 = vmatprep.subr.mxu0 0.0
        %1491 = vmatpush1.msra.mxu0 0.0
        %1492 = vmatprep.mubr.f32.mxu0 0.0
        %v1493 = vand.u32 %v402, 4294901760
        %1494 = vmatmul.mubr.f32.gmra.mrb[0].mxu0 %v1493
        %v1495 = vpop.f32.mrb[0].mxu0
        %v1496 = vadd.f32 %v1398, %v1495
        %v1497 = vpop.f32.mrb[0].mxu0
        %1498 = vmatprep.mubr.f32.mxu0 0.0
        %v1499 = vand.u32 %v405, 4294901760
        %1500 = vmatmul.mubr.f32.gmra.mrb[0].mxu0 %v1499
        %v1501 = vpop.f32.mrb[0].mxu0
        %v1502 = vadd.f32 %v1406, %v1501
        %v1503 = vpop.f32.mrb[0].mxu0
        %1504 = vmatprep.mubr.f32.mxu0 0.0
        %v1505 = vand.u32 %v408, 4294901760
        %1506 = vmatmul.mubr.f32.gmra.mrb[0].mxu0 %v1505
        %v1507 = vpop.f32.mrb[0].mxu0
        %v1508 = vadd.f32 %v1414, %v1507
        %v1509 = vpop.f32.mrb[0].mxu0
        %1510 = vmatprep.mubr.f32.mxu0 0.0
        %v1511 = vand.u32 %v411, 4294901760
        %1512 = vmatmul.mubr.f32.gmra.mrb[0].mxu0 %v1511
        %v1513 = vpop.f32.mrb[0].mxu0
        %v1514 = vadd.f32 %v1422, %v1513
        %v1515 = vpop.f32.mrb[0].mxu0
        %1516 = vdwg.mxu0
        %1517 = vmatprep.subr.mxu0 0.0
        %v1518 = vand.u32 %v418, 4294901760
        %1519 = vmatpush1.msra.mxu0 %v1518
        %1520 = vmatprep.subr.mxu0 0.0
        %1521 = vmatpush1.msra.mxu0 0.0
        %1522 = vmatprep.subr.mxu0 0.0
        %1523 = vmatpush1.msra.mxu0 0.0
        %1524 = vmatprep.subr.mxu0 0.0
        %1525 = vmatpush1.msra.mxu0 0.0
        %1526 = vmatprep.subr.mxu0 0.0
        %1527 = vmatpush1.msra.mxu0 0.0
        %1528 = vmatprep.subr.mxu0 0.0
        %1529 = vmatpush1.msra.mxu0 0.0
        %1530 = vmatprep.subr.mxu0 0.0
        %1531 = vmatpush1.msra.mxu0 0.0
        %1532 = vmatprep.subr.mxu0 0.0
        %1533 = vmatpush1.msra.mxu0 0.0
        %1534 = vmatprep.subr.mxu0 0.0
        %1535 = vmatpush1.msra.mxu0 0.0
        %1536 = vmatprep.subr.mxu0 0.0
        %1537 = vmatpush1.msra.mxu0 0.0
        %1538 = vmatprep.subr.mxu0 0.0
        %1539 = vmatpush1.msra.mxu0 0.0
        %1540 = vmatprep.subr.mxu0 0.0
        %1541 = vmatpush1.msra.mxu0 0.0
        %1542 = vmatprep.subr.mxu0 0.0
        %1543 = vmatpush1.msra.mxu0 0.0
        %1544 = vmatprep.subr.mxu0 0.0
        %1545 = vmatpush1.msra.mxu0 0.0
        %1546 = vmatprep.subr.mxu0 0.0
        %1547 = vmatpush1.msra.mxu0 0.0
        %1548 = vmatprep.subr.mxu0 0.0
        %1549 = vmatpush1.msra.mxu0 0.0
        %1550 = vmatprep.subr.mxu0 0.0
        %1551 = vmatpush1.msra.mxu0 0.0
        %1552 = vmatprep.subr.mxu0 0.0
        %1553 = vmatpush1.msra.mxu0 0.0
        %1554 = vmatprep.subr.mxu0 0.0
        %1555 = vmatpush1.msra.mxu0 0.0
        %1556 = vmatprep.subr.mxu0 0.0
        %1557 = vmatpush1.msra.mxu0 0.0
        %1558 = vmatprep.subr.mxu0 0.0
        %1559 = vmatpush1.msra.mxu0 0.0
        %1560 = vmatprep.subr.mxu0 0.0
        %1561 = vmatpush1.msra.mxu0 0.0
        %1562 = vmatprep.subr.mxu0 0.0
        %1563 = vmatpush1.msra.mxu0 0.0
        %1564 = vmatprep.subr.mxu0 0.0
        %1565 = vmatpush1.msra.mxu0 0.0
        %1566 = vmatprep.subr.mxu0 0.0
        %1567 = vmatpush1.msra.mxu0 0.0
        %1568 = vmatprep.subr.mxu0 0.0
        %1569 = vmatpush1.msra.mxu0 0.0
        %1570 = vmatprep.subr.mxu0 0.0
        %1571 = vmatpush1.msra.mxu0 0.0
        %1572 = vmatprep.subr.mxu0 0.0
        %1573 = vmatpush1.msra.mxu0 0.0
        %1574 = vmatprep.subr.mxu0 0.0
        %1575 = vmatpush1.msra.mxu0 0.0
        %1576 = vmatprep.subr.mxu0 0.0
        %1577 = vmatpush1.msra.mxu0 0.0
        %1578 = vmatprep.subr.mxu0 0.0
        %1579 = vmatpush1.msra.mxu0 0.0
        %1580 = vmatprep.subr.mxu0 0.0
        %1581 = vmatpush1.msra.mxu0 0.0
        %1582 = vmatprep.mubr.f32.mxu0 0.0
        %v1583 = vand.u32 %v402, 4294901760
        %1584 = vmatmul.mubr.f32.gmra.mrb[0].mxu0 %v1583
        %v1585 = vpop.f32.mrb[0].mxu0
        %v1586 = vadd.f32 %v1496, %v1585
        %v1587 = vpop.f32.mrb[0].mxu0
        %1588 = vmatprep.mubr.f32.mxu0 0.0
        %v1589 = vand.u32 %v405, 4294901760
        %1590 = vmatmul.mubr.f32.gmra.mrb[0].mxu0 %v1589
        %v1591 = vpop.f32.mrb[0].mxu0
        %v1592 = vadd.f32 %v1502, %v1591
        %v1593 = vpop.f32.mrb[0].mxu0
        %1594 = vmatprep.mubr.f32.mxu0 0.0
        %v1595 = vand.u32 %v408, 4294901760
        %1596 = vmatmul.mubr.f32.gmra.mrb[0].mxu0 %v1595
        %v1597 = vpop.f32.mrb[0].mxu0
        %v1598 = vadd.f32 %v1508, %v1597
        %v1599 = vpop.f32.mrb[0].mxu0
        %1600 = vmatprep.mubr.f32.mxu0 0.0
        %v1601 = vand.u32 %v411, 4294901760
        %1602 = vmatmul.mubr.f32.gmra.mrb[0].mxu0 %v1601
        %v1603 = vpop.f32.mrb[0].mxu0
        %v1604 = vadd.f32 %v1514, %v1603
        %v1605 = vpop.f32.mrb[0].mxu0
        %1606 = vdwg.mxu0
        %1607 = vst [vmem:[#allocation2] sm:$0xff] %v1007
        %1608 = vst [vmem:[#allocation2 + $0x8] sm:$0xff] %v1009
        %1609 = vst [vmem:[#allocation2 + $0x10] sm:$0xff] %v1586
        %1610 = vst [vmem:[#allocation2 + $0x18] sm:$0xff] %v1014
        %1611 = vst [vmem:[#allocation2 + $0x20] sm:$0xff] %v1016
        %1612 = vst [vmem:[#allocation2 + $0x28] sm:$0xff] %v1592
        %1613 = vst [vmem:[#allocation2 + $0x30] sm:$0xff] %v1021
        %1614 = vst [vmem:[#allocation2 + $0x38] sm:$0xff] %v1023
        %1615 = vst [vmem:[#allocation2 + $0x40] sm:$0xff] %v1598
        %1616 = vst [vmem:[#allocation2 + $0x48] sm:$0xff] %v1028
        %1617 = vst [vmem:[#allocation2 + $0x50] sm:$0xff] %v1030
        %1618 = vst [vmem:[#allocation2 + $0x58] sm:$0xff] %v1604
        %v1619 = vld [vmem:[%s4] sm:$0x7]
        %v1621 = vlaneseq
        %v1622 = vshrl.u32 %v1621, 7
        %v1623 = vsub.s32 0, %v1622
        %v1624 = vrot.slane %v1619, %v1623
        %v1625 = vlaneseq
        %v1626 = vshrl.u32 %v1625, 7
        %v1627 = vsub.s32 1, %v1626
        %v1628 = vrot.slane %v1619, %v1627
        %v1629 = vlaneseq
        %v1630 = vshrl.u32 %v1629, 7
        %v1631 = vsub.s32 2, %v1630
        %v1632 = vrot.slane %v1619, %v1631
        %v1636 = vld [vmem:[#allocation3] sm:$0xff]
        %s1637 = smul.u32 3, 3
        %s1638 = smul.addr %s1637, 8
        %s1639 = scalar_lea.vmem [#allocation2], %s1638
        %v1640 = vld [vmem:[%s1639] sm:$0xff]
        %v1641 = vld [vmem:[%s1639 + $0x8] sm:$0xff]
        %v1642 = vld [vmem:[%s1639 + $0x10] sm:$0xff]
        %v1643 = vld [vmem:[%s2] sm:$0xff]
        %v1644 = vld [vmem:[%s2 + $0x8] sm:$0xff]
        %v1645 = vld [vmem:[%s2 + $0x10] sm:$0xff]
        %v1646 = vld [vmem:[%s2 + $0x18] sm:$0xff]
        %v1647 = vld [vmem:[%s2 + $0x20] sm:$0xff]
        %v1648 = vld [vmem:[%s2 + $0x28] sm:$0xff]
        %v1649 = vld [vmem:[%s2 + $0x30] sm:$0xff]
        %v1650 = vld [vmem:[%s2 + $0x38] sm:$0xff]
        %v1651 = vld [vmem:[%s2 + $0x40] sm:$0xff]
        %v1652 = vld [vmem:[%s2 + $0x48] sm:$0xff]
        %v1653 = vld [vmem:[%s2 + $0x50] sm:$0xff]
        %v1654 = vld [vmem:[%s2 + $0x58] sm:$0xff]
        %v1655 = vld [vmem:[%s2 + $0x60] sm:$0xff]
        %v1656 = vld [vmem:[%s2 + $0x68] sm:$0xff]
        %v1657 = vld [vmem:[%s2 + $0x70] sm:$0xff]
        %v1658 = vld [vmem:[%s2 + $0x78] sm:$0xff]
        %v1659 = vld [vmem:[%s2 + $0x80] sm:$0xff]
        %v1660 = vld [vmem:[%s2 + $0x88] sm:$0xff]
        %v1661 = vld [vmem:[%s2 + $0x90] sm:$0xff]
        %v1662 = vld [vmem:[%s2 + $0x98] sm:$0xff]
        %v1663 = vld [vmem:[%s2 + $0xa0] sm:$0xff]
        %v1664 = vld [vmem:[%s2 + $0xa8] sm:$0xff]
        %v1665 = vld [vmem:[%s2 + $0xb0] sm:$0xff]
        %v1666 = vld [vmem:[%s2 + $0xb8] sm:$0xff]
        %v1667 = vld [vmem:[%s2 + $0xc0] sm:$0xff]
        %v1668 = vld [vmem:[%s2 + $0xc8] sm:$0xff]
        %v1669 = vld [vmem:[%s2 + $0xd0] sm:$0xff]
        %v1670 = vld [vmem:[%s2 + $0xd8] sm:$0xff]
        %v1671 = vld [vmem:[%s2 + $0xe0] sm:$0xff]
        %v1672 = vld [vmem:[%s2 + $0xe8] sm:$0xff]
        %v1673 = vld [vmem:[%s2 + $0xf0] sm:$0xff]
        %v1674 = vld [vmem:[%s2 + $0xf8] sm:$0xff]
        %v1675 = vld [vmem:[%s2 + $0x100] sm:$0xff]
        %v1676 = vld [vmem:[%s2 + $0x108] sm:$0xff]
        %v1677 = vld [vmem:[%s2 + $0x110] sm:$0xff]
        %v1678 = vld [vmem:[%s2 + $0x118] sm:$0xff]
        %v1679 = vld [vmem:[%s2 + $0x120] sm:$0xff]
        %v1680 = vld [vmem:[%s2 + $0x128] sm:$0xff]
        %v1681 = vld [vmem:[%s2 + $0x130] sm:$0xff]
        %v1682 = vld [vmem:[%s2 + $0x138] sm:$0xff]
        %v1683 = vld [vmem:[%s2 + $0x140] sm:$0xff]
        %v1684 = vld [vmem:[%s2 + $0x148] sm:$0xff]
        %v1685 = vld [vmem:[%s2 + $0x150] sm:$0xff]
        %v1686 = vld [vmem:[%s2 + $0x158] sm:$0xff]
        %v1687 = vld [vmem:[%s2 + $0x160] sm:$0xff]
        %v1688 = vld [vmem:[%s2 + $0x168] sm:$0xff]
        %v1689 = vld [vmem:[%s2 + $0x170] sm:$0xff]
        %v1690 = vld [vmem:[%s2 + $0x178] sm:$0xff]
        %v1691 = vand.u32 %v1644, 4294901760
        %1692 = vmatprep.subr.mxu0 %v1691
        %v1693 = vand.u32 %v1643, 4294901760
        %1694 = vmatpush1.msra.mxu0 %v1693
        %v1695 = vand.u32 %v1647, 4294901760
        %1696 = vmatprep.subr.mxu0 %v1695
        %v1697 = vand.u32 %v1646, 4294901760
        %1698 = vmatpush1.msra.mxu0 %v1697
        %v1699 = vand.u32 %v1650, 4294901760
        %1700 = vmatprep.subr.mxu0 %v1699
        %v1701 = vand.u32 %v1649, 4294901760
        %1702 = vmatpush1.msra.mxu0 %v1701
        %v1703 = vand.u32 %v1653, 4294901760
        %1704 = vmatprep.subr.mxu0 %v1703
        %v1705 = vand.u32 %v1652, 4294901760
        %1706 = vmatpush1.msra.mxu0 %v1705
        %v1707 = vand.u32 %v1656, 4294901760
        %1708 = vmatprep.subr.mxu0 %v1707
        %v1709 = vand.u32 %v1655, 4294901760
        %1710 = vmatpush1.msra.mxu0 %v1709
        %v1711 = vand.u32 %v1659, 4294901760
        %1712 = vmatprep.subr.mxu0 %v1711
        %v1713 = vand.u32 %v1658, 4294901760
        %1714 = vmatpush1.msra.mxu0 %v1713
        %v1715 = vand.u32 %v1662, 4294901760
        %1716 = vmatprep.subr.mxu0 %v1715
        %v1717 = vand.u32 %v1661, 4294901760
        %1718 = vmatpush1.msra.mxu0 %v1717
        %v1719 = vand.u32 %v1665, 4294901760
        %1720 = vmatprep.subr.mxu0 %v1719
        %v1721 = vand.u32 %v1664, 4294901760
        %1722 = vmatpush1.msra.mxu0 %v1721
        %v1723 = vand.u32 %v1668, 4294901760
        %1724 = vmatprep.subr.mxu0 %v1723
        %v1725 = vand.u32 %v1667, 4294901760
        %1726 = vmatpush1.msra.mxu0 %v1725
        %v1727 = vand.u32 %v1671, 4294901760
        %1728 = vmatprep.subr.mxu0 %v1727
        %v1729 = vand.u32 %v1670, 4294901760
        %1730 = vmatpush1.msra.mxu0 %v1729
        %v1731 = vand.u32 %v1674, 4294901760
        %1732 = vmatprep.subr.mxu0 %v1731
        %v1733 = vand.u32 %v1673, 4294901760
        %1734 = vmatpush1.msra.mxu0 %v1733
        %v1735 = vand.u32 %v1677, 4294901760
        %1736 = vmatprep.subr.mxu0 %v1735
        %v1737 = vand.u32 %v1676, 4294901760
        %1738 = vmatpush1.msra.mxu0 %v1737
        %v1739 = vand.u32 %v1680, 4294901760
        %1740 = vmatprep.subr.mxu0 %v1739
        %v1741 = vand.u32 %v1679, 4294901760
        %1742 = vmatpush1.msra.mxu0 %v1741
        %v1743 = vand.u32 %v1683, 4294901760
        %1744 = vmatprep.subr.mxu0 %v1743
        %v1745 = vand.u32 %v1682, 4294901760
        %1746 = vmatpush1.msra.mxu0 %v1745
        %v1747 = vand.u32 %v1686, 4294901760
        %1748 = vmatprep.subr.mxu0 %v1747
        %v1749 = vand.u32 %v1685, 4294901760
        %1750 = vmatpush1.msra.mxu0 %v1749
        %v1751 = vand.u32 %v1689, 4294901760
        %1752 = vmatprep.subr.mxu0 %v1751
        %v1753 = vand.u32 %v1688, 4294901760
        %1754 = vmatpush1.msra.mxu0 %v1753
        %1755 = vmatprep.subr.mxu0 0.0
        %1756 = vmatpush1.msra.mxu0 0.0
        %1757 = vmatprep.subr.mxu0 0.0
        %1758 = vmatpush1.msra.mxu0 0.0
        %1759 = vmatprep.subr.mxu0 0.0
        %1760 = vmatpush1.msra.mxu0 0.0
        %1761 = vmatprep.subr.mxu0 0.0
        %1762 = vmatpush1.msra.mxu0 0.0
        %1763 = vmatprep.subr.mxu0 0.0
        %1764 = vmatpush1.msra.mxu0 0.0
        %1765 = vmatprep.subr.mxu0 0.0
        %1766 = vmatpush1.msra.mxu0 0.0
        %1767 = vmatprep.subr.mxu0 0.0
        %1768 = vmatpush1.msra.mxu0 0.0
        %1769 = vmatprep.subr.mxu0 0.0
        %1770 = vmatpush1.msra.mxu0 0.0
        %1771 = vmatprep.subr.mxu0 0.0
        %1772 = vmatpush1.msra.mxu0 0.0
        %1773 = vmatprep.subr.mxu0 0.0
        %1774 = vmatpush1.msra.mxu0 0.0
        %1775 = vmatprep.subr.mxu0 0.0
        %1776 = vmatpush1.msra.mxu0 0.0
        %1777 = vmatprep.subr.mxu0 0.0
        %1778 = vmatpush1.msra.mxu0 0.0
        %1779 = vmatprep.subr.mxu0 0.0
        %1780 = vmatpush1.msra.mxu0 0.0
        %1781 = vmatprep.subr.mxu0 0.0
        %1782 = vmatpush1.msra.mxu0 0.0
        %1783 = vmatprep.subr.mxu0 0.0
        %1784 = vmatpush1.msra.mxu0 0.0
        %1785 = vmatprep.subr.mxu0 0.0
        %1786 = vmatpush1.msra.mxu0 0.0
        %1787 = vmatprep.mubr.f32.mxu0 0.0
        %v1788 = vand.u32 %v1636, 4294901760
        %v1789 = vsub.f32 %v1636, %v1788
        %v1790 = vand.u32 %v1789, 4294901760
        %v1791 = vsub.f32 %v1789, %v1790
        %v1792 = vand.u32 %v1791, 4294901760
        %1793 = vmatmul.mubr.f32.gmra.mrb[0].mxu0 %v1792
        %v1794 = vpop.f32.mrb[0].mxu0
        %v1795 = vadd.f32 %v1624, %v1794
        %v1796 = vpop.f32.mrb[0].mxu0
        %v1797 = vadd.f32 %v1628, %v1796
        %1798 = vdwg.mxu0
        %v1799 = vand.u32 %v1644, 4294901760
        %v1800 = vsub.f32 %v1644, %v1799
        %v1801 = vand.u32 %v1800, 4294901760
        %v1802 = vsub.f32 %v1800, %v1801
        %v1803 = vand.u32 %v1802, 4294901760
        %1804 = vmatprep.subr.mxu0 %v1803
        %v1805 = vand.u32 %v1643, 4294901760
        %v1806 = vsub.f32 %v1643, %v1805
        %v1807 = vand.u32 %v1806, 4294901760
        %v1808 = vsub.f32 %v1806, %v1807
        %v1809 = vand.u32 %v1808, 4294901760
        %1810 = vmatpush1.msra.mxu0 %v1809
        %v1811 = vand.u32 %v1647, 4294901760
        %v1812 = vsub.f32 %v1647, %v1811
        %v1813 = vand.u32 %v1812, 4294901760
        %v1814 = vsub.f32 %v1812, %v1813
        %v1815 = vand.u32 %v1814, 4294901760
        %1816 = vmatprep.subr.mxu0 %v1815
        %v1817 = vand.u32 %v1646, 4294901760
        %v1818 = vsub.f32 %v1646, %v1817
        %v1819 = vand.u32 %v1818, 4294901760
        %v1820 = vsub.f32 %v1818, %v1819
        %v1821 = vand.u32 %v1820, 4294901760
        %1822 = vmatpush1.msra.mxu0 %v1821
        %v1823 = vand.u32 %v1650, 4294901760
        %v1824 = vsub.f32 %v1650, %v1823
        %v1825 = vand.u32 %v1824, 4294901760
        %v1826 = vsub.f32 %v1824, %v1825
        %v1827 = vand.u32 %v1826, 4294901760
        %1828 = vmatprep.subr.mxu0 %v1827
        %v1829 = vand.u32 %v1649, 4294901760
        %v1830 = vsub.f32 %v1649, %v1829
        %v1831 = vand.u32 %v1830, 4294901760
        %v1832 = vsub.f32 %v1830, %v1831
        %v1833 = vand.u32 %v1832, 4294901760
        %1834 = vmatpush1.msra.mxu0 %v1833
        %v1835 = vand.u32 %v1653, 4294901760
        %v1836 = vsub.f32 %v1653, %v1835
        %v1837 = vand.u32 %v1836, 4294901760
        %v1838 = vsub.f32 %v1836, %v1837
        %v1839 = vand.u32 %v1838, 4294901760
        %1840 = vmatprep.subr.mxu0 %v1839
        %v1841 = vand.u32 %v1652, 4294901760
        %v1842 = vsub.f32 %v1652, %v1841
        %v1843 = vand.u32 %v1842, 4294901760
        %v1844 = vsub.f32 %v1842, %v1843
        %v1845 = vand.u32 %v1844, 4294901760
        %1846 = vmatpush1.msra.mxu0 %v1845
        %v1847 = vand.u32 %v1656, 4294901760
        %v1848 = vsub.f32 %v1656, %v1847
        %v1849 = vand.u32 %v1848, 4294901760
        %v1850 = vsub.f32 %v1848, %v1849
        %v1851 = vand.u32 %v1850, 4294901760
        %1852 = vmatprep.subr.mxu0 %v1851
        %v1853 = vand.u32 %v1655, 4294901760
        %v1854 = vsub.f32 %v1655, %v1853
        %v1855 = vand.u32 %v1854, 4294901760
        %v1856 = vsub.f32 %v1854, %v1855
        %v1857 = vand.u32 %v1856, 4294901760
        %1858 = vmatpush1.msra.mxu0 %v1857
        %v1859 = vand.u32 %v1659, 4294901760
        %v1860 = vsub.f32 %v1659, %v1859
        %v1861 = vand.u32 %v1860, 4294901760
        %v1862 = vsub.f32 %v1860, %v1861
        %v1863 = vand.u32 %v1862, 4294901760
        %1864 = vmatprep.subr.mxu0 %v1863
        %v1865 = vand.u32 %v1658, 4294901760
        %v1866 = vsub.f32 %v1658, %v1865
        %v1867 = vand.u32 %v1866, 4294901760
        %v1868 = vsub.f32 %v1866, %v1867
        %v1869 = vand.u32 %v1868, 4294901760
        %1870 = vmatpush1.msra.mxu0 %v1869
        %v1871 = vand.u32 %v1662, 4294901760
        %v1872 = vsub.f32 %v1662, %v1871
        %v1873 = vand.u32 %v1872, 4294901760
        %v1874 = vsub.f32 %v1872, %v1873
        %v1875 = vand.u32 %v1874, 4294901760
        %1876 = vmatprep.subr.mxu0 %v1875
        %v1877 = vand.u32 %v1661, 4294901760
        %v1878 = vsub.f32 %v1661, %v1877
        %v1879 = vand.u32 %v1878, 4294901760
        %v1880 = vsub.f32 %v1878, %v1879
        %v1881 = vand.u32 %v1880, 4294901760
        %1882 = vmatpush1.msra.mxu0 %v1881
        %v1883 = vand.u32 %v1665, 4294901760
        %v1884 = vsub.f32 %v1665, %v1883
        %v1885 = vand.u32 %v1884, 4294901760
        %v1886 = vsub.f32 %v1884, %v1885
        %v1887 = vand.u32 %v1886, 4294901760
        %1888 = vmatprep.subr.mxu0 %v1887
        %v1889 = vand.u32 %v1664, 4294901760
        %v1890 = vsub.f32 %v1664, %v1889
        %v1891 = vand.u32 %v1890, 4294901760
        %v1892 = vsub.f32 %v1890, %v1891
        %v1893 = vand.u32 %v1892, 4294901760
        %1894 = vmatpush1.msra.mxu0 %v1893
        %v1895 = vand.u32 %v1668, 4294901760
        %v1896 = vsub.f32 %v1668, %v1895
        %v1897 = vand.u32 %v1896, 4294901760
        %v1898 = vsub.f32 %v1896, %v1897
        %v1899 = vand.u32 %v1898, 4294901760
        %1900 = vmatprep.subr.mxu0 %v1899
        %v1901 = vand.u32 %v1667, 4294901760
        %v1902 = vsub.f32 %v1667, %v1901
        %v1903 = vand.u32 %v1902, 4294901760
        %v1904 = vsub.f32 %v1902, %v1903
        %v1905 = vand.u32 %v1904, 4294901760
        %1906 = vmatpush1.msra.mxu0 %v1905
        %v1907 = vand.u32 %v1671, 4294901760
        %v1908 = vsub.f32 %v1671, %v1907
        %v1909 = vand.u32 %v1908, 4294901760
        %v1910 = vsub.f32 %v1908, %v1909
        %v1911 = vand.u32 %v1910, 4294901760
        %1912 = vmatprep.subr.mxu0 %v1911
        %v1913 = vand.u32 %v1670, 4294901760
        %v1914 = vsub.f32 %v1670, %v1913
        %v1915 = vand.u32 %v1914, 4294901760
        %v1916 = vsub.f32 %v1914, %v1915
        %v1917 = vand.u32 %v1916, 4294901760
        %1918 = vmatpush1.msra.mxu0 %v1917
        %v1919 = vand.u32 %v1674, 4294901760
        %v1920 = vsub.f32 %v1674, %v1919
        %v1921 = vand.u32 %v1920, 4294901760
        %v1922 = vsub.f32 %v1920, %v1921
        %v1923 = vand.u32 %v1922, 4294901760
        %1924 = vmatprep.subr.mxu0 %v1923
        %v1925 = vand.u32 %v1673, 4294901760
        %v1926 = vsub.f32 %v1673, %v1925
        %v1927 = vand.u32 %v1926, 4294901760
        %v1928 = vsub.f32 %v1926, %v1927
        %v1929 = vand.u32 %v1928, 4294901760
        %1930 = vmatpush1.msra.mxu0 %v1929
        %v1931 = vand.u32 %v1677, 4294901760
        %v1932 = vsub.f32 %v1677, %v1931
        %v1933 = vand.u32 %v1932, 4294901760
        %v1934 = vsub.f32 %v1932, %v1933
        %v1935 = vand.u32 %v1934, 4294901760
        %1936 = vmatprep.subr.mxu0 %v1935
        %v1937 = vand.u32 %v1676, 4294901760
        %v1938 = vsub.f32 %v1676, %v1937
        %v1939 = vand.u32 %v1938, 4294901760
        %v1940 = vsub.f32 %v1938, %v1939
        %v1941 = vand.u32 %v1940, 4294901760
        %1942 = vmatpush1.msra.mxu0 %v1941
        %v1943 = vand.u32 %v1680, 4294901760
        %v1944 = vsub.f32 %v1680, %v1943
        %v1945 = vand.u32 %v1944, 4294901760
        %v1946 = vsub.f32 %v1944, %v1945
        %v1947 = vand.u32 %v1946, 4294901760
        %1948 = vmatprep.subr.mxu0 %v1947
        %v1949 = vand.u32 %v1679, 4294901760
        %v1950 = vsub.f32 %v1679, %v1949
        %v1951 = vand.u32 %v1950, 4294901760
        %v1952 = vsub.f32 %v1950, %v1951
        %v1953 = vand.u32 %v1952, 4294901760
        %1954 = vmatpush1.msra.mxu0 %v1953
        %v1955 = vand.u32 %v1683, 4294901760
        %v1956 = vsub.f32 %v1683, %v1955
        %v1957 = vand.u32 %v1956, 4294901760
        %v1958 = vsub.f32 %v1956, %v1957
        %v1959 = vand.u32 %v1958, 4294901760
        %1960 = vmatprep.subr.mxu0 %v1959
        %v1961 = vand.u32 %v1682, 4294901760
        %v1962 = vsub.f32 %v1682, %v1961
        %v1963 = vand.u32 %v1962, 4294901760
        %v1964 = vsub.f32 %v1962, %v1963
        %v1965 = vand.u32 %v1964, 4294901760
        %1966 = vmatpush1.msra.mxu0 %v1965
        %v1967 = vand.u32 %v1686, 4294901760
        %v1968 = vsub.f32 %v1686, %v1967
        %v1969 = vand.u32 %v1968, 4294901760
        %v1970 = vsub.f32 %v1968, %v1969
        %v1971 = vand.u32 %v1970, 4294901760
        %1972 = vmatprep.subr.mxu0 %v1971
        %v1973 = vand.u32 %v1685, 4294901760
        %v1974 = vsub.f32 %v1685, %v1973
        %v1975 = vand.u32 %v1974, 4294901760
        %v1976 = vsub.f32 %v1974, %v1975
        %v1977 = vand.u32 %v1976, 4294901760
        %1978 = vmatpush1.msra.mxu0 %v1977
        %v1979 = vand.u32 %v1689, 4294901760
        %v1980 = vsub.f32 %v1689, %v1979
        %v1981 = vand.u32 %v1980, 4294901760
        %v1982 = vsub.f32 %v1980, %v1981
        %v1983 = vand.u32 %v1982, 4294901760
        %1984 = vmatprep.subr.mxu0 %v1983
        %v1985 = vand.u32 %v1688, 4294901760
        %v1986 = vsub.f32 %v1688, %v1985
        %v1987 = vand.u32 %v1986, 4294901760
        %v1988 = vsub.f32 %v1986, %v1987
        %v1989 = vand.u32 %v1988, 4294901760
        %1990 = vmatpush1.msra.mxu0 %v1989
        %1991 = vmatprep.subr.mxu0 0.0
        %1992 = vmatpush1.msra.mxu0 0.0
        %1993 = vmatprep.subr.mxu0 0.0
        %1994 = vmatpush1.msra.mxu0 0.0
        %1995 = vmatprep.subr.mxu0 0.0
        %1996 = vmatpush1.msra.mxu0 0.0
        %1997 = vmatprep.subr.mxu0 0.0
        %1998 = vmatpush1.msra.mxu0 0.0
        %1999 = vmatprep.subr.mxu0 0.0
        %2000 = vmatpush1.msra.mxu0 0.0
        %2001 = vmatprep.subr.mxu0 0.0
        %2002 = vmatpush1.msra.mxu0 0.0
        %2003 = vmatprep.subr.mxu0 0.0
        %2004 = vmatpush1.msra.mxu0 0.0
        %2005 = vmatprep.subr.mxu0 0.0
        %2006 = vmatpush1.msra.mxu0 0.0
        %2007 = vmatprep.subr.mxu0 0.0
        %2008 = vmatpush1.msra.mxu0 0.0
        %2009 = vmatprep.subr.mxu0 0.0
        %2010 = vmatpush1.msra.mxu0 0.0
        %2011 = vmatprep.subr.mxu0 0.0
        %2012 = vmatpush1.msra.mxu0 0.0
        %2013 = vmatprep.subr.mxu0 0.0
        %2014 = vmatpush1.msra.mxu0 0.0
        %2015 = vmatprep.subr.mxu0 0.0
        %2016 = vmatpush1.msra.mxu0 0.0
        %2017 = vmatprep.subr.mxu0 0.0
        %2018 = vmatpush1.msra.mxu0 0.0
        %2019 = vmatprep.subr.mxu0 0.0
        %2020 = vmatpush1.msra.mxu0 0.0
        %2021 = vmatprep.subr.mxu0 0.0
        %2022 = vmatpush1.msra.mxu0 0.0
        %2023 = vmatprep.mubr.f32.mxu0 0.0
        %v2024 = vand.u32 %v1636, 4294901760
        %2025 = vmatmul.mubr.f32.gmra.mrb[0].mxu0 %v2024
        %v2026 = vpop.f32.mrb[0].mxu0
        %v2027 = vadd.f32 %v1795, %v2026
        %v2028 = vpop.f32.mrb[0].mxu0
        %v2029 = vadd.f32 %v1797, %v2028
        %2030 = vdwg.mxu0
        %v2031 = vand.u32 %v1644, 4294901760
        %v2032 = vsub.f32 %v1644, %v2031
        %2033 = vmatprep.subr.mxu0 %v2032
        %v2034 = vand.u32 %v1643, 4294901760
        %v2035 = vsub.f32 %v1643, %v2034
        %2036 = vmatpush1.msra.mxu0 %v2035
        %v2037 = vand.u32 %v1647, 4294901760
        %v2038 = vsub.f32 %v1647, %v2037
        %2039 = vmatprep.subr.mxu0 %v2038
        %v2040 = vand.u32 %v1646, 4294901760
        %v2041 = vsub.f32 %v1646, %v2040
        %2042 = vmatpush1.msra.mxu0 %v2041
        %v2043 = vand.u32 %v1650, 4294901760
        %v2044 = vsub.f32 %v1650, %v2043
        %2045 = vmatprep.subr.mxu0 %v2044
        %v2046 = vand.u32 %v1649, 4294901760
        %v2047 = vsub.f32 %v1649, %v2046
        %2048 = vmatpush1.msra.mxu0 %v2047
        %v2049 = vand.u32 %v1653, 4294901760
        %v2050 = vsub.f32 %v1653, %v2049
        %2051 = vmatprep.subr.mxu0 %v2050
        %v2052 = vand.u32 %v1652, 4294901760
        %v2053 = vsub.f32 %v1652, %v2052
        %2054 = vmatpush1.msra.mxu0 %v2053
        %v2055 = vand.u32 %v1656, 4294901760
        %v2056 = vsub.f32 %v1656, %v2055
        %2057 = vmatprep.subr.mxu0 %v2056
        %v2058 = vand.u32 %v1655, 4294901760
        %v2059 = vsub.f32 %v1655, %v2058
        %2060 = vmatpush1.msra.mxu0 %v2059
        %v2061 = vand.u32 %v1659, 4294901760
        %v2062 = vsub.f32 %v1659, %v2061
        %2063 = vmatprep.subr.mxu0 %v2062
        %v2064 = vand.u32 %v1658, 4294901760
        %v2065 = vsub.f32 %v1658, %v2064
        %2066 = vmatpush1.msra.mxu0 %v2065
        %v2067 = vand.u32 %v1662, 4294901760
        %v2068 = vsub.f32 %v1662, %v2067
        %2069 = vmatprep.subr.mxu0 %v2068
        %v2070 = vand.u32 %v1661, 4294901760
        %v2071 = vsub.f32 %v1661, %v2070
        %2072 = vmatpush1.msra.mxu0 %v2071
        %v2073 = vand.u32 %v1665, 4294901760
        %v2074 = vsub.f32 %v1665, %v2073
        %2075 = vmatprep.subr.mxu0 %v2074
        %v2076 = vand.u32 %v1664, 4294901760
        %v2077 = vsub.f32 %v1664, %v2076
        %2078 = vmatpush1.msra.mxu0 %v2077
        %v2079 = vand.u32 %v1668, 4294901760
        %v2080 = vsub.f32 %v1668, %v2079
        %2081 = vmatprep.subr.mxu0 %v2080
        %v2082 = vand.u32 %v1667, 4294901760
        %v2083 = vsub.f32 %v1667, %v2082
        %2084 = vmatpush1.msra.mxu0 %v2083
        %v2085 = vand.u32 %v1671, 4294901760
        %v2086 = vsub.f32 %v1671, %v2085
        %2087 = vmatprep.subr.mxu0 %v2086
        %v2088 = vand.u32 %v1670, 4294901760
        %v2089 = vsub.f32 %v1670, %v2088
        %2090 = vmatpush1.msra.mxu0 %v2089
        %v2091 = vand.u32 %v1674, 4294901760
        %v2092 = vsub.f32 %v1674, %v2091
        %2093 = vmatprep.subr.mxu0 %v2092
        %v2094 = vand.u32 %v1673, 4294901760
        %v2095 = vsub.f32 %v1673, %v2094
        %2096 = vmatpush1.msra.mxu0 %v2095
        %v2097 = vand.u32 %v1677, 4294901760
        %v2098 = vsub.f32 %v1677, %v2097
        %2099 = vmatprep.subr.mxu0 %v2098
        %v2100 = vand.u32 %v1676, 4294901760
        %v2101 = vsub.f32 %v1676, %v2100
        %2102 = vmatpush1.msra.mxu0 %v2101
        %v2103 = vand.u32 %v1680, 4294901760
        %v2104 = vsub.f32 %v1680, %v2103
        %2105 = vmatprep.subr.mxu0 %v2104
        %v2106 = vand.u32 %v1679, 4294901760
        %v2107 = vsub.f32 %v1679, %v2106
        %2108 = vmatpush1.msra.mxu0 %v2107
        %v2109 = vand.u32 %v1683, 4294901760
        %v2110 = vsub.f32 %v1683, %v2109
        %2111 = vmatprep.subr.mxu0 %v2110
        %v2112 = vand.u32 %v1682, 4294901760
        %v2113 = vsub.f32 %v1682, %v2112
        %2114 = vmatpush1.msra.mxu0 %v2113
        %v2115 = vand.u32 %v1686, 4294901760
        %v2116 = vsub.f32 %v1686, %v2115
        %2117 = vmatprep.subr.mxu0 %v2116
        %v2118 = vand.u32 %v1685, 4294901760
        %v2119 = vsub.f32 %v1685, %v2118
        %2120 = vmatpush1.msra.mxu0 %v2119
        %v2121 = vand.u32 %v1689, 4294901760
        %v2122 = vsub.f32 %v1689, %v2121
        %2123 = vmatprep.subr.mxu0 %v2122
        %v2124 = vand.u32 %v1688, 4294901760
        %v2125 = vsub.f32 %v1688, %v2124
        %2126 = vmatpush1.msra.mxu0 %v2125
        %2127 = vmatprep.subr.mxu0 0.0
        %2128 = vmatpush1.msra.mxu0 0.0
        %2129 = vmatprep.subr.mxu0 0.0
        %2130 = vmatpush1.msra.mxu0 0.0
        %2131 = vmatprep.subr.mxu0 0.0
        %2132 = vmatpush1.msra.mxu0 0.0
        %2133 = vmatprep.subr.mxu0 0.0
        %2134 = vmatpush1.msra.mxu0 0.0
        %2135 = vmatprep.subr.mxu0 0.0
        %2136 = vmatpush1.msra.mxu0 0.0
        %2137 = vmatprep.subr.mxu0 0.0
        %2138 = vmatpush1.msra.mxu0 0.0
        %2139 = vmatprep.subr.mxu0 0.0
        %2140 = vmatpush1.msra.mxu0 0.0
        %2141 = vmatprep.subr.mxu0 0.0
        %2142 = vmatpush1.msra.mxu0 0.0
        %2143 = vmatprep.subr.mxu0 0.0
        %2144 = vmatpush1.msra.mxu0 0.0
        %2145 = vmatprep.subr.mxu0 0.0
        %2146 = vmatpush1.msra.mxu0 0.0
        %2147 = vmatprep.subr.mxu0 0.0
        %2148 = vmatpush1.msra.mxu0 0.0
        %2149 = vmatprep.subr.mxu0 0.0
        %2150 = vmatpush1.msra.mxu0 0.0
        %2151 = vmatprep.subr.mxu0 0.0
        %2152 = vmatpush1.msra.mxu0 0.0
        %2153 = vmatprep.subr.mxu0 0.0
        %2154 = vmatpush1.msra.mxu0 0.0
        %2155 = vmatprep.subr.mxu0 0.0
        %2156 = vmatpush1.msra.mxu0 0.0
        %2157 = vmatprep.subr.mxu0 0.0
        %2158 = vmatpush1.msra.mxu0 0.0
        %2159 = vmatprep.mubr.f32.mxu0 0.0
        %v2160 = vand.u32 %v1636, 4294901760
        %v2161 = vsub.f32 %v1636, %v2160
        %2162 = vmatmul.mubr.f32.gmra.mrb[0].mxu0 %v2161
        %v2163 = vpop.f32.mrb[0].mxu0
        %v2164 = vadd.f32 %v2027, %v2163
        %v2165 = vpop.f32.mrb[0].mxu0
        %v2166 = vadd.f32 %v2029, %v2165
        %2167 = vdwg.mxu0
        %v2168 = vand.u32 %v1644, 4294901760
        %2169 = vmatprep.subr.mxu0 %v2168
        %v2170 = vand.u32 %v1643, 4294901760
        %2171 = vmatpush1.msra.mxu0 %v2170
        %v2172 = vand.u32 %v1647, 4294901760
        %2173 = vmatprep.subr.mxu0 %v2172
        %v2174 = vand.u32 %v1646, 4294901760
        %2175 = vmatpush1.msra.mxu0 %v2174
        %v2176 = vand.u32 %v1650, 4294901760
        %2177 = vmatprep.subr.mxu0 %v2176
        %v2178 = vand.u32 %v1649, 4294901760
        %2179 = vmatpush1.msra.mxu0 %v2178
        %v2180 = vand.u32 %v1653, 4294901760
        %2181 = vmatprep.subr.mxu0 %v2180
        %v2182 = vand.u32 %v1652, 4294901760
        %2183 = vmatpush1.msra.mxu0 %v2182
        %v2184 = vand.u32 %v1656, 4294901760
        %2185 = vmatprep.subr.mxu0 %v2184
        %v2186 = vand.u32 %v1655, 4294901760
        %2187 = vmatpush1.msra.mxu0 %v2186
        %v2188 = vand.u32 %v1659, 4294901760
        %2189 = vmatprep.subr.mxu0 %v2188
        %v2190 = vand.u32 %v1658, 4294901760
        %2191 = vmatpush1.msra.mxu0 %v2190
        %v2192 = vand.u32 %v1662, 4294901760
        %2193 = vmatprep.subr.mxu0 %v2192
        %v2194 = vand.u32 %v1661, 4294901760
        %2195 = vmatpush1.msra.mxu0 %v2194
        %v2196 = vand.u32 %v1665, 4294901760
        %2197 = vmatprep.subr.mxu0 %v2196
        %v2198 = vand.u32 %v1664, 4294901760
        %2199 = vmatpush1.msra.mxu0 %v2198
        %v2200 = vand.u32 %v1668, 4294901760
        %2201 = vmatprep.subr.mxu0 %v2200
        %v2202 = vand.u32 %v1667, 4294901760
        %2203 = vmatpush1.msra.mxu0 %v2202
        %v2204 = vand.u32 %v1671, 4294901760
        %2205 = vmatprep.subr.mxu0 %v2204
        %v2206 = vand.u32 %v1670, 4294901760
        %2207 = vmatpush1.msra.mxu0 %v2206
        %v2208 = vand.u32 %v1674, 4294901760
        %2209 = vmatprep.subr.mxu0 %v2208
        %v2210 = vand.u32 %v1673, 4294901760
        %2211 = vmatpush1.msra.mxu0 %v2210
        %v2212 = vand.u32 %v1677, 4294901760
        %2213 = vmatprep.subr.mxu0 %v2212
        %v2214 = vand.u32 %v1676, 4294901760
        %2215 = vmatpush1.msra.mxu0 %v2214
        %v2216 = vand.u32 %v1680, 4294901760
        %2217 = vmatprep.subr.mxu0 %v2216
        %v2218 = vand.u32 %v1679, 4294901760
        %2219 = vmatpush1.msra.mxu0 %v2218
        %v2220 = vand.u32 %v1683, 4294901760
        %2221 = vmatprep.subr.mxu0 %v2220
        %v2222 = vand.u32 %v1682, 4294901760
        %2223 = vmatpush1.msra.mxu0 %v2222
        %v2224 = vand.u32 %v1686, 4294901760
        %2225 = vmatprep.subr.mxu0 %v2224
        %v2226 = vand.u32 %v1685, 4294901760
        %2227 = vmatpush1.msra.mxu0 %v2226
        %v2228 = vand.u32 %v1689, 4294901760
        %2229 = vmatprep.subr.mxu0 %v2228
        %v2230 = vand.u32 %v1688, 4294901760
        %2231 = vmatpush1.msra.mxu0 %v2230
        %2232 = vmatprep.subr.mxu0 0.0
        %2233 = vmatpush1.msra.mxu0 0.0
        %2234 = vmatprep.subr.mxu0 0.0
        %2235 = vmatpush1.msra.mxu0 0.0
        %2236 = vmatprep.subr.mxu0 0.0
        %2237 = vmatpush1.msra.mxu0 0.0
        %2238 = vmatprep.subr.mxu0 0.0
        %2239 = vmatpush1.msra.mxu0 0.0
        %2240 = vmatprep.subr.mxu0 0.0
        %2241 = vmatpush1.msra.mxu0 0.0
        %2242 = vmatprep.subr.mxu0 0.0
        %2243 = vmatpush1.msra.mxu0 0.0
        %2244 = vmatprep.subr.mxu0 0.0
        %2245 = vmatpush1.msra.mxu0 0.0
        %2246 = vmatprep.subr.mxu0 0.0
        %2247 = vmatpush1.msra.mxu0 0.0
        %2248 = vmatprep.subr.mxu0 0.0
        %2249 = vmatpush1.msra.mxu0 0.0
        %2250 = vmatprep.subr.mxu0 0.0
        %2251 = vmatpush1.msra.mxu0 0.0
        %2252 = vmatprep.subr.mxu0 0.0
        %2253 = vmatpush1.msra.mxu0 0.0
        %2254 = vmatprep.subr.mxu0 0.0
        %2255 = vmatpush1.msra.mxu0 0.0
        %2256 = vmatprep.subr.mxu0 0.0
        %2257 = vmatpush1.msra.mxu0 0.0
        %2258 = vmatprep.subr.mxu0 0.0
        %2259 = vmatpush1.msra.mxu0 0.0
        %2260 = vmatprep.subr.mxu0 0.0
        %2261 = vmatpush1.msra.mxu0 0.0
        %2262 = vmatprep.subr.mxu0 0.0
        %2263 = vmatpush1.msra.mxu0 0.0
        %2264 = vmatprep.mubr.f32.mxu0 0.0
        %v2265 = vand.u32 %v1636, 4294901760
        %v2266 = vsub.f32 %v1636, %v2265
        %v2267 = vand.u32 %v2266, 4294901760
        %2268 = vmatmul.mubr.f32.gmra.mrb[0].mxu0 %v2267
        %v2269 = vpop.f32.mrb[0].mxu0
        %v2270 = vadd.f32 %v2164, %v2269
        %v2271 = vpop.f32.mrb[0].mxu0
        %v2272 = vadd.f32 %v2166, %v2271
        %2273 = vdwg.mxu0
        %v2274 = vand.u32 %v1644, 4294901760
        %v2275 = vsub.f32 %v1644, %v2274
        %v2276 = vand.u32 %v2275, 4294901760
        %2277 = vmatprep.subr.mxu0 %v2276
        %v2278 = vand.u32 %v1643, 4294901760
        %v2279 = vsub.f32 %v1643, %v2278
        %v2280 = vand.u32 %v2279, 4294901760
        %2281 = vmatpush1.msra.mxu0 %v2280
        %v2282 = vand.u32 %v1647, 4294901760
        %v2283 = vsub.f32 %v1647, %v2282
        %v2284 = vand.u32 %v2283, 4294901760
        %2285 = vmatprep.subr.mxu0 %v2284
        %v2286 = vand.u32 %v1646, 4294901760
        %v2287 = vsub.f32 %v1646, %v2286
        %v2288 = vand.u32 %v2287, 4294901760
        %2289 = vmatpush1.msra.mxu0 %v2288
        %v2290 = vand.u32 %v1650, 4294901760
        %v2291 = vsub.f32 %v1650, %v2290
        %v2292 = vand.u32 %v2291, 4294901760
        %2293 = vmatprep.subr.mxu0 %v2292
        %v2294 = vand.u32 %v1649, 4294901760
        %v2295 = vsub.f32 %v1649, %v2294
        %v2296 = vand.u32 %v2295, 4294901760
        %2297 = vmatpush1.msra.mxu0 %v2296
        %v2298 = vand.u32 %v1653, 4294901760
        %v2299 = vsub.f32 %v1653, %v2298
        %v2300 = vand.u32 %v2299, 4294901760
        %2301 = vmatprep.subr.mxu0 %v2300
        %v2302 = vand.u32 %v1652, 4294901760
        %v2303 = vsub.f32 %v1652, %v2302
        %v2304 = vand.u32 %v2303, 4294901760
        %2305 = vmatpush1.msra.mxu0 %v2304
        %v2306 = vand.u32 %v1656, 4294901760
        %v2307 = vsub.f32 %v1656, %v2306
        %v2308 = vand.u32 %v2307, 4294901760
        %2309 = vmatprep.subr.mxu0 %v2308
        %v2310 = vand.u32 %v1655, 4294901760
        %v2311 = vsub.f32 %v1655, %v2310
        %v2312 = vand.u32 %v2311, 4294901760
        %2313 = vmatpush1.msra.mxu0 %v2312
        %v2314 = vand.u32 %v1659, 4294901760
        %v2315 = vsub.f32 %v1659, %v2314
        %v2316 = vand.u32 %v2315, 4294901760
        %2317 = vmatprep.subr.mxu0 %v2316
        %v2318 = vand.u32 %v1658, 4294901760
        %v2319 = vsub.f32 %v1658, %v2318
        %v2320 = vand.u32 %v2319, 4294901760
        %2321 = vmatpush1.msra.mxu0 %v2320
        %v2322 = vand.u32 %v1662, 4294901760
        %v2323 = vsub.f32 %v1662, %v2322
        %v2324 = vand.u32 %v2323, 4294901760
        %2325 = vmatprep.subr.mxu0 %v2324
        %v2326 = vand.u32 %v1661, 4294901760
        %v2327 = vsub.f32 %v1661, %v2326
        %v2328 = vand.u32 %v2327, 4294901760
        %2329 = vmatpush1.msra.mxu0 %v2328
        %v2330 = vand.u32 %v1665, 4294901760
        %v2331 = vsub.f32 %v1665, %v2330
        %v2332 = vand.u32 %v2331, 4294901760
        %2333 = vmatprep.subr.mxu0 %v2332
        %v2334 = vand.u32 %v1664, 4294901760
        %v2335 = vsub.f32 %v1664, %v2334
        %v2336 = vand.u32 %v2335, 4294901760
        %2337 = vmatpush1.msra.mxu0 %v2336
        %v2338 = vand.u32 %v1668, 4294901760
        %v2339 = vsub.f32 %v1668, %v2338
        %v2340 = vand.u32 %v2339, 4294901760
        %2341 = vmatprep.subr.mxu0 %v2340
        %v2342 = vand.u32 %v1667, 4294901760
        %v2343 = vsub.f32 %v1667, %v2342
        %v2344 = vand.u32 %v2343, 4294901760
        %2345 = vmatpush1.msra.mxu0 %v2344
        %v2346 = vand.u32 %v1671, 4294901760
        %v2347 = vsub.f32 %v1671, %v2346
        %v2348 = vand.u32 %v2347, 4294901760
        %2349 = vmatprep.subr.mxu0 %v2348
        %v2350 = vand.u32 %v1670, 4294901760
        %v2351 = vsub.f32 %v1670, %v2350
        %v2352 = vand.u32 %v2351, 4294901760
        %2353 = vmatpush1.msra.mxu0 %v2352
        %v2354 = vand.u32 %v1674, 4294901760
        %v2355 = vsub.f32 %v1674, %v2354
        %v2356 = vand.u32 %v2355, 4294901760
        %2357 = vmatprep.subr.mxu0 %v2356
        %v2358 = vand.u32 %v1673, 4294901760
        %v2359 = vsub.f32 %v1673, %v2358
        %v2360 = vand.u32 %v2359, 4294901760
        %2361 = vmatpush1.msra.mxu0 %v2360
        %v2362 = vand.u32 %v1677, 4294901760
        %v2363 = vsub.f32 %v1677, %v2362
        %v2364 = vand.u32 %v2363, 4294901760
        %2365 = vmatprep.subr.mxu0 %v2364
        %v2366 = vand.u32 %v1676, 4294901760
        %v2367 = vsub.f32 %v1676, %v2366
        %v2368 = vand.u32 %v2367, 4294901760
        %2369 = vmatpush1.msra.mxu0 %v2368
        %v2370 = vand.u32 %v1680, 4294901760
        %v2371 = vsub.f32 %v1680, %v2370
        %v2372 = vand.u32 %v2371, 4294901760
        %2373 = vmatprep.subr.mxu0 %v2372
        %v2374 = vand.u32 %v1679, 4294901760
        %v2375 = vsub.f32 %v1679, %v2374
        %v2376 = vand.u32 %v2375, 4294901760
        %2377 = vmatpush1.msra.mxu0 %v2376
        %v2378 = vand.u32 %v1683, 4294901760
        %v2379 = vsub.f32 %v1683, %v2378
        %v2380 = vand.u32 %v2379, 4294901760
        %2381 = vmatprep.subr.mxu0 %v2380
        %v2382 = vand.u32 %v1682, 4294901760
        %v2383 = vsub.f32 %v1682, %v2382
        %v2384 = vand.u32 %v2383, 4294901760
        %2385 = vmatpush1.msra.mxu0 %v2384
        %v2386 = vand.u32 %v1686, 4294901760
        %v2387 = vsub.f32 %v1686, %v2386
        %v2388 = vand.u32 %v2387, 4294901760
        %2389 = vmatprep.subr.mxu0 %v2388
        %v2390 = vand.u32 %v1685, 4294901760
        %v2391 = vsub.f32 %v1685, %v2390
        %v2392 = vand.u32 %v2391, 4294901760
        %2393 = vmatpush1.msra.mxu0 %v2392
        %v2394 = vand.u32 %v1689, 4294901760
        %v2395 = vsub.f32 %v1689, %v2394
        %v2396 = vand.u32 %v2395, 4294901760
        %2397 = vmatprep.subr.mxu0 %v2396
        %v2398 = vand.u32 %v1688, 4294901760
        %v2399 = vsub.f32 %v1688, %v2398
        %v2400 = vand.u32 %v2399, 4294901760
        %2401 = vmatpush1.msra.mxu0 %v2400
        %2402 = vmatprep.subr.mxu0 0.0
        %2403 = vmatpush1.msra.mxu0 0.0
        %2404 = vmatprep.subr.mxu0 0.0
        %2405 = vmatpush1.msra.mxu0 0.0
        %2406 = vmatprep.subr.mxu0 0.0
        %2407 = vmatpush1.msra.mxu0 0.0
        %2408 = vmatprep.subr.mxu0 0.0
        %2409 = vmatpush1.msra.mxu0 0.0
        %2410 = vmatprep.subr.mxu0 0.0
        %2411 = vmatpush1.msra.mxu0 0.0
        %2412 = vmatprep.subr.mxu0 0.0
        %2413 = vmatpush1.msra.mxu0 0.0
        %2414 = vmatprep.subr.mxu0 0.0
        %2415 = vmatpush1.msra.mxu0 0.0
        %2416 = vmatprep.subr.mxu0 0.0
        %2417 = vmatpush1.msra.mxu0 0.0
        %2418 = vmatprep.subr.mxu0 0.0
        %2419 = vmatpush1.msra.mxu0 0.0
        %2420 = vmatprep.subr.mxu0 0.0
        %2421 = vmatpush1.msra.mxu0 0.0
        %2422 = vmatprep.subr.mxu0 0.0
        %2423 = vmatpush1.msra.mxu0 0.0
        %2424 = vmatprep.subr.mxu0 0.0
        %2425 = vmatpush1.msra.mxu0 0.0
        %2426 = vmatprep.subr.mxu0 0.0
        %2427 = vmatpush1.msra.mxu0 0.0
        %2428 = vmatprep.subr.mxu0 0.0
        %2429 = vmatpush1.msra.mxu0 0.0
        %2430 = vmatprep.subr.mxu0 0.0
        %2431 = vmatpush1.msra.mxu0 0.0
        %2432 = vmatprep.subr.mxu0 0.0
        %2433 = vmatpush1.msra.mxu0 0.0
        %2434 = vmatprep.mubr.f32.mxu0 0.0
        %v2435 = vand.u32 %v1636, 4294901760
        %2436 = vmatmul.mubr.f32.gmra.mrb[0].mxu0 %v2435
        %v2437 = vpop.f32.mrb[0].mxu0
        %v2438 = vadd.f32 %v2270, %v2437
        %v2439 = vpop.f32.mrb[0].mxu0
        %v2440 = vadd.f32 %v2272, %v2439
        %2441 = vdwg.mxu0
        %v2442 = vand.u32 %v1644, 4294901760
        %2443 = vmatprep.subr.mxu0 %v2442
        %v2444 = vand.u32 %v1643, 4294901760
        %2445 = vmatpush1.msra.mxu0 %v2444
        %v2446 = vand.u32 %v1647, 4294901760
        %2447 = vmatprep.subr.mxu0 %v2446
        %v2448 = vand.u32 %v1646, 4294901760
        %2449 = vmatpush1.msra.mxu0 %v2448
        %v2450 = vand.u32 %v1650, 4294901760
        %2451 = vmatprep.subr.mxu0 %v2450
        %v2452 = vand.u32 %v1649, 4294901760
        %2453 = vmatpush1.msra.mxu0 %v2452
        %v2454 = vand.u32 %v1653, 4294901760
        %2455 = vmatprep.subr.mxu0 %v2454
        %v2456 = vand.u32 %v1652, 4294901760
        %2457 = vmatpush1.msra.mxu0 %v2456
        %v2458 = vand.u32 %v1656, 4294901760
        %2459 = vmatprep.subr.mxu0 %v2458
        %v2460 = vand.u32 %v1655, 4294901760
        %2461 = vmatpush1.msra.mxu0 %v2460
        %v2462 = vand.u32 %v1659, 4294901760
        %2463 = vmatprep.subr.mxu0 %v2462
        %v2464 = vand.u32 %v1658, 4294901760
        %2465 = vmatpush1.msra.mxu0 %v2464
        %v2466 = vand.u32 %v1662, 4294901760
        %2467 = vmatprep.subr.mxu0 %v2466
        %v2468 = vand.u32 %v1661, 4294901760
        %2469 = vmatpush1.msra.mxu0 %v2468
        %v2470 = vand.u32 %v1665, 4294901760
        %2471 = vmatprep.subr.mxu0 %v2470
        %v2472 = vand.u32 %v1664, 4294901760
        %2473 = vmatpush1.msra.mxu0 %v2472
        %v2474 = vand.u32 %v1668, 4294901760
        %2475 = vmatprep.subr.mxu0 %v2474
        %v2476 = vand.u32 %v1667, 4294901760
        %2477 = vmatpush1.msra.mxu0 %v2476
        %v2478 = vand.u32 %v1671, 4294901760
        %2479 = vmatprep.subr.mxu0 %v2478
        %v2480 = vand.u32 %v1670, 4294901760
        %2481 = vmatpush1.msra.mxu0 %v2480
        %v2482 = vand.u32 %v1674, 4294901760
        %2483 = vmatprep.subr.mxu0 %v2482
        %v2484 = vand.u32 %v1673, 4294901760
        %2485 = vmatpush1.msra.mxu0 %v2484
        %v2486 = vand.u32 %v1677, 4294901760
        %2487 = vmatprep.subr.mxu0 %v2486
        %v2488 = vand.u32 %v1676, 4294901760
        %2489 = vmatpush1.msra.mxu0 %v2488
        %v2490 = vand.u32 %v1680, 4294901760
        %2491 = vmatprep.subr.mxu0 %v2490
        %v2492 = vand.u32 %v1679, 4294901760
        %2493 = vmatpush1.msra.mxu0 %v2492
        %v2494 = vand.u32 %v1683, 4294901760
        %2495 = vmatprep.subr.mxu0 %v2494
        %v2496 = vand.u32 %v1682, 4294901760
        %2497 = vmatpush1.msra.mxu0 %v2496
        %v2498 = vand.u32 %v1686, 4294901760
        %2499 = vmatprep.subr.mxu0 %v2498
        %v2500 = vand.u32 %v1685, 4294901760
        %2501 = vmatpush1.msra.mxu0 %v2500
        %v2502 = vand.u32 %v1689, 4294901760
        %2503 = vmatprep.subr.mxu0 %v2502
        %v2504 = vand.u32 %v1688, 4294901760
        %2505 = vmatpush1.msra.mxu0 %v2504
        %2506 = vmatprep.subr.mxu0 0.0
        %2507 = vmatpush1.msra.mxu0 0.0
        %2508 = vmatprep.subr.mxu0 0.0
        %2509 = vmatpush1.msra.mxu0 0.0
        %2510 = vmatprep.subr.mxu0 0.0
        %2511 = vmatpush1.msra.mxu0 0.0
        %2512 = vmatprep.subr.mxu0 0.0
        %2513 = vmatpush1.msra.mxu0 0.0
        %2514 = vmatprep.subr.mxu0 0.0
        %2515 = vmatpush1.msra.mxu0 0.0
        %2516 = vmatprep.subr.mxu0 0.0
        %2517 = vmatpush1.msra.mxu0 0.0
        %2518 = vmatprep.subr.mxu0 0.0
        %2519 = vmatpush1.msra.mxu0 0.0
        %2520 = vmatprep.subr.mxu0 0.0
        %2521 = vmatpush1.msra.mxu0 0.0
        %2522 = vmatprep.subr.mxu0 0.0
        %2523 = vmatpush1.msra.mxu0 0.0
        %2524 = vmatprep.subr.mxu0 0.0
        %2525 = vmatpush1.msra.mxu0 0.0
        %2526 = vmatprep.subr.mxu0 0.0
        %2527 = vmatpush1.msra.mxu0 0.0
        %2528 = vmatprep.subr.mxu0 0.0
        %2529 = vmatpush1.msra.mxu0 0.0
        %2530 = vmatprep.subr.mxu0 0.0
        %2531 = vmatpush1.msra.mxu0 0.0
        %2532 = vmatprep.subr.mxu0 0.0
        %2533 = vmatpush1.msra.mxu0 0.0
        %2534 = vmatprep.subr.mxu0 0.0
        %2535 = vmatpush1.msra.mxu0 0.0
        %2536 = vmatprep.subr.mxu0 0.0
        %2537 = vmatpush1.msra.mxu0 0.0
        %2538 = vmatprep.mubr.f32.mxu0 0.0
        %v2539 = vand.u32 %v1636, 4294901760
        %2540 = vmatmul.mubr.f32.gmra.mrb[0].mxu0 %v2539
        %v2541 = vpop.f32.mrb[0].mxu0
        %v2542 = vadd.f32 %v2438, %v2541
        %v2543 = vpop.f32.mrb[0].mxu0
        %v2544 = vadd.f32 %v2440, %v2543
        %2545 = vdwg.mxu0
        %2546 = vmatprep.subr.mxu0 0.0
        %v2547 = vand.u32 %v1645, 4294901760
        %2548 = vmatpush1.msra.mxu0 %v2547
        %2549 = vmatprep.subr.mxu0 0.0
        %v2550 = vand.u32 %v1648, 4294901760
        %2551 = vmatpush1.msra.mxu0 %v2550
        %2552 = vmatprep.subr.mxu0 0.0
        %v2553 = vand.u32 %v1651, 4294901760
        %2554 = vmatpush1.msra.mxu0 %v2553
        %2555 = vmatprep.subr.mxu0 0.0
        %v2556 = vand.u32 %v1654, 4294901760
        %2557 = vmatpush1.msra.mxu0 %v2556
        %2558 = vmatprep.subr.mxu0 0.0
        %v2559 = vand.u32 %v1657, 4294901760
        %2560 = vmatpush1.msra.mxu0 %v2559
        %2561 = vmatprep.subr.mxu0 0.0
        %v2562 = vand.u32 %v1660, 4294901760
        %2563 = vmatpush1.msra.mxu0 %v2562
        %2564 = vmatprep.subr.mxu0 0.0
        %v2565 = vand.u32 %v1663, 4294901760
        %2566 = vmatpush1.msra.mxu0 %v2565
        %2567 = vmatprep.subr.mxu0 0.0
        %v2568 = vand.u32 %v1666, 4294901760
        %2569 = vmatpush1.msra.mxu0 %v2568
        %2570 = vmatprep.subr.mxu0 0.0
        %v2571 = vand.u32 %v1669, 4294901760
        %2572 = vmatpush1.msra.mxu0 %v2571
        %2573 = vmatprep.subr.mxu0 0.0
        %v2574 = vand.u32 %v1672, 4294901760
        %2575 = vmatpush1.msra.mxu0 %v2574
        %2576 = vmatprep.subr.mxu0 0.0
        %v2577 = vand.u32 %v1675, 4294901760
        %2578 = vmatpush1.msra.mxu0 %v2577
        %2579 = vmatprep.subr.mxu0 0.0
        %v2580 = vand.u32 %v1678, 4294901760
        %2581 = vmatpush1.msra.mxu0 %v2580
        %2582 = vmatprep.subr.mxu0 0.0
        %v2583 = vand.u32 %v1681, 4294901760
        %2584 = vmatpush1.msra.mxu0 %v2583
        %2585 = vmatprep.subr.mxu0 0.0
        %v2586 = vand.u32 %v1684, 4294901760
        %2587 = vmatpush1.msra.mxu0 %v2586
        %2588 = vmatprep.subr.mxu0 0.0
        %v2589 = vand.u32 %v1687, 4294901760
        %2590 = vmatpush1.msra.mxu0 %v2589
        %2591 = vmatprep.subr.mxu0 0.0
        %v2592 = vand.u32 %v1690, 4294901760
        %2593 = vmatpush1.msra.mxu0 %v2592
        %2594 = vmatprep.subr.mxu0 0.0
        %2595 = vmatpush1.msra.mxu0 0.0
        %2596 = vmatprep.subr.mxu0 0.0
        %2597 = vmatpush1.msra.mxu0 0.0
        %2598 = vmatprep.subr.mxu0 0.0
        %2599 = vmatpush1.msra.mxu0 0.0
        %2600 = vmatprep.subr.mxu0 0.0
        %2601 = vmatpush1.msra.mxu0 0.0
        %2602 = vmatprep.subr.mxu0 0.0
        %2603 = vmatpush1.msra.mxu0 0.0
        %2604 = vmatprep.subr.mxu0 0.0
        %2605 = vmatpush1.msra.mxu0 0.0
        %2606 = vmatprep.subr.mxu0 0.0
        %2607 = vmatpush1.msra.mxu0 0.0
        %2608 = vmatprep.subr.mxu0 0.0
        %2609 = vmatpush1.msra.mxu0 0.0
        %2610 = vmatprep.subr.mxu0 0.0
        %2611 = vmatpush1.msra.mxu0 0.0
        %2612 = vmatprep.subr.mxu0 0.0
        %2613 = vmatpush1.msra.mxu0 0.0
        %2614 = vmatprep.subr.mxu0 0.0
        %2615 = vmatpush1.msra.mxu0 0.0
        %2616 = vmatprep.subr.mxu0 0.0
        %2617 = vmatpush1.msra.mxu0 0.0
        %2618 = vmatprep.subr.mxu0 0.0
        %2619 = vmatpush1.msra.mxu0 0.0
        %2620 = vmatprep.subr.mxu0 0.0
        %2621 = vmatpush1.msra.mxu0 0.0
        %2622 = vmatprep.subr.mxu0 0.0
        %2623 = vmatpush1.msra.mxu0 0.0
        %2624 = vmatprep.subr.mxu0 0.0
        %2625 = vmatpush1.msra.mxu0 0.0
        %2626 = vmatprep.mubr.f32.mxu0 0.0
        %v2627 = vand.u32 %v1636, 4294901760
        %v2628 = vsub.f32 %v1636, %v2627
        %v2629 = vand.u32 %v2628, 4294901760
        %v2630 = vsub.f32 %v2628, %v2629
        %v2631 = vand.u32 %v2630, 4294901760
        %2632 = vmatmul.mubr.f32.gmra.mrb[0].mxu0 %v2631
        %v2633 = vpop.f32.mrb[0].mxu0
        %v2634 = vadd.f32 %v1632, %v2633
        %v2635 = vpop.f32.mrb[0].mxu0
        %2636 = vdwg.mxu0
        %2637 = vmatprep.subr.mxu0 0.0
        %v2638 = vand.u32 %v1645, 4294901760
        %v2639 = vsub.f32 %v1645, %v2638
        %v2640 = vand.u32 %v2639, 4294901760
        %v2641 = vsub.f32 %v2639, %v2640
        %v2642 = vand.u32 %v2641, 4294901760
        %2643 = vmatpush1.msra.mxu0 %v2642
        %2644 = vmatprep.subr.mxu0 0.0
        %v2645 = vand.u32 %v1648, 4294901760
        %v2646 = vsub.f32 %v1648, %v2645
        %v2647 = vand.u32 %v2646, 4294901760
        %v2648 = vsub.f32 %v2646, %v2647
        %v2649 = vand.u32 %v2648, 4294901760
        %2650 = vmatpush1.msra.mxu0 %v2649
        %2651 = vmatprep.subr.mxu0 0.0
        %v2652 = vand.u32 %v1651, 4294901760
        %v2653 = vsub.f32 %v1651, %v2652
        %v2654 = vand.u32 %v2653, 4294901760
        %v2655 = vsub.f32 %v2653, %v2654
        %v2656 = vand.u32 %v2655, 4294901760
        %2657 = vmatpush1.msra.mxu0 %v2656
        %2658 = vmatprep.subr.mxu0 0.0
        %v2659 = vand.u32 %v1654, 4294901760
        %v2660 = vsub.f32 %v1654, %v2659
        %v2661 = vand.u32 %v2660, 4294901760
        %v2662 = vsub.f32 %v2660, %v2661
        %v2663 = vand.u32 %v2662, 4294901760
        %2664 = vmatpush1.msra.mxu0 %v2663
        %2665 = vmatprep.subr.mxu0 0.0
        %v2666 = vand.u32 %v1657, 4294901760
        %v2667 = vsub.f32 %v1657, %v2666
        %v2668 = vand.u32 %v2667, 4294901760
        %v2669 = vsub.f32 %v2667, %v2668
        %v2670 = vand.u32 %v2669, 4294901760
        %2671 = vmatpush1.msra.mxu0 %v2670
        %2672 = vmatprep.subr.mxu0 0.0
        %v2673 = vand.u32 %v1660, 4294901760
        %v2674 = vsub.f32 %v1660, %v2673
        %v2675 = vand.u32 %v2674, 4294901760
        %v2676 = vsub.f32 %v2674, %v2675
        %v2677 = vand.u32 %v2676, 4294901760
        %2678 = vmatpush1.msra.mxu0 %v2677
        %2679 = vmatprep.subr.mxu0 0.0
        %v2680 = vand.u32 %v1663, 4294901760
        %v2681 = vsub.f32 %v1663, %v2680
        %v2682 = vand.u32 %v2681, 4294901760
        %v2683 = vsub.f32 %v2681, %v2682
        %v2684 = vand.u32 %v2683, 4294901760
        %2685 = vmatpush1.msra.mxu0 %v2684
        %2686 = vmatprep.subr.mxu0 0.0
        %v2687 = vand.u32 %v1666, 4294901760
        %v2688 = vsub.f32 %v1666, %v2687
        %v2689 = vand.u32 %v2688, 4294901760
        %v2690 = vsub.f32 %v2688, %v2689
        %v2691 = vand.u32 %v2690, 4294901760
        %2692 = vmatpush1.msra.mxu0 %v2691
        %2693 = vmatprep.subr.mxu0 0.0
        %v2694 = vand.u32 %v1669, 4294901760
        %v2695 = vsub.f32 %v1669, %v2694
        %v2696 = vand.u32 %v2695, 4294901760
        %v2697 = vsub.f32 %v2695, %v2696
        %v2698 = vand.u32 %v2697, 4294901760
        %2699 = vmatpush1.msra.mxu0 %v2698
        %2700 = vmatprep.subr.mxu0 0.0
        %v2701 = vand.u32 %v1672, 4294901760
        %v2702 = vsub.f32 %v1672, %v2701
        %v2703 = vand.u32 %v2702, 4294901760
        %v2704 = vsub.f32 %v2702, %v2703
        %v2705 = vand.u32 %v2704, 4294901760
        %2706 = vmatpush1.msra.mxu0 %v2705
        %2707 = vmatprep.subr.mxu0 0.0
        %v2708 = vand.u32 %v1675, 4294901760
        %v2709 = vsub.f32 %v1675, %v2708
        %v2710 = vand.u32 %v2709, 4294901760
        %v2711 = vsub.f32 %v2709, %v2710
        %v2712 = vand.u32 %v2711, 4294901760
        %2713 = vmatpush1.msra.mxu0 %v2712
        %2714 = vmatprep.subr.mxu0 0.0
        %v2715 = vand.u32 %v1678, 4294901760
        %v2716 = vsub.f32 %v1678, %v2715
        %v2717 = vand.u32 %v2716, 4294901760
        %v2718 = vsub.f32 %v2716, %v2717
        %v2719 = vand.u32 %v2718, 4294901760
        %2720 = vmatpush1.msra.mxu0 %v2719
        %2721 = vmatprep.subr.mxu0 0.0
        %v2722 = vand.u32 %v1681, 4294901760
        %v2723 = vsub.f32 %v1681, %v2722
        %v2724 = vand.u32 %v2723, 4294901760
        %v2725 = vsub.f32 %v2723, %v2724
        %v2726 = vand.u32 %v2725, 4294901760
        %2727 = vmatpush1.msra.mxu0 %v2726
        %2728 = vmatprep.subr.mxu0 0.0
        %v2729 = vand.u32 %v1684, 4294901760
        %v2730 = vsub.f32 %v1684, %v2729
        %v2731 = vand.u32 %v2730, 4294901760
        %v2732 = vsub.f32 %v2730, %v2731
        %v2733 = vand.u32 %v2732, 4294901760
        %2734 = vmatpush1.msra.mxu0 %v2733
        %2735 = vmatprep.subr.mxu0 0.0
        %v2736 = vand.u32 %v1687, 4294901760
        %v2737 = vsub.f32 %v1687, %v2736
        %v2738 = vand.u32 %v2737, 4294901760
        %v2739 = vsub.f32 %v2737, %v2738
        %v2740 = vand.u32 %v2739, 4294901760
        %2741 = vmatpush1.msra.mxu0 %v2740
        %2742 = vmatprep.subr.mxu0 0.0
        %v2743 = vand.u32 %v1690, 4294901760
        %v2744 = vsub.f32 %v1690, %v2743
        %v2745 = vand.u32 %v2744, 4294901760
        %v2746 = vsub.f32 %v2744, %v2745
        %v2747 = vand.u32 %v2746, 4294901760
        %2748 = vmatpush1.msra.mxu0 %v2747
        %2749 = vmatprep.subr.mxu0 0.0
        %2750 = vmatpush1.msra.mxu0 0.0
        %2751 = vmatprep.subr.mxu0 0.0
        %2752 = vmatpush1.msra.mxu0 0.0
        %2753 = vmatprep.subr.mxu0 0.0
        %2754 = vmatpush1.msra.mxu0 0.0
        %2755 = vmatprep.subr.mxu0 0.0
        %2756 = vmatpush1.msra.mxu0 0.0
        %2757 = vmatprep.subr.mxu0 0.0
        %2758 = vmatpush1.msra.mxu0 0.0
        %2759 = vmatprep.subr.mxu0 0.0
        %2760 = vmatpush1.msra.mxu0 0.0
        %2761 = vmatprep.subr.mxu0 0.0
        %2762 = vmatpush1.msra.mxu0 0.0
        %2763 = vmatprep.subr.mxu0 0.0
        %2764 = vmatpush1.msra.mxu0 0.0
        %2765 = vmatprep.subr.mxu0 0.0
        %2766 = vmatpush1.msra.mxu0 0.0
        %2767 = vmatprep.subr.mxu0 0.0
        %2768 = vmatpush1.msra.mxu0 0.0
        %2769 = vmatprep.subr.mxu0 0.0
        %2770 = vmatpush1.msra.mxu0 0.0
        %2771 = vmatprep.subr.mxu0 0.0
        %2772 = vmatpush1.msra.mxu0 0.0
        %2773 = vmatprep.subr.mxu0 0.0
        %2774 = vmatpush1.msra.mxu0 0.0
        %2775 = vmatprep.subr.mxu0 0.0
        %2776 = vmatpush1.msra.mxu0 0.0
        %2777 = vmatprep.subr.mxu0 0.0
        %2778 = vmatpush1.msra.mxu0 0.0
        %2779 = vmatprep.subr.mxu0 0.0
        %2780 = vmatpush1.msra.mxu0 0.0
        %2781 = vmatprep.mubr.f32.mxu0 0.0
        %v2782 = vand.u32 %v1636, 4294901760
        %2783 = vmatmul.mubr.f32.gmra.mrb[0].mxu0 %v2782
        %v2784 = vpop.f32.mrb[0].mxu0
        %v2785 = vadd.f32 %v2634, %v2784
        %v2786 = vpop.f32.mrb[0].mxu0
        %2787 = vdwg.mxu0
        %2788 = vmatprep.subr.mxu0 0.0
        %v2789 = vand.u32 %v1645, 4294901760
        %v2790 = vsub.f32 %v1645, %v2789
        %2791 = vmatpush1.msra.mxu0 %v2790
        %2792 = vmatprep.subr.mxu0 0.0
        %v2793 = vand.u32 %v1648, 4294901760
        %v2794 = vsub.f32 %v1648, %v2793
        %2795 = vmatpush1.msra.mxu0 %v2794
        %2796 = vmatprep.subr.mxu0 0.0
        %v2797 = vand.u32 %v1651, 4294901760
        %v2798 = vsub.f32 %v1651, %v2797
        %2799 = vmatpush1.msra.mxu0 %v2798
        %2800 = vmatprep.subr.mxu0 0.0
        %v2801 = vand.u32 %v1654, 4294901760
        %v2802 = vsub.f32 %v1654, %v2801
        %2803 = vmatpush1.msra.mxu0 %v2802
        %2804 = vmatprep.subr.mxu0 0.0
        %v2805 = vand.u32 %v1657, 4294901760
        %v2806 = vsub.f32 %v1657, %v2805
        %2807 = vmatpush1.msra.mxu0 %v2806
        %2808 = vmatprep.subr.mxu0 0.0
        %v2809 = vand.u32 %v1660, 4294901760
        %v2810 = vsub.f32 %v1660, %v2809
        %2811 = vmatpush1.msra.mxu0 %v2810
        %2812 = vmatprep.subr.mxu0 0.0
        %v2813 = vand.u32 %v1663, 4294901760
        %v2814 = vsub.f32 %v1663, %v2813
        %2815 = vmatpush1.msra.mxu0 %v2814
        %2816 = vmatprep.subr.mxu0 0.0
        %v2817 = vand.u32 %v1666, 4294901760
        %v2818 = vsub.f32 %v1666, %v2817
        %2819 = vmatpush1.msra.mxu0 %v2818
        %2820 = vmatprep.subr.mxu0 0.0
        %v2821 = vand.u32 %v1669, 4294901760
        %v2822 = vsub.f32 %v1669, %v2821
        %2823 = vmatpush1.msra.mxu0 %v2822
        %2824 = vmatprep.subr.mxu0 0.0
        %v2825 = vand.u32 %v1672, 4294901760
        %v2826 = vsub.f32 %v1672, %v2825
        %2827 = vmatpush1.msra.mxu0 %v2826
        %2828 = vmatprep.subr.mxu0 0.0
        %v2829 = vand.u32 %v1675, 4294901760
        %v2830 = vsub.f32 %v1675, %v2829
        %2831 = vmatpush1.msra.mxu0 %v2830
        %2832 = vmatprep.subr.mxu0 0.0
        %v2833 = vand.u32 %v1678, 4294901760
        %v2834 = vsub.f32 %v1678, %v2833
        %2835 = vmatpush1.msra.mxu0 %v2834
        %2836 = vmatprep.subr.mxu0 0.0
        %v2837 = vand.u32 %v1681, 4294901760
        %v2838 = vsub.f32 %v1681, %v2837
        %2839 = vmatpush1.msra.mxu0 %v2838
        %2840 = vmatprep.subr.mxu0 0.0
        %v2841 = vand.u32 %v1684, 4294901760
        %v2842 = vsub.f32 %v1684, %v2841
        %2843 = vmatpush1.msra.mxu0 %v2842
        %2844 = vmatprep.subr.mxu0 0.0
        %v2845 = vand.u32 %v1687, 4294901760
        %v2846 = vsub.f32 %v1687, %v2845
        %2847 = vmatpush1.msra.mxu0 %v2846
        %2848 = vmatprep.subr.mxu0 0.0
        %v2849 = vand.u32 %v1690, 4294901760
        %v2850 = vsub.f32 %v1690, %v2849
        %2851 = vmatpush1.msra.mxu0 %v2850
        %2852 = vmatprep.subr.mxu0 0.0
        %2853 = vmatpush1.msra.mxu0 0.0
        %2854 = vmatprep.subr.mxu0 0.0
        %2855 = vmatpush1.msra.mxu0 0.0
        %2856 = vmatprep.subr.mxu0 0.0
        %2857 = vmatpush1.msra.mxu0 0.0
        %2858 = vmatprep.subr.mxu0 0.0
        %2859 = vmatpush1.msra.mxu0 0.0
        %2860 = vmatprep.subr.mxu0 0.0
        %2861 = vmatpush1.msra.mxu0 0.0
        %2862 = vmatprep.subr.mxu0 0.0
        %2863 = vmatpush1.msra.mxu0 0.0
        %2864 = vmatprep.subr.mxu0 0.0
        %2865 = vmatpush1.msra.mxu0 0.0
        %2866 = vmatprep.subr.mxu0 0.0
        %2867 = vmatpush1.msra.mxu0 0.0
        %2868 = vmatprep.subr.mxu0 0.0
        %2869 = vmatpush1.msra.mxu0 0.0
        %2870 = vmatprep.subr.mxu0 0.0
        %2871 = vmatpush1.msra.mxu0 0.0
        %2872 = vmatprep.subr.mxu0 0.0
        %2873 = vmatpush1.msra.mxu0 0.0
        %2874 = vmatprep.subr.mxu0 0.0
        %2875 = vmatpush1.msra.mxu0 0.0
        %2876 = vmatprep.subr.mxu0 0.0
        %2877 = vmatpush1.msra.mxu0 0.0
        %2878 = vmatprep.subr.mxu0 0.0
        %2879 = vmatpush1.msra.mxu0 0.0
        %2880 = vmatprep.subr.mxu0 0.0
        %2881 = vmatpush1.msra.mxu0 0.0
        %2882 = vmatprep.subr.mxu0 0.0
        %2883 = vmatpush1.msra.mxu0 0.0
        %2884 = vmatprep.mubr.f32.mxu0 0.0
        %v2885 = vand.u32 %v1636, 4294901760
        %v2886 = vsub.f32 %v1636, %v2885
        %2887 = vmatmul.mubr.f32.gmra.mrb[0].mxu0 %v2886
        %v2888 = vpop.f32.mrb[0].mxu0
        %v2889 = vadd.f32 %v2785, %v2888
        %v2890 = vpop.f32.mrb[0].mxu0
        %2891 = vdwg.mxu0
        %2892 = vmatprep.subr.mxu0 0.0
        %v2893 = vand.u32 %v1645, 4294901760
        %2894 = vmatpush1.msra.mxu0 %v2893
        %2895 = vmatprep.subr.mxu0 0.0
        %v2896 = vand.u32 %v1648, 4294901760
        %2897 = vmatpush1.msra.mxu0 %v2896
        %2898 = vmatprep.subr.mxu0 0.0
        %v2899 = vand.u32 %v1651, 4294901760
        %2900 = vmatpush1.msra.mxu0 %v2899
        %2901 = vmatprep.subr.mxu0 0.0
        %v2902 = vand.u32 %v1654, 4294901760
        %2903 = vmatpush1.msra.mxu0 %v2902
        %2904 = vmatprep.subr.mxu0 0.0
        %v2905 = vand.u32 %v1657, 4294901760
        %2906 = vmatpush1.msra.mxu0 %v2905
        %2907 = vmatprep.subr.mxu0 0.0
        %v2908 = vand.u32 %v1660, 4294901760
        %2909 = vmatpush1.msra.mxu0 %v2908
        %2910 = vmatprep.subr.mxu0 0.0
        %v2911 = vand.u32 %v1663, 4294901760
        %2912 = vmatpush1.msra.mxu0 %v2911
        %2913 = vmatprep.subr.mxu0 0.0
        %v2914 = vand.u32 %v1666, 4294901760
        %2915 = vmatpush1.msra.mxu0 %v2914
        %2916 = vmatprep.subr.mxu0 0.0
        %v2917 = vand.u32 %v1669, 4294901760
        %2918 = vmatpush1.msra.mxu0 %v2917
        %2919 = vmatprep.subr.mxu0 0.0
        %v2920 = vand.u32 %v1672, 4294901760
        %2921 = vmatpush1.msra.mxu0 %v2920
        %2922 = vmatprep.subr.mxu0 0.0
        %v2923 = vand.u32 %v1675, 4294901760
        %2924 = vmatpush1.msra.mxu0 %v2923
        %2925 = vmatprep.subr.mxu0 0.0
        %v2926 = vand.u32 %v1678, 4294901760
        %2927 = vmatpush1.msra.mxu0 %v2926
        %2928 = vmatprep.subr.mxu0 0.0
        %v2929 = vand.u32 %v1681, 4294901760
        %2930 = vmatpush1.msra.mxu0 %v2929
        %2931 = vmatprep.subr.mxu0 0.0
        %v2932 = vand.u32 %v1684, 4294901760
        %2933 = vmatpush1.msra.mxu0 %v2932
        %2934 = vmatprep.subr.mxu0 0.0
        %v2935 = vand.u32 %v1687, 4294901760
        %2936 = vmatpush1.msra.mxu0 %v2935
        %2937 = vmatprep.subr.mxu0 0.0
        %v2938 = vand.u32 %v1690, 4294901760
        %2939 = vmatpush1.msra.mxu0 %v2938
        %2940 = vmatprep.subr.mxu0 0.0
        %2941 = vmatpush1.msra.mxu0 0.0
        %2942 = vmatprep.subr.mxu0 0.0
        %2943 = vmatpush1.msra.mxu0 0.0
        %2944 = vmatprep.subr.mxu0 0.0
        %2945 = vmatpush1.msra.mxu0 0.0
        %2946 = vmatprep.subr.mxu0 0.0
        %2947 = vmatpush1.msra.mxu0 0.0
        %2948 = vmatprep.subr.mxu0 0.0
        %2949 = vmatpush1.msra.mxu0 0.0
        %2950 = vmatprep.subr.mxu0 0.0
        %2951 = vmatpush1.msra.mxu0 0.0
        %2952 = vmatprep.subr.mxu0 0.0
        %2953 = vmatpush1.msra.mxu0 0.0
        %2954 = vmatprep.subr.mxu0 0.0
        %2955 = vmatpush1.msra.mxu0 0.0
        %2956 = vmatprep.subr.mxu0 0.0
        %2957 = vmatpush1.msra.mxu0 0.0
        %2958 = vmatprep.subr.mxu0 0.0
        %2959 = vmatpush1.msra.mxu0 0.0
        %2960 = vmatprep.subr.mxu0 0.0
        %2961 = vmatpush1.msra.mxu0 0.0
        %2962 = vmatprep.subr.mxu0 0.0
        %2963 = vmatpush1.msra.mxu0 0.0
        %2964 = vmatprep.subr.mxu0 0.0
        %2965 = vmatpush1.msra.mxu0 0.0
        %2966 = vmatprep.subr.mxu0 0.0
        %2967 = vmatpush1.msra.mxu0 0.0
        %2968 = vmatprep.subr.mxu0 0.0
        %2969 = vmatpush1.msra.mxu0 0.0
        %2970 = vmatprep.subr.mxu0 0.0
        %2971 = vmatpush1.msra.mxu0 0.0
        %2972 = vmatprep.mubr.f32.mxu0 0.0
        %v2973 = vand.u32 %v1636, 4294901760
        %v2974 = vsub.f32 %v1636, %v2973
        %v2975 = vand.u32 %v2974, 4294901760
        %2976 = vmatmul.mubr.f32.gmra.mrb[0].mxu0 %v2975
        %v2977 = vpop.f32.mrb[0].mxu0
        %v2978 = vadd.f32 %v2889, %v2977
        %v2979 = vpop.f32.mrb[0].mxu0
        %2980 = vdwg.mxu0
        %2981 = vmatprep.subr.mxu0 0.0
        %v2982 = vand.u32 %v1645, 4294901760
        %v2983 = vsub.f32 %v1645, %v2982
        %v2984 = vand.u32 %v2983, 4294901760
        %2985 = vmatpush1.msra.mxu0 %v2984
        %2986 = vmatprep.subr.mxu0 0.0
        %v2987 = vand.u32 %v1648, 4294901760
        %v2988 = vsub.f32 %v1648, %v2987
        %v2989 = vand.u32 %v2988, 4294901760
        %2990 = vmatpush1.msra.mxu0 %v2989
        %2991 = vmatprep.subr.mxu0 0.0
        %v2992 = vand.u32 %v1651, 4294901760
        %v2993 = vsub.f32 %v1651, %v2992
        %v2994 = vand.u32 %v2993, 4294901760
        %2995 = vmatpush1.msra.mxu0 %v2994
        %2996 = vmatprep.subr.mxu0 0.0
        %v2997 = vand.u32 %v1654, 4294901760
        %v2998 = vsub.f32 %v1654, %v2997
        %v2999 = vand.u32 %v2998, 4294901760
        %3000 = vmatpush1.msra.mxu0 %v2999
        %3001 = vmatprep.subr.mxu0 0.0
        %v3002 = vand.u32 %v1657, 4294901760
        %v3003 = vsub.f32 %v1657, %v3002
        %v3004 = vand.u32 %v3003, 4294901760
        %3005 = vmatpush1.msra.mxu0 %v3004
        %3006 = vmatprep.subr.mxu0 0.0
        %v3007 = vand.u32 %v1660, 4294901760
        %v3008 = vsub.f32 %v1660, %v3007
        %v3009 = vand.u32 %v3008, 4294901760
        %3010 = vmatpush1.msra.mxu0 %v3009
        %3011 = vmatprep.subr.mxu0 0.0
        %v3012 = vand.u32 %v1663, 4294901760
        %v3013 = vsub.f32 %v1663, %v3012
        %v3014 = vand.u32 %v3013, 4294901760
        %3015 = vmatpush1.msra.mxu0 %v3014
        %3016 = vmatprep.subr.mxu0 0.0
        %v3017 = vand.u32 %v1666, 4294901760
        %v3018 = vsub.f32 %v1666, %v3017
        %v3019 = vand.u32 %v3018, 4294901760
        %3020 = vmatpush1.msra.mxu0 %v3019
        %3021 = vmatprep.subr.mxu0 0.0
        %v3022 = vand.u32 %v1669, 4294901760
        %v3023 = vsub.f32 %v1669, %v3022
        %v3024 = vand.u32 %v3023, 4294901760
        %3025 = vmatpush1.msra.mxu0 %v3024
        %3026 = vmatprep.subr.mxu0 0.0
        %v3027 = vand.u32 %v1672, 4294901760
        %v3028 = vsub.f32 %v1672, %v3027
        %v3029 = vand.u32 %v3028, 4294901760
        %3030 = vmatpush1.msra.mxu0 %v3029
        %3031 = vmatprep.subr.mxu0 0.0
        %v3032 = vand.u32 %v1675, 4294901760
        %v3033 = vsub.f32 %v1675, %v3032
        %v3034 = vand.u32 %v3033, 4294901760
        %3035 = vmatpush1.msra.mxu0 %v3034
        %3036 = vmatprep.subr.mxu0 0.0
        %v3037 = vand.u32 %v1678, 4294901760
        %v3038 = vsub.f32 %v1678, %v3037
        %v3039 = vand.u32 %v3038, 4294901760
        %3040 = vmatpush1.msra.mxu0 %v3039
        %3041 = vmatprep.subr.mxu0 0.0
        %v3042 = vand.u32 %v1681, 4294901760
        %v3043 = vsub.f32 %v1681, %v3042
        %v3044 = vand.u32 %v3043, 4294901760
        %3045 = vmatpush1.msra.mxu0 %v3044
        %3046 = vmatprep.subr.mxu0 0.0
        %v3047 = vand.u32 %v1684, 4294901760
        %v3048 = vsub.f32 %v1684, %v3047
        %v3049 = vand.u32 %v3048, 4294901760
        %3050 = vmatpush1.msra.mxu0 %v3049
        %3051 = vmatprep.subr.mxu0 0.0
        %v3052 = vand.u32 %v1687, 4294901760
        %v3053 = vsub.f32 %v1687, %v3052
        %v3054 = vand.u32 %v3053, 4294901760
        %3055 = vmatpush1.msra.mxu0 %v3054
        %3056 = vmatprep.subr.mxu0 0.0
        %v3057 = vand.u32 %v1690, 4294901760
        %v3058 = vsub.f32 %v1690, %v3057
        %v3059 = vand.u32 %v3058, 4294901760
        %3060 = vmatpush1.msra.mxu0 %v3059
        %3061 = vmatprep.subr.mxu0 0.0
        %3062 = vmatpush1.msra.mxu0 0.0
        %3063 = vmatprep.subr.mxu0 0.0
        %3064 = vmatpush1.msra.mxu0 0.0
        %3065 = vmatprep.subr.mxu0 0.0
        %3066 = vmatpush1.msra.mxu0 0.0
        %3067 = vmatprep.subr.mxu0 0.0
        %3068 = vmatpush1.msra.mxu0 0.0
        %3069 = vmatprep.subr.mxu0 0.0
        %3070 = vmatpush1.msra.mxu0 0.0
        %3071 = vmatprep.subr.mxu0 0.0
        %3072 = vmatpush1.msra.mxu0 0.0
        %3073 = vmatprep.subr.mxu0 0.0
        %3074 = vmatpush1.msra.mxu0 0.0
        %3075 = vmatprep.subr.mxu0 0.0
        %3076 = vmatpush1.msra.mxu0 0.0
        %3077 = vmatprep.subr.mxu0 0.0
        %3078 = vmatpush1.msra.mxu0 0.0
        %3079 = vmatprep.subr.mxu0 0.0
        %3080 = vmatpush1.msra.mxu0 0.0
        %3081 = vmatprep.subr.mxu0 0.0
        %3082 = vmatpush1.msra.mxu0 0.0
        %3083 = vmatprep.subr.mxu0 0.0
        %3084 = vmatpush1.msra.mxu0 0.0
        %3085 = vmatprep.subr.mxu0 0.0
        %3086 = vmatpush1.msra.mxu0 0.0
        %3087 = vmatprep.subr.mxu0 0.0
        %3088 = vmatpush1.msra.mxu0 0.0
        %3089 = vmatprep.subr.mxu0 0.0
        %3090 = vmatpush1.msra.mxu0 0.0
        %3091 = vmatprep.subr.mxu0 0.0
        %3092 = vmatpush1.msra.mxu0 0.0
        %3093 = vmatprep.mubr.f32.mxu0 0.0
        %v3094 = vand.u32 %v1636, 4294901760
        %3095 = vmatmul.mubr.f32.gmra.mrb[0].mxu0 %v3094
        %v3096 = vpop.f32.mrb[0].mxu0
        %v3097 = vadd.f32 %v2978, %v3096
        %v3098 = vpop.f32.mrb[0].mxu0
        %3099 = vdwg.mxu0
        %3100 = vmatprep.subr.mxu0 0.0
        %v3101 = vand.u32 %v1645, 4294901760
        %3102 = vmatpush1.msra.mxu0 %v3101
        %3103 = vmatprep.subr.mxu0 0.0
        %v3104 = vand.u32 %v1648, 4294901760
        %3105 = vmatpush1.msra.mxu0 %v3104
        %3106 = vmatprep.subr.mxu0 0.0
        %v3107 = vand.u32 %v1651, 4294901760
        %3108 = vmatpush1.msra.mxu0 %v3107
        %3109 = vmatprep.subr.mxu0 0.0
        %v3110 = vand.u32 %v1654, 4294901760
        %3111 = vmatpush1.msra.mxu0 %v3110
        %3112 = vmatprep.subr.mxu0 0.0
        %v3113 = vand.u32 %v1657, 4294901760
        %3114 = vmatpush1.msra.mxu0 %v3113
        %3115 = vmatprep.subr.mxu0 0.0
        %v3116 = vand.u32 %v1660, 4294901760
        %3117 = vmatpush1.msra.mxu0 %v3116
        %3118 = vmatprep.subr.mxu0 0.0
        %v3119 = vand.u32 %v1663, 4294901760
        %3120 = vmatpush1.msra.mxu0 %v3119
        %3121 = vmatprep.subr.mxu0 0.0
        %v3122 = vand.u32 %v1666, 4294901760
        %3123 = vmatpush1.msra.mxu0 %v3122
        %3124 = vmatprep.subr.mxu0 0.0
        %v3125 = vand.u32 %v1669, 4294901760
        %3126 = vmatpush1.msra.mxu0 %v3125
        %3127 = vmatprep.subr.mxu0 0.0
        %v3128 = vand.u32 %v1672, 4294901760
        %3129 = vmatpush1.msra.mxu0 %v3128
        %3130 = vmatprep.subr.mxu0 0.0
        %v3131 = vand.u32 %v1675, 4294901760
        %3132 = vmatpush1.msra.mxu0 %v3131
        %3133 = vmatprep.subr.mxu0 0.0
        %v3134 = vand.u32 %v1678, 4294901760
        %3135 = vmatpush1.msra.mxu0 %v3134
        %3136 = vmatprep.subr.mxu0 0.0
        %v3137 = vand.u32 %v1681, 4294901760
        %3138 = vmatpush1.msra.mxu0 %v3137
        %3139 = vmatprep.subr.mxu0 0.0
        %v3140 = vand.u32 %v1684, 4294901760
        %3141 = vmatpush1.msra.mxu0 %v3140
        %3142 = vmatprep.subr.mxu0 0.0
        %v3143 = vand.u32 %v1687, 4294901760
        %3144 = vmatpush1.msra.mxu0 %v3143
        %3145 = vmatprep.subr.mxu0 0.0
        %v3146 = vand.u32 %v1690, 4294901760
        %3147 = vmatpush1.msra.mxu0 %v3146
        %3148 = vmatprep.subr.mxu0 0.0
        %3149 = vmatpush1.msra.mxu0 0.0
        %3150 = vmatprep.subr.mxu0 0.0
        %3151 = vmatpush1.msra.mxu0 0.0
        %3152 = vmatprep.subr.mxu0 0.0
        %3153 = vmatpush1.msra.mxu0 0.0
        %3154 = vmatprep.subr.mxu0 0.0
        %3155 = vmatpush1.msra.mxu0 0.0
        %3156 = vmatprep.subr.mxu0 0.0
        %3157 = vmatpush1.msra.mxu0 0.0
        %3158 = vmatprep.subr.mxu0 0.0
        %3159 = vmatpush1.msra.mxu0 0.0
        %3160 = vmatprep.subr.mxu0 0.0
        %3161 = vmatpush1.msra.mxu0 0.0
        %3162 = vmatprep.subr.mxu0 0.0
        %3163 = vmatpush1.msra.mxu0 0.0
        %3164 = vmatprep.subr.mxu0 0.0
        %3165 = vmatpush1.msra.mxu0 0.0
        %3166 = vmatprep.subr.mxu0 0.0
        %3167 = vmatpush1.msra.mxu0 0.0
        %3168 = vmatprep.subr.mxu0 0.0
        %3169 = vmatpush1.msra.mxu0 0.0
        %3170 = vmatprep.subr.mxu0 0.0
        %3171 = vmatpush1.msra.mxu0 0.0
        %3172 = vmatprep.subr.mxu0 0.0
        %3173 = vmatpush1.msra.mxu0 0.0
        %3174 = vmatprep.subr.mxu0 0.0
        %3175 = vmatpush1.msra.mxu0 0.0
        %3176 = vmatprep.subr.mxu0 0.0
        %3177 = vmatpush1.msra.mxu0 0.0
        %3178 = vmatprep.subr.mxu0 0.0
        %3179 = vmatpush1.msra.mxu0 0.0
        %3180 = vmatprep.mubr.f32.mxu0 0.0
        %v3181 = vand.u32 %v1636, 4294901760
        %3182 = vmatmul.mubr.f32.gmra.mrb[0].mxu0 %v3181
        %v3183 = vpop.f32.mrb[0].mxu0
        %v3184 = vadd.f32 %v3097, %v3183
        %v3185 = vpop.f32.mrb[0].mxu0
        %3186 = vdwg.mxu0
        %v3187 = vadd.f32 %v1640, %v2542
        %v3188 = vadd.f32 %v1641, %v2544
        %v3189 = vxor.u32 %v3187, 2147483648
        %v3190 = vxor.u32 %v3188, 2147483648
        %v3191 = vmul.f32 %v3189, 1.442695
        %v3192 = vpow.pop %v3191
        %v3193 = vmul.f32 %v3190, 1.442695
        %v3194 = vpow.pop %v3193
        %v3195 = vadd.f32 %v3192, 1.0
        %v3196 = vadd.f32 %v3194, 1.0
        %v3197 = vrcp.pop %v3195
        %v3198 = vmul.f32 1.0, %v3197
        %v3199 = vrcp.pop %v3196
        %v3200 = vmul.f32 1.0, %v3199
        %v3201 = vmul.f32 %v3198, %v3184
        %v3202 = vadd.f32 %v1642, %v3201
        %v3203 = vtanh.pop %v3202
        %v3204 = vsub.f32 1.0, %v3200
        %v3205 = vmul.f32 %v3204, %v3203
        %v3206 = vmul.f32 %v3200, %v1636
        %v3207 = vadd.f32 %v3205, %v3206
        %s3208 = smul.u32 %s27, 4
        %p3209 = scmp.lt.s32.totalorder %s3208, 11
        %s3210 = scalar_select %p3209, 1, 0
        %v3211 = vstv %s3210
        %vm3212 = vcmp.eq.s32.totalorder %v3211, 1
        %v3213 = vsel %vm3212, %v3207, %v1636
        %s3214 = smul.u32 2, 3
        %s3215 = smul.addr %s3214, 8
        %s3216 = scalar_lea.vmem [#allocation2], %s3215
        %v3217 = vld [vmem:[%s3216] sm:$0xff]
        %v3218 = vld [vmem:[%s3216 + $0x8] sm:$0xff]
        %v3219 = vld [vmem:[%s3216 + $0x10] sm:$0xff]
        %v3220 = vand.u32 %v1644, 4294901760
        %3221 = vmatprep.subr.mxu0 %v3220
        %v3222 = vand.u32 %v1643, 4294901760
        %3223 = vmatpush1.msra.mxu0 %v3222
        %v3224 = vand.u32 %v1647, 4294901760
        %3225 = vmatprep.subr.mxu0 %v3224
        %v3226 = vand.u32 %v1646, 4294901760
        %3227 = vmatpush1.msra.mxu0 %v3226
        %v3228 = vand.u32 %v1650, 4294901760
        %3229 = vmatprep.subr.mxu0 %v3228
        %v3230 = vand.u32 %v1649, 4294901760
        %3231 = vmatpush1.msra.mxu0 %v3230
        %v3232 = vand.u32 %v1653, 4294901760
        %3233 = vmatprep.subr.mxu0 %v3232
        %v3234 = vand.u32 %v1652, 4294901760
        %3235 = vmatpush1.msra.mxu0 %v3234
        %v3236 = vand.u32 %v1656, 4294901760
        %3237 = vmatprep.subr.mxu0 %v3236
        %v3238 = vand.u32 %v1655, 4294901760
        %3239 = vmatpush1.msra.mxu0 %v3238
        %v3240 = vand.u32 %v1659, 4294901760
        %3241 = vmatprep.subr.mxu0 %v3240
        %v3242 = vand.u32 %v1658, 4294901760
        %3243 = vmatpush1.msra.mxu0 %v3242
        %v3244 = vand.u32 %v1662, 4294901760
        %3245 = vmatprep.subr.mxu0 %v3244
        %v3246 = vand.u32 %v1661, 4294901760
        %3247 = vmatpush1.msra.mxu0 %v3246
        %v3248 = vand.u32 %v1665, 4294901760
        %3249 = vmatprep.subr.mxu0 %v3248
        %v3250 = vand.u32 %v1664, 4294901760
        %3251 = vmatpush1.msra.mxu0 %v3250
        %v3252 = vand.u32 %v1668, 4294901760
        %3253 = vmatprep.subr.mxu0 %v3252
        %v3254 = vand.u32 %v1667, 4294901760
        %3255 = vmatpush1.msra.mxu0 %v3254
        %v3256 = vand.u32 %v1671, 4294901760
        %3257 = vmatprep.subr.mxu0 %v3256
        %v3258 = vand.u32 %v1670, 4294901760
        %3259 = vmatpush1.msra.mxu0 %v3258
        %v3260 = vand.u32 %v1674, 4294901760
        %3261 = vmatprep.subr.mxu0 %v3260
        %v3262 = vand.u32 %v1673, 4294901760
        %3263 = vmatpush1.msra.mxu0 %v3262
        %v3264 = vand.u32 %v1677, 4294901760
        %3265 = vmatprep.subr.mxu0 %v3264
        %v3266 = vand.u32 %v1676, 4294901760
        %3267 = vmatpush1.msra.mxu0 %v3266
        %v3268 = vand.u32 %v1680, 4294901760
        %3269 = vmatprep.subr.mxu0 %v3268
        %v3270 = vand.u32 %v1679, 4294901760
        %3271 = vmatpush1.msra.mxu0 %v3270
        %v3272 = vand.u32 %v1683, 4294901760
        %3273 = vmatprep.subr.mxu0 %v3272
        %v3274 = vand.u32 %v1682, 4294901760
        %3275 = vmatpush1.msra.mxu0 %v3274
        %v3276 = vand.u32 %v1686, 4294901760
        %3277 = vmatprep.subr.mxu0 %v3276
        %v3278 = vand.u32 %v1685, 4294901760
        %3279 = vmatpush1.msra.mxu0 %v3278
        %v3280 = vand.u32 %v1689, 4294901760
        %3281 = vmatprep.subr.mxu0 %v3280
        %v3282 = vand.u32 %v1688, 4294901760
        %3283 = vmatpush1.msra.mxu0 %v3282
        %3284 = vmatprep.subr.mxu0 0.0
        %3285 = vmatpush1.msra.mxu0 0.0
        %3286 = vmatprep.subr.mxu0 0.0
        %3287 = vmatpush1.msra.mxu0 0.0
        %3288 = vmatprep.subr.mxu0 0.0
        %3289 = vmatpush1.msra.mxu0 0.0
        %3290 = vmatprep.subr.mxu0 0.0
        %3291 = vmatpush1.msra.mxu0 0.0
        %3292 = vmatprep.subr.mxu0 0.0
        %3293 = vmatpush1.msra.mxu0 0.0
        %3294 = vmatprep.subr.mxu0 0.0
        %3295 = vmatpush1.msra.mxu0 0.0
        %3296 = vmatprep.subr.mxu0 0.0
        %3297 = vmatpush1.msra.mxu0 0.0
        %3298 = vmatprep.subr.mxu0 0.0
        %3299 = vmatpush1.msra.mxu0 0.0
        %3300 = vmatprep.subr.mxu0 0.0
        %3301 = vmatpush1.msra.mxu0 0.0
        %3302 = vmatprep.subr.mxu0 0.0
        %3303 = vmatpush1.msra.mxu0 0.0
        %3304 = vmatprep.subr.mxu0 0.0
        %3305 = vmatpush1.msra.mxu0 0.0
        %3306 = vmatprep.subr.mxu0 0.0
        %3307 = vmatpush1.msra.mxu0 0.0
        %3308 = vmatprep.subr.mxu0 0.0
        %3309 = vmatpush1.msra.mxu0 0.0
        %3310 = vmatprep.subr.mxu0 0.0
        %3311 = vmatpush1.msra.mxu0 0.0
        %3312 = vmatprep.subr.mxu0 0.0
        %3313 = vmatpush1.msra.mxu0 0.0
        %3314 = vmatprep.subr.mxu0 0.0
        %3315 = vmatpush1.msra.mxu0 0.0
        %3316 = vmatprep.mubr.f32.mxu0 0.0
        %v3317 = vand.u32 %v3213, 4294901760
        %v3318 = vsub.f32 %v3213, %v3317
        %v3319 = vand.u32 %v3318, 4294901760
        %v3320 = vsub.f32 %v3318, %v3319
        %v3321 = vand.u32 %v3320, 4294901760
        %3322 = vmatmul.mubr.f32.gmra.mrb[0].mxu0 %v3321
        %v3323 = vpop.f32.mrb[0].mxu0
        %v3324 = vadd.f32 %v1624, %v3323
        %v3325 = vpop.f32.mrb[0].mxu0
        %v3326 = vadd.f32 %v1628, %v3325
        %3327 = vdwg.mxu0
        %v3328 = vand.u32 %v1644, 4294901760
        %v3329 = vsub.f32 %v1644, %v3328
        %v3330 = vand.u32 %v3329, 4294901760
        %v3331 = vsub.f32 %v3329, %v3330
        %v3332 = vand.u32 %v3331, 4294901760
        %3333 = vmatprep.subr.mxu0 %v3332
        %v3334 = vand.u32 %v1643, 4294901760
        %v3335 = vsub.f32 %v1643, %v3334
        %v3336 = vand.u32 %v3335, 4294901760
        %v3337 = vsub.f32 %v3335, %v3336
        %v3338 = vand.u32 %v3337, 4294901760
        %3339 = vmatpush1.msra.mxu0 %v3338
        %v3340 = vand.u32 %v1647, 4294901760
        %v3341 = vsub.f32 %v1647, %v3340
        %v3342 = vand.u32 %v3341, 4294901760
        %v3343 = vsub.f32 %v3341, %v3342
        %v3344 = vand.u32 %v3343, 4294901760
        %3345 = vmatprep.subr.mxu0 %v3344
        %v3346 = vand.u32 %v1646, 4294901760
        %v3347 = vsub.f32 %v1646, %v3346
        %v3348 = vand.u32 %v3347, 4294901760
        %v3349 = vsub.f32 %v3347, %v3348
        %v3350 = vand.u32 %v3349, 4294901760
        %3351 = vmatpush1.msra.mxu0 %v3350
        %v3352 = vand.u32 %v1650, 4294901760
        %v3353 = vsub.f32 %v1650, %v3352
        %v3354 = vand.u32 %v3353, 4294901760
        %v3355 = vsub.f32 %v3353, %v3354
        %v3356 = vand.u32 %v3355, 4294901760
        %3357 = vmatprep.subr.mxu0 %v3356
        %v3358 = vand.u32 %v1649, 4294901760
        %v3359 = vsub.f32 %v1649, %v3358
        %v3360 = vand.u32 %v3359, 4294901760
        %v3361 = vsub.f32 %v3359, %v3360
        %v3362 = vand.u32 %v3361, 4294901760
        %3363 = vmatpush1.msra.mxu0 %v3362
        %v3364 = vand.u32 %v1653, 4294901760
        %v3365 = vsub.f32 %v1653, %v3364
        %v3366 = vand.u32 %v3365, 4294901760
        %v3367 = vsub.f32 %v3365, %v3366
        %v3368 = vand.u32 %v3367, 4294901760
        %3369 = vmatprep.subr.mxu0 %v3368
        %v3370 = vand.u32 %v1652, 4294901760
        %v3371 = vsub.f32 %v1652, %v3370
        %v3372 = vand.u32 %v3371, 4294901760
        %v3373 = vsub.f32 %v3371, %v3372
        %v3374 = vand.u32 %v3373, 4294901760
        %3375 = vmatpush1.msra.mxu0 %v3374
        %v3376 = vand.u32 %v1656, 4294901760
        %v3377 = vsub.f32 %v1656, %v3376
        %v3378 = vand.u32 %v3377, 4294901760
        %v3379 = vsub.f32 %v3377, %v3378
        %v3380 = vand.u32 %v3379, 4294901760
        %3381 = vmatprep.subr.mxu0 %v3380
        %v3382 = vand.u32 %v1655, 4294901760
        %v3383 = vsub.f32 %v1655, %v3382
        %v3384 = vand.u32 %v3383, 4294901760
        %v3385 = vsub.f32 %v3383, %v3384
        %v3386 = vand.u32 %v3385, 4294901760
        %3387 = vmatpush1.msra.mxu0 %v3386
        %v3388 = vand.u32 %v1659, 4294901760
        %v3389 = vsub.f32 %v1659, %v3388
        %v3390 = vand.u32 %v3389, 4294901760
        %v3391 = vsub.f32 %v3389, %v3390
        %v3392 = vand.u32 %v3391, 4294901760
        %3393 = vmatprep.subr.mxu0 %v3392
        %v3394 = vand.u32 %v1658, 4294901760
        %v3395 = vsub.f32 %v1658, %v3394
        %v3396 = vand.u32 %v3395, 4294901760
        %v3397 = vsub.f32 %v3395, %v3396
        %v3398 = vand.u32 %v3397, 4294901760
        %3399 = vmatpush1.msra.mxu0 %v3398
        %v3400 = vand.u32 %v1662, 4294901760
        %v3401 = vsub.f32 %v1662, %v3400
        %v3402 = vand.u32 %v3401, 4294901760
        %v3403 = vsub.f32 %v3401, %v3402
        %v3404 = vand.u32 %v3403, 4294901760
        %3405 = vmatprep.subr.mxu0 %v3404
        %v3406 = vand.u32 %v1661, 4294901760
        %v3407 = vsub.f32 %v1661, %v3406
        %v3408 = vand.u32 %v3407, 4294901760
        %v3409 = vsub.f32 %v3407, %v3408
        %v3410 = vand.u32 %v3409, 4294901760
        %3411 = vmatpush1.msra.mxu0 %v3410
        %v3412 = vand.u32 %v1665, 4294901760
        %v3413 = vsub.f32 %v1665, %v3412
        %v3414 = vand.u32 %v3413, 4294901760
        %v3415 = vsub.f32 %v3413, %v3414
        %v3416 = vand.u32 %v3415, 4294901760
        %3417 = vmatprep.subr.mxu0 %v3416
        %v3418 = vand.u32 %v1664, 4294901760
        %v3419 = vsub.f32 %v1664, %v3418
        %v3420 = vand.u32 %v3419, 4294901760
        %v3421 = vsub.f32 %v3419, %v3420
        %v3422 = vand.u32 %v3421, 4294901760
        %3423 = vmatpush1.msra.mxu0 %v3422
        %v3424 = vand.u32 %v1668, 4294901760
        %v3425 = vsub.f32 %v1668, %v3424
        %v3426 = vand.u32 %v3425, 4294901760
        %v3427 = vsub.f32 %v3425, %v3426
        %v3428 = vand.u32 %v3427, 4294901760
        %3429 = vmatprep.subr.mxu0 %v3428
        %v3430 = vand.u32 %v1667, 4294901760
        %v3431 = vsub.f32 %v1667, %v3430
        %v3432 = vand.u32 %v3431, 4294901760
        %v3433 = vsub.f32 %v3431, %v3432
        %v3434 = vand.u32 %v3433, 4294901760
        %3435 = vmatpush1.msra.mxu0 %v3434
        %v3436 = vand.u32 %v1671, 4294901760
        %v3437 = vsub.f32 %v1671, %v3436
        %v3438 = vand.u32 %v3437, 4294901760
        %v3439 = vsub.f32 %v3437, %v3438
        %v3440 = vand.u32 %v3439, 4294901760
        %3441 = vmatprep.subr.mxu0 %v3440
        %v3442 = vand.u32 %v1670, 4294901760
        %v3443 = vsub.f32 %v1670, %v3442
        %v3444 = vand.u32 %v3443, 4294901760
        %v3445 = vsub.f32 %v3443, %v3444
        %v3446 = vand.u32 %v3445, 4294901760
        %3447 = vmatpush1.msra.mxu0 %v3446
        %v3448 = vand.u32 %v1674, 4294901760
        %v3449 = vsub.f32 %v1674, %v3448
        %v3450 = vand.u32 %v3449, 4294901760
        %v3451 = vsub.f32 %v3449, %v3450
        %v3452 = vand.u32 %v3451, 4294901760
        %3453 = vmatprep.subr.mxu0 %v3452
        %v3454 = vand.u32 %v1673, 4294901760
        %v3455 = vsub.f32 %v1673, %v3454
        %v3456 = vand.u32 %v3455, 4294901760
        %v3457 = vsub.f32 %v3455, %v3456
        %v3458 = vand.u32 %v3457, 4294901760
        %3459 = vmatpush1.msra.mxu0 %v3458
        %v3460 = vand.u32 %v1677, 4294901760
        %v3461 = vsub.f32 %v1677, %v3460
        %v3462 = vand.u32 %v3461, 4294901760
        %v3463 = vsub.f32 %v3461, %v3462
        %v3464 = vand.u32 %v3463, 4294901760
        %3465 = vmatprep.subr.mxu0 %v3464
        %v3466 = vand.u32 %v1676, 4294901760
        %v3467 = vsub.f32 %v1676, %v3466
        %v3468 = vand.u32 %v3467, 4294901760
        %v3469 = vsub.f32 %v3467, %v3468
        %v3470 = vand.u32 %v3469, 4294901760
        %3471 = vmatpush1.msra.mxu0 %v3470
        %v3472 = vand.u32 %v1680, 4294901760
        %v3473 = vsub.f32 %v1680, %v3472
        %v3474 = vand.u32 %v3473, 4294901760
        %v3475 = vsub.f32 %v3473, %v3474
        %v3476 = vand.u32 %v3475, 4294901760
        %3477 = vmatprep.subr.mxu0 %v3476
        %v3478 = vand.u32 %v1679, 4294901760
        %v3479 = vsub.f32 %v1679, %v3478
        %v3480 = vand.u32 %v3479, 4294901760
        %v3481 = vsub.f32 %v3479, %v3480
        %v3482 = vand.u32 %v3481, 4294901760
        %3483 = vmatpush1.msra.mxu0 %v3482
        %v3484 = vand.u32 %v1683, 4294901760
        %v3485 = vsub.f32 %v1683, %v3484
        %v3486 = vand.u32 %v3485, 4294901760
        %v3487 = vsub.f32 %v3485, %v3486
        %v3488 = vand.u32 %v3487, 4294901760
        %3489 = vmatprep.subr.mxu0 %v3488
        %v3490 = vand.u32 %v1682, 4294901760
        %v3491 = vsub.f32 %v1682, %v3490
        %v3492 = vand.u32 %v3491, 4294901760
        %v3493 = vsub.f32 %v3491, %v3492
        %v3494 = vand.u32 %v3493, 4294901760
        %3495 = vmatpush1.msra.mxu0 %v3494
        %v3496 = vand.u32 %v1686, 4294901760
        %v3497 = vsub.f32 %v1686, %v3496
        %v3498 = vand.u32 %v3497, 4294901760
        %v3499 = vsub.f32 %v3497, %v3498
        %v3500 = vand.u32 %v3499, 4294901760
        %3501 = vmatprep.subr.mxu0 %v3500
        %v3502 = vand.u32 %v1685, 4294901760
        %v3503 = vsub.f32 %v1685, %v3502
        %v3504 = vand.u32 %v3503, 4294901760
        %v3505 = vsub.f32 %v3503, %v3504
        %v3506 = vand.u32 %v3505, 4294901760
        %3507 = vmatpush1.msra.mxu0 %v3506
        %v3508 = vand.u32 %v1689, 4294901760
        %v3509 = vsub.f32 %v1689, %v3508
        %v3510 = vand.u32 %v3509, 4294901760
        %v3511 = vsub.f32 %v3509, %v3510
        %v3512 = vand.u32 %v3511, 4294901760
        %3513 = vmatprep.subr.mxu0 %v3512
        %v3514 = vand.u32 %v1688, 4294901760
        %v3515 = vsub.f32 %v1688, %v3514
        %v3516 = vand.u32 %v3515, 4294901760
        %v3517 = vsub.f32 %v3515, %v3516
        %v3518 = vand.u32 %v3517, 4294901760
        %3519 = vmatpush1.msra.mxu0 %v3518
        %3520 = vmatprep.subr.mxu0 0.0
        %3521 = vmatpush1.msra.mxu0 0.0
        %3522 = vmatprep.subr.mxu0 0.0
        %3523 = vmatpush1.msra.mxu0 0.0
        %3524 = vmatprep.subr.mxu0 0.0
        %3525 = vmatpush1.msra.mxu0 0.0
        %3526 = vmatprep.subr.mxu0 0.0
        %3527 = vmatpush1.msra.mxu0 0.0
        %3528 = vmatprep.subr.mxu0 0.0
        %3529 = vmatpush1.msra.mxu0 0.0
        %3530 = vmatprep.subr.mxu0 0.0
        %3531 = vmatpush1.msra.mxu0 0.0
        %3532 = vmatprep.subr.mxu0 0.0
        %3533 = vmatpush1.msra.mxu0 0.0
        %3534 = vmatprep.subr.mxu0 0.0
        %3535 = vmatpush1.msra.mxu0 0.0
        %3536 = vmatprep.subr.mxu0 0.0
        %3537 = vmatpush1.msra.mxu0 0.0
        %3538 = vmatprep.subr.mxu0 0.0
        %3539 = vmatpush1.msra.mxu0 0.0
        %3540 = vmatprep.subr.mxu0 0.0
        %3541 = vmatpush1.msra.mxu0 0.0
        %3542 = vmatprep.subr.mxu0 0.0
        %3543 = vmatpush1.msra.mxu0 0.0
        %3544 = vmatprep.subr.mxu0 0.0
        %3545 = vmatpush1.msra.mxu0 0.0
        %3546 = vmatprep.subr.mxu0 0.0
        %3547 = vmatpush1.msra.mxu0 0.0
        %3548 = vmatprep.subr.mxu0 0.0
        %3549 = vmatpush1.msra.mxu0 0.0
        %3550 = vmatprep.subr.mxu0 0.0
        %3551 = vmatpush1.msra.mxu0 0.0
        %3552 = vmatprep.mubr.f32.mxu0 0.0
        %v3553 = vand.u32 %v3213, 4294901760
        %3554 = vmatmul.mubr.f32.gmra.mrb[0].mxu0 %v3553
        %v3555 = vpop.f32.mrb[0].mxu0
        %v3556 = vadd.f32 %v3324, %v3555
        %v3557 = vpop.f32.mrb[0].mxu0
        %v3558 = vadd.f32 %v3326, %v3557
        %3559 = vdwg.mxu0
        %v3560 = vand.u32 %v1644, 4294901760
        %v3561 = vsub.f32 %v1644, %v3560
        %3562 = vmatprep.subr.mxu0 %v3561
        %v3563 = vand.u32 %v1643, 4294901760
        %v3564 = vsub.f32 %v1643, %v3563
        %3565 = vmatpush1.msra.mxu0 %v3564
        %v3566 = vand.u32 %v1647, 4294901760
        %v3567 = vsub.f32 %v1647, %v3566
        %3568 = vmatprep.subr.mxu0 %v3567
        %v3569 = vand.u32 %v1646, 4294901760
        %v3570 = vsub.f32 %v1646, %v3569
        %3571 = vmatpush1.msra.mxu0 %v3570
        %v3572 = vand.u32 %v1650, 4294901760
        %v3573 = vsub.f32 %v1650, %v3572
        %3574 = vmatprep.subr.mxu0 %v3573
        %v3575 = vand.u32 %v1649, 4294901760
        %v3576 = vsub.f32 %v1649, %v3575
        %3577 = vmatpush1.msra.mxu0 %v3576
        %v3578 = vand.u32 %v1653, 4294901760
        %v3579 = vsub.f32 %v1653, %v3578
        %3580 = vmatprep.subr.mxu0 %v3579
        %v3581 = vand.u32 %v1652, 4294901760
        %v3582 = vsub.f32 %v1652, %v3581
        %3583 = vmatpush1.msra.mxu0 %v3582
        %v3584 = vand.u32 %v1656, 4294901760
        %v3585 = vsub.f32 %v1656, %v3584
        %3586 = vmatprep.subr.mxu0 %v3585
        %v3587 = vand.u32 %v1655, 4294901760
        %v3588 = vsub.f32 %v1655, %v3587
        %3589 = vmatpush1.msra.mxu0 %v3588
        %v3590 = vand.u32 %v1659, 4294901760
        %v3591 = vsub.f32 %v1659, %v3590
        %3592 = vmatprep.subr.mxu0 %v3591
        %v3593 = vand.u32 %v1658, 4294901760
        %v3594 = vsub.f32 %v1658, %v3593
        %3595 = vmatpush1.msra.mxu0 %v3594
        %v3596 = vand.u32 %v1662, 4294901760
        %v3597 = vsub.f32 %v1662, %v3596
        %3598 = vmatprep.subr.mxu0 %v3597
        %v3599 = vand.u32 %v1661, 4294901760
        %v3600 = vsub.f32 %v1661, %v3599
        %3601 = vmatpush1.msra.mxu0 %v3600
        %v3602 = vand.u32 %v1665, 4294901760
        %v3603 = vsub.f32 %v1665, %v3602
        %3604 = vmatprep.subr.mxu0 %v3603
        %v3605 = vand.u32 %v1664, 4294901760
        %v3606 = vsub.f32 %v1664, %v3605
        %3607 = vmatpush1.msra.mxu0 %v3606
        %v3608 = vand.u32 %v1668, 4294901760
        %v3609 = vsub.f32 %v1668, %v3608
        %3610 = vmatprep.subr.mxu0 %v3609
        %v3611 = vand.u32 %v1667, 4294901760
        %v3612 = vsub.f32 %v1667, %v3611
        %3613 = vmatpush1.msra.mxu0 %v3612
        %v3614 = vand.u32 %v1671, 4294901760
        %v3615 = vsub.f32 %v1671, %v3614
        %3616 = vmatprep.subr.mxu0 %v3615
        %v3617 = vand.u32 %v1670, 4294901760
        %v3618 = vsub.f32 %v1670, %v3617
        %3619 = vmatpush1.msra.mxu0 %v3618
        %v3620 = vand.u32 %v1674, 4294901760
        %v3621 = vsub.f32 %v1674, %v3620
        %3622 = vmatprep.subr.mxu0 %v3621
        %v3623 = vand.u32 %v1673, 4294901760
        %v3624 = vsub.f32 %v1673, %v3623
        %3625 = vmatpush1.msra.mxu0 %v3624
        %v3626 = vand.u32 %v1677, 4294901760
        %v3627 = vsub.f32 %v1677, %v3626
        %3628 = vmatprep.subr.mxu0 %v3627
        %v3629 = vand.u32 %v1676, 4294901760
        %v3630 = vsub.f32 %v1676, %v3629
        %3631 = vmatpush1.msra.mxu0 %v3630
        %v3632 = vand.u32 %v1680, 4294901760
        %v3633 = vsub.f32 %v1680, %v3632
        %3634 = vmatprep.subr.mxu0 %v3633
        %v3635 = vand.u32 %v1679, 4294901760
        %v3636 = vsub.f32 %v1679, %v3635
        %3637 = vmatpush1.msra.mxu0 %v3636
        %v3638 = vand.u32 %v1683, 4294901760
        %v3639 = vsub.f32 %v1683, %v3638
        %3640 = vmatprep.subr.mxu0 %v3639
        %v3641 = vand.u32 %v1682, 4294901760
        %v3642 = vsub.f32 %v1682, %v3641
        %3643 = vmatpush1.msra.mxu0 %v3642
        %v3644 = vand.u32 %v1686, 4294901760
        %v3645 = vsub.f32 %v1686, %v3644
        %3646 = vmatprep.subr.mxu0 %v3645
        %v3647 = vand.u32 %v1685, 4294901760
        %v3648 = vsub.f32 %v1685, %v3647
        %3649 = vmatpush1.msra.mxu0 %v3648
        %v3650 = vand.u32 %v1689, 4294901760
        %v3651 = vsub.f32 %v1689, %v3650
        %3652 = vmatprep.subr.mxu0 %v3651
        %v3653 = vand.u32 %v1688, 4294901760
        %v3654 = vsub.f32 %v1688, %v3653
        %3655 = vmatpush1.msra.mxu0 %v3654
        %3656 = vmatprep.subr.mxu0 0.0
        %3657 = vmatpush1.msra.mxu0 0.0
        %3658 = vmatprep.subr.mxu0 0.0
        %3659 = vmatpush1.msra.mxu0 0.0
        %3660 = vmatprep.subr.mxu0 0.0
        %3661 = vmatpush1.msra.mxu0 0.0
        %3662 = vmatprep.subr.mxu0 0.0
        %3663 = vmatpush1.msra.mxu0 0.0
        %3664 = vmatprep.subr.mxu0 0.0
        %3665 = vmatpush1.msra.mxu0 0.0
        %3666 = vmatprep.subr.mxu0 0.0
        %3667 = vmatpush1.msra.mxu0 0.0
        %3668 = vmatprep.subr.mxu0 0.0
        %3669 = vmatpush1.msra.mxu0 0.0
        %3670 = vmatprep.subr.mxu0 0.0
        %3671 = vmatpush1.msra.mxu0 0.0
        %3672 = vmatprep.subr.mxu0 0.0
        %3673 = vmatpush1.msra.mxu0 0.0
        %3674 = vmatprep.subr.mxu0 0.0
        %3675 = vmatpush1.msra.mxu0 0.0
        %3676 = vmatprep.subr.mxu0 0.0
        %3677 = vmatpush1.msra.mxu0 0.0
        %3678 = vmatprep.subr.mxu0 0.0
        %3679 = vmatpush1.msra.mxu0 0.0
        %3680 = vmatprep.subr.mxu0 0.0
        %3681 = vmatpush1.msra.mxu0 0.0
        %3682 = vmatprep.subr.mxu0 0.0
        %3683 = vmatpush1.msra.mxu0 0.0
        %3684 = vmatprep.subr.mxu0 0.0
        %3685 = vmatpush1.msra.mxu0 0.0
        %3686 = vmatprep.subr.mxu0 0.0
        %3687 = vmatpush1.msra.mxu0 0.0
        %3688 = vmatprep.mubr.f32.mxu0 0.0
        %v3689 = vand.u32 %v3213, 4294901760
        %v3690 = vsub.f32 %v3213, %v3689
        %3691 = vmatmul.mubr.f32.gmra.mrb[0].mxu0 %v3690
        %v3692 = vpop.f32.mrb[0].mxu0
        %v3693 = vadd.f32 %v3556, %v3692
        %v3694 = vpop.f32.mrb[0].mxu0
        %v3695 = vadd.f32 %v3558, %v3694
        %3696 = vdwg.mxu0
        %v3697 = vand.u32 %v1644, 4294901760
        %3698 = vmatprep.subr.mxu0 %v3697
        %v3699 = vand.u32 %v1643, 4294901760
        %3700 = vmatpush1.msra.mxu0 %v3699
        %v3701 = vand.u32 %v1647, 4294901760
        %3702 = vmatprep.subr.mxu0 %v3701
        %v3703 = vand.u32 %v1646, 4294901760
        %3704 = vmatpush1.msra.mxu0 %v3703
        %v3705 = vand.u32 %v1650, 4294901760
        %3706 = vmatprep.subr.mxu0 %v3705
        %v3707 = vand.u32 %v1649, 4294901760
        %3708 = vmatpush1.msra.mxu0 %v3707
        %v3709 = vand.u32 %v1653, 4294901760
        %3710 = vmatprep.subr.mxu0 %v3709
        %v3711 = vand.u32 %v1652, 4294901760
        %3712 = vmatpush1.msra.mxu0 %v3711
        %v3713 = vand.u32 %v1656, 4294901760
        %3714 = vmatprep.subr.mxu0 %v3713
        %v3715 = vand.u32 %v1655, 4294901760
        %3716 = vmatpush1.msra.mxu0 %v3715
        %v3717 = vand.u32 %v1659, 4294901760
        %3718 = vmatprep.subr.mxu0 %v3717
        %v3719 = vand.u32 %v1658, 4294901760
        %3720 = vmatpush1.msra.mxu0 %v3719
        %v3721 = vand.u32 %v1662, 4294901760
        %3722 = vmatprep.subr.mxu0 %v3721
        %v3723 = vand.u32 %v1661, 4294901760
        %3724 = vmatpush1.msra.mxu0 %v3723
        %v3725 = vand.u32 %v1665, 4294901760
        %3726 = vmatprep.subr.mxu0 %v3725
        %v3727 = vand.u32 %v1664, 4294901760
        %3728 = vmatpush1.msra.mxu0 %v3727
        %v3729 = vand.u32 %v1668, 4294901760
        %3730 = vmatprep.subr.mxu0 %v3729
        %v3731 = vand.u32 %v1667, 4294901760
        %3732 = vmatpush1.msra.mxu0 %v3731
        %v3733 = vand.u32 %v1671, 4294901760
        %3734 = vmatprep.subr.mxu0 %v3733
        %v3735 = vand.u32 %v1670, 4294901760
        %3736 = vmatpush1.msra.mxu0 %v3735
        %v3737 = vand.u32 %v1674, 4294901760
        %3738 = vmatprep.subr.mxu0 %v3737
        %v3739 = vand.u32 %v1673, 4294901760
        %3740 = vmatpush1.msra.mxu0 %v3739
        %v3741 = vand.u32 %v1677, 4294901760
        %3742 = vmatprep.subr.mxu0 %v3741
        %v3743 = vand.u32 %v1676, 4294901760
        %3744 = vmatpush1.msra.mxu0 %v3743
        %v3745 = vand.u32 %v1680, 4294901760
        %3746 = vmatprep.subr.mxu0 %v3745
        %v3747 = vand.u32 %v1679, 4294901760
        %3748 = vmatpush1.msra.mxu0 %v3747
        %v3749 = vand.u32 %v1683, 4294901760
        %3750 = vmatprep.subr.mxu0 %v3749
        %v3751 = vand.u32 %v1682, 4294901760
        %3752 = vmatpush1.msra.mxu0 %v3751
        %v3753 = vand.u32 %v1686, 4294901760
        %3754 = vmatprep.subr.mxu0 %v3753
        %v3755 = vand.u32 %v1685, 4294901760
        %3756 = vmatpush1.msra.mxu0 %v3755
        %v3757 = vand.u32 %v1689, 4294901760
        %3758 = vmatprep.subr.mxu0 %v3757
        %v3759 = vand.u32 %v1688, 4294901760
        %3760 = vmatpush1.msra.mxu0 %v3759
        %3761 = vmatprep.subr.mxu0 0.0
        %3762 = vmatpush1.msra.mxu0 0.0
        %3763 = vmatprep.subr.mxu0 0.0
        %3764 = vmatpush1.msra.mxu0 0.0
        %3765 = vmatprep.subr.mxu0 0.0
        %3766 = vmatpush1.msra.mxu0 0.0
        %3767 = vmatprep.subr.mxu0 0.0
        %3768 = vmatpush1.msra.mxu0 0.0
        %3769 = vmatprep.subr.mxu0 0.0
        %3770 = vmatpush1.msra.mxu0 0.0
        %3771 = vmatprep.subr.mxu0 0.0
        %3772 = vmatpush1.msra.mxu0 0.0
        %3773 = vmatprep.subr.mxu0 0.0
        %3774 = vmatpush1.msra.mxu0 0.0
        %3775 = vmatprep.subr.mxu0 0.0
        %3776 = vmatpush1.msra.mxu0 0.0
        %3777 = vmatprep.subr.mxu0 0.0
        %3778 = vmatpush1.msra.mxu0 0.0
        %3779 = vmatprep.subr.mxu0 0.0
        %3780 = vmatpush1.msra.mxu0 0.0
        %3781 = vmatprep.subr.mxu0 0.0
        %3782 = vmatpush1.msra.mxu0 0.0
        %3783 = vmatprep.subr.mxu0 0.0
        %3784 = vmatpush1.msra.mxu0 0.0
        %3785 = vmatprep.subr.mxu0 0.0
        %3786 = vmatpush1.msra.mxu0 0.0
        %3787 = vmatprep.subr.mxu0 0.0
        %3788 = vmatpush1.msra.mxu0 0.0
        %3789 = vmatprep.subr.mxu0 0.0
        %3790 = vmatpush1.msra.mxu0 0.0
        %3791 = vmatprep.subr.mxu0 0.0
        %3792 = vmatpush1.msra.mxu0 0.0
        %3793 = vmatprep.mubr.f32.mxu0 0.0
        %v3794 = vand.u32 %v3213, 4294901760
        %v3795 = vsub.f32 %v3213, %v3794
        %v3796 = vand.u32 %v3795, 4294901760
        %3797 = vmatmul.mubr.f32.gmra.mrb[0].mxu0 %v3796
        %v3798 = vpop.f32.mrb[0].mxu0
        %v3799 = vadd.f32 %v3693, %v3798
        %v3800 = vpop.f32.mrb[0].mxu0
        %v3801 = vadd.f32 %v3695, %v3800
        %3802 = vdwg.mxu0
        %v3803 = vand.u32 %v1644, 4294901760
        %v3804 = vsub.f32 %v1644, %v3803
        %v3805 = vand.u32 %v3804, 4294901760
        %3806 = vmatprep.subr.mxu0 %v3805
        %v3807 = vand.u32 %v1643, 4294901760
        %v3808 = vsub.f32 %v1643, %v3807
        %v3809 = vand.u32 %v3808, 4294901760
        %3810 = vmatpush1.msra.mxu0 %v3809
        %v3811 = vand.u32 %v1647, 4294901760
        %v3812 = vsub.f32 %v1647, %v3811
        %v3813 = vand.u32 %v3812, 4294901760
        %3814 = vmatprep.subr.mxu0 %v3813
        %v3815 = vand.u32 %v1646, 4294901760
        %v3816 = vsub.f32 %v1646, %v3815
        %v3817 = vand.u32 %v3816, 4294901760
        %3818 = vmatpush1.msra.mxu0 %v3817
        %v3819 = vand.u32 %v1650, 4294901760
        %v3820 = vsub.f32 %v1650, %v3819
        %v3821 = vand.u32 %v3820, 4294901760
        %3822 = vmatprep.subr.mxu0 %v3821
        %v3823 = vand.u32 %v1649, 4294901760
        %v3824 = vsub.f32 %v1649, %v3823
        %v3825 = vand.u32 %v3824, 4294901760
        %3826 = vmatpush1.msra.mxu0 %v3825
        %v3827 = vand.u32 %v1653, 4294901760
        %v3828 = vsub.f32 %v1653, %v3827
        %v3829 = vand.u32 %v3828, 4294901760
        %3830 = vmatprep.subr.mxu0 %v3829
        %v3831 = vand.u32 %v1652, 4294901760
        %v3832 = vsub.f32 %v1652, %v3831
        %v3833 = vand.u32 %v3832, 4294901760
        %3834 = vmatpush1.msra.mxu0 %v3833
        %v3835 = vand.u32 %v1656, 4294901760
        %v3836 = vsub.f32 %v1656, %v3835
        %v3837 = vand.u32 %v3836, 4294901760
        %3838 = vmatprep.subr.mxu0 %v3837
        %v3839 = vand.u32 %v1655, 4294901760
        %v3840 = vsub.f32 %v1655, %v3839
        %v3841 = vand.u32 %v3840, 4294901760
        %3842 = vmatpush1.msra.mxu0 %v3841
        %v3843 = vand.u32 %v1659, 4294901760
        %v3844 = vsub.f32 %v1659, %v3843
        %v3845 = vand.u32 %v3844, 4294901760
        %3846 = vmatprep.subr.mxu0 %v3845
        %v3847 = vand.u32 %v1658, 4294901760
        %v3848 = vsub.f32 %v1658, %v3847
        %v3849 = vand.u32 %v3848, 4294901760
        %3850 = vmatpush1.msra.mxu0 %v3849
        %v3851 = vand.u32 %v1662, 4294901760
        %v3852 = vsub.f32 %v1662, %v3851
        %v3853 = vand.u32 %v3852, 4294901760
        %3854 = vmatprep.subr.mxu0 %v3853
        %v3855 = vand.u32 %v1661, 4294901760
        %v3856 = vsub.f32 %v1661, %v3855
        %v3857 = vand.u32 %v3856, 4294901760
        %3858 = vmatpush1.msra.mxu0 %v3857
        %v3859 = vand.u32 %v1665, 4294901760
        %v3860 = vsub.f32 %v1665, %v3859
        %v3861 = vand.u32 %v3860, 4294901760
        %3862 = vmatprep.subr.mxu0 %v3861
        %v3863 = vand.u32 %v1664, 4294901760
        %v3864 = vsub.f32 %v1664, %v3863
        %v3865 = vand.u32 %v3864, 4294901760
        %3866 = vmatpush1.msra.mxu0 %v3865
        %v3867 = vand.u32 %v1668, 4294901760
        %v3868 = vsub.f32 %v1668, %v3867
        %v3869 = vand.u32 %v3868, 4294901760
        %3870 = vmatprep.subr.mxu0 %v3869
        %v3871 = vand.u32 %v1667, 4294901760
        %v3872 = vsub.f32 %v1667, %v3871
        %v3873 = vand.u32 %v3872, 4294901760
        %3874 = vmatpush1.msra.mxu0 %v3873
        %v3875 = vand.u32 %v1671, 4294901760
        %v3876 = vsub.f32 %v1671, %v3875
        %v3877 = vand.u32 %v3876, 4294901760
        %3878 = vmatprep.subr.mxu0 %v3877
        %v3879 = vand.u32 %v1670, 4294901760
        %v3880 = vsub.f32 %v1670, %v3879
        %v3881 = vand.u32 %v3880, 4294901760
        %3882 = vmatpush1.msra.mxu0 %v3881
        %v3883 = vand.u32 %v1674, 4294901760
        %v3884 = vsub.f32 %v1674, %v3883
        %v3885 = vand.u32 %v3884, 4294901760
        %3886 = vmatprep.subr.mxu0 %v3885
        %v3887 = vand.u32 %v1673, 4294901760
        %v3888 = vsub.f32 %v1673, %v3887
        %v3889 = vand.u32 %v3888, 4294901760
        %3890 = vmatpush1.msra.mxu0 %v3889
        %v3891 = vand.u32 %v1677, 4294901760
        %v3892 = vsub.f32 %v1677, %v3891
        %v3893 = vand.u32 %v3892, 4294901760
        %3894 = vmatprep.subr.mxu0 %v3893
        %v3895 = vand.u32 %v1676, 4294901760
        %v3896 = vsub.f32 %v1676, %v3895
        %v3897 = vand.u32 %v3896, 4294901760
        %3898 = vmatpush1.msra.mxu0 %v3897
        %v3899 = vand.u32 %v1680, 4294901760
        %v3900 = vsub.f32 %v1680, %v3899
        %v3901 = vand.u32 %v3900, 4294901760
        %3902 = vmatprep.subr.mxu0 %v3901
        %v3903 = vand.u32 %v1679, 4294901760
        %v3904 = vsub.f32 %v1679, %v3903
        %v3905 = vand.u32 %v3904, 4294901760
        %3906 = vmatpush1.msra.mxu0 %v3905
        %v3907 = vand.u32 %v1683, 4294901760
        %v3908 = vsub.f32 %v1683, %v3907
        %v3909 = vand.u32 %v3908, 4294901760
        %3910 = vmatprep.subr.mxu0 %v3909
        %v3911 = vand.u32 %v1682, 4294901760
        %v3912 = vsub.f32 %v1682, %v3911
        %v3913 = vand.u32 %v3912, 4294901760
        %3914 = vmatpush1.msra.mxu0 %v3913
        %v3915 = vand.u32 %v1686, 4294901760
        %v3916 = vsub.f32 %v1686, %v3915
        %v3917 = vand.u32 %v3916, 4294901760
        %3918 = vmatprep.subr.mxu0 %v3917
        %v3919 = vand.u32 %v1685, 4294901760
        %v3920 = vsub.f32 %v1685, %v3919
        %v3921 = vand.u32 %v3920, 4294901760
        %3922 = vmatpush1.msra.mxu0 %v3921
        %v3923 = vand.u32 %v1689, 4294901760
        %v3924 = vsub.f32 %v1689, %v3923
        %v3925 = vand.u32 %v3924, 4294901760
        %3926 = vmatprep.subr.mxu0 %v3925
        %v3927 = vand.u32 %v1688, 4294901760
        %v3928 = vsub.f32 %v1688, %v3927
        %v3929 = vand.u32 %v3928, 4294901760
        %3930 = vmatpush1.msra.mxu0 %v3929
        %3931 = vmatprep.subr.mxu0 0.0
        %3932 = vmatpush1.msra.mxu0 0.0
        %3933 = vmatprep.subr.mxu0 0.0
        %3934 = vmatpush1.msra.mxu0 0.0
        %3935 = vmatprep.subr.mxu0 0.0
        %3936 = vmatpush1.msra.mxu0 0.0
        %3937 = vmatprep.subr.mxu0 0.0
        %3938 = vmatpush1.msra.mxu0 0.0
        %3939 = vmatprep.subr.mxu0 0.0
        %3940 = vmatpush1.msra.mxu0 0.0
        %3941 = vmatprep.subr.mxu0 0.0
        %3942 = vmatpush1.msra.mxu0 0.0
        %3943 = vmatprep.subr.mxu0 0.0
        %3944 = vmatpush1.msra.mxu0 0.0
        %3945 = vmatprep.subr.mxu0 0.0
        %3946 = vmatpush1.msra.mxu0 0.0
        %3947 = vmatprep.subr.mxu0 0.0
        %3948 = vmatpush1.msra.mxu0 0.0
        %3949 = vmatprep.subr.mxu0 0.0
        %3950 = vmatpush1.msra.mxu0 0.0
        %3951 = vmatprep.subr.mxu0 0.0
        %3952 = vmatpush1.msra.mxu0 0.0
        %3953 = vmatprep.subr.mxu0 0.0
        %3954 = vmatpush1.msra.mxu0 0.0
        %3955 = vmatprep.subr.mxu0 0.0
        %3956 = vmatpush1.msra.mxu0 0.0
        %3957 = vmatprep.subr.mxu0 0.0
        %3958 = vmatpush1.msra.mxu0 0.0
        %3959 = vmatprep.subr.mxu0 0.0
        %3960 = vmatpush1.msra.mxu0 0.0
        %3961 = vmatprep.subr.mxu0 0.0
        %3962 = vmatpush1.msra.mxu0 0.0
        %3963 = vmatprep.mubr.f32.mxu0 0.0
        %v3964 = vand.u32 %v3213, 4294901760
        %3965 = vmatmul.mubr.f32.gmra.mrb[0].mxu0 %v3964
        %v3966 = vpop.f32.mrb[0].mxu0
        %v3967 = vadd.f32 %v3799, %v3966
        %v3968 = vpop.f32.mrb[0].mxu0
        %v3969 = vadd.f32 %v3801, %v3968
        %3970 = vdwg.mxu0
        %v3971 = vand.u32 %v1644, 4294901760
        %3972 = vmatprep.subr.mxu0 %v3971
        %v3973 = vand.u32 %v1643, 4294901760
        %3974 = vmatpush1.msra.mxu0 %v3973
        %v3975 = vand.u32 %v1647, 4294901760
        %3976 = vmatprep.subr.mxu0 %v3975
        %v3977 = vand.u32 %v1646, 4294901760
        %3978 = vmatpush1.msra.mxu0 %v3977
        %v3979 = vand.u32 %v1650, 4294901760
        %3980 = vmatprep.subr.mxu0 %v3979
        %v3981 = vand.u32 %v1649, 4294901760
        %3982 = vmatpush1.msra.mxu0 %v3981
        %v3983 = vand.u32 %v1653, 4294901760
        %3984 = vmatprep.subr.mxu0 %v3983
        %v3985 = vand.u32 %v1652, 4294901760
        %3986 = vmatpush1.msra.mxu0 %v3985
        %v3987 = vand.u32 %v1656, 4294901760
        %3988 = vmatprep.subr.mxu0 %v3987
        %v3989 = vand.u32 %v1655, 4294901760
        %3990 = vmatpush1.msra.mxu0 %v3989
        %v3991 = vand.u32 %v1659, 4294901760
        %3992 = vmatprep.subr.mxu0 %v3991
        %v3993 = vand.u32 %v1658, 4294901760
        %3994 = vmatpush1.msra.mxu0 %v3993
        %v3995 = vand.u32 %v1662, 4294901760
        %3996 = vmatprep.subr.mxu0 %v3995
        %v3997 = vand.u32 %v1661, 4294901760
        %3998 = vmatpush1.msra.mxu0 %v3997
        %v3999 = vand.u32 %v1665, 4294901760
        %4000 = vmatprep.subr.mxu0 %v3999
        %v4001 = vand.u32 %v1664, 4294901760
        %4002 = vmatpush1.msra.mxu0 %v4001
        %v4003 = vand.u32 %v1668, 4294901760
        %4004 = vmatprep.subr.mxu0 %v4003
        %v4005 = vand.u32 %v1667, 4294901760
        %4006 = vmatpush1.msra.mxu0 %v4005
        %v4007 = vand.u32 %v1671, 4294901760
        %4008 = vmatprep.subr.mxu0 %v4007
        %v4009 = vand.u32 %v1670, 4294901760
        %4010 = vmatpush1.msra.mxu0 %v4009
        %v4011 = vand.u32 %v1674, 4294901760
        %4012 = vmatprep.subr.mxu0 %v4011
        %v4013 = vand.u32 %v1673, 4294901760
        %4014 = vmatpush1.msra.mxu0 %v4013
        %v4015 = vand.u32 %v1677, 4294901760
        %4016 = vmatprep.subr.mxu0 %v4015
        %v4017 = vand.u32 %v1676, 4294901760
        %4018 = vmatpush1.msra.mxu0 %v4017
        %v4019 = vand.u32 %v1680, 4294901760
        %4020 = vmatprep.subr.mxu0 %v4019
        %v4021 = vand.u32 %v1679, 4294901760
        %4022 = vmatpush1.msra.mxu0 %v4021
        %v4023 = vand.u32 %v1683, 4294901760
        %4024 = vmatprep.subr.mxu0 %v4023
        %v4025 = vand.u32 %v1682, 4294901760
        %4026 = vmatpush1.msra.mxu0 %v4025
        %v4027 = vand.u32 %v1686, 4294901760
        %4028 = vmatprep.subr.mxu0 %v4027
        %v4029 = vand.u32 %v1685, 4294901760
        %4030 = vmatpush1.msra.mxu0 %v4029
        %v4031 = vand.u32 %v1689, 4294901760
        %4032 = vmatprep.subr.mxu0 %v4031
        %v4033 = vand.u32 %v1688, 4294901760
        %4034 = vmatpush1.msra.mxu0 %v4033
        %4035 = vmatprep.subr.mxu0 0.0
        %4036 = vmatpush1.msra.mxu0 0.0
        %4037 = vmatprep.subr.mxu0 0.0
        %4038 = vmatpush1.msra.mxu0 0.0
        %4039 = vmatprep.subr.mxu0 0.0
        %4040 = vmatpush1.msra.mxu0 0.0
        %4041 = vmatprep.subr.mxu0 0.0
        %4042 = vmatpush1.msra.mxu0 0.0
        %4043 = vmatprep.subr.mxu0 0.0
        %4044 = vmatpush1.msra.mxu0 0.0
        %4045 = vmatprep.subr.mxu0 0.0
        %4046 = vmatpush1.msra.mxu0 0.0
        %4047 = vmatprep.subr.mxu0 0.0
        %4048 = vmatpush1.msra.mxu0 0.0
        %4049 = vmatprep.subr.mxu0 0.0
        %4050 = vmatpush1.msra.mxu0 0.0
        %4051 = vmatprep.subr.mxu0 0.0
        %4052 = vmatpush1.msra.mxu0 0.0
        %4053 = vmatprep.subr.mxu0 0.0
        %4054 = vmatpush1.msra.mxu0 0.0
        %4055 = vmatprep.subr.mxu0 0.0
        %4056 = vmatpush1.msra.mxu0 0.0
        %4057 = vmatprep.subr.mxu0 0.0
        %4058 = vmatpush1.msra.mxu0 0.0
        %4059 = vmatprep.subr.mxu0 0.0
        %4060 = vmatpush1.msra.mxu0 0.0
        %4061 = vmatprep.subr.mxu0 0.0
        %4062 = vmatpush1.msra.mxu0 0.0
        %4063 = vmatprep.subr.mxu0 0.0
        %4064 = vmatpush1.msra.mxu0 0.0
        %4065 = vmatprep.subr.mxu0 0.0
        %4066 = vmatpush1.msra.mxu0 0.0
        %4067 = vmatprep.mubr.f32.mxu0 0.0
        %v4068 = vand.u32 %v3213, 4294901760
        %4069 = vmatmul.mubr.f32.gmra.mrb[0].mxu0 %v4068
        %v4070 = vpop.f32.mrb[0].mxu0
        %v4071 = vadd.f32 %v3967, %v4070
        %v4072 = vpop.f32.mrb[0].mxu0
        %v4073 = vadd.f32 %v3969, %v4072
        %4074 = vdwg.mxu0
        %4075 = vmatprep.subr.mxu0 0.0
        %v4076 = vand.u32 %v1645, 4294901760
        %4077 = vmatpush1.msra.mxu0 %v4076
        %4078 = vmatprep.subr.mxu0 0.0
        %v4079 = vand.u32 %v1648, 4294901760
        %4080 = vmatpush1.msra.mxu0 %v4079
        %4081 = vmatprep.subr.mxu0 0.0
        %v4082 = vand.u32 %v1651, 4294901760
        %4083 = vmatpush1.msra.mxu0 %v4082
        %4084 = vmatprep.subr.mxu0 0.0
        %v4085 = vand.u32 %v1654, 4294901760
        %4086 = vmatpush1.msra.mxu0 %v4085
        %4087 = vmatprep.subr.mxu0 0.0
        %v4088 = vand.u32 %v1657, 4294901760
        %4089 = vmatpush1.msra.mxu0 %v4088
        %4090 = vmatprep.subr.mxu0 0.0
        %v4091 = vand.u32 %v1660, 4294901760
        %4092 = vmatpush1.msra.mxu0 %v4091
        %4093 = vmatprep.subr.mxu0 0.0
        %v4094 = vand.u32 %v1663, 4294901760
        %4095 = vmatpush1.msra.mxu0 %v4094
        %4096 = vmatprep.subr.mxu0 0.0
        %v4097 = vand.u32 %v1666, 4294901760
        %4098 = vmatpush1.msra.mxu0 %v4097
        %4099 = vmatprep.subr.mxu0 0.0
        %v4100 = vand.u32 %v1669, 4294901760
        %4101 = vmatpush1.msra.mxu0 %v4100
        %4102 = vmatprep.subr.mxu0 0.0
        %v4103 = vand.u32 %v1672, 4294901760
        %4104 = vmatpush1.msra.mxu0 %v4103
        %4105 = vmatprep.subr.mxu0 0.0
        %v4106 = vand.u32 %v1675, 4294901760
        %4107 = vmatpush1.msra.mxu0 %v4106
        %4108 = vmatprep.subr.mxu0 0.0
        %v4109 = vand.u32 %v1678, 4294901760
        %4110 = vmatpush1.msra.mxu0 %v4109
        %4111 = vmatprep.subr.mxu0 0.0
        %v4112 = vand.u32 %v1681, 4294901760
        %4113 = vmatpush1.msra.mxu0 %v4112
        %4114 = vmatprep.subr.mxu0 0.0
        %v4115 = vand.u32 %v1684, 4294901760
        %4116 = vmatpush1.msra.mxu0 %v4115
        %4117 = vmatprep.subr.mxu0 0.0
        %v4118 = vand.u32 %v1687, 4294901760
        %4119 = vmatpush1.msra.mxu0 %v4118
        %4120 = vmatprep.subr.mxu0 0.0
        %v4121 = vand.u32 %v1690, 4294901760
        %4122 = vmatpush1.msra.mxu0 %v4121
        %4123 = vmatprep.subr.mxu0 0.0
        %4124 = vmatpush1.msra.mxu0 0.0
        %4125 = vmatprep.subr.mxu0 0.0
        %4126 = vmatpush1.msra.mxu0 0.0
        %4127 = vmatprep.subr.mxu0 0.0
        %4128 = vmatpush1.msra.mxu0 0.0
        %4129 = vmatprep.subr.mxu0 0.0
        %4130 = vmatpush1.msra.mxu0 0.0
        %4131 = vmatprep.subr.mxu0 0.0
        %4132 = vmatpush1.msra.mxu0 0.0
        %4133 = vmatprep.subr.mxu0 0.0
        %4134 = vmatpush1.msra.mxu0 0.0
        %4135 = vmatprep.subr.mxu0 0.0
        %4136 = vmatpush1.msra.mxu0 0.0
        %4137 = vmatprep.subr.mxu0 0.0
        %4138 = vmatpush1.msra.mxu0 0.0
        %4139 = vmatprep.subr.mxu0 0.0
        %4140 = vmatpush1.msra.mxu0 0.0
        %4141 = vmatprep.subr.mxu0 0.0
        %4142 = vmatpush1.msra.mxu0 0.0
        %4143 = vmatprep.subr.mxu0 0.0
        %4144 = vmatpush1.msra.mxu0 0.0
        %4145 = vmatprep.subr.mxu0 0.0
        %4146 = vmatpush1.msra.mxu0 0.0
        %4147 = vmatprep.subr.mxu0 0.0
        %4148 = vmatpush1.msra.mxu0 0.0
        %4149 = vmatprep.subr.mxu0 0.0
        %4150 = vmatpush1.msra.mxu0 0.0
        %4151 = vmatprep.subr.mxu0 0.0
        %4152 = vmatpush1.msra.mxu0 0.0
        %4153 = vmatprep.subr.mxu0 0.0
        %4154 = vmatpush1.msra.mxu0 0.0
        %4155 = vmatprep.mubr.f32.mxu0 0.0
        %v4156 = vand.u32 %v3213, 4294901760
        %v4157 = vsub.f32 %v3213, %v4156
        %v4158 = vand.u32 %v4157, 4294901760
        %v4159 = vsub.f32 %v4157, %v4158
        %v4160 = vand.u32 %v4159, 4294901760
        %4161 = vmatmul.mubr.f32.gmra.mrb[0].mxu0 %v4160
        %v4162 = vpop.f32.mrb[0].mxu0
        %v4163 = vadd.f32 %v1632, %v4162
        %v4164 = vpop.f32.mrb[0].mxu0
        %4165 = vdwg.mxu0
        %4166 = vmatprep.subr.mxu0 0.0
        %v4167 = vand.u32 %v1645, 4294901760
        %v4168 = vsub.f32 %v1645, %v4167
        %v4169 = vand.u32 %v4168, 4294901760
        %v4170 = vsub.f32 %v4168, %v4169
        %v4171 = vand.u32 %v4170, 4294901760
        %4172 = vmatpush1.msra.mxu0 %v4171
        %4173 = vmatprep.subr.mxu0 0.0
        %v4174 = vand.u32 %v1648, 4294901760
        %v4175 = vsub.f32 %v1648, %v4174
        %v4176 = vand.u32 %v4175, 4294901760
        %v4177 = vsub.f32 %v4175, %v4176
        %v4178 = vand.u32 %v4177, 4294901760
        %4179 = vmatpush1.msra.mxu0 %v4178
        %4180 = vmatprep.subr.mxu0 0.0
        %v4181 = vand.u32 %v1651, 4294901760
        %v4182 = vsub.f32 %v1651, %v4181
        %v4183 = vand.u32 %v4182, 4294901760
        %v4184 = vsub.f32 %v4182, %v4183
        %v4185 = vand.u32 %v4184, 4294901760
        %4186 = vmatpush1.msra.mxu0 %v4185
        %4187 = vmatprep.subr.mxu0 0.0
        %v4188 = vand.u32 %v1654, 4294901760
        %v4189 = vsub.f32 %v1654, %v4188
        %v4190 = vand.u32 %v4189, 4294901760
        %v4191 = vsub.f32 %v4189, %v4190
        %v4192 = vand.u32 %v4191, 4294901760
        %4193 = vmatpush1.msra.mxu0 %v4192
        %4194 = vmatprep.subr.mxu0 0.0
        %v4195 = vand.u32 %v1657, 4294901760
        %v4196 = vsub.f32 %v1657, %v4195
        %v4197 = vand.u32 %v4196, 4294901760
        %v4198 = vsub.f32 %v4196, %v4197
        %v4199 = vand.u32 %v4198, 4294901760
        %4200 = vmatpush1.msra.mxu0 %v4199
        %4201 = vmatprep.subr.mxu0 0.0
        %v4202 = vand.u32 %v1660, 4294901760
        %v4203 = vsub.f32 %v1660, %v4202
        %v4204 = vand.u32 %v4203, 4294901760
        %v4205 = vsub.f32 %v4203, %v4204
        %v4206 = vand.u32 %v4205, 4294901760
        %4207 = vmatpush1.msra.mxu0 %v4206
        %4208 = vmatprep.subr.mxu0 0.0
        %v4209 = vand.u32 %v1663, 4294901760
        %v4210 = vsub.f32 %v1663, %v4209
        %v4211 = vand.u32 %v4210, 4294901760
        %v4212 = vsub.f32 %v4210, %v4211
        %v4213 = vand.u32 %v4212, 4294901760
        %4214 = vmatpush1.msra.mxu0 %v4213
        %4215 = vmatprep.subr.mxu0 0.0
        %v4216 = vand.u32 %v1666, 4294901760
        %v4217 = vsub.f32 %v1666, %v4216
        %v4218 = vand.u32 %v4217, 4294901760
        %v4219 = vsub.f32 %v4217, %v4218
        %v4220 = vand.u32 %v4219, 4294901760
        %4221 = vmatpush1.msra.mxu0 %v4220
        %4222 = vmatprep.subr.mxu0 0.0
        %v4223 = vand.u32 %v1669, 4294901760
        %v4224 = vsub.f32 %v1669, %v4223
        %v4225 = vand.u32 %v4224, 4294901760
        %v4226 = vsub.f32 %v4224, %v4225
        %v4227 = vand.u32 %v4226, 4294901760
        %4228 = vmatpush1.msra.mxu0 %v4227
        %4229 = vmatprep.subr.mxu0 0.0
        %v4230 = vand.u32 %v1672, 4294901760
        %v4231 = vsub.f32 %v1672, %v4230
        %v4232 = vand.u32 %v4231, 4294901760
        %v4233 = vsub.f32 %v4231, %v4232
        %v4234 = vand.u32 %v4233, 4294901760
        %4235 = vmatpush1.msra.mxu0 %v4234
        %4236 = vmatprep.subr.mxu0 0.0
        %v4237 = vand.u32 %v1675, 4294901760
        %v4238 = vsub.f32 %v1675, %v4237
        %v4239 = vand.u32 %v4238, 4294901760
        %v4240 = vsub.f32 %v4238, %v4239
        %v4241 = vand.u32 %v4240, 4294901760
        %4242 = vmatpush1.msra.mxu0 %v4241
        %4243 = vmatprep.subr.mxu0 0.0
        %v4244 = vand.u32 %v1678, 4294901760
        %v4245 = vsub.f32 %v1678, %v4244
        %v4246 = vand.u32 %v4245, 4294901760
        %v4247 = vsub.f32 %v4245, %v4246
        %v4248 = vand.u32 %v4247, 4294901760
        %4249 = vmatpush1.msra.mxu0 %v4248
        %4250 = vmatprep.subr.mxu0 0.0
        %v4251 = vand.u32 %v1681, 4294901760
        %v4252 = vsub.f32 %v1681, %v4251
        %v4253 = vand.u32 %v4252, 4294901760
        %v4254 = vsub.f32 %v4252, %v4253
        %v4255 = vand.u32 %v4254, 4294901760
        %4256 = vmatpush1.msra.mxu0 %v4255
        %4257 = vmatprep.subr.mxu0 0.0
        %v4258 = vand.u32 %v1684, 4294901760
        %v4259 = vsub.f32 %v1684, %v4258
        %v4260 = vand.u32 %v4259, 4294901760
        %v4261 = vsub.f32 %v4259, %v4260
        %v4262 = vand.u32 %v4261, 4294901760
        %4263 = vmatpush1.msra.mxu0 %v4262
        %4264 = vmatprep.subr.mxu0 0.0
        %v4265 = vand.u32 %v1687, 4294901760
        %v4266 = vsub.f32 %v1687, %v4265
        %v4267 = vand.u32 %v4266, 4294901760
        %v4268 = vsub.f32 %v4266, %v4267
        %v4269 = vand.u32 %v4268, 4294901760
        %4270 = vmatpush1.msra.mxu0 %v4269
        %4271 = vmatprep.subr.mxu0 0.0
        %v4272 = vand.u32 %v1690, 4294901760
        %v4273 = vsub.f32 %v1690, %v4272
        %v4274 = vand.u32 %v4273, 4294901760
        %v4275 = vsub.f32 %v4273, %v4274
        %v4276 = vand.u32 %v4275, 4294901760
        %4277 = vmatpush1.msra.mxu0 %v4276
        %4278 = vmatprep.subr.mxu0 0.0
        %4279 = vmatpush1.msra.mxu0 0.0
        %4280 = vmatprep.subr.mxu0 0.0
        %4281 = vmatpush1.msra.mxu0 0.0
        %4282 = vmatprep.subr.mxu0 0.0
        %4283 = vmatpush1.msra.mxu0 0.0
        %4284 = vmatprep.subr.mxu0 0.0
        %4285 = vmatpush1.msra.mxu0 0.0
        %4286 = vmatprep.subr.mxu0 0.0
        %4287 = vmatpush1.msra.mxu0 0.0
        %4288 = vmatprep.subr.mxu0 0.0
        %4289 = vmatpush1.msra.mxu0 0.0
        %4290 = vmatprep.subr.mxu0 0.0
        %4291 = vmatpush1.msra.mxu0 0.0
        %4292 = vmatprep.subr.mxu0 0.0
        %4293 = vmatpush1.msra.mxu0 0.0
        %4294 = vmatprep.subr.mxu0 0.0
        %4295 = vmatpush1.msra.mxu0 0.0
        %4296 = vmatprep.subr.mxu0 0.0
        %4297 = vmatpush1.msra.mxu0 0.0
        %4298 = vmatprep.subr.mxu0 0.0
        %4299 = vmatpush1.msra.mxu0 0.0
        %4300 = vmatprep.subr.mxu0 0.0
        %4301 = vmatpush1.msra.mxu0 0.0
        %4302 = vmatprep.subr.mxu0 0.0
        %4303 = vmatpush1.msra.mxu0 0.0
        %4304 = vmatprep.subr.mxu0 0.0
        %4305 = vmatpush1.msra.mxu0 0.0
        %4306 = vmatprep.subr.mxu0 0.0
        %4307 = vmatpush1.msra.mxu0 0.0
        %4308 = vmatprep.subr.mxu0 0.0
        %4309 = vmatpush1.msra.mxu0 0.0
        %4310 = vmatprep.mubr.f32.mxu0 0.0
        %v4311 = vand.u32 %v3213, 4294901760
        %4312 = vmatmul.mubr.f32.gmra.mrb[0].mxu0 %v4311
        %v4313 = vpop.f32.mrb[0].mxu0
        %v4314 = vadd.f32 %v4163, %v4313
        %v4315 = vpop.f32.mrb[0].mxu0
        %4316 = vdwg.mxu0
        %4317 = vmatprep.subr.mxu0 0.0
        %v4318 = vand.u32 %v1645, 4294901760
        %v4319 = vsub.f32 %v1645, %v4318
        %4320 = vmatpush1.msra.mxu0 %v4319
        %4321 = vmatprep.subr.mxu0 0.0
        %v4322 = vand.u32 %v1648, 4294901760
        %v4323 = vsub.f32 %v1648, %v4322
        %4324 = vmatpush1.msra.mxu0 %v4323
        %4325 = vmatprep.subr.mxu0 0.0
        %v4326 = vand.u32 %v1651, 4294901760
        %v4327 = vsub.f32 %v1651, %v4326
        %4328 = vmatpush1.msra.mxu0 %v4327
        %4329 = vmatprep.subr.mxu0 0.0
        %v4330 = vand.u32 %v1654, 4294901760
        %v4331 = vsub.f32 %v1654, %v4330
        %4332 = vmatpush1.msra.mxu0 %v4331
        %4333 = vmatprep.subr.mxu0 0.0
        %v4334 = vand.u32 %v1657, 4294901760
        %v4335 = vsub.f32 %v1657, %v4334
        %4336 = vmatpush1.msra.mxu0 %v4335
        %4337 = vmatprep.subr.mxu0 0.0
        %v4338 = vand.u32 %v1660, 4294901760
        %v4339 = vsub.f32 %v1660, %v4338
        %4340 = vmatpush1.msra.mxu0 %v4339
        %4341 = vmatprep.subr.mxu0 0.0
        %v4342 = vand.u32 %v1663, 4294901760
        %v4343 = vsub.f32 %v1663, %v4342
        %4344 = vmatpush1.msra.mxu0 %v4343
        %4345 = vmatprep.subr.mxu0 0.0
        %v4346 = vand.u32 %v1666, 4294901760
        %v4347 = vsub.f32 %v1666, %v4346
        %4348 = vmatpush1.msra.mxu0 %v4347
        %4349 = vmatprep.subr.mxu0 0.0
        %v4350 = vand.u32 %v1669, 4294901760
        %v4351 = vsub.f32 %v1669, %v4350
        %4352 = vmatpush1.msra.mxu0 %v4351
        %4353 = vmatprep.subr.mxu0 0.0
        %v4354 = vand.u32 %v1672, 4294901760
        %v4355 = vsub.f32 %v1672, %v4354
        %4356 = vmatpush1.msra.mxu0 %v4355
        %4357 = vmatprep.subr.mxu0 0.0
        %v4358 = vand.u32 %v1675, 4294901760
        %v4359 = vsub.f32 %v1675, %v4358
        %4360 = vmatpush1.msra.mxu0 %v4359
        %4361 = vmatprep.subr.mxu0 0.0
        %v4362 = vand.u32 %v1678, 4294901760
        %v4363 = vsub.f32 %v1678, %v4362
        %4364 = vmatpush1.msra.mxu0 %v4363
        %4365 = vmatprep.subr.mxu0 0.0
        %v4366 = vand.u32 %v1681, 4294901760
        %v4367 = vsub.f32 %v1681, %v4366
        %4368 = vmatpush1.msra.mxu0 %v4367
        %4369 = vmatprep.subr.mxu0 0.0
        %v4370 = vand.u32 %v1684, 4294901760
        %v4371 = vsub.f32 %v1684, %v4370
        %4372 = vmatpush1.msra.mxu0 %v4371
        %4373 = vmatprep.subr.mxu0 0.0
        %v4374 = vand.u32 %v1687, 4294901760
        %v4375 = vsub.f32 %v1687, %v4374
        %4376 = vmatpush1.msra.mxu0 %v4375
        %4377 = vmatprep.subr.mxu0 0.0
        %v4378 = vand.u32 %v1690, 4294901760
        %v4379 = vsub.f32 %v1690, %v4378
        %4380 = vmatpush1.msra.mxu0 %v4379
        %4381 = vmatprep.subr.mxu0 0.0
        %4382 = vmatpush1.msra.mxu0 0.0
        %4383 = vmatprep.subr.mxu0 0.0
        %4384 = vmatpush1.msra.mxu0 0.0
        %4385 = vmatprep.subr.mxu0 0.0
        %4386 = vmatpush1.msra.mxu0 0.0
        %4387 = vmatprep.subr.mxu0 0.0
        %4388 = vmatpush1.msra.mxu0 0.0
        %4389 = vmatprep.subr.mxu0 0.0
        %4390 = vmatpush1.msra.mxu0 0.0
        %4391 = vmatprep.subr.mxu0 0.0
        %4392 = vmatpush1.msra.mxu0 0.0
        %4393 = vmatprep.subr.mxu0 0.0
        %4394 = vmatpush1.msra.mxu0 0.0
        %4395 = vmatprep.subr.mxu0 0.0
        %4396 = vmatpush1.msra.mxu0 0.0
        %4397 = vmatprep.subr.mxu0 0.0
        %4398 = vmatpush1.msra.mxu0 0.0
        %4399 = vmatprep.subr.mxu0 0.0
        %4400 = vmatpush1.msra.mxu0 0.0
        %4401 = vmatprep.subr.mxu0 0.0
        %4402 = vmatpush1.msra.mxu0 0.0
        %4403 = vmatprep.subr.mxu0 0.0
        %4404 = vmatpush1.msra.mxu0 0.0
        %4405 = vmatprep.subr.mxu0 0.0
        %4406 = vmatpush1.msra.mxu0 0.0
        %4407 = vmatprep.subr.mxu0 0.0
        %4408 = vmatpush1.msra.mxu0 0.0
        %4409 = vmatprep.subr.mxu0 0.0
        %4410 = vmatpush1.msra.mxu0 0.0
        %4411 = vmatprep.subr.mxu0 0.0
        %4412 = vmatpush1.msra.mxu0 0.0
        %4413 = vmatprep.mubr.f32.mxu0 0.0
        %v4414 = vand.u32 %v3213, 4294901760
        %v4415 = vsub.f32 %v3213, %v4414
        %4416 = vmatmul.mubr.f32.gmra.mrb[0].mxu0 %v4415
        %v4417 = vpop.f32.mrb[0].mxu0
        %v4418 = vadd.f32 %v4314, %v4417
        %v4419 = vpop.f32.mrb[0].mxu0
        %4420 = vdwg.mxu0
        %4421 = vmatprep.subr.mxu0 0.0
        %v4422 = vand.u32 %v1645, 4294901760
        %4423 = vmatpush1.msra.mxu0 %v4422
        %4424 = vmatprep.subr.mxu0 0.0
        %v4425 = vand.u32 %v1648, 4294901760
        %4426 = vmatpush1.msra.mxu0 %v4425
        %4427 = vmatprep.subr.mxu0 0.0
        %v4428 = vand.u32 %v1651, 4294901760
        %4429 = vmatpush1.msra.mxu0 %v4428
        %4430 = vmatprep.subr.mxu0 0.0
        %v4431 = vand.u32 %v1654, 4294901760
        %4432 = vmatpush1.msra.mxu0 %v4431
        %4433 = vmatprep.subr.mxu0 0.0
        %v4434 = vand.u32 %v1657, 4294901760
        %4435 = vmatpush1.msra.mxu0 %v4434
        %4436 = vmatprep.subr.mxu0 0.0
        %v4437 = vand.u32 %v1660, 4294901760
        %4438 = vmatpush1.msra.mxu0 %v4437
        %4439 = vmatprep.subr.mxu0 0.0
        %v4440 = vand.u32 %v1663, 4294901760
        %4441 = vmatpush1.msra.mxu0 %v4440
        %4442 = vmatprep.subr.mxu0 0.0
        %v4443 = vand.u32 %v1666, 4294901760
        %4444 = vmatpush1.msra.mxu0 %v4443
        %4445 = vmatprep.subr.mxu0 0.0
        %v4446 = vand.u32 %v1669, 4294901760
        %4447 = vmatpush1.msra.mxu0 %v4446
        %4448 = vmatprep.subr.mxu0 0.0
        %v4449 = vand.u32 %v1672, 4294901760
        %4450 = vmatpush1.msra.mxu0 %v4449
        %4451 = vmatprep.subr.mxu0 0.0
        %v4452 = vand.u32 %v1675, 4294901760
        %4453 = vmatpush1.msra.mxu0 %v4452
        %4454 = vmatprep.subr.mxu0 0.0
        %v4455 = vand.u32 %v1678, 4294901760
        %4456 = vmatpush1.msra.mxu0 %v4455
        %4457 = vmatprep.subr.mxu0 0.0
        %v4458 = vand.u32 %v1681, 4294901760
        %4459 = vmatpush1.msra.mxu0 %v4458
        %4460 = vmatprep.subr.mxu0 0.0
        %v4461 = vand.u32 %v1684, 4294901760
        %4462 = vmatpush1.msra.mxu0 %v4461
        %4463 = vmatprep.subr.mxu0 0.0
        %v4464 = vand.u32 %v1687, 4294901760
        %4465 = vmatpush1.msra.mxu0 %v4464
        %4466 = vmatprep.subr.mxu0 0.0
        %v4467 = vand.u32 %v1690, 4294901760
        %4468 = vmatpush1.msra.mxu0 %v4467
        %4469 = vmatprep.subr.mxu0 0.0
        %4470 = vmatpush1.msra.mxu0 0.0
        %4471 = vmatprep.subr.mxu0 0.0
        %4472 = vmatpush1.msra.mxu0 0.0
        %4473 = vmatprep.subr.mxu0 0.0
        %4474 = vmatpush1.msra.mxu0 0.0
        %4475 = vmatprep.subr.mxu0 0.0
        %4476 = vmatpush1.msra.mxu0 0.0
        %4477 = vmatprep.subr.mxu0 0.0
        %4478 = vmatpush1.msra.mxu0 0.0
        %4479 = vmatprep.subr.mxu0 0.0
        %4480 = vmatpush1.msra.mxu0 0.0
        %4481 = vmatprep.subr.mxu0 0.0
        %4482 = vmatpush1.msra.mxu0 0.0
        %4483 = vmatprep.subr.mxu0 0.0
        %4484 = vmatpush1.msra.mxu0 0.0
        %4485 = vmatprep.subr.mxu0 0.0
        %4486 = vmatpush1.msra.mxu0 0.0
        %4487 = vmatprep.subr.mxu0 0.0
        %4488 = vmatpush1.msra.mxu0 0.0
        %4489 = vmatprep.subr.mxu0 0.0
        %4490 = vmatpush1.msra.mxu0 0.0
        %4491 = vmatprep.subr.mxu0 0.0
        %4492 = vmatpush1.msra.mxu0 0.0
        %4493 = vmatprep.subr.mxu0 0.0
        %4494 = vmatpush1.msra.mxu0 0.0
        %4495 = vmatprep.subr.mxu0 0.0
        %4496 = vmatpush1.msra.mxu0 0.0
        %4497 = vmatprep.subr.mxu0 0.0
        %4498 = vmatpush1.msra.mxu0 0.0
        %4499 = vmatprep.subr.mxu0 0.0
        %4500 = vmatpush1.msra.mxu0 0.0
        %4501 = vmatprep.mubr.f32.mxu0 0.0
        %v4502 = vand.u32 %v3213, 4294901760
        %v4503 = vsub.f32 %v3213, %v4502
        %v4504 = vand.u32 %v4503, 4294901760
        %4505 = vmatmul.mubr.f32.gmra.mrb[0].mxu0 %v4504
        %v4506 = vpop.f32.mrb[0].mxu0
        %v4507 = vadd.f32 %v4418, %v4506
        %v4508 = vpop.f32.mrb[0].mxu0
        %4509 = vdwg.mxu0
        %4510 = vmatprep.subr.mxu0 0.0
        %v4511 = vand.u32 %v1645, 4294901760
        %v4512 = vsub.f32 %v1645, %v4511
        %v4513 = vand.u32 %v4512, 4294901760
        %4514 = vmatpush1.msra.mxu0 %v4513
        %4515 = vmatprep.subr.mxu0 0.0
        %v4516 = vand.u32 %v1648, 4294901760
        %v4517 = vsub.f32 %v1648, %v4516
        %v4518 = vand.u32 %v4517, 4294901760
        %4519 = vmatpush1.msra.mxu0 %v4518
        %4520 = vmatprep.subr.mxu0 0.0
        %v4521 = vand.u32 %v1651, 4294901760
        %v4522 = vsub.f32 %v1651, %v4521
        %v4523 = vand.u32 %v4522, 4294901760
        %4524 = vmatpush1.msra.mxu0 %v4523
        %4525 = vmatprep.subr.mxu0 0.0
        %v4526 = vand.u32 %v1654, 4294901760
        %v4527 = vsub.f32 %v1654, %v4526
        %v4528 = vand.u32 %v4527, 4294901760
        %4529 = vmatpush1.msra.mxu0 %v4528
        %4530 = vmatprep.subr.mxu0 0.0
        %v4531 = vand.u32 %v1657, 4294901760
        %v4532 = vsub.f32 %v1657, %v4531
        %v4533 = vand.u32 %v4532, 4294901760
        %4534 = vmatpush1.msra.mxu0 %v4533
        %4535 = vmatprep.subr.mxu0 0.0
        %v4536 = vand.u32 %v1660, 4294901760
        %v4537 = vsub.f32 %v1660, %v4536
        %v4538 = vand.u32 %v4537, 4294901760
        %4539 = vmatpush1.msra.mxu0 %v4538
        %4540 = vmatprep.subr.mxu0 0.0
        %v4541 = vand.u32 %v1663, 4294901760
        %v4542 = vsub.f32 %v1663, %v4541
        %v4543 = vand.u32 %v4542, 4294901760
        %4544 = vmatpush1.msra.mxu0 %v4543
        %4545 = vmatprep.subr.mxu0 0.0
        %v4546 = vand.u32 %v1666, 4294901760
        %v4547 = vsub.f32 %v1666, %v4546
        %v4548 = vand.u32 %v4547, 4294901760
        %4549 = vmatpush1.msra.mxu0 %v4548
        %4550 = vmatprep.subr.mxu0 0.0
        %v4551 = vand.u32 %v1669, 4294901760
        %v4552 = vsub.f32 %v1669, %v4551
        %v4553 = vand.u32 %v4552, 4294901760
        %4554 = vmatpush1.msra.mxu0 %v4553
        %4555 = vmatprep.subr.mxu0 0.0
        %v4556 = vand.u32 %v1672, 4294901760
        %v4557 = vsub.f32 %v1672, %v4556
        %v4558 = vand.u32 %v4557, 4294901760
        %4559 = vmatpush1.msra.mxu0 %v4558
        %4560 = vmatprep.subr.mxu0 0.0
        %v4561 = vand.u32 %v1675, 4294901760
        %v4562 = vsub.f32 %v1675, %v4561
        %v4563 = vand.u32 %v4562, 4294901760
        %4564 = vmatpush1.msra.mxu0 %v4563
        %4565 = vmatprep.subr.mxu0 0.0
        %v4566 = vand.u32 %v1678, 4294901760
        %v4567 = vsub.f32 %v1678, %v4566
        %v4568 = vand.u32 %v4567, 4294901760
        %4569 = vmatpush1.msra.mxu0 %v4568
        %4570 = vmatprep.subr.mxu0 0.0
        %v4571 = vand.u32 %v1681, 4294901760
        %v4572 = vsub.f32 %v1681, %v4571
        %v4573 = vand.u32 %v4572, 4294901760
        %4574 = vmatpush1.msra.mxu0 %v4573
        %4575 = vmatprep.subr.mxu0 0.0
        %v4576 = vand.u32 %v1684, 4294901760
        %v4577 = vsub.f32 %v1684, %v4576
        %v4578 = vand.u32 %v4577, 4294901760
        %4579 = vmatpush1.msra.mxu0 %v4578
        %4580 = vmatprep.subr.mxu0 0.0
        %v4581 = vand.u32 %v1687, 4294901760
        %v4582 = vsub.f32 %v1687, %v4581
        %v4583 = vand.u32 %v4582, 4294901760
        %4584 = vmatpush1.msra.mxu0 %v4583
        %4585 = vmatprep.subr.mxu0 0.0
        %v4586 = vand.u32 %v1690, 4294901760
        %v4587 = vsub.f32 %v1690, %v4586
        %v4588 = vand.u32 %v4587, 4294901760
        %4589 = vmatpush1.msra.mxu0 %v4588
        %4590 = vmatprep.subr.mxu0 0.0
        %4591 = vmatpush1.msra.mxu0 0.0
        %4592 = vmatprep.subr.mxu0 0.0
        %4593 = vmatpush1.msra.mxu0 0.0
        %4594 = vmatprep.subr.mxu0 0.0
        %4595 = vmatpush1.msra.mxu0 0.0
        %4596 = vmatprep.subr.mxu0 0.0
        %4597 = vmatpush1.msra.mxu0 0.0
        %4598 = vmatprep.subr.mxu0 0.0
        %4599 = vmatpush1.msra.mxu0 0.0
        %4600 = vmatprep.subr.mxu0 0.0
        %4601 = vmatpush1.msra.mxu0 0.0
        %4602 = vmatprep.subr.mxu0 0.0
        %4603 = vmatpush1.msra.mxu0 0.0
        %4604 = vmatprep.subr.mxu0 0.0
        %4605 = vmatpush1.msra.mxu0 0.0
        %4606 = vmatprep.subr.mxu0 0.0
        %4607 = vmatpush1.msra.mxu0 0.0
        %4608 = vmatprep.subr.mxu0 0.0
        %4609 = vmatpush1.msra.mxu0 0.0
        %4610 = vmatprep.subr.mxu0 0.0
        %4611 = vmatpush1.msra.mxu0 0.0
        %4612 = vmatprep.subr.mxu0 0.0
        %4613 = vmatpush1.msra.mxu0 0.0
        %4614 = vmatprep.subr.mxu0 0.0
        %4615 = vmatpush1.msra.mxu0 0.0
        %4616 = vmatprep.subr.mxu0 0.0
        %4617 = vmatpush1.msra.mxu0 0.0
        %4618 = vmatprep.subr.mxu0 0.0
        %4619 = vmatpush1.msra.mxu0 0.0
        %4620 = vmatprep.subr.mxu0 0.0
        %4621 = vmatpush1.msra.mxu0 0.0
        %4622 = vmatprep.mubr.f32.mxu0 0.0
        %v4623 = vand.u32 %v3213, 4294901760
        %4624 = vmatmul.mubr.f32.gmra.mrb[0].mxu0 %v4623
        %v4625 = vpop.f32.mrb[0].mxu0
        %v4626 = vadd.f32 %v4507, %v4625
        %v4627 = vpop.f32.mrb[0].mxu0
        %4628 = vdwg.mxu0
        %4629 = vmatprep.subr.mxu0 0.0
        %v4630 = vand.u32 %v1645, 4294901760
        %4631 = vmatpush1.msra.mxu0 %v4630
        %4632 = vmatprep.subr.mxu0 0.0
        %v4633 = vand.u32 %v1648, 4294901760
        %4634 = vmatpush1.msra.mxu0 %v4633
        %4635 = vmatprep.subr.mxu0 0.0
        %v4636 = vand.u32 %v1651, 4294901760
        %4637 = vmatpush1.msra.mxu0 %v4636
        %4638 = vmatprep.subr.mxu0 0.0
        %v4639 = vand.u32 %v1654, 4294901760
        %4640 = vmatpush1.msra.mxu0 %v4639
        %4641 = vmatprep.subr.mxu0 0.0
        %v4642 = vand.u32 %v1657, 4294901760
        %4643 = vmatpush1.msra.mxu0 %v4642
        %4644 = vmatprep.subr.mxu0 0.0
        %v4645 = vand.u32 %v1660, 4294901760
        %4646 = vmatpush1.msra.mxu0 %v4645
        %4647 = vmatprep.subr.mxu0 0.0
        %v4648 = vand.u32 %v1663, 4294901760
        %4649 = vmatpush1.msra.mxu0 %v4648
        %4650 = vmatprep.subr.mxu0 0.0
        %v4651 = vand.u32 %v1666, 4294901760
        %4652 = vmatpush1.msra.mxu0 %v4651
        %4653 = vmatprep.subr.mxu0 0.0
        %v4654 = vand.u32 %v1669, 4294901760
        %4655 = vmatpush1.msra.mxu0 %v4654
        %4656 = vmatprep.subr.mxu0 0.0
        %v4657 = vand.u32 %v1672, 4294901760
        %4658 = vmatpush1.msra.mxu0 %v4657
        %4659 = vmatprep.subr.mxu0 0.0
        %v4660 = vand.u32 %v1675, 4294901760
        %4661 = vmatpush1.msra.mxu0 %v4660
        %4662 = vmatprep.subr.mxu0 0.0
        %v4663 = vand.u32 %v1678, 4294901760
        %4664 = vmatpush1.msra.mxu0 %v4663
        %4665 = vmatprep.subr.mxu0 0.0
        %v4666 = vand.u32 %v1681, 4294901760
        %4667 = vmatpush1.msra.mxu0 %v4666
        %4668 = vmatprep.subr.mxu0 0.0
        %v4669 = vand.u32 %v1684, 4294901760
        %4670 = vmatpush1.msra.mxu0 %v4669
        %4671 = vmatprep.subr.mxu0 0.0
        %v4672 = vand.u32 %v1687, 4294901760
        %4673 = vmatpush1.msra.mxu0 %v4672
        %4674 = vmatprep.subr.mxu0 0.0
        %v4675 = vand.u32 %v1690, 4294901760
        %4676 = vmatpush1.msra.mxu0 %v4675
        %4677 = vmatprep.subr.mxu0 0.0
        %4678 = vmatpush1.msra.mxu0 0.0
        %4679 = vmatprep.subr.mxu0 0.0
        %4680 = vmatpush1.msra.mxu0 0.0
        %4681 = vmatprep.subr.mxu0 0.0
        %4682 = vmatpush1.msra.mxu0 0.0
        %4683 = vmatprep.subr.mxu0 0.0
        %4684 = vmatpush1.msra.mxu0 0.0
        %4685 = vmatprep.subr.mxu0 0.0
        %4686 = vmatpush1.msra.mxu0 0.0
        %4687 = vmatprep.subr.mxu0 0.0
        %4688 = vmatpush1.msra.mxu0 0.0
        %4689 = vmatprep.subr.mxu0 0.0
        %4690 = vmatpush1.msra.mxu0 0.0
        %4691 = vmatprep.subr.mxu0 0.0
        %4692 = vmatpush1.msra.mxu0 0.0
        %4693 = vmatprep.subr.mxu0 0.0
        %4694 = vmatpush1.msra.mxu0 0.0
        %4695 = vmatprep.subr.mxu0 0.0
        %4696 = vmatpush1.msra.mxu0 0.0
        %4697 = vmatprep.subr.mxu0 0.0
        %4698 = vmatpush1.msra.mxu0 0.0
        %4699 = vmatprep.subr.mxu0 0.0
        %4700 = vmatpush1.msra.mxu0 0.0
        %4701 = vmatprep.subr.mxu0 0.0
        %4702 = vmatpush1.msra.mxu0 0.0
        %4703 = vmatprep.subr.mxu0 0.0
        %4704 = vmatpush1.msra.mxu0 0.0
        %4705 = vmatprep.subr.mxu0 0.0
        %4706 = vmatpush1.msra.mxu0 0.0
        %4707 = vmatprep.subr.mxu0 0.0
        %4708 = vmatpush1.msra.mxu0 0.0
        %4709 = vmatprep.mubr.f32.mxu0 0.0
        %v4710 = vand.u32 %v3213, 4294901760
        %4711 = vmatmul.mubr.f32.gmra.mrb[0].mxu0 %v4710
        %v4712 = vpop.f32.mrb[0].mxu0
        %v4713 = vadd.f32 %v4626, %v4712
        %v4714 = vpop.f32.mrb[0].mxu0
        %4715 = vdwg.mxu0
        %v4716 = vadd.f32 %v3217, %v4071
        %v4717 = vadd.f32 %v3218, %v4073
        %v4718 = vxor.u32 %v4716, 2147483648
        %v4719 = vxor.u32 %v4717, 2147483648
        %v4720 = vmul.f32 %v4718, 1.442695
        %v4721 = vpow.pop %v4720
        %v4722 = vmul.f32 %v4719, 1.442695
        %v4723 = vpow.pop %v4722
        %v4724 = vadd.f32 %v4721, 1.0
        %v4725 = vadd.f32 %v4723, 1.0
        %v4726 = vrcp.pop %v4724
        %v4727 = vmul.f32 1.0, %v4726
        %v4728 = vrcp.pop %v4725
        %v4729 = vmul.f32 1.0, %v4728
        %v4730 = vmul.f32 %v4727, %v4713
        %v4731 = vadd.f32 %v3219, %v4730
        %v4732 = vtanh.pop %v4731
        %v4733 = vsub.f32 1.0, %v4729
        %v4734 = vmul.f32 %v4733, %v4732
        %v4735 = vmul.f32 %v4729, %v3213
        %v4736 = vadd.f32 %v4734, %v4735
        %s4737 = sadd.s32 %s3208, 1
        %p4738 = scmp.lt.s32.totalorder %s4737, 11
        %s4739 = scalar_select %p4738, 1, 0
        %v4740 = vstv %s4739
        %vm4741 = vcmp.eq.s32.totalorder %v4740, 1
        %v4742 = vsel %vm4741, %v4736, %v3213
        %s4743 = smul.u32 1, 3
        %s4744 = smul.addr %s4743, 8
        %s4745 = scalar_lea.vmem [#allocation2], %s4744
        %v4746 = vld [vmem:[%s4745] sm:$0xff]
        %v4747 = vld [vmem:[%s4745 + $0x8] sm:$0xff]
        %v4748 = vld [vmem:[%s4745 + $0x10] sm:$0xff]
        %v4749 = vand.u32 %v1644, 4294901760
        %4750 = vmatprep.subr.mxu0 %v4749
        %v4751 = vand.u32 %v1643, 4294901760
        %4752 = vmatpush1.msra.mxu0 %v4751
        %v4753 = vand.u32 %v1647, 4294901760
        %4754 = vmatprep.subr.mxu0 %v4753
        %v4755 = vand.u32 %v1646, 4294901760
        %4756 = vmatpush1.msra.mxu0 %v4755
        %v4757 = vand.u32 %v1650, 4294901760
        %4758 = vmatprep.subr.mxu0 %v4757
        %v4759 = vand.u32 %v1649, 4294901760
        %4760 = vmatpush1.msra.mxu0 %v4759
        %v4761 = vand.u32 %v1653, 4294901760
        %4762 = vmatprep.subr.mxu0 %v4761
        %v4763 = vand.u32 %v1652, 4294901760
        %4764 = vmatpush1.msra.mxu0 %v4763
        %v4765 = vand.u32 %v1656, 4294901760
        %4766 = vmatprep.subr.mxu0 %v4765
        %v4767 = vand.u32 %v1655, 4294901760
        %4768 = vmatpush1.msra.mxu0 %v4767
        %v4769 = vand.u32 %v1659, 4294901760
        %4770 = vmatprep.subr.mxu0 %v4769
        %v4771 = vand.u32 %v1658, 4294901760
        %4772 = vmatpush1.msra.mxu0 %v4771
        %v4773 = vand.u32 %v1662, 4294901760
        %4774 = vmatprep.subr.mxu0 %v4773
        %v4775 = vand.u32 %v1661, 4294901760
        %4776 = vmatpush1.msra.mxu0 %v4775
        %v4777 = vand.u32 %v1665, 4294901760
        %4778 = vmatprep.subr.mxu0 %v4777
        %v4779 = vand.u32 %v1664, 4294901760
        %4780 = vmatpush1.msra.mxu0 %v4779
        %v4781 = vand.u32 %v1668, 4294901760
        %4782 = vmatprep.subr.mxu0 %v4781
        %v4783 = vand.u32 %v1667, 4294901760
        %4784 = vmatpush1.msra.mxu0 %v4783
        %v4785 = vand.u32 %v1671, 4294901760
        %4786 = vmatprep.subr.mxu0 %v4785
        %v4787 = vand.u32 %v1670, 4294901760
        %4788 = vmatpush1.msra.mxu0 %v4787
        %v4789 = vand.u32 %v1674, 4294901760
        %4790 = vmatprep.subr.mxu0 %v4789
        %v4791 = vand.u32 %v1673, 4294901760
        %4792 = vmatpush1.msra.mxu0 %v4791
        %v4793 = vand.u32 %v1677, 4294901760
        %4794 = vmatprep.subr.mxu0 %v4793
        %v4795 = vand.u32 %v1676, 4294901760
        %4796 = vmatpush1.msra.mxu0 %v4795
        %v4797 = vand.u32 %v1680, 4294901760
        %4798 = vmatprep.subr.mxu0 %v4797
        %v4799 = vand.u32 %v1679, 4294901760
        %4800 = vmatpush1.msra.mxu0 %v4799
        %v4801 = vand.u32 %v1683, 4294901760
        %4802 = vmatprep.subr.mxu0 %v4801
        %v4803 = vand.u32 %v1682, 4294901760
        %4804 = vmatpush1.msra.mxu0 %v4803
        %v4805 = vand.u32 %v1686, 4294901760
        %4806 = vmatprep.subr.mxu0 %v4805
        %v4807 = vand.u32 %v1685, 4294901760
        %4808 = vmatpush1.msra.mxu0 %v4807
        %v4809 = vand.u32 %v1689, 4294901760
        %4810 = vmatprep.subr.mxu0 %v4809
        %v4811 = vand.u32 %v1688, 4294901760
        %4812 = vmatpush1.msra.mxu0 %v4811
        %4813 = vmatprep.subr.mxu0 0.0
        %4814 = vmatpush1.msra.mxu0 0.0
        %4815 = vmatprep.subr.mxu0 0.0
        %4816 = vmatpush1.msra.mxu0 0.0
        %4817 = vmatprep.subr.mxu0 0.0
        %4818 = vmatpush1.msra.mxu0 0.0
        %4819 = vmatprep.subr.mxu0 0.0
        %4820 = vmatpush1.msra.mxu0 0.0
        %4821 = vmatprep.subr.mxu0 0.0
        %4822 = vmatpush1.msra.mxu0 0.0
        %4823 = vmatprep.subr.mxu0 0.0
        %4824 = vmatpush1.msra.mxu0 0.0
        %4825 = vmatprep.subr.mxu0 0.0
        %4826 = vmatpush1.msra.mxu0 0.0
        %4827 = vmatprep.subr.mxu0 0.0
        %4828 = vmatpush1.msra.mxu0 0.0
        %4829 = vmatprep.subr.mxu0 0.0
        %4830 = vmatpush1.msra.mxu0 0.0
        %4831 = vmatprep.subr.mxu0 0.0
        %4832 = vmatpush1.msra.mxu0 0.0
        %4833 = vmatprep.subr.mxu0 0.0
        %4834 = vmatpush1.msra.mxu0 0.0
        %4835 = vmatprep.subr.mxu0 0.0
        %4836 = vmatpush1.msra.mxu0 0.0
        %4837 = vmatprep.subr.mxu0 0.0
        %4838 = vmatpush1.msra.mxu0 0.0
        %4839 = vmatprep.subr.mxu0 0.0
        %4840 = vmatpush1.msra.mxu0 0.0
        %4841 = vmatprep.subr.mxu0 0.0
        %4842 = vmatpush1.msra.mxu0 0.0
        %4843 = vmatprep.subr.mxu0 0.0
        %4844 = vmatpush1.msra.mxu0 0.0
        %4845 = vmatprep.mubr.f32.mxu0 0.0
        %v4846 = vand.u32 %v4742, 4294901760
        %v4847 = vsub.f32 %v4742, %v4846
        %v4848 = vand.u32 %v4847, 4294901760
        %v4849 = vsub.f32 %v4847, %v4848
        %v4850 = vand.u32 %v4849, 4294901760
        %4851 = vmatmul.mubr.f32.gmra.mrb[0].mxu0 %v4850
        %v4852 = vpop.f32.mrb[0].mxu0
        %v4853 = vadd.f32 %v1624, %v4852
        %v4854 = vpop.f32.mrb[0].mxu0
        %v4855 = vadd.f32 %v1628, %v4854
        %4856 = vdwg.mxu0
        %v4857 = vand.u32 %v1644, 4294901760
        %v4858 = vsub.f32 %v1644, %v4857
        %v4859 = vand.u32 %v4858, 4294901760
        %v4860 = vsub.f32 %v4858, %v4859
        %v4861 = vand.u32 %v4860, 4294901760
        %4862 = vmatprep.subr.mxu0 %v4861
        %v4863 = vand.u32 %v1643, 4294901760
        %v4864 = vsub.f32 %v1643, %v4863
        %v4865 = vand.u32 %v4864, 4294901760
        %v4866 = vsub.f32 %v4864, %v4865
        %v4867 = vand.u32 %v4866, 4294901760
        %4868 = vmatpush1.msra.mxu0 %v4867
        %v4869 = vand.u32 %v1647, 4294901760
        %v4870 = vsub.f32 %v1647, %v4869
        %v4871 = vand.u32 %v4870, 4294901760
        %v4872 = vsub.f32 %v4870, %v4871
        %v4873 = vand.u32 %v4872, 4294901760
        %4874 = vmatprep.subr.mxu0 %v4873
        %v4875 = vand.u32 %v1646, 4294901760
        %v4876 = vsub.f32 %v1646, %v4875
        %v4877 = vand.u32 %v4876, 4294901760
        %v4878 = vsub.f32 %v4876, %v4877
        %v4879 = vand.u32 %v4878, 4294901760
        %4880 = vmatpush1.msra.mxu0 %v4879
        %v4881 = vand.u32 %v1650, 4294901760
        %v4882 = vsub.f32 %v1650, %v4881
        %v4883 = vand.u32 %v4882, 4294901760
        %v4884 = vsub.f32 %v4882, %v4883
        %v4885 = vand.u32 %v4884, 4294901760
        %4886 = vmatprep.subr.mxu0 %v4885
        %v4887 = vand.u32 %v1649, 4294901760
        %v4888 = vsub.f32 %v1649, %v4887
        %v4889 = vand.u32 %v4888, 4294901760
        %v4890 = vsub.f32 %v4888, %v4889
        %v4891 = vand.u32 %v4890, 4294901760
        %4892 = vmatpush1.msra.mxu0 %v4891
        %v4893 = vand.u32 %v1653, 4294901760
        %v4894 = vsub.f32 %v1653, %v4893
        %v4895 = vand.u32 %v4894, 4294901760
        %v4896 = vsub.f32 %v4894, %v4895
        %v4897 = vand.u32 %v4896, 4294901760
        %4898 = vmatprep.subr.mxu0 %v4897
        %v4899 = vand.u32 %v1652, 4294901760
        %v4900 = vsub.f32 %v1652, %v4899
        %v4901 = vand.u32 %v4900, 4294901760
        %v4902 = vsub.f32 %v4900, %v4901
        %v4903 = vand.u32 %v4902, 4294901760
        %4904 = vmatpush1.msra.mxu0 %v4903
        %v4905 = vand.u32 %v1656, 4294901760
        %v4906 = vsub.f32 %v1656, %v4905
        %v4907 = vand.u32 %v4906, 4294901760
        %v4908 = vsub.f32 %v4906, %v4907
        %v4909 = vand.u32 %v4908, 4294901760
        %4910 = vmatprep.subr.mxu0 %v4909
        %v4911 = vand.u32 %v1655, 4294901760
        %v4912 = vsub.f32 %v1655, %v4911
        %v4913 = vand.u32 %v4912, 4294901760
        %v4914 = vsub.f32 %v4912, %v4913
        %v4915 = vand.u32 %v4914, 4294901760
        %4916 = vmatpush1.msra.mxu0 %v4915
        %v4917 = vand.u32 %v1659, 4294901760
        %v4918 = vsub.f32 %v1659, %v4917
        %v4919 = vand.u32 %v4918, 4294901760
        %v4920 = vsub.f32 %v4918, %v4919
        %v4921 = vand.u32 %v4920, 4294901760
        %4922 = vmatprep.subr.mxu0 %v4921
        %v4923 = vand.u32 %v1658, 4294901760
        %v4924 = vsub.f32 %v1658, %v4923
        %v4925 = vand.u32 %v4924, 4294901760
        %v4926 = vsub.f32 %v4924, %v4925
        %v4927 = vand.u32 %v4926, 4294901760
        %4928 = vmatpush1.msra.mxu0 %v4927
        %v4929 = vand.u32 %v1662, 4294901760
        %v4930 = vsub.f32 %v1662, %v4929
        %v4931 = vand.u32 %v4930, 4294901760
        %v4932 = vsub.f32 %v4930, %v4931
        %v4933 = vand.u32 %v4932, 4294901760
        %4934 = vmatprep.subr.mxu0 %v4933
        %v4935 = vand.u32 %v1661, 4294901760
        %v4936 = vsub.f32 %v1661, %v4935
        %v4937 = vand.u32 %v4936, 4294901760
        %v4938 = vsub.f32 %v4936, %v4937
        %v4939 = vand.u32 %v4938, 4294901760
        %4940 = vmatpush1.msra.mxu0 %v4939
        %v4941 = vand.u32 %v1665, 4294901760
        %v4942 = vsub.f32 %v1665, %v4941
        %v4943 = vand.u32 %v4942, 4294901760
        %v4944 = vsub.f32 %v4942, %v4943
        %v4945 = vand.u32 %v4944, 4294901760
        %4946 = vmatprep.subr.mxu0 %v4945
        %v4947 = vand.u32 %v1664, 4294901760
        %v4948 = vsub.f32 %v1664, %v4947
        %v4949 = vand.u32 %v4948, 4294901760
        %v4950 = vsub.f32 %v4948, %v4949
        %v4951 = vand.u32 %v4950, 4294901760
        %4952 = vmatpush1.msra.mxu0 %v4951
        %v4953 = vand.u32 %v1668, 4294901760
        %v4954 = vsub.f32 %v1668, %v4953
        %v4955 = vand.u32 %v4954, 4294901760
        %v4956 = vsub.f32 %v4954, %v4955
        %v4957 = vand.u32 %v4956, 4294901760
        %4958 = vmatprep.subr.mxu0 %v4957
        %v4959 = vand.u32 %v1667, 4294901760
        %v4960 = vsub.f32 %v1667, %v4959
        %v4961 = vand.u32 %v4960, 4294901760
        %v4962 = vsub.f32 %v4960, %v4961
        %v4963 = vand.u32 %v4962, 4294901760
        %4964 = vmatpush1.msra.mxu0 %v4963
        %v4965 = vand.u32 %v1671, 4294901760
        %v4966 = vsub.f32 %v1671, %v4965
        %v4967 = vand.u32 %v4966, 4294901760
        %v4968 = vsub.f32 %v4966, %v4967
        %v4969 = vand.u32 %v4968, 4294901760
        %4970 = vmatprep.subr.mxu0 %v4969
        %v4971 = vand.u32 %v1670, 4294901760
        %v4972 = vsub.f32 %v1670, %v4971
        %v4973 = vand.u32 %v4972, 4294901760
        %v4974 = vsub.f32 %v4972, %v4973
        %v4975 = vand.u32 %v4974, 4294901760
        %4976 = vmatpush1.msra.mxu0 %v4975
        %v4977 = vand.u32 %v1674, 4294901760
        %v4978 = vsub.f32 %v1674, %v4977
        %v4979 = vand.u32 %v4978, 4294901760
        %v4980 = vsub.f32 %v4978, %v4979
        %v4981 = vand.u32 %v4980, 4294901760
        %4982 = vmatprep.subr.mxu0 %v4981
        %v4983 = vand.u32 %v1673, 4294901760
        %v4984 = vsub.f32 %v1673, %v4983
        %v4985 = vand.u32 %v4984, 4294901760
        %v4986 = vsub.f32 %v4984, %v4985
        %v4987 = vand.u32 %v4986, 4294901760
        %4988 = vmatpush1.msra.mxu0 %v4987
        %v4989 = vand.u32 %v1677, 4294901760
        %v4990 = vsub.f32 %v1677, %v4989
        %v4991 = vand.u32 %v4990, 4294901760
        %v4992 = vsub.f32 %v4990, %v4991
        %v4993 = vand.u32 %v4992, 4294901760
        %4994 = vmatprep.subr.mxu0 %v4993
        %v4995 = vand.u32 %v1676, 4294901760
        %v4996 = vsub.f32 %v1676, %v4995
        %v4997 = vand.u32 %v4996, 4294901760
        %v4998 = vsub.f32 %v4996, %v4997
        %v4999 = vand.u32 %v4998, 4294901760
        %5000 = vmatpush1.msra.mxu0 %v4999
        %v5001 = vand.u32 %v1680, 4294901760
        %v5002 = vsub.f32 %v1680, %v5001
        %v5003 = vand.u32 %v5002, 4294901760
        %v5004 = vsub.f32 %v5002, %v5003
        %v5005 = vand.u32 %v5004, 4294901760
        %5006 = vmatprep.subr.mxu0 %v5005
        %v5007 = vand.u32 %v1679, 4294901760
        %v5008 = vsub.f32 %v1679, %v5007
        %v5009 = vand.u32 %v5008, 4294901760
        %v5010 = vsub.f32 %v5008, %v5009
        %v5011 = vand.u32 %v5010, 4294901760
        %5012 = vmatpush1.msra.mxu0 %v5011
        %v5013 = vand.u32 %v1683, 4294901760
        %v5014 = vsub.f32 %v1683, %v5013
        %v5015 = vand.u32 %v5014, 4294901760
        %v5016 = vsub.f32 %v5014, %v5015
        %v5017 = vand.u32 %v5016, 4294901760
        %5018 = vmatprep.subr.mxu0 %v5017
        %v5019 = vand.u32 %v1682, 4294901760
        %v5020 = vsub.f32 %v1682, %v5019
        %v5021 = vand.u32 %v5020, 4294901760
        %v5022 = vsub.f32 %v5020, %v5021
        %v5023 = vand.u32 %v5022, 4294901760
        %5024 = vmatpush1.msra.mxu0 %v5023
        %v5025 = vand.u32 %v1686, 4294901760
        %v5026 = vsub.f32 %v1686, %v5025
        %v5027 = vand.u32 %v5026, 4294901760
        %v5028 = vsub.f32 %v5026, %v5027
        %v5029 = vand.u32 %v5028, 4294901760
        %5030 = vmatprep.subr.mxu0 %v5029
        %v5031 = vand.u32 %v1685, 4294901760
        %v5032 = vsub.f32 %v1685, %v5031
        %v5033 = vand.u32 %v5032, 4294901760
        %v5034 = vsub.f32 %v5032, %v5033
        %v5035 = vand.u32 %v5034, 4294901760
        %5036 = vmatpush1.msra.mxu0 %v5035
        %v5037 = vand.u32 %v1689, 4294901760
        %v5038 = vsub.f32 %v1689, %v5037
        %v5039 = vand.u32 %v5038, 4294901760
        %v5040 = vsub.f32 %v5038, %v5039
        %v5041 = vand.u32 %v5040, 4294901760
        %5042 = vmatprep.subr.mxu0 %v5041
        %v5043 = vand.u32 %v1688, 4294901760
        %v5044 = vsub.f32 %v1688, %v5043
        %v5045 = vand.u32 %v5044, 4294901760
        %v5046 = vsub.f32 %v5044, %v5045
        %v5047 = vand.u32 %v5046, 4294901760
        %5048 = vmatpush1.msra.mxu0 %v5047
        %5049 = vmatprep.subr.mxu0 0.0
        %5050 = vmatpush1.msra.mxu0 0.0
        %5051 = vmatprep.subr.mxu0 0.0
        %5052 = vmatpush1.msra.mxu0 0.0
        %5053 = vmatprep.subr.mxu0 0.0
        %5054 = vmatpush1.msra.mxu0 0.0
        %5055 = vmatprep.subr.mxu0 0.0
        %5056 = vmatpush1.msra.mxu0 0.0
        %5057 = vmatprep.subr.mxu0 0.0
        %5058 = vmatpush1.msra.mxu0 0.0
        %5059 = vmatprep.subr.mxu0 0.0
        %5060 = vmatpush1.msra.mxu0 0.0
        %5061 = vmatprep.subr.mxu0 0.0
        %5062 = vmatpush1.msra.mxu0 0.0
        %5063 = vmatprep.subr.mxu0 0.0
        %5064 = vmatpush1.msra.mxu0 0.0
        %5065 = vmatprep.subr.mxu0 0.0
        %5066 = vmatpush1.msra.mxu0 0.0
        %5067 = vmatprep.subr.mxu0 0.0
        %5068 = vmatpush1.msra.mxu0 0.0
        %5069 = vmatprep.subr.mxu0 0.0
        %5070 = vmatpush1.msra.mxu0 0.0
        %5071 = vmatprep.subr.mxu0 0.0
        %5072 = vmatpush1.msra.mxu0 0.0
        %5073 = vmatprep.subr.mxu0 0.0
        %5074 = vmatpush1.msra.mxu0 0.0
        %5075 = vmatprep.subr.mxu0 0.0
        %5076 = vmatpush1.msra.mxu0 0.0
        %5077 = vmatprep.subr.mxu0 0.0
        %5078 = vmatpush1.msra.mxu0 0.0
        %5079 = vmatprep.subr.mxu0 0.0
        %5080 = vmatpush1.msra.mxu0 0.0
        %5081 = vmatprep.mubr.f32.mxu0 0.0
        %v5082 = vand.u32 %v4742, 4294901760
        %5083 = vmatmul.mubr.f32.gmra.mrb[0].mxu0 %v5082
        %v5084 = vpop.f32.mrb[0].mxu0
        %v5085 = vadd.f32 %v4853, %v5084
        %v5086 = vpop.f32.mrb[0].mxu0
        %v5087 = vadd.f32 %v4855, %v5086
        %5088 = vdwg.mxu0
        %v5089 = vand.u32 %v1644, 4294901760
        %v5090 = vsub.f32 %v1644, %v5089
        %5091 = vmatprep.subr.mxu0 %v5090
        %v5092 = vand.u32 %v1643, 4294901760
        %v5093 = vsub.f32 %v1643, %v5092
        %5094 = vmatpush1.msra.mxu0 %v5093
        %v5095 = vand.u32 %v1647, 4294901760
        %v5096 = vsub.f32 %v1647, %v5095
        %5097 = vmatprep.subr.mxu0 %v5096
        %v5098 = vand.u32 %v1646, 4294901760
        %v5099 = vsub.f32 %v1646, %v5098
        %5100 = vmatpush1.msra.mxu0 %v5099
        %v5101 = vand.u32 %v1650, 4294901760
        %v5102 = vsub.f32 %v1650, %v5101
        %5103 = vmatprep.subr.mxu0 %v5102
        %v5104 = vand.u32 %v1649, 4294901760
        %v5105 = vsub.f32 %v1649, %v5104
        %5106 = vmatpush1.msra.mxu0 %v5105
        %v5107 = vand.u32 %v1653, 4294901760
        %v5108 = vsub.f32 %v1653, %v5107
        %5109 = vmatprep.subr.mxu0 %v5108
        %v5110 = vand.u32 %v1652, 4294901760
        %v5111 = vsub.f32 %v1652, %v5110
        %5112 = vmatpush1.msra.mxu0 %v5111
        %v5113 = vand.u32 %v1656, 4294901760
        %v5114 = vsub.f32 %v1656, %v5113
        %5115 = vmatprep.subr.mxu0 %v5114
        %v5116 = vand.u32 %v1655, 4294901760
        %v5117 = vsub.f32 %v1655, %v5116
        %5118 = vmatpush1.msra.mxu0 %v5117
        %v5119 = vand.u32 %v1659, 4294901760
        %v5120 = vsub.f32 %v1659, %v5119
        %5121 = vmatprep.subr.mxu0 %v5120
        %v5122 = vand.u32 %v1658, 4294901760
        %v5123 = vsub.f32 %v1658, %v5122
        %5124 = vmatpush1.msra.mxu0 %v5123
        %v5125 = vand.u32 %v1662, 4294901760
        %v5126 = vsub.f32 %v1662, %v5125
        %5127 = vmatprep.subr.mxu0 %v5126
        %v5128 = vand.u32 %v1661, 4294901760
        %v5129 = vsub.f32 %v1661, %v5128
        %5130 = vmatpush1.msra.mxu0 %v5129
        %v5131 = vand.u32 %v1665, 4294901760
        %v5132 = vsub.f32 %v1665, %v5131
        %5133 = vmatprep.subr.mxu0 %v5132
        %v5134 = vand.u32 %v1664, 4294901760
        %v5135 = vsub.f32 %v1664, %v5134
        %5136 = vmatpush1.msra.mxu0 %v5135
        %v5137 = vand.u32 %v1668, 4294901760
        %v5138 = vsub.f32 %v1668, %v5137
        %5139 = vmatprep.subr.mxu0 %v5138
        %v5140 = vand.u32 %v1667, 4294901760
        %v5141 = vsub.f32 %v1667, %v5140
        %5142 = vmatpush1.msra.mxu0 %v5141
        %v5143 = vand.u32 %v1671, 4294901760
        %v5144 = vsub.f32 %v1671, %v5143
        %5145 = vmatprep.subr.mxu0 %v5144
        %v5146 = vand.u32 %v1670, 4294901760
        %v5147 = vsub.f32 %v1670, %v5146
        %5148 = vmatpush1.msra.mxu0 %v5147
        %v5149 = vand.u32 %v1674, 4294901760
        %v5150 = vsub.f32 %v1674, %v5149
        %5151 = vmatprep.subr.mxu0 %v5150
        %v5152 = vand.u32 %v1673, 4294901760
        %v5153 = vsub.f32 %v1673, %v5152
        %5154 = vmatpush1.msra.mxu0 %v5153
        %v5155 = vand.u32 %v1677, 4294901760
        %v5156 = vsub.f32 %v1677, %v5155
        %5157 = vmatprep.subr.mxu0 %v5156
        %v5158 = vand.u32 %v1676, 4294901760
        %v5159 = vsub.f32 %v1676, %v5158
        %5160 = vmatpush1.msra.mxu0 %v5159
        %v5161 = vand.u32 %v1680, 4294901760
        %v5162 = vsub.f32 %v1680, %v5161
        %5163 = vmatprep.subr.mxu0 %v5162
        %v5164 = vand.u32 %v1679, 4294901760
        %v5165 = vsub.f32 %v1679, %v5164
        %5166 = vmatpush1.msra.mxu0 %v5165
        %v5167 = vand.u32 %v1683, 4294901760
        %v5168 = vsub.f32 %v1683, %v5167
        %5169 = vmatprep.subr.mxu0 %v5168
        %v5170 = vand.u32 %v1682, 4294901760
        %v5171 = vsub.f32 %v1682, %v5170
        %5172 = vmatpush1.msra.mxu0 %v5171
        %v5173 = vand.u32 %v1686, 4294901760
        %v5174 = vsub.f32 %v1686, %v5173
        %5175 = vmatprep.subr.mxu0 %v5174
        %v5176 = vand.u32 %v1685, 4294901760
        %v5177 = vsub.f32 %v1685, %v5176
        %5178 = vmatpush1.msra.mxu0 %v5177
        %v5179 = vand.u32 %v1689, 4294901760
        %v5180 = vsub.f32 %v1689, %v5179
        %5181 = vmatprep.subr.mxu0 %v5180
        %v5182 = vand.u32 %v1688, 4294901760
        %v5183 = vsub.f32 %v1688, %v5182
        %5184 = vmatpush1.msra.mxu0 %v5183
        %5185 = vmatprep.subr.mxu0 0.0
        %5186 = vmatpush1.msra.mxu0 0.0
        %5187 = vmatprep.subr.mxu0 0.0
        %5188 = vmatpush1.msra.mxu0 0.0
        %5189 = vmatprep.subr.mxu0 0.0
        %5190 = vmatpush1.msra.mxu0 0.0
        %5191 = vmatprep.subr.mxu0 0.0
        %5192 = vmatpush1.msra.mxu0 0.0
        %5193 = vmatprep.subr.mxu0 0.0
        %5194 = vmatpush1.msra.mxu0 0.0
        %5195 = vmatprep.subr.mxu0 0.0
        %5196 = vmatpush1.msra.mxu0 0.0
        %5197 = vmatprep.subr.mxu0 0.0
        %5198 = vmatpush1.msra.mxu0 0.0
        %5199 = vmatprep.subr.mxu0 0.0
        %5200 = vmatpush1.msra.mxu0 0.0
        %5201 = vmatprep.subr.mxu0 0.0
        %5202 = vmatpush1.msra.mxu0 0.0
        %5203 = vmatprep.subr.mxu0 0.0
        %5204 = vmatpush1.msra.mxu0 0.0
        %5205 = vmatprep.subr.mxu0 0.0
        %5206 = vmatpush1.msra.mxu0 0.0
        %5207 = vmatprep.subr.mxu0 0.0
        %5208 = vmatpush1.msra.mxu0 0.0
        %5209 = vmatprep.subr.mxu0 0.0
        %5210 = vmatpush1.msra.mxu0 0.0
        %5211 = vmatprep.subr.mxu0 0.0
        %5212 = vmatpush1.msra.mxu0 0.0
        %5213 = vmatprep.subr.mxu0 0.0
        %5214 = vmatpush1.msra.mxu0 0.0
        %5215 = vmatprep.subr.mxu0 0.0
        %5216 = vmatpush1.msra.mxu0 0.0
        %5217 = vmatprep.mubr.f32.mxu0 0.0
        %v5218 = vand.u32 %v4742, 4294901760
        %v5219 = vsub.f32 %v4742, %v5218
        %5220 = vmatmul.mubr.f32.gmra.mrb[0].mxu0 %v5219
        %v5221 = vpop.f32.mrb[0].mxu0
        %v5222 = vadd.f32 %v5085, %v5221
        %v5223 = vpop.f32.mrb[0].mxu0
        %v5224 = vadd.f32 %v5087, %v5223
        %5225 = vdwg.mxu0
        %v5226 = vand.u32 %v1644, 4294901760
        %5227 = vmatprep.subr.mxu0 %v5226
        %v5228 = vand.u32 %v1643, 4294901760
        %5229 = vmatpush1.msra.mxu0 %v5228
        %v5230 = vand.u32 %v1647, 4294901760
        %5231 = vmatprep.subr.mxu0 %v5230
        %v5232 = vand.u32 %v1646, 4294901760
        %5233 = vmatpush1.msra.mxu0 %v5232
        %v5234 = vand.u32 %v1650, 4294901760
        %5235 = vmatprep.subr.mxu0 %v5234
        %v5236 = vand.u32 %v1649, 4294901760
        %5237 = vmatpush1.msra.mxu0 %v5236
        %v5238 = vand.u32 %v1653, 4294901760
        %5239 = vmatprep.subr.mxu0 %v5238
        %v5240 = vand.u32 %v1652, 4294901760
        %5241 = vmatpush1.msra.mxu0 %v5240
        %v5242 = vand.u32 %v1656, 4294901760
        %5243 = vmatprep.subr.mxu0 %v5242
        %v5244 = vand.u32 %v1655, 4294901760
        %5245 = vmatpush1.msra.mxu0 %v5244
        %v5246 = vand.u32 %v1659, 4294901760
        %5247 = vmatprep.subr.mxu0 %v5246
        %v5248 = vand.u32 %v1658, 4294901760
        %5249 = vmatpush1.msra.mxu0 %v5248
        %v5250 = vand.u32 %v1662, 4294901760
        %5251 = vmatprep.subr.mxu0 %v5250
        %v5252 = vand.u32 %v1661, 4294901760
        %5253 = vmatpush1.msra.mxu0 %v5252
        %v5254 = vand.u32 %v1665, 4294901760
        %5255 = vmatprep.subr.mxu0 %v5254
        %v5256 = vand.u32 %v1664, 4294901760
        %5257 = vmatpush1.msra.mxu0 %v5256
        %v5258 = vand.u32 %v1668, 4294901760
        %5259 = vmatprep.subr.mxu0 %v5258
        %v5260 = vand.u32 %v1667, 4294901760
        %5261 = vmatpush1.msra.mxu0 %v5260
        %v5262 = vand.u32 %v1671, 4294901760
        %5263 = vmatprep.subr.mxu0 %v5262
        %v5264 = vand.u32 %v1670, 4294901760
        %5265 = vmatpush1.msra.mxu0 %v5264
        %v5266 = vand.u32 %v1674, 4294901760
        %5267 = vmatprep.subr.mxu0 %v5266
        %v5268 = vand.u32 %v1673, 4294901760
        %5269 = vmatpush1.msra.mxu0 %v5268
        %v5270 = vand.u32 %v1677, 4294901760
        %5271 = vmatprep.subr.mxu0 %v5270
        %v5272 = vand.u32 %v1676, 4294901760
        %5273 = vmatpush1.msra.mxu0 %v5272
        %v5274 = vand.u32 %v1680, 4294901760
        %5275 = vmatprep.subr.mxu0 %v5274
        %v5276 = vand.u32 %v1679, 4294901760
        %5277 = vmatpush1.msra.mxu0 %v5276
        %v5278 = vand.u32 %v1683, 4294901760
        %5279 = vmatprep.subr.mxu0 %v5278
        %v5280 = vand.u32 %v1682, 4294901760
        %5281 = vmatpush1.msra.mxu0 %v5280
        %v5282 = vand.u32 %v1686, 4294901760
        %5283 = vmatprep.subr.mxu0 %v5282
        %v5284 = vand.u32 %v1685, 4294901760
        %5285 = vmatpush1.msra.mxu0 %v5284
        %v5286 = vand.u32 %v1689, 4294901760
        %5287 = vmatprep.subr.mxu0 %v5286
        %v5288 = vand.u32 %v1688, 4294901760
        %5289 = vmatpush1.msra.mxu0 %v5288
        %5290 = vmatprep.subr.mxu0 0.0
        %5291 = vmatpush1.msra.mxu0 0.0
        %5292 = vmatprep.subr.mxu0 0.0
        %5293 = vmatpush1.msra.mxu0 0.0
        %5294 = vmatprep.subr.mxu0 0.0
        %5295 = vmatpush1.msra.mxu0 0.0
        %5296 = vmatprep.subr.mxu0 0.0
        %5297 = vmatpush1.msra.mxu0 0.0
        %5298 = vmatprep.subr.mxu0 0.0
        %5299 = vmatpush1.msra.mxu0 0.0
        %5300 = vmatprep.subr.mxu0 0.0
        %5301 = vmatpush1.msra.mxu0 0.0
        %5302 = vmatprep.subr.mxu0 0.0
        %5303 = vmatpush1.msra.mxu0 0.0
        %5304 = vmatprep.subr.mxu0 0.0
        %5305 = vmatpush1.msra.mxu0 0.0
        %5306 = vmatprep.subr.mxu0 0.0
        %5307 = vmatpush1.msra.mxu0 0.0
        %5308 = vmatprep.subr.mxu0 0.0
        %5309 = vmatpush1.msra.mxu0 0.0
        %5310 = vmatprep.subr.mxu0 0.0
        %5311 = vmatpush1.msra.mxu0 0.0
        %5312 = vmatprep.subr.mxu0 0.0
        %5313 = vmatpush1.msra.mxu0 0.0
        %5314 = vmatprep.subr.mxu0 0.0
        %5315 = vmatpush1.msra.mxu0 0.0
        %5316 = vmatprep.subr.mxu0 0.0
        %5317 = vmatpush1.msra.mxu0 0.0
        %5318 = vmatprep.subr.mxu0 0.0
        %5319 = vmatpush1.msra.mxu0 0.0
        %5320 = vmatprep.subr.mxu0 0.0
        %5321 = vmatpush1.msra.mxu0 0.0
        %5322 = vmatprep.mubr.f32.mxu0 0.0
        %v5323 = vand.u32 %v4742, 4294901760
        %v5324 = vsub.f32 %v4742, %v5323
        %v5325 = vand.u32 %v5324, 4294901760
        %5326 = vmatmul.mubr.f32.gmra.mrb[0].mxu0 %v5325
        %v5327 = vpop.f32.mrb[0].mxu0
        %v5328 = vadd.f32 %v5222, %v5327
        %v5329 = vpop.f32.mrb[0].mxu0
        %v5330 = vadd.f32 %v5224, %v5329
        %5331 = vdwg.mxu0
        %v5332 = vand.u32 %v1644, 4294901760
        %v5333 = vsub.f32 %v1644, %v5332
        %v5334 = vand.u32 %v5333, 4294901760
        %5335 = vmatprep.subr.mxu0 %v5334
        %v5336 = vand.u32 %v1643, 4294901760
        %v5337 = vsub.f32 %v1643, %v5336
        %v5338 = vand.u32 %v5337, 4294901760
        %5339 = vmatpush1.msra.mxu0 %v5338
        %v5340 = vand.u32 %v1647, 4294901760
        %v5341 = vsub.f32 %v1647, %v5340
        %v5342 = vand.u32 %v5341, 4294901760
        %5343 = vmatprep.subr.mxu0 %v5342
        %v5344 = vand.u32 %v1646, 4294901760
        %v5345 = vsub.f32 %v1646, %v5344
        %v5346 = vand.u32 %v5345, 4294901760
        %5347 = vmatpush1.msra.mxu0 %v5346
        %v5348 = vand.u32 %v1650, 4294901760
        %v5349 = vsub.f32 %v1650, %v5348
        %v5350 = vand.u32 %v5349, 4294901760
        %5351 = vmatprep.subr.mxu0 %v5350
        %v5352 = vand.u32 %v1649, 4294901760
        %v5353 = vsub.f32 %v1649, %v5352
        %v5354 = vand.u32 %v5353, 4294901760
        %5355 = vmatpush1.msra.mxu0 %v5354
        %v5356 = vand.u32 %v1653, 4294901760
        %v5357 = vsub.f32 %v1653, %v5356
        %v5358 = vand.u32 %v5357, 4294901760
        %5359 = vmatprep.subr.mxu0 %v5358
        %v5360 = vand.u32 %v1652, 4294901760
        %v5361 = vsub.f32 %v1652, %v5360
        %v5362 = vand.u32 %v5361, 4294901760
        %5363 = vmatpush1.msra.mxu0 %v5362
        %v5364 = vand.u32 %v1656, 4294901760
        %v5365 = vsub.f32 %v1656, %v5364
        %v5366 = vand.u32 %v5365, 4294901760
        %5367 = vmatprep.subr.mxu0 %v5366
        %v5368 = vand.u32 %v1655, 4294901760
        %v5369 = vsub.f32 %v1655, %v5368
        %v5370 = vand.u32 %v5369, 4294901760
        %5371 = vmatpush1.msra.mxu0 %v5370
        %v5372 = vand.u32 %v1659, 4294901760
        %v5373 = vsub.f32 %v1659, %v5372
        %v5374 = vand.u32 %v5373, 4294901760
        %5375 = vmatprep.subr.mxu0 %v5374
        %v5376 = vand.u32 %v1658, 4294901760
        %v5377 = vsub.f32 %v1658, %v5376
        %v5378 = vand.u32 %v5377, 4294901760
        %5379 = vmatpush1.msra.mxu0 %v5378
        %v5380 = vand.u32 %v1662, 4294901760
        %v5381 = vsub.f32 %v1662, %v5380
        %v5382 = vand.u32 %v5381, 4294901760
        %5383 = vmatprep.subr.mxu0 %v5382
        %v5384 = vand.u32 %v1661, 4294901760
        %v5385 = vsub.f32 %v1661, %v5384
        %v5386 = vand.u32 %v5385, 4294901760
        %5387 = vmatpush1.msra.mxu0 %v5386
        %v5388 = vand.u32 %v1665, 4294901760
        %v5389 = vsub.f32 %v1665, %v5388
        %v5390 = vand.u32 %v5389, 4294901760
        %5391 = vmatprep.subr.mxu0 %v5390
        %v5392 = vand.u32 %v1664, 4294901760
        %v5393 = vsub.f32 %v1664, %v5392
        %v5394 = vand.u32 %v5393, 4294901760
        %5395 = vmatpush1.msra.mxu0 %v5394
        %v5396 = vand.u32 %v1668, 4294901760
        %v5397 = vsub.f32 %v1668, %v5396
        %v5398 = vand.u32 %v5397, 4294901760
        %5399 = vmatprep.subr.mxu0 %v5398
        %v5400 = vand.u32 %v1667, 4294901760
        %v5401 = vsub.f32 %v1667, %v5400
        %v5402 = vand.u32 %v5401, 4294901760
        %5403 = vmatpush1.msra.mxu0 %v5402
        %v5404 = vand.u32 %v1671, 4294901760
        %v5405 = vsub.f32 %v1671, %v5404
        %v5406 = vand.u32 %v5405, 4294901760
        %5407 = vmatprep.subr.mxu0 %v5406
        %v5408 = vand.u32 %v1670, 4294901760
        %v5409 = vsub.f32 %v1670, %v5408
        %v5410 = vand.u32 %v5409, 4294901760
        %5411 = vmatpush1.msra.mxu0 %v5410
        %v5412 = vand.u32 %v1674, 4294901760
        %v5413 = vsub.f32 %v1674, %v5412
        %v5414 = vand.u32 %v5413, 4294901760
        %5415 = vmatprep.subr.mxu0 %v5414
        %v5416 = vand.u32 %v1673, 4294901760
        %v5417 = vsub.f32 %v1673, %v5416
        %v5418 = vand.u32 %v5417, 4294901760
        %5419 = vmatpush1.msra.mxu0 %v5418
        %v5420 = vand.u32 %v1677, 4294901760
        %v5421 = vsub.f32 %v1677, %v5420
        %v5422 = vand.u32 %v5421, 4294901760
        %5423 = vmatprep.subr.mxu0 %v5422
        %v5424 = vand.u32 %v1676, 4294901760
        %v5425 = vsub.f32 %v1676, %v5424
        %v5426 = vand.u32 %v5425, 4294901760
        %5427 = vmatpush1.msra.mxu0 %v5426
        %v5428 = vand.u32 %v1680, 4294901760
        %v5429 = vsub.f32 %v1680, %v5428
        %v5430 = vand.u32 %v5429, 4294901760
        %5431 = vmatprep.subr.mxu0 %v5430
        %v5432 = vand.u32 %v1679, 4294901760
        %v5433 = vsub.f32 %v1679, %v5432
        %v5434 = vand.u32 %v5433, 4294901760
        %5435 = vmatpush1.msra.mxu0 %v5434
        %v5436 = vand.u32 %v1683, 4294901760
        %v5437 = vsub.f32 %v1683, %v5436
        %v5438 = vand.u32 %v5437, 4294901760
        %5439 = vmatprep.subr.mxu0 %v5438
        %v5440 = vand.u32 %v1682, 4294901760
        %v5441 = vsub.f32 %v1682, %v5440
        %v5442 = vand.u32 %v5441, 4294901760
        %5443 = vmatpush1.msra.mxu0 %v5442
        %v5444 = vand.u32 %v1686, 4294901760
        %v5445 = vsub.f32 %v1686, %v5444
        %v5446 = vand.u32 %v5445, 4294901760
        %5447 = vmatprep.subr.mxu0 %v5446
        %v5448 = vand.u32 %v1685, 4294901760
        %v5449 = vsub.f32 %v1685, %v5448
        %v5450 = vand.u32 %v5449, 4294901760
        %5451 = vmatpush1.msra.mxu0 %v5450
        %v5452 = vand.u32 %v1689, 4294901760
        %v5453 = vsub.f32 %v1689, %v5452
        %v5454 = vand.u32 %v5453, 4294901760
        %5455 = vmatprep.subr.mxu0 %v5454
        %v5456 = vand.u32 %v1688, 4294901760
        %v5457 = vsub.f32 %v1688, %v5456
        %v5458 = vand.u32 %v5457, 4294901760
        %5459 = vmatpush1.msra.mxu0 %v5458
        %5460 = vmatprep.subr.mxu0 0.0
        %5461 = vmatpush1.msra.mxu0 0.0
        %5462 = vmatprep.subr.mxu0 0.0
        %5463 = vmatpush1.msra.mxu0 0.0
        %5464 = vmatprep.subr.mxu0 0.0
        %5465 = vmatpush1.msra.mxu0 0.0
        %5466 = vmatprep.subr.mxu0 0.0
        %5467 = vmatpush1.msra.mxu0 0.0
        %5468 = vmatprep.subr.mxu0 0.0
        %5469 = vmatpush1.msra.mxu0 0.0
        %5470 = vmatprep.subr.mxu0 0.0
        %5471 = vmatpush1.msra.mxu0 0.0
        %5472 = vmatprep.subr.mxu0 0.0
        %5473 = vmatpush1.msra.mxu0 0.0
        %5474 = vmatprep.subr.mxu0 0.0
        %5475 = vmatpush1.msra.mxu0 0.0
        %5476 = vmatprep.subr.mxu0 0.0
        %5477 = vmatpush1.msra.mxu0 0.0
        %5478 = vmatprep.subr.mxu0 0.0
        %5479 = vmatpush1.msra.mxu0 0.0
        %5480 = vmatprep.subr.mxu0 0.0
        %5481 = vmatpush1.msra.mxu0 0.0
        %5482 = vmatprep.subr.mxu0 0.0
        %5483 = vmatpush1.msra.mxu0 0.0
        %5484 = vmatprep.subr.mxu0 0.0
        %5485 = vmatpush1.msra.mxu0 0.0
        %5486 = vmatprep.subr.mxu0 0.0
        %5487 = vmatpush1.msra.mxu0 0.0
        %5488 = vmatprep.subr.mxu0 0.0
        %5489 = vmatpush1.msra.mxu0 0.0
        %5490 = vmatprep.subr.mxu0 0.0
        %5491 = vmatpush1.msra.mxu0 0.0
        %5492 = vmatprep.mubr.f32.mxu0 0.0
        %v5493 = vand.u32 %v4742, 4294901760
        %5494 = vmatmul.mubr.f32.gmra.mrb[0].mxu0 %v5493
        %v5495 = vpop.f32.mrb[0].mxu0
        %v5496 = vadd.f32 %v5328, %v5495
        %v5497 = vpop.f32.mrb[0].mxu0
        %v5498 = vadd.f32 %v5330, %v5497
        %5499 = vdwg.mxu0
        %v5500 = vand.u32 %v1644, 4294901760
        %5501 = vmatprep.subr.mxu0 %v5500
        %v5502 = vand.u32 %v1643, 4294901760
        %5503 = vmatpush1.msra.mxu0 %v5502
        %v5504 = vand.u32 %v1647, 4294901760
        %5505 = vmatprep.subr.mxu0 %v5504
        %v5506 = vand.u32 %v1646, 4294901760
        %5507 = vmatpush1.msra.mxu0 %v5506
        %v5508 = vand.u32 %v1650, 4294901760
        %5509 = vmatprep.subr.mxu0 %v5508
        %v5510 = vand.u32 %v1649, 4294901760
        %5511 = vmatpush1.msra.mxu0 %v5510
        %v5512 = vand.u32 %v1653, 4294901760
        %5513 = vmatprep.subr.mxu0 %v5512
        %v5514 = vand.u32 %v1652, 4294901760
        %5515 = vmatpush1.msra.mxu0 %v5514
        %v5516 = vand.u32 %v1656, 4294901760
        %5517 = vmatprep.subr.mxu0 %v5516
        %v5518 = vand.u32 %v1655, 4294901760
        %5519 = vmatpush1.msra.mxu0 %v5518
        %v5520 = vand.u32 %v1659, 4294901760
        %5521 = vmatprep.subr.mxu0 %v5520
        %v5522 = vand.u32 %v1658, 4294901760
        %5523 = vmatpush1.msra.mxu0 %v5522
        %v5524 = vand.u32 %v1662, 4294901760
        %5525 = vmatprep.subr.mxu0 %v5524
        %v5526 = vand.u32 %v1661, 4294901760
        %5527 = vmatpush1.msra.mxu0 %v5526
        %v5528 = vand.u32 %v1665, 4294901760
        %5529 = vmatprep.subr.mxu0 %v5528
        %v5530 = vand.u32 %v1664, 4294901760
        %5531 = vmatpush1.msra.mxu0 %v5530
        %v5532 = vand.u32 %v1668, 4294901760
        %5533 = vmatprep.subr.mxu0 %v5532
        %v5534 = vand.u32 %v1667, 4294901760
        %5535 = vmatpush1.msra.mxu0 %v5534
        %v5536 = vand.u32 %v1671, 4294901760
        %5537 = vmatprep.subr.mxu0 %v5536
        %v5538 = vand.u32 %v1670, 4294901760
        %5539 = vmatpush1.msra.mxu0 %v5538
        %v5540 = vand.u32 %v1674, 4294901760
        %5541 = vmatprep.subr.mxu0 %v5540
        %v5542 = vand.u32 %v1673, 4294901760
        %5543 = vmatpush1.msra.mxu0 %v5542
        %v5544 = vand.u32 %v1677, 4294901760
        %5545 = vmatprep.subr.mxu0 %v5544
        %v5546 = vand.u32 %v1676, 4294901760
        %5547 = vmatpush1.msra.mxu0 %v5546
        %v5548 = vand.u32 %v1680, 4294901760
        %5549 = vmatprep.subr.mxu0 %v5548
        %v5550 = vand.u32 %v1679, 4294901760
        %5551 = vmatpush1.msra.mxu0 %v5550
        %v5552 = vand.u32 %v1683, 4294901760
        %5553 = vmatprep.subr.mxu0 %v5552
        %v5554 = vand.u32 %v1682, 4294901760
        %5555 = vmatpush1.msra.mxu0 %v5554
        %v5556 = vand.u32 %v1686, 4294901760
        %5557 = vmatprep.subr.mxu0 %v5556
        %v5558 = vand.u32 %v1685, 4294901760
        %5559 = vmatpush1.msra.mxu0 %v5558
        %v5560 = vand.u32 %v1689, 4294901760
        %5561 = vmatprep.subr.mxu0 %v5560
        %v5562 = vand.u32 %v1688, 4294901760
        %5563 = vmatpush1.msra.mxu0 %v5562
        %5564 = vmatprep.subr.mxu0 0.0
        %5565 = vmatpush1.msra.mxu0 0.0
        %5566 = vmatprep.subr.mxu0 0.0
        %5567 = vmatpush1.msra.mxu0 0.0
        %5568 = vmatprep.subr.mxu0 0.0
        %5569 = vmatpush1.msra.mxu0 0.0
        %5570 = vmatprep.subr.mxu0 0.0
        %5571 = vmatpush1.msra.mxu0 0.0
        %5572 = vmatprep.subr.mxu0 0.0
        %5573 = vmatpush1.msra.mxu0 0.0
        %5574 = vmatprep.subr.mxu0 0.0
        %5575 = vmatpush1.msra.mxu0 0.0
        %5576 = vmatprep.subr.mxu0 0.0
        %5577 = vmatpush1.msra.mxu0 0.0
        %5578 = vmatprep.subr.mxu0 0.0
        %5579 = vmatpush1.msra.mxu0 0.0
        %5580 = vmatprep.subr.mxu0 0.0
        %5581 = vmatpush1.msra.mxu0 0.0
        %5582 = vmatprep.subr.mxu0 0.0
        %5583 = vmatpush1.msra.mxu0 0.0
        %5584 = vmatprep.subr.mxu0 0.0
        %5585 = vmatpush1.msra.mxu0 0.0
        %5586 = vmatprep.subr.mxu0 0.0
        %5587 = vmatpush1.msra.mxu0 0.0
        %5588 = vmatprep.subr.mxu0 0.0
        %5589 = vmatpush1.msra.mxu0 0.0
        %5590 = vmatprep.subr.mxu0 0.0
        %5591 = vmatpush1.msra.mxu0 0.0
        %5592 = vmatprep.subr.mxu0 0.0
        %5593 = vmatpush1.msra.mxu0 0.0
        %5594 = vmatprep.subr.mxu0 0.0
        %5595 = vmatpush1.msra.mxu0 0.0
        %5596 = vmatprep.mubr.f32.mxu0 0.0
        %v5597 = vand.u32 %v4742, 4294901760
        %5598 = vmatmul.mubr.f32.gmra.mrb[0].mxu0 %v5597
        %v5599 = vpop.f32.mrb[0].mxu0
        %v5600 = vadd.f32 %v5496, %v5599
        %v5601 = vpop.f32.mrb[0].mxu0
        %v5602 = vadd.f32 %v5498, %v5601
        %5603 = vdwg.mxu0
        %5604 = vmatprep.subr.mxu0 0.0
        %v5605 = vand.u32 %v1645, 4294901760
        %5606 = vmatpush1.msra.mxu0 %v5605
        %5607 = vmatprep.subr.mxu0 0.0
        %v5608 = vand.u32 %v1648, 4294901760
        %5609 = vmatpush1.msra.mxu0 %v5608
        %5610 = vmatprep.subr.mxu0 0.0
        %v5611 = vand.u32 %v1651, 4294901760
        %5612 = vmatpush1.msra.mxu0 %v5611
        %5613 = vmatprep.subr.mxu0 0.0
        %v5614 = vand.u32 %v1654, 4294901760
        %5615 = vmatpush1.msra.mxu0 %v5614
        %5616 = vmatprep.subr.mxu0 0.0
        %v5617 = vand.u32 %v1657, 4294901760
        %5618 = vmatpush1.msra.mxu0 %v5617
        %5619 = vmatprep.subr.mxu0 0.0
        %v5620 = vand.u32 %v1660, 4294901760
        %5621 = vmatpush1.msra.mxu0 %v5620
        %5622 = vmatprep.subr.mxu0 0.0
        %v5623 = vand.u32 %v1663, 4294901760
        %5624 = vmatpush1.msra.mxu0 %v5623
        %5625 = vmatprep.subr.mxu0 0.0
        %v5626 = vand.u32 %v1666, 4294901760
        %5627 = vmatpush1.msra.mxu0 %v5626
        %5628 = vmatprep.subr.mxu0 0.0
        %v5629 = vand.u32 %v1669, 4294901760
        %5630 = vmatpush1.msra.mxu0 %v5629
        %5631 = vmatprep.subr.mxu0 0.0
        %v5632 = vand.u32 %v1672, 4294901760
        %5633 = vmatpush1.msra.mxu0 %v5632
        %5634 = vmatprep.subr.mxu0 0.0
        %v5635 = vand.u32 %v1675, 4294901760
        %5636 = vmatpush1.msra.mxu0 %v5635
        %5637 = vmatprep.subr.mxu0 0.0
        %v5638 = vand.u32 %v1678, 4294901760
        %5639 = vmatpush1.msra.mxu0 %v5638
        %5640 = vmatprep.subr.mxu0 0.0
        %v5641 = vand.u32 %v1681, 4294901760
        %5642 = vmatpush1.msra.mxu0 %v5641
        %5643 = vmatprep.subr.mxu0 0.0
        %v5644 = vand.u32 %v1684, 4294901760
        %5645 = vmatpush1.msra.mxu0 %v5644
        %5646 = vmatprep.subr.mxu0 0.0
        %v5647 = vand.u32 %v1687, 4294901760
        %5648 = vmatpush1.msra.mxu0 %v5647
        %5649 = vmatprep.subr.mxu0 0.0
        %v5650 = vand.u32 %v1690, 4294901760
        %5651 = vmatpush1.msra.mxu0 %v5650
        %5652 = vmatprep.subr.mxu0 0.0
        %5653 = vmatpush1.msra.mxu0 0.0
        %5654 = vmatprep.subr.mxu0 0.0
        %5655 = vmatpush1.msra.mxu0 0.0
        %5656 = vmatprep.subr.mxu0 0.0
        %5657 = vmatpush1.msra.mxu0 0.0
        %5658 = vmatprep.subr.mxu0 0.0
        %5659 = vmatpush1.msra.mxu0 0.0
        %5660 = vmatprep.subr.mxu0 0.0
        %5661 = vmatpush1.msra.mxu0 0.0
        %5662 = vmatprep.subr.mxu0 0.0
        %5663 = vmatpush1.msra.mxu0 0.0
        %5664 = vmatprep.subr.mxu0 0.0
        %5665 = vmatpush1.msra.mxu0 0.0
        %5666 = vmatprep.subr.mxu0 0.0
        %5667 = vmatpush1.msra.mxu0 0.0
        %5668 = vmatprep.subr.mxu0 0.0
        %5669 = vmatpush1.msra.mxu0 0.0
        %5670 = vmatprep.subr.mxu0 0.0
        %5671 = vmatpush1.msra.mxu0 0.0
        %5672 = vmatprep.subr.mxu0 0.0
        %5673 = vmatpush1.msra.mxu0 0.0
        %5674 = vmatprep.subr.mxu0 0.0
        %5675 = vmatpush1.msra.mxu0 0.0
        %5676 = vmatprep.subr.mxu0 0.0
        %5677 = vmatpush1.msra.mxu0 0.0
        %5678 = vmatprep.subr.mxu0 0.0
        %5679 = vmatpush1.msra.mxu0 0.0
        %5680 = vmatprep.subr.mxu0 0.0
        %5681 = vmatpush1.msra.mxu0 0.0
        %5682 = vmatprep.subr.mxu0 0.0
        %5683 = vmatpush1.msra.mxu0 0.0
        %5684 = vmatprep.mubr.f32.mxu0 0.0
        %v5685 = vand.u32 %v4742, 4294901760
        %v5686 = vsub.f32 %v4742, %v5685
        %v5687 = vand.u32 %v5686, 4294901760
        %v5688 = vsub.f32 %v5686, %v5687
        %v5689 = vand.u32 %v5688, 4294901760
        %5690 = vmatmul.mubr.f32.gmra.mrb[0].mxu0 %v5689
        %v5691 = vpop.f32.mrb[0].mxu0
        %v5692 = vadd.f32 %v1632, %v5691
        %v5693 = vpop.f32.mrb[0].mxu0
        %5694 = vdwg.mxu0
        %5695 = vmatprep.subr.mxu0 0.0
        %v5696 = vand.u32 %v1645, 4294901760
        %v5697 = vsub.f32 %v1645, %v5696
        %v5698 = vand.u32 %v5697, 4294901760
        %v5699 = vsub.f32 %v5697, %v5698
        %v5700 = vand.u32 %v5699, 4294901760
        %5701 = vmatpush1.msra.mxu0 %v5700
        %5702 = vmatprep.subr.mxu0 0.0
        %v5703 = vand.u32 %v1648, 4294901760
        %v5704 = vsub.f32 %v1648, %v5703
        %v5705 = vand.u32 %v5704, 4294901760
        %v5706 = vsub.f32 %v5704, %v5705
        %v5707 = vand.u32 %v5706, 4294901760
        %5708 = vmatpush1.msra.mxu0 %v5707
        %5709 = vmatprep.subr.mxu0 0.0
        %v5710 = vand.u32 %v1651, 4294901760
        %v5711 = vsub.f32 %v1651, %v5710
        %v5712 = vand.u32 %v5711, 4294901760
        %v5713 = vsub.f32 %v5711, %v5712
        %v5714 = vand.u32 %v5713, 4294901760
        %5715 = vmatpush1.msra.mxu0 %v5714
        %5716 = vmatprep.subr.mxu0 0.0
        %v5717 = vand.u32 %v1654, 4294901760
        %v5718 = vsub.f32 %v1654, %v5717
        %v5719 = vand.u32 %v5718, 4294901760
        %v5720 = vsub.f32 %v5718, %v5719
        %v5721 = vand.u32 %v5720, 4294901760
        %5722 = vmatpush1.msra.mxu0 %v5721
        %5723 = vmatprep.subr.mxu0 0.0
        %v5724 = vand.u32 %v1657, 4294901760
        %v5725 = vsub.f32 %v1657, %v5724
        %v5726 = vand.u32 %v5725, 4294901760
        %v5727 = vsub.f32 %v5725, %v5726
        %v5728 = vand.u32 %v5727, 4294901760
        %5729 = vmatpush1.msra.mxu0 %v5728
        %5730 = vmatprep.subr.mxu0 0.0
        %v5731 = vand.u32 %v1660, 4294901760
        %v5732 = vsub.f32 %v1660, %v5731
        %v5733 = vand.u32 %v5732, 4294901760
        %v5734 = vsub.f32 %v5732, %v5733
        %v5735 = vand.u32 %v5734, 4294901760
        %5736 = vmatpush1.msra.mxu0 %v5735
        %5737 = vmatprep.subr.mxu0 0.0
        %v5738 = vand.u32 %v1663, 4294901760
        %v5739 = vsub.f32 %v1663, %v5738
        %v5740 = vand.u32 %v5739, 4294901760
        %v5741 = vsub.f32 %v5739, %v5740
        %v5742 = vand.u32 %v5741, 4294901760
        %5743 = vmatpush1.msra.mxu0 %v5742
        %5744 = vmatprep.subr.mxu0 0.0
        %v5745 = vand.u32 %v1666, 4294901760
        %v5746 = vsub.f32 %v1666, %v5745
        %v5747 = vand.u32 %v5746, 4294901760
        %v5748 = vsub.f32 %v5746, %v5747
        %v5749 = vand.u32 %v5748, 4294901760
        %5750 = vmatpush1.msra.mxu0 %v5749
        %5751 = vmatprep.subr.mxu0 0.0
        %v5752 = vand.u32 %v1669, 4294901760
        %v5753 = vsub.f32 %v1669, %v5752
        %v5754 = vand.u32 %v5753, 4294901760
        %v5755 = vsub.f32 %v5753, %v5754
        %v5756 = vand.u32 %v5755, 4294901760
        %5757 = vmatpush1.msra.mxu0 %v5756
        %5758 = vmatprep.subr.mxu0 0.0
        %v5759 = vand.u32 %v1672, 4294901760
        %v5760 = vsub.f32 %v1672, %v5759
        %v5761 = vand.u32 %v5760, 4294901760
        %v5762 = vsub.f32 %v5760, %v5761
        %v5763 = vand.u32 %v5762, 4294901760
        %5764 = vmatpush1.msra.mxu0 %v5763
        %5765 = vmatprep.subr.mxu0 0.0
        %v5766 = vand.u32 %v1675, 4294901760
        %v5767 = vsub.f32 %v1675, %v5766
        %v5768 = vand.u32 %v5767, 4294901760
        %v5769 = vsub.f32 %v5767, %v5768
        %v5770 = vand.u32 %v5769, 4294901760
        %5771 = vmatpush1.msra.mxu0 %v5770
        %5772 = vmatprep.subr.mxu0 0.0
        %v5773 = vand.u32 %v1678, 4294901760
        %v5774 = vsub.f32 %v1678, %v5773
        %v5775 = vand.u32 %v5774, 4294901760
        %v5776 = vsub.f32 %v5774, %v5775
        %v5777 = vand.u32 %v5776, 4294901760
        %5778 = vmatpush1.msra.mxu0 %v5777
        %5779 = vmatprep.subr.mxu0 0.0
        %v5780 = vand.u32 %v1681, 4294901760
        %v5781 = vsub.f32 %v1681, %v5780
        %v5782 = vand.u32 %v5781, 4294901760
        %v5783 = vsub.f32 %v5781, %v5782
        %v5784 = vand.u32 %v5783, 4294901760
        %5785 = vmatpush1.msra.mxu0 %v5784
        %5786 = vmatprep.subr.mxu0 0.0
        %v5787 = vand.u32 %v1684, 4294901760
        %v5788 = vsub.f32 %v1684, %v5787
        %v5789 = vand.u32 %v5788, 4294901760
        %v5790 = vsub.f32 %v5788, %v5789
        %v5791 = vand.u32 %v5790, 4294901760
        %5792 = vmatpush1.msra.mxu0 %v5791
        %5793 = vmatprep.subr.mxu0 0.0
        %v5794 = vand.u32 %v1687, 4294901760
        %v5795 = vsub.f32 %v1687, %v5794
        %v5796 = vand.u32 %v5795, 4294901760
        %v5797 = vsub.f32 %v5795, %v5796
        %v5798 = vand.u32 %v5797, 4294901760
        %5799 = vmatpush1.msra.mxu0 %v5798
        %5800 = vmatprep.subr.mxu0 0.0
        %v5801 = vand.u32 %v1690, 4294901760
        %v5802 = vsub.f32 %v1690, %v5801
        %v5803 = vand.u32 %v5802, 4294901760
        %v5804 = vsub.f32 %v5802, %v5803
        %v5805 = vand.u32 %v5804, 4294901760
        %5806 = vmatpush1.msra.mxu0 %v5805
        %5807 = vmatprep.subr.mxu0 0.0
        %5808 = vmatpush1.msra.mxu0 0.0
        %5809 = vmatprep.subr.mxu0 0.0
        %5810 = vmatpush1.msra.mxu0 0.0
        %5811 = vmatprep.subr.mxu0 0.0
        %5812 = vmatpush1.msra.mxu0 0.0
        %5813 = vmatprep.subr.mxu0 0.0
        %5814 = vmatpush1.msra.mxu0 0.0
        %5815 = vmatprep.subr.mxu0 0.0
        %5816 = vmatpush1.msra.mxu0 0.0
        %5817 = vmatprep.subr.mxu0 0.0
        %5818 = vmatpush1.msra.mxu0 0.0
        %5819 = vmatprep.subr.mxu0 0.0
        %5820 = vmatpush1.msra.mxu0 0.0
        %5821 = vmatprep.subr.mxu0 0.0
        %5822 = vmatpush1.msra.mxu0 0.0
        %5823 = vmatprep.subr.mxu0 0.0
        %5824 = vmatpush1.msra.mxu0 0.0
        %5825 = vmatprep.subr.mxu0 0.0
        %5826 = vmatpush1.msra.mxu0 0.0
        %5827 = vmatprep.subr.mxu0 0.0
        %5828 = vmatpush1.msra.mxu0 0.0
        %5829 = vmatprep.subr.mxu0 0.0
        %5830 = vmatpush1.msra.mxu0 0.0
        %5831 = vmatprep.subr.mxu0 0.0
        %5832 = vmatpush1.msra.mxu0 0.0
        %5833 = vmatprep.subr.mxu0 0.0
        %5834 = vmatpush1.msra.mxu0 0.0
        %5835 = vmatprep.subr.mxu0 0.0
        %5836 = vmatpush1.msra.mxu0 0.0
        %5837 = vmatprep.subr.mxu0 0.0
        %5838 = vmatpush1.msra.mxu0 0.0
        %5839 = vmatprep.mubr.f32.mxu0 0.0
        %v5840 = vand.u32 %v4742, 4294901760
        %5841 = vmatmul.mubr.f32.gmra.mrb[0].mxu0 %v5840
        %v5842 = vpop.f32.mrb[0].mxu0
        %v5843 = vadd.f32 %v5692, %v5842
        %v5844 = vpop.f32.mrb[0].mxu0
        %5845 = vdwg.mxu0
        %5846 = vmatprep.subr.mxu0 0.0
        %v5847 = vand.u32 %v1645, 4294901760
        %v5848 = vsub.f32 %v1645, %v5847
        %5849 = vmatpush1.msra.mxu0 %v5848
        %5850 = vmatprep.subr.mxu0 0.0
        %v5851 = vand.u32 %v1648, 4294901760
        %v5852 = vsub.f32 %v1648, %v5851
        %5853 = vmatpush1.msra.mxu0 %v5852
        %5854 = vmatprep.subr.mxu0 0.0
        %v5855 = vand.u32 %v1651, 4294901760
        %v5856 = vsub.f32 %v1651, %v5855
        %5857 = vmatpush1.msra.mxu0 %v5856
        %5858 = vmatprep.subr.mxu0 0.0
        %v5859 = vand.u32 %v1654, 4294901760
        %v5860 = vsub.f32 %v1654, %v5859
        %5861 = vmatpush1.msra.mxu0 %v5860
        %5862 = vmatprep.subr.mxu0 0.0
        %v5863 = vand.u32 %v1657, 4294901760
        %v5864 = vsub.f32 %v1657, %v5863
        %5865 = vmatpush1.msra.mxu0 %v5864
        %5866 = vmatprep.subr.mxu0 0.0
        %v5867 = vand.u32 %v1660, 4294901760
        %v5868 = vsub.f32 %v1660, %v5867
        %5869 = vmatpush1.msra.mxu0 %v5868
        %5870 = vmatprep.subr.mxu0 0.0
        %v5871 = vand.u32 %v1663, 4294901760
        %v5872 = vsub.f32 %v1663, %v5871
        %5873 = vmatpush1.msra.mxu0 %v5872
        %5874 = vmatprep.subr.mxu0 0.0
        %v5875 = vand.u32 %v1666, 4294901760
        %v5876 = vsub.f32 %v1666, %v5875
        %5877 = vmatpush1.msra.mxu0 %v5876
        %5878 = vmatprep.subr.mxu0 0.0
        %v5879 = vand.u32 %v1669, 4294901760
        %v5880 = vsub.f32 %v1669, %v5879
        %5881 = vmatpush1.msra.mxu0 %v5880
        %5882 = vmatprep.subr.mxu0 0.0
        %v5883 = vand.u32 %v1672, 4294901760
        %v5884 = vsub.f32 %v1672, %v5883
        %5885 = vmatpush1.msra.mxu0 %v5884
        %5886 = vmatprep.subr.mxu0 0.0
        %v5887 = vand.u32 %v1675, 4294901760
        %v5888 = vsub.f32 %v1675, %v5887
        %5889 = vmatpush1.msra.mxu0 %v5888
        %5890 = vmatprep.subr.mxu0 0.0
        %v5891 = vand.u32 %v1678, 4294901760
        %v5892 = vsub.f32 %v1678, %v5891
        %5893 = vmatpush1.msra.mxu0 %v5892
        %5894 = vmatprep.subr.mxu0 0.0
        %v5895 = vand.u32 %v1681, 4294901760
        %v5896 = vsub.f32 %v1681, %v5895
        %5897 = vmatpush1.msra.mxu0 %v5896
        %5898 = vmatprep.subr.mxu0 0.0
        %v5899 = vand.u32 %v1684, 4294901760
        %v5900 = vsub.f32 %v1684, %v5899
        %5901 = vmatpush1.msra.mxu0 %v5900
        %5902 = vmatprep.subr.mxu0 0.0
        %v5903 = vand.u32 %v1687, 4294901760
        %v5904 = vsub.f32 %v1687, %v5903
        %5905 = vmatpush1.msra.mxu0 %v5904
        %5906 = vmatprep.subr.mxu0 0.0
        %v5907 = vand.u32 %v1690, 4294901760
        %v5908 = vsub.f32 %v1690, %v5907
        %5909 = vmatpush1.msra.mxu0 %v5908
        %5910 = vmatprep.subr.mxu0 0.0
        %5911 = vmatpush1.msra.mxu0 0.0
        %5912 = vmatprep.subr.mxu0 0.0
        %5913 = vmatpush1.msra.mxu0 0.0
        %5914 = vmatprep.subr.mxu0 0.0
        %5915 = vmatpush1.msra.mxu0 0.0
        %5916 = vmatprep.subr.mxu0 0.0
        %5917 = vmatpush1.msra.mxu0 0.0
        %5918 = vmatprep.subr.mxu0 0.0
        %5919 = vmatpush1.msra.mxu0 0.0
        %5920 = vmatprep.subr.mxu0 0.0
        %5921 = vmatpush1.msra.mxu0 0.0
        %5922 = vmatprep.subr.mxu0 0.0
        %5923 = vmatpush1.msra.mxu0 0.0
        %5924 = vmatprep.subr.mxu0 0.0
        %5925 = vmatpush1.msra.mxu0 0.0
        %5926 = vmatprep.subr.mxu0 0.0
        %5927 = vmatpush1.msra.mxu0 0.0
        %5928 = vmatprep.subr.mxu0 0.0
        %5929 = vmatpush1.msra.mxu0 0.0
        %5930 = vmatprep.subr.mxu0 0.0
        %5931 = vmatpush1.msra.mxu0 0.0
        %5932 = vmatprep.subr.mxu0 0.0
        %5933 = vmatpush1.msra.mxu0 0.0
        %5934 = vmatprep.subr.mxu0 0.0
        %5935 = vmatpush1.msra.mxu0 0.0
        %5936 = vmatprep.subr.mxu0 0.0
        %5937 = vmatpush1.msra.mxu0 0.0
        %5938 = vmatprep.subr.mxu0 0.0
        %5939 = vmatpush1.msra.mxu0 0.0
        %5940 = vmatprep.subr.mxu0 0.0
        %5941 = vmatpush1.msra.mxu0 0.0
        %5942 = vmatprep.mubr.f32.mxu0 0.0
        %v5943 = vand.u32 %v4742, 4294901760
        %v5944 = vsub.f32 %v4742, %v5943
        %5945 = vmatmul.mubr.f32.gmra.mrb[0].mxu0 %v5944
        %v5946 = vpop.f32.mrb[0].mxu0
        %v5947 = vadd.f32 %v5843, %v5946
        %v5948 = vpop.f32.mrb[0].mxu0
        %5949 = vdwg.mxu0
        %5950 = vmatprep.subr.mxu0 0.0
        %v5951 = vand.u32 %v1645, 4294901760
        %5952 = vmatpush1.msra.mxu0 %v5951
        %5953 = vmatprep.subr.mxu0 0.0
        %v5954 = vand.u32 %v1648, 4294901760
        %5955 = vmatpush1.msra.mxu0 %v5954
        %5956 = vmatprep.subr.mxu0 0.0
        %v5957 = vand.u32 %v1651, 4294901760
        %5958 = vmatpush1.msra.mxu0 %v5957
        %5959 = vmatprep.subr.mxu0 0.0
        %v5960 = vand.u32 %v1654, 4294901760
        %5961 = vmatpush1.msra.mxu0 %v5960
        %5962 = vmatprep.subr.mxu0 0.0
        %v5963 = vand.u32 %v1657, 4294901760
        %5964 = vmatpush1.msra.mxu0 %v5963
        %5965 = vmatprep.subr.mxu0 0.0
        %v5966 = vand.u32 %v1660, 4294901760
        %5967 = vmatpush1.msra.mxu0 %v5966
        %5968 = vmatprep.subr.mxu0 0.0
        %v5969 = vand.u32 %v1663, 4294901760
        %5970 = vmatpush1.msra.mxu0 %v5969
        %5971 = vmatprep.subr.mxu0 0.0
        %v5972 = vand.u32 %v1666, 4294901760
        %5973 = vmatpush1.msra.mxu0 %v5972
        %5974 = vmatprep.subr.mxu0 0.0
        %v5975 = vand.u32 %v1669, 4294901760
        %5976 = vmatpush1.msra.mxu0 %v5975
        %5977 = vmatprep.subr.mxu0 0.0
        %v5978 = vand.u32 %v1672, 4294901760
        %5979 = vmatpush1.msra.mxu0 %v5978
        %5980 = vmatprep.subr.mxu0 0.0
        %v5981 = vand.u32 %v1675, 4294901760
        %5982 = vmatpush1.msra.mxu0 %v5981
        %5983 = vmatprep.subr.mxu0 0.0
        %v5984 = vand.u32 %v1678, 4294901760
        %5985 = vmatpush1.msra.mxu0 %v5984
        %5986 = vmatprep.subr.mxu0 0.0
        %v5987 = vand.u32 %v1681, 4294901760
        %5988 = vmatpush1.msra.mxu0 %v5987
        %5989 = vmatprep.subr.mxu0 0.0
        %v5990 = vand.u32 %v1684, 4294901760
        %5991 = vmatpush1.msra.mxu0 %v5990
        %5992 = vmatprep.subr.mxu0 0.0
        %v5993 = vand.u32 %v1687, 4294901760
        %5994 = vmatpush1.msra.mxu0 %v5993
        %5995 = vmatprep.subr.mxu0 0.0
        %v5996 = vand.u32 %v1690, 4294901760
        %5997 = vmatpush1.msra.mxu0 %v5996
        %5998 = vmatprep.subr.mxu0 0.0
        %5999 = vmatpush1.msra.mxu0 0.0
        %6000 = vmatprep.subr.mxu0 0.0
        %6001 = vmatpush1.msra.mxu0 0.0
        %6002 = vmatprep.subr.mxu0 0.0
        %6003 = vmatpush1.msra.mxu0 0.0
        %6004 = vmatprep.subr.mxu0 0.0
        %6005 = vmatpush1.msra.mxu0 0.0
        %6006 = vmatprep.subr.mxu0 0.0
        %6007 = vmatpush1.msra.mxu0 0.0
        %6008 = vmatprep.subr.mxu0 0.0
        %6009 = vmatpush1.msra.mxu0 0.0
        %6010 = vmatprep.subr.mxu0 0.0
        %6011 = vmatpush1.msra.mxu0 0.0
        %6012 = vmatprep.subr.mxu0 0.0
        %6013 = vmatpush1.msra.mxu0 0.0
        %6014 = vmatprep.subr.mxu0 0.0
        %6015 = vmatpush1.msra.mxu0 0.0
        %6016 = vmatprep.subr.mxu0 0.0
        %6017 = vmatpush1.msra.mxu0 0.0
        %6018 = vmatprep.subr.mxu0 0.0
        %6019 = vmatpush1.msra.mxu0 0.0
        %6020 = vmatprep.subr.mxu0 0.0
        %6021 = vmatpush1.msra.mxu0 0.0
        %6022 = vmatprep.subr.mxu0 0.0
        %6023 = vmatpush1.msra.mxu0 0.0
        %6024 = vmatprep.subr.mxu0 0.0
        %6025 = vmatpush1.msra.mxu0 0.0
        %6026 = vmatprep.subr.mxu0 0.0
        %6027 = vmatpush1.msra.mxu0 0.0
        %6028 = vmatprep.subr.mxu0 0.0
        %6029 = vmatpush1.msra.mxu0 0.0
        %6030 = vmatprep.mubr.f32.mxu0 0.0
        %v6031 = vand.u32 %v4742, 4294901760
        %v6032 = vsub.f32 %v4742, %v6031
        %v6033 = vand.u32 %v6032, 4294901760
        %6034 = vmatmul.mubr.f32.gmra.mrb[0].mxu0 %v6033
        %v6035 = vpop.f32.mrb[0].mxu0
        %v6036 = vadd.f32 %v5947, %v6035
        %v6037 = vpop.f32.mrb[0].mxu0
        %6038 = vdwg.mxu0
        %6039 = vmatprep.subr.mxu0 0.0
        %v6040 = vand.u32 %v1645, 4294901760
        %v6041 = vsub.f32 %v1645, %v6040
        %v6042 = vand.u32 %v6041, 4294901760
        %6043 = vmatpush1.msra.mxu0 %v6042
        %6044 = vmatprep.subr.mxu0 0.0
        %v6045 = vand.u32 %v1648, 4294901760
        %v6046 = vsub.f32 %v1648, %v6045
        %v6047 = vand.u32 %v6046, 4294901760
        %6048 = vmatpush1.msra.mxu0 %v6047
        %6049 = vmatprep.subr.mxu0 0.0
        %v6050 = vand.u32 %v1651, 4294901760
        %v6051 = vsub.f32 %v1651, %v6050
        %v6052 = vand.u32 %v6051, 4294901760
        %6053 = vmatpush1.msra.mxu0 %v6052
        %6054 = vmatprep.subr.mxu0 0.0
        %v6055 = vand.u32 %v1654, 4294901760
        %v6056 = vsub.f32 %v1654, %v6055
        %v6057 = vand.u32 %v6056, 4294901760
        %6058 = vmatpush1.msra.mxu0 %v6057
        %6059 = vmatprep.subr.mxu0 0.0
        %v6060 = vand.u32 %v1657, 4294901760
        %v6061 = vsub.f32 %v1657, %v6060
        %v6062 = vand.u32 %v6061, 4294901760
        %6063 = vmatpush1.msra.mxu0 %v6062
        %6064 = vmatprep.subr.mxu0 0.0
        %v6065 = vand.u32 %v1660, 4294901760
        %v6066 = vsub.f32 %v1660, %v6065
        %v6067 = vand.u32 %v6066, 4294901760
        %6068 = vmatpush1.msra.mxu0 %v6067
        %6069 = vmatprep.subr.mxu0 0.0
        %v6070 = vand.u32 %v1663, 4294901760
        %v6071 = vsub.f32 %v1663, %v6070
        %v6072 = vand.u32 %v6071, 4294901760
        %6073 = vmatpush1.msra.mxu0 %v6072
        %6074 = vmatprep.subr.mxu0 0.0
        %v6075 = vand.u32 %v1666, 4294901760
        %v6076 = vsub.f32 %v1666, %v6075
        %v6077 = vand.u32 %v6076, 4294901760
        %6078 = vmatpush1.msra.mxu0 %v6077
        %6079 = vmatprep.subr.mxu0 0.0
        %v6080 = vand.u32 %v1669, 4294901760
        %v6081 = vsub.f32 %v1669, %v6080
        %v6082 = vand.u32 %v6081, 4294901760
        %6083 = vmatpush1.msra.mxu0 %v6082
        %6084 = vmatprep.subr.mxu0 0.0
        %v6085 = vand.u32 %v1672, 4294901760
        %v6086 = vsub.f32 %v1672, %v6085
        %v6087 = vand.u32 %v6086, 4294901760
        %6088 = vmatpush1.msra.mxu0 %v6087
        %6089 = vmatprep.subr.mxu0 0.0
        %v6090 = vand.u32 %v1675, 4294901760
        %v6091 = vsub.f32 %v1675, %v6090
        %v6092 = vand.u32 %v6091, 4294901760
        %6093 = vmatpush1.msra.mxu0 %v6092
        %6094 = vmatprep.subr.mxu0 0.0
        %v6095 = vand.u32 %v1678, 4294901760
        %v6096 = vsub.f32 %v1678, %v6095
        %v6097 = vand.u32 %v6096, 4294901760
        %6098 = vmatpush1.msra.mxu0 %v6097
        %6099 = vmatprep.subr.mxu0 0.0
        %v6100 = vand.u32 %v1681, 4294901760
        %v6101 = vsub.f32 %v1681, %v6100
        %v6102 = vand.u32 %v6101, 4294901760
        %6103 = vmatpush1.msra.mxu0 %v6102
        %6104 = vmatprep.subr.mxu0 0.0
        %v6105 = vand.u32 %v1684, 4294901760
        %v6106 = vsub.f32 %v1684, %v6105
        %v6107 = vand.u32 %v6106, 4294901760
        %6108 = vmatpush1.msra.mxu0 %v6107
        %6109 = vmatprep.subr.mxu0 0.0
        %v6110 = vand.u32 %v1687, 4294901760
        %v6111 = vsub.f32 %v1687, %v6110
        %v6112 = vand.u32 %v6111, 4294901760
        %6113 = vmatpush1.msra.mxu0 %v6112
        %6114 = vmatprep.subr.mxu0 0.0
        %v6115 = vand.u32 %v1690, 4294901760
        %v6116 = vsub.f32 %v1690, %v6115
        %v6117 = vand.u32 %v6116, 4294901760
        %6118 = vmatpush1.msra.mxu0 %v6117
        %6119 = vmatprep.subr.mxu0 0.0
        %6120 = vmatpush1.msra.mxu0 0.0
        %6121 = vmatprep.subr.mxu0 0.0
        %6122 = vmatpush1.msra.mxu0 0.0
        %6123 = vmatprep.subr.mxu0 0.0
        %6124 = vmatpush1.msra.mxu0 0.0
        %6125 = vmatprep.subr.mxu0 0.0
        %6126 = vmatpush1.msra.mxu0 0.0
        %6127 = vmatprep.subr.mxu0 0.0
        %6128 = vmatpush1.msra.mxu0 0.0
        %6129 = vmatprep.subr.mxu0 0.0
        %6130 = vmatpush1.msra.mxu0 0.0
        %6131 = vmatprep.subr.mxu0 0.0
        %6132 = vmatpush1.msra.mxu0 0.0
        %6133 = vmatprep.subr.mxu0 0.0
        %6134 = vmatpush1.msra.mxu0 0.0
        %6135 = vmatprep.subr.mxu0 0.0
        %6136 = vmatpush1.msra.mxu0 0.0
        %6137 = vmatprep.subr.mxu0 0.0
        %6138 = vmatpush1.msra.mxu0 0.0
        %6139 = vmatprep.subr.mxu0 0.0
        %6140 = vmatpush1.msra.mxu0 0.0
        %6141 = vmatprep.subr.mxu0 0.0
        %6142 = vmatpush1.msra.mxu0 0.0
        %6143 = vmatprep.subr.mxu0 0.0
        %6144 = vmatpush1.msra.mxu0 0.0
        %6145 = vmatprep.subr.mxu0 0.0
        %6146 = vmatpush1.msra.mxu0 0.0
        %6147 = vmatprep.subr.mxu0 0.0
        %6148 = vmatpush1.msra.mxu0 0.0
        %6149 = vmatprep.subr.mxu0 0.0
        %6150 = vmatpush1.msra.mxu0 0.0
        %6151 = vmatprep.mubr.f32.mxu0 0.0
        %v6152 = vand.u32 %v4742, 4294901760
        %6153 = vmatmul.mubr.f32.gmra.mrb[0].mxu0 %v6152
        %v6154 = vpop.f32.mrb[0].mxu0
        %v6155 = vadd.f32 %v6036, %v6154
        %v6156 = vpop.f32.mrb[0].mxu0
        %6157 = vdwg.mxu0
        %6158 = vmatprep.subr.mxu0 0.0
        %v6159 = vand.u32 %v1645, 4294901760
        %6160 = vmatpush1.msra.mxu0 %v6159
        %6161 = vmatprep.subr.mxu0 0.0
        %v6162 = vand.u32 %v1648, 4294901760
        %6163 = vmatpush1.msra.mxu0 %v6162
        %6164 = vmatprep.subr.mxu0 0.0
        %v6165 = vand.u32 %v1651, 4294901760
        %6166 = vmatpush1.msra.mxu0 %v6165
        %6167 = vmatprep.subr.mxu0 0.0
        %v6168 = vand.u32 %v1654, 4294901760
        %6169 = vmatpush1.msra.mxu0 %v6168
        %6170 = vmatprep.subr.mxu0 0.0
        %v6171 = vand.u32 %v1657, 4294901760
        %6172 = vmatpush1.msra.mxu0 %v6171
        %6173 = vmatprep.subr.mxu0 0.0
        %v6174 = vand.u32 %v1660, 4294901760
        %6175 = vmatpush1.msra.mxu0 %v6174
        %6176 = vmatprep.subr.mxu0 0.0
        %v6177 = vand.u32 %v1663, 4294901760
        %6178 = vmatpush1.msra.mxu0 %v6177
        %6179 = vmatprep.subr.mxu0 0.0
        %v6180 = vand.u32 %v1666, 4294901760
        %6181 = vmatpush1.msra.mxu0 %v6180
        %6182 = vmatprep.subr.mxu0 0.0
        %v6183 = vand.u32 %v1669, 4294901760
        %6184 = vmatpush1.msra.mxu0 %v6183
        %6185 = vmatprep.subr.mxu0 0.0
        %v6186 = vand.u32 %v1672, 4294901760
        %6187 = vmatpush1.msra.mxu0 %v6186
        %6188 = vmatprep.subr.mxu0 0.0
        %v6189 = vand.u32 %v1675, 4294901760
        %6190 = vmatpush1.msra.mxu0 %v6189
        %6191 = vmatprep.subr.mxu0 0.0
        %v6192 = vand.u32 %v1678, 4294901760
        %6193 = vmatpush1.msra.mxu0 %v6192
        %6194 = vmatprep.subr.mxu0 0.0
        %v6195 = vand.u32 %v1681, 4294901760
        %6196 = vmatpush1.msra.mxu0 %v6195
        %6197 = vmatprep.subr.mxu0 0.0
        %v6198 = vand.u32 %v1684, 4294901760
        %6199 = vmatpush1.msra.mxu0 %v6198
        %6200 = vmatprep.subr.mxu0 0.0
        %v6201 = vand.u32 %v1687, 4294901760
        %6202 = vmatpush1.msra.mxu0 %v6201
        %6203 = vmatprep.subr.mxu0 0.0
        %v6204 = vand.u32 %v1690, 4294901760
        %6205 = vmatpush1.msra.mxu0 %v6204
        %6206 = vmatprep.subr.mxu0 0.0
        %6207 = vmatpush1.msra.mxu0 0.0
        %6208 = vmatprep.subr.mxu0 0.0
        %6209 = vmatpush1.msra.mxu0 0.0
        %6210 = vmatprep.subr.mxu0 0.0
        %6211 = vmatpush1.msra.mxu0 0.0
        %6212 = vmatprep.subr.mxu0 0.0
        %6213 = vmatpush1.msra.mxu0 0.0
        %6214 = vmatprep.subr.mxu0 0.0
        %6215 = vmatpush1.msra.mxu0 0.0
        %6216 = vmatprep.subr.mxu0 0.0
        %6217 = vmatpush1.msra.mxu0 0.0
        %6218 = vmatprep.subr.mxu0 0.0
        %6219 = vmatpush1.msra.mxu0 0.0
        %6220 = vmatprep.subr.mxu0 0.0
        %6221 = vmatpush1.msra.mxu0 0.0
        %6222 = vmatprep.subr.mxu0 0.0
        %6223 = vmatpush1.msra.mxu0 0.0
        %6224 = vmatprep.subr.mxu0 0.0
        %6225 = vmatpush1.msra.mxu0 0.0
        %6226 = vmatprep.subr.mxu0 0.0
        %6227 = vmatpush1.msra.mxu0 0.0
        %6228 = vmatprep.subr.mxu0 0.0
        %6229 = vmatpush1.msra.mxu0 0.0
        %6230 = vmatprep.subr.mxu0 0.0
        %6231 = vmatpush1.msra.mxu0 0.0
        %6232 = vmatprep.subr.mxu0 0.0
        %6233 = vmatpush1.msra.mxu0 0.0
        %6234 = vmatprep.subr.mxu0 0.0
        %6235 = vmatpush1.msra.mxu0 0.0
        %6236 = vmatprep.subr.mxu0 0.0
        %6237 = vmatpush1.msra.mxu0 0.0
        %6238 = vmatprep.mubr.f32.mxu0 0.0
        %v6239 = vand.u32 %v4742, 4294901760
        %6240 = vmatmul.mubr.f32.gmra.mrb[0].mxu0 %v6239
        %v6241 = vpop.f32.mrb[0].mxu0
        %v6242 = vadd.f32 %v6155, %v6241
        %v6243 = vpop.f32.mrb[0].mxu0
        %6244 = vdwg.mxu0
        %v6245 = vadd.f32 %v4746, %v5600
        %v6246 = vadd.f32 %v4747, %v5602
        %v6247 = vxor.u32 %v6245, 2147483648
        %v6248 = vxor.u32 %v6246, 2147483648
        %v6249 = vmul.f32 %v6247, 1.442695
        %v6250 = vpow.pop %v6249
        %v6251 = vmul.f32 %v6248, 1.442695
        %v6252 = vpow.pop %v6251
        %v6253 = vadd.f32 %v6250, 1.0
        %v6254 = vadd.f32 %v6252, 1.0
        %v6255 = vrcp.pop %v6253
        %v6256 = vmul.f32 1.0, %v6255
        %v6257 = vrcp.pop %v6254
        %v6258 = vmul.f32 1.0, %v6257
        %v6259 = vmul.f32 %v6256, %v6242
        %v6260 = vadd.f32 %v4748, %v6259
        %v6261 = vtanh.pop %v6260
        %v6262 = vsub.f32 1.0, %v6258
        %v6263 = vmul.f32 %v6262, %v6261
        %v6264 = vmul.f32 %v6258, %v4742
        %v6265 = vadd.f32 %v6263, %v6264
        %s6266 = sadd.s32 %s3208, 2
        %p6267 = scmp.lt.s32.totalorder %s6266, 11
        %s6268 = scalar_select %p6267, 1, 0
        %v6269 = vstv %s6268
        %vm6270 = vcmp.eq.s32.totalorder %v6269, 1
        %v6271 = vsel %vm6270, %v6265, %v4742
        %s6272 = smul.u32 0, 3
        %s6273 = smul.addr %s6272, 8
        %s6274 = scalar_lea.vmem [#allocation2], %s6273
        %v6275 = vld [vmem:[%s6274] sm:$0xff]
        %v6276 = vld [vmem:[%s6274 + $0x8] sm:$0xff]
        %v6277 = vld [vmem:[%s6274 + $0x10] sm:$0xff]
        %v6278 = vand.u32 %v1644, 4294901760
        %6279 = vmatprep.subr.mxu0 %v6278
        %v6280 = vand.u32 %v1643, 4294901760
        %6281 = vmatpush1.msra.mxu0 %v6280
        %v6282 = vand.u32 %v1647, 4294901760
        %6283 = vmatprep.subr.mxu0 %v6282
        %v6284 = vand.u32 %v1646, 4294901760
        %6285 = vmatpush1.msra.mxu0 %v6284
        %v6286 = vand.u32 %v1650, 4294901760
        %6287 = vmatprep.subr.mxu0 %v6286
        %v6288 = vand.u32 %v1649, 4294901760
        %6289 = vmatpush1.msra.mxu0 %v6288
        %v6290 = vand.u32 %v1653, 4294901760
        %6291 = vmatprep.subr.mxu0 %v6290
        %v6292 = vand.u32 %v1652, 4294901760
        %6293 = vmatpush1.msra.mxu0 %v6292
        %v6294 = vand.u32 %v1656, 4294901760
        %6295 = vmatprep.subr.mxu0 %v6294
        %v6296 = vand.u32 %v1655, 4294901760
        %6297 = vmatpush1.msra.mxu0 %v6296
        %v6298 = vand.u32 %v1659, 4294901760
        %6299 = vmatprep.subr.mxu0 %v6298
        %v6300 = vand.u32 %v1658, 4294901760
        %6301 = vmatpush1.msra.mxu0 %v6300
        %v6302 = vand.u32 %v1662, 4294901760
        %6303 = vmatprep.subr.mxu0 %v6302
        %v6304 = vand.u32 %v1661, 4294901760
        %6305 = vmatpush1.msra.mxu0 %v6304
        %v6306 = vand.u32 %v1665, 4294901760
        %6307 = vmatprep.subr.mxu0 %v6306
        %v6308 = vand.u32 %v1664, 4294901760
        %6309 = vmatpush1.msra.mxu0 %v6308
        %v6310 = vand.u32 %v1668, 4294901760
        %6311 = vmatprep.subr.mxu0 %v6310
        %v6312 = vand.u32 %v1667, 4294901760
        %6313 = vmatpush1.msra.mxu0 %v6312
        %v6314 = vand.u32 %v1671, 4294901760
        %6315 = vmatprep.subr.mxu0 %v6314
        %v6316 = vand.u32 %v1670, 4294901760
        %6317 = vmatpush1.msra.mxu0 %v6316
        %v6318 = vand.u32 %v1674, 4294901760
        %6319 = vmatprep.subr.mxu0 %v6318
        %v6320 = vand.u32 %v1673, 4294901760
        %6321 = vmatpush1.msra.mxu0 %v6320
        %v6322 = vand.u32 %v1677, 4294901760
        %6323 = vmatprep.subr.mxu0 %v6322
        %v6324 = vand.u32 %v1676, 4294901760
        %6325 = vmatpush1.msra.mxu0 %v6324
        %v6326 = vand.u32 %v1680, 4294901760
        %6327 = vmatprep.subr.mxu0 %v6326
        %v6328 = vand.u32 %v1679, 4294901760
        %6329 = vmatpush1.msra.mxu0 %v6328
        %v6330 = vand.u32 %v1683, 4294901760
        %6331 = vmatprep.subr.mxu0 %v6330
        %v6332 = vand.u32 %v1682, 4294901760
        %6333 = vmatpush1.msra.mxu0 %v6332
        %v6334 = vand.u32 %v1686, 4294901760
        %6335 = vmatprep.subr.mxu0 %v6334
        %v6336 = vand.u32 %v1685, 4294901760
        %6337 = vmatpush1.msra.mxu0 %v6336
        %v6338 = vand.u32 %v1689, 4294901760
        %6339 = vmatprep.subr.mxu0 %v6338
        %v6340 = vand.u32 %v1688, 4294901760
        %6341 = vmatpush1.msra.mxu0 %v6340
        %6342 = vmatprep.subr.mxu0 0.0
        %6343 = vmatpush1.msra.mxu0 0.0
        %6344 = vmatprep.subr.mxu0 0.0
        %6345 = vmatpush1.msra.mxu0 0.0
        %6346 = vmatprep.subr.mxu0 0.0
        %6347 = vmatpush1.msra.mxu0 0.0
        %6348 = vmatprep.subr.mxu0 0.0
        %6349 = vmatpush1.msra.mxu0 0.0
        %6350 = vmatprep.subr.mxu0 0.0
        %6351 = vmatpush1.msra.mxu0 0.0
        %6352 = vmatprep.subr.mxu0 0.0
        %6353 = vmatpush1.msra.mxu0 0.0
        %6354 = vmatprep.subr.mxu0 0.0
        %6355 = vmatpush1.msra.mxu0 0.0
        %6356 = vmatprep.subr.mxu0 0.0
        %6357 = vmatpush1.msra.mxu0 0.0
        %6358 = vmatprep.subr.mxu0 0.0
        %6359 = vmatpush1.msra.mxu0 0.0
        %6360 = vmatprep.subr.mxu0 0.0
        %6361 = vmatpush1.msra.mxu0 0.0
        %6362 = vmatprep.subr.mxu0 0.0
        %6363 = vmatpush1.msra.mxu0 0.0
        %6364 = vmatprep.subr.mxu0 0.0
        %6365 = vmatpush1.msra.mxu0 0.0
        %6366 = vmatprep.subr.mxu0 0.0
        %6367 = vmatpush1.msra.mxu0 0.0
        %6368 = vmatprep.subr.mxu0 0.0
        %6369 = vmatpush1.msra.mxu0 0.0
        %6370 = vmatprep.subr.mxu0 0.0
        %6371 = vmatpush1.msra.mxu0 0.0
        %6372 = vmatprep.subr.mxu0 0.0
        %6373 = vmatpush1.msra.mxu0 0.0
        %6374 = vmatprep.mubr.f32.mxu0 0.0
        %v6375 = vand.u32 %v6271, 4294901760
        %v6376 = vsub.f32 %v6271, %v6375
        %v6377 = vand.u32 %v6376, 4294901760
        %v6378 = vsub.f32 %v6376, %v6377
        %v6379 = vand.u32 %v6378, 4294901760
        %6380 = vmatmul.mubr.f32.gmra.mrb[0].mxu0 %v6379
        %v6381 = vpop.f32.mrb[0].mxu0
        %v6382 = vadd.f32 %v1624, %v6381
        %v6383 = vpop.f32.mrb[0].mxu0
        %v6384 = vadd.f32 %v1628, %v6383
        %6385 = vdwg.mxu0
        %v6386 = vand.u32 %v1644, 4294901760
        %v6387 = vsub.f32 %v1644, %v6386
        %v6388 = vand.u32 %v6387, 4294901760
        %v6389 = vsub.f32 %v6387, %v6388
        %v6390 = vand.u32 %v6389, 4294901760
        %6391 = vmatprep.subr.mxu0 %v6390
        %v6392 = vand.u32 %v1643, 4294901760
        %v6393 = vsub.f32 %v1643, %v6392
        %v6394 = vand.u32 %v6393, 4294901760
        %v6395 = vsub.f32 %v6393, %v6394
        %v6396 = vand.u32 %v6395, 4294901760
        %6397 = vmatpush1.msra.mxu0 %v6396
        %v6398 = vand.u32 %v1647, 4294901760
        %v6399 = vsub.f32 %v1647, %v6398
        %v6400 = vand.u32 %v6399, 4294901760
        %v6401 = vsub.f32 %v6399, %v6400
        %v6402 = vand.u32 %v6401, 4294901760
        %6403 = vmatprep.subr.mxu0 %v6402
        %v6404 = vand.u32 %v1646, 4294901760
        %v6405 = vsub.f32 %v1646, %v6404
        %v6406 = vand.u32 %v6405, 4294901760
        %v6407 = vsub.f32 %v6405, %v6406
        %v6408 = vand.u32 %v6407, 4294901760
        %6409 = vmatpush1.msra.mxu0 %v6408
        %v6410 = vand.u32 %v1650, 4294901760
        %v6411 = vsub.f32 %v1650, %v6410
        %v6412 = vand.u32 %v6411, 4294901760
        %v6413 = vsub.f32 %v6411, %v6412
        %v6414 = vand.u32 %v6413, 4294901760
        %6415 = vmatprep.subr.mxu0 %v6414
        %v6416 = vand.u32 %v1649, 4294901760
        %v6417 = vsub.f32 %v1649, %v6416
        %v6418 = vand.u32 %v6417, 4294901760
        %v6419 = vsub.f32 %v6417, %v6418
        %v6420 = vand.u32 %v6419, 4294901760
        %6421 = vmatpush1.msra.mxu0 %v6420
        %v6422 = vand.u32 %v1653, 4294901760
        %v6423 = vsub.f32 %v1653, %v6422
        %v6424 = vand.u32 %v6423, 4294901760
        %v6425 = vsub.f32 %v6423, %v6424
        %v6426 = vand.u32 %v6425, 4294901760
        %6427 = vmatprep.subr.mxu0 %v6426
        %v6428 = vand.u32 %v1652, 4294901760
        %v6429 = vsub.f32 %v1652, %v6428
        %v6430 = vand.u32 %v6429, 4294901760
        %v6431 = vsub.f32 %v6429, %v6430
        %v6432 = vand.u32 %v6431, 4294901760
        %6433 = vmatpush1.msra.mxu0 %v6432
        %v6434 = vand.u32 %v1656, 4294901760
        %v6435 = vsub.f32 %v1656, %v6434
        %v6436 = vand.u32 %v6435, 4294901760
        %v6437 = vsub.f32 %v6435, %v6436
        %v6438 = vand.u32 %v6437, 4294901760
        %6439 = vmatprep.subr.mxu0 %v6438
        %v6440 = vand.u32 %v1655, 4294901760
        %v6441 = vsub.f32 %v1655, %v6440
        %v6442 = vand.u32 %v6441, 4294901760
        %v6443 = vsub.f32 %v6441, %v6442
        %v6444 = vand.u32 %v6443, 4294901760
        %6445 = vmatpush1.msra.mxu0 %v6444
        %v6446 = vand.u32 %v1659, 4294901760
        %v6447 = vsub.f32 %v1659, %v6446
        %v6448 = vand.u32 %v6447, 4294901760
        %v6449 = vsub.f32 %v6447, %v6448
        %v6450 = vand.u32 %v6449, 4294901760
        %6451 = vmatprep.subr.mxu0 %v6450
        %v6452 = vand.u32 %v1658, 4294901760
        %v6453 = vsub.f32 %v1658, %v6452
        %v6454 = vand.u32 %v6453, 4294901760
        %v6455 = vsub.f32 %v6453, %v6454
        %v6456 = vand.u32 %v6455, 4294901760
        %6457 = vmatpush1.msra.mxu0 %v6456
        %v6458 = vand.u32 %v1662, 4294901760
        %v6459 = vsub.f32 %v1662, %v6458
        %v6460 = vand.u32 %v6459, 4294901760
        %v6461 = vsub.f32 %v6459, %v6460
        %v6462 = vand.u32 %v6461, 4294901760
        %6463 = vmatprep.subr.mxu0 %v6462
        %v6464 = vand.u32 %v1661, 4294901760
        %v6465 = vsub.f32 %v1661, %v6464
        %v6466 = vand.u32 %v6465, 4294901760
        %v6467 = vsub.f32 %v6465, %v6466
        %v6468 = vand.u32 %v6467, 4294901760
        %6469 = vmatpush1.msra.mxu0 %v6468
        %v6470 = vand.u32 %v1665, 4294901760
        %v6471 = vsub.f32 %v1665, %v6470
        %v6472 = vand.u32 %v6471, 4294901760
        %v6473 = vsub.f32 %v6471, %v6472
        %v6474 = vand.u32 %v6473, 4294901760
        %6475 = vmatprep.subr.mxu0 %v6474
        %v6476 = vand.u32 %v1664, 4294901760
        %v6477 = vsub.f32 %v1664, %v6476
        %v6478 = vand.u32 %v6477, 4294901760
        %v6479 = vsub.f32 %v6477, %v6478
        %v6480 = vand.u32 %v6479, 4294901760
        %6481 = vmatpush1.msra.mxu0 %v6480
        %v6482 = vand.u32 %v1668, 4294901760
        %v6483 = vsub.f32 %v1668, %v6482
        %v6484 = vand.u32 %v6483, 4294901760
        %v6485 = vsub.f32 %v6483, %v6484
        %v6486 = vand.u32 %v6485, 4294901760
        %6487 = vmatprep.subr.mxu0 %v6486
        %v6488 = vand.u32 %v1667, 4294901760
        %v6489 = vsub.f32 %v1667, %v6488
        %v6490 = vand.u32 %v6489, 4294901760
        %v6491 = vsub.f32 %v6489, %v6490
        %v6492 = vand.u32 %v6491, 4294901760
        %6493 = vmatpush1.msra.mxu0 %v6492
        %v6494 = vand.u32 %v1671, 4294901760
        %v6495 = vsub.f32 %v1671, %v6494
        %v6496 = vand.u32 %v6495, 4294901760
        %v6497 = vsub.f32 %v6495, %v6496
        %v6498 = vand.u32 %v6497, 4294901760
        %6499 = vmatprep.subr.mxu0 %v6498
        %v6500 = vand.u32 %v1670, 4294901760
        %v6501 = vsub.f32 %v1670, %v6500
        %v6502 = vand.u32 %v6501, 4294901760
        %v6503 = vsub.f32 %v6501, %v6502
        %v6504 = vand.u32 %v6503, 4294901760
        %6505 = vmatpush1.msra.mxu0 %v6504
        %v6506 = vand.u32 %v1674, 4294901760
        %v6507 = vsub.f32 %v1674, %v6506
        %v6508 = vand.u32 %v6507, 4294901760
        %v6509 = vsub.f32 %v6507, %v6508
        %v6510 = vand.u32 %v6509, 4294901760
        %6511 = vmatprep.subr.mxu0 %v6510
        %v6512 = vand.u32 %v1673, 4294901760
        %v6513 = vsub.f32 %v1673, %v6512
        %v6514 = vand.u32 %v6513, 4294901760
        %v6515 = vsub.f32 %v6513, %v6514
        %v6516 = vand.u32 %v6515, 4294901760
        %6517 = vmatpush1.msra.mxu0 %v6516
        %v6518 = vand.u32 %v1677, 4294901760
        %v6519 = vsub.f32 %v1677, %v6518
        %v6520 = vand.u32 %v6519, 4294901760
        %v6521 = vsub.f32 %v6519, %v6520
        %v6522 = vand.u32 %v6521, 4294901760
        %6523 = vmatprep.subr.mxu0 %v6522
        %v6524 = vand.u32 %v1676, 4294901760
        %v6525 = vsub.f32 %v1676, %v6524
        %v6526 = vand.u32 %v6525, 4294901760
        %v6527 = vsub.f32 %v6525, %v6526
        %v6528 = vand.u32 %v6527, 4294901760
        %6529 = vmatpush1.msra.mxu0 %v6528
        %v6530 = vand.u32 %v1680, 4294901760
        %v6531 = vsub.f32 %v1680, %v6530
        %v6532 = vand.u32 %v6531, 4294901760
        %v6533 = vsub.f32 %v6531, %v6532
        %v6534 = vand.u32 %v6533, 4294901760
        %6535 = vmatprep.subr.mxu0 %v6534
        %v6536 = vand.u32 %v1679, 4294901760
        %v6537 = vsub.f32 %v1679, %v6536
        %v6538 = vand.u32 %v6537, 4294901760
        %v6539 = vsub.f32 %v6537, %v6538
        %v6540 = vand.u32 %v6539, 4294901760
        %6541 = vmatpush1.msra.mxu0 %v6540
        %v6542 = vand.u32 %v1683, 4294901760
        %v6543 = vsub.f32 %v1683, %v6542
        %v6544 = vand.u32 %v6543, 4294901760
        %v6545 = vsub.f32 %v6543, %v6544
        %v6546 = vand.u32 %v6545, 4294901760
        %6547 = vmatprep.subr.mxu0 %v6546
        %v6548 = vand.u32 %v1682, 4294901760
        %v6549 = vsub.f32 %v1682, %v6548
        %v6550 = vand.u32 %v6549, 4294901760
        %v6551 = vsub.f32 %v6549, %v6550
        %v6552 = vand.u32 %v6551, 4294901760
        %6553 = vmatpush1.msra.mxu0 %v6552
        %v6554 = vand.u32 %v1686, 4294901760
        %v6555 = vsub.f32 %v1686, %v6554
        %v6556 = vand.u32 %v6555, 4294901760
        %v6557 = vsub.f32 %v6555, %v6556
        %v6558 = vand.u32 %v6557, 4294901760
        %6559 = vmatprep.subr.mxu0 %v6558
        %v6560 = vand.u32 %v1685, 4294901760
        %v6561 = vsub.f32 %v1685, %v6560
        %v6562 = vand.u32 %v6561, 4294901760
        %v6563 = vsub.f32 %v6561, %v6562
        %v6564 = vand.u32 %v6563, 4294901760
        %6565 = vmatpush1.msra.mxu0 %v6564
        %v6566 = vand.u32 %v1689, 4294901760
        %v6567 = vsub.f32 %v1689, %v6566
        %v6568 = vand.u32 %v6567, 4294901760
        %v6569 = vsub.f32 %v6567, %v6568
        %v6570 = vand.u32 %v6569, 4294901760
        %6571 = vmatprep.subr.mxu0 %v6570
        %v6572 = vand.u32 %v1688, 4294901760
        %v6573 = vsub.f32 %v1688, %v6572
        %v6574 = vand.u32 %v6573, 4294901760
        %v6575 = vsub.f32 %v6573, %v6574
        %v6576 = vand.u32 %v6575, 4294901760
        %6577 = vmatpush1.msra.mxu0 %v6576
        %6578 = vmatprep.subr.mxu0 0.0
        %6579 = vmatpush1.msra.mxu0 0.0
        %6580 = vmatprep.subr.mxu0 0.0
        %6581 = vmatpush1.msra.mxu0 0.0
        %6582 = vmatprep.subr.mxu0 0.0
        %6583 = vmatpush1.msra.mxu0 0.0
        %6584 = vmatprep.subr.mxu0 0.0
        %6585 = vmatpush1.msra.mxu0 0.0
        %6586 = vmatprep.subr.mxu0 0.0
        %6587 = vmatpush1.msra.mxu0 0.0
        %6588 = vmatprep.subr.mxu0 0.0
        %6589 = vmatpush1.msra.mxu0 0.0
        %6590 = vmatprep.subr.mxu0 0.0
        %6591 = vmatpush1.msra.mxu0 0.0
        %6592 = vmatprep.subr.mxu0 0.0
        %6593 = vmatpush1.msra.mxu0 0.0
        %6594 = vmatprep.subr.mxu0 0.0
        %6595 = vmatpush1.msra.mxu0 0.0
        %6596 = vmatprep.subr.mxu0 0.0
        %6597 = vmatpush1.msra.mxu0 0.0
        %6598 = vmatprep.subr.mxu0 0.0
        %6599 = vmatpush1.msra.mxu0 0.0
        %6600 = vmatprep.subr.mxu0 0.0
        %6601 = vmatpush1.msra.mxu0 0.0
        %6602 = vmatprep.subr.mxu0 0.0
        %6603 = vmatpush1.msra.mxu0 0.0
        %6604 = vmatprep.subr.mxu0 0.0
        %6605 = vmatpush1.msra.mxu0 0.0
        %6606 = vmatprep.subr.mxu0 0.0
        %6607 = vmatpush1.msra.mxu0 0.0
        %6608 = vmatprep.subr.mxu0 0.0
        %6609 = vmatpush1.msra.mxu0 0.0
        %6610 = vmatprep.mubr.f32.mxu0 0.0
        %v6611 = vand.u32 %v6271, 4294901760
        %6612 = vmatmul.mubr.f32.gmra.mrb[0].mxu0 %v6611
        %v6613 = vpop.f32.mrb[0].mxu0
        %v6614 = vadd.f32 %v6382, %v6613
        %v6615 = vpop.f32.mrb[0].mxu0
        %v6616 = vadd.f32 %v6384, %v6615
        %6617 = vdwg.mxu0
        %v6618 = vand.u32 %v1644, 4294901760
        %v6619 = vsub.f32 %v1644, %v6618
        %6620 = vmatprep.subr.mxu0 %v6619
        %v6621 = vand.u32 %v1643, 4294901760
        %v6622 = vsub.f32 %v1643, %v6621
        %6623 = vmatpush1.msra.mxu0 %v6622
        %v6624 = vand.u32 %v1647, 4294901760
        %v6625 = vsub.f32 %v1647, %v6624
        %6626 = vmatprep.subr.mxu0 %v6625
        %v6627 = vand.u32 %v1646, 4294901760
        %v6628 = vsub.f32 %v1646, %v6627
        %6629 = vmatpush1.msra.mxu0 %v6628
        %v6630 = vand.u32 %v1650, 4294901760
        %v6631 = vsub.f32 %v1650, %v6630
        %6632 = vmatprep.subr.mxu0 %v6631
        %v6633 = vand.u32 %v1649, 4294901760
        %v6634 = vsub.f32 %v1649, %v6633
        %6635 = vmatpush1.msra.mxu0 %v6634
        %v6636 = vand.u32 %v1653, 4294901760
        %v6637 = vsub.f32 %v1653, %v6636
        %6638 = vmatprep.subr.mxu0 %v6637
        %v6639 = vand.u32 %v1652, 4294901760
        %v6640 = vsub.f32 %v1652, %v6639
        %6641 = vmatpush1.msra.mxu0 %v6640
        %v6642 = vand.u32 %v1656, 4294901760
        %v6643 = vsub.f32 %v1656, %v6642
        %6644 = vmatprep.subr.mxu0 %v6643
        %v6645 = vand.u32 %v1655, 4294901760
        %v6646 = vsub.f32 %v1655, %v6645
        %6647 = vmatpush1.msra.mxu0 %v6646
        %v6648 = vand.u32 %v1659, 4294901760
        %v6649 = vsub.f32 %v1659, %v6648
        %6650 = vmatprep.subr.mxu0 %v6649
        %v6651 = vand.u32 %v1658, 4294901760
        %v6652 = vsub.f32 %v1658, %v6651
        %6653 = vmatpush1.msra.mxu0 %v6652
        %v6654 = vand.u32 %v1662, 4294901760
        %v6655 = vsub.f32 %v1662, %v6654
        %6656 = vmatprep.subr.mxu0 %v6655
        %v6657 = vand.u32 %v1661, 4294901760
        %v6658 = vsub.f32 %v1661, %v6657
        %6659 = vmatpush1.msra.mxu0 %v6658
        %v6660 = vand.u32 %v1665, 4294901760
        %v6661 = vsub.f32 %v1665, %v6660
        %6662 = vmatprep.subr.mxu0 %v6661
        %v6663 = vand.u32 %v1664, 4294901760
        %v6664 = vsub.f32 %v1664, %v6663
        %6665 = vmatpush1.msra.mxu0 %v6664
        %v6666 = vand.u32 %v1668, 4294901760
        %v6667 = vsub.f32 %v1668, %v6666
        %6668 = vmatprep.subr.mxu0 %v6667
        %v6669 = vand.u32 %v1667, 4294901760
        %v6670 = vsub.f32 %v1667, %v6669
        %6671 = vmatpush1.msra.mxu0 %v6670
        %v6672 = vand.u32 %v1671, 4294901760
        %v6673 = vsub.f32 %v1671, %v6672
        %6674 = vmatprep.subr.mxu0 %v6673
        %v6675 = vand.u32 %v1670, 4294901760
        %v6676 = vsub.f32 %v1670, %v6675
        %6677 = vmatpush1.msra.mxu0 %v6676
        %v6678 = vand.u32 %v1674, 4294901760
        %v6679 = vsub.f32 %v1674, %v6678
        %6680 = vmatprep.subr.mxu0 %v6679
        %v6681 = vand.u32 %v1673, 4294901760
        %v6682 = vsub.f32 %v1673, %v6681
        %6683 = vmatpush1.msra.mxu0 %v6682
        %v6684 = vand.u32 %v1677, 4294901760
        %v6685 = vsub.f32 %v1677, %v6684
        %6686 = vmatprep.subr.mxu0 %v6685
        %v6687 = vand.u32 %v1676, 4294901760
        %v6688 = vsub.f32 %v1676, %v6687
        %6689 = vmatpush1.msra.mxu0 %v6688
        %v6690 = vand.u32 %v1680, 4294901760
        %v6691 = vsub.f32 %v1680, %v6690
        %6692 = vmatprep.subr.mxu0 %v6691
        %v6693 = vand.u32 %v1679, 4294901760
        %v6694 = vsub.f32 %v1679, %v6693
        %6695 = vmatpush1.msra.mxu0 %v6694
        %v6696 = vand.u32 %v1683, 4294901760
        %v6697 = vsub.f32 %v1683, %v6696
        %6698 = vmatprep.subr.mxu0 %v6697
        %v6699 = vand.u32 %v1682, 4294901760
        %v6700 = vsub.f32 %v1682, %v6699
        %6701 = vmatpush1.msra.mxu0 %v6700
        %v6702 = vand.u32 %v1686, 4294901760
        %v6703 = vsub.f32 %v1686, %v6702
        %6704 = vmatprep.subr.mxu0 %v6703
        %v6705 = vand.u32 %v1685, 4294901760
        %v6706 = vsub.f32 %v1685, %v6705
        %6707 = vmatpush1.msra.mxu0 %v6706
        %v6708 = vand.u32 %v1689, 4294901760
        %v6709 = vsub.f32 %v1689, %v6708
        %6710 = vmatprep.subr.mxu0 %v6709
        %v6711 = vand.u32 %v1688, 4294901760
        %v6712 = vsub.f32 %v1688, %v6711
        %6713 = vmatpush1.msra.mxu0 %v6712
        %6714 = vmatprep.subr.mxu0 0.0
        %6715 = vmatpush1.msra.mxu0 0.0
        %6716 = vmatprep.subr.mxu0 0.0
        %6717 = vmatpush1.msra.mxu0 0.0
        %6718 = vmatprep.subr.mxu0 0.0
        %6719 = vmatpush1.msra.mxu0 0.0
        %6720 = vmatprep.subr.mxu0 0.0
        %6721 = vmatpush1.msra.mxu0 0.0
        %6722 = vmatprep.subr.mxu0 0.0
        %6723 = vmatpush1.msra.mxu0 0.0
        %6724 = vmatprep.subr.mxu0 0.0
        %6725 = vmatpush1.msra.mxu0 0.0
        %6726 = vmatprep.subr.mxu0 0.0
        %6727 = vmatpush1.msra.mxu0 0.0
        %6728 = vmatprep.subr.mxu0 0.0
        %6729 = vmatpush1.msra.mxu0 0.0
        %6730 = vmatprep.subr.mxu0 0.0
        %6731 = vmatpush1.msra.mxu0 0.0
        %6732 = vmatprep.subr.mxu0 0.0
        %6733 = vmatpush1.msra.mxu0 0.0
        %6734 = vmatprep.subr.mxu0 0.0
        %6735 = vmatpush1.msra.mxu0 0.0
        %6736 = vmatprep.subr.mxu0 0.0
        %6737 = vmatpush1.msra.mxu0 0.0
        %6738 = vmatprep.subr.mxu0 0.0
        %6739 = vmatpush1.msra.mxu0 0.0
        %6740 = vmatprep.subr.mxu0 0.0
        %6741 = vmatpush1.msra.mxu0 0.0
        %6742 = vmatprep.subr.mxu0 0.0
        %6743 = vmatpush1.msra.mxu0 0.0
        %6744 = vmatprep.subr.mxu0 0.0
        %6745 = vmatpush1.msra.mxu0 0.0
        %6746 = vmatprep.mubr.f32.mxu0 0.0
        %v6747 = vand.u32 %v6271, 4294901760
        %v6748 = vsub.f32 %v6271, %v6747
        %6749 = vmatmul.mubr.f32.gmra.mrb[0].mxu0 %v6748
        %v6750 = vpop.f32.mrb[0].mxu0
        %v6751 = vadd.f32 %v6614, %v6750
        %v6752 = vpop.f32.mrb[0].mxu0
        %v6753 = vadd.f32 %v6616, %v6752
        %6754 = vdwg.mxu0
        %v6755 = vand.u32 %v1644, 4294901760
        %6756 = vmatprep.subr.mxu0 %v6755
        %v6757 = vand.u32 %v1643, 4294901760
        %6758 = vmatpush1.msra.mxu0 %v6757
        %v6759 = vand.u32 %v1647, 4294901760
        %6760 = vmatprep.subr.mxu0 %v6759
        %v6761 = vand.u32 %v1646, 4294901760
        %6762 = vmatpush1.msra.mxu0 %v6761
        %v6763 = vand.u32 %v1650, 4294901760
        %6764 = vmatprep.subr.mxu0 %v6763
        %v6765 = vand.u32 %v1649, 4294901760
        %6766 = vmatpush1.msra.mxu0 %v6765
        %v6767 = vand.u32 %v1653, 4294901760
        %6768 = vmatprep.subr.mxu0 %v6767
        %v6769 = vand.u32 %v1652, 4294901760
        %6770 = vmatpush1.msra.mxu0 %v6769
        %v6771 = vand.u32 %v1656, 4294901760
        %6772 = vmatprep.subr.mxu0 %v6771
        %v6773 = vand.u32 %v1655, 4294901760
        %6774 = vmatpush1.msra.mxu0 %v6773
        %v6775 = vand.u32 %v1659, 4294901760
        %6776 = vmatprep.subr.mxu0 %v6775
        %v6777 = vand.u32 %v1658, 4294901760
        %6778 = vmatpush1.msra.mxu0 %v6777
        %v6779 = vand.u32 %v1662, 4294901760
        %6780 = vmatprep.subr.mxu0 %v6779
        %v6781 = vand.u32 %v1661, 4294901760
        %6782 = vmatpush1.msra.mxu0 %v6781
        %v6783 = vand.u32 %v1665, 4294901760
        %6784 = vmatprep.subr.mxu0 %v6783
        %v6785 = vand.u32 %v1664, 4294901760
        %6786 = vmatpush1.msra.mxu0 %v6785
        %v6787 = vand.u32 %v1668, 4294901760
        %6788 = vmatprep.subr.mxu0 %v6787
        %v6789 = vand.u32 %v1667, 4294901760
        %6790 = vmatpush1.msra.mxu0 %v6789
        %v6791 = vand.u32 %v1671, 4294901760
        %6792 = vmatprep.subr.mxu0 %v6791
        %v6793 = vand.u32 %v1670, 4294901760
        %6794 = vmatpush1.msra.mxu0 %v6793
        %v6795 = vand.u32 %v1674, 4294901760
        %6796 = vmatprep.subr.mxu0 %v6795
        %v6797 = vand.u32 %v1673, 4294901760
        %6798 = vmatpush1.msra.mxu0 %v6797
        %v6799 = vand.u32 %v1677, 4294901760
        %6800 = vmatprep.subr.mxu0 %v6799
        %v6801 = vand.u32 %v1676, 4294901760
        %6802 = vmatpush1.msra.mxu0 %v6801
        %v6803 = vand.u32 %v1680, 4294901760
        %6804 = vmatprep.subr.mxu0 %v6803
        %v6805 = vand.u32 %v1679, 4294901760
        %6806 = vmatpush1.msra.mxu0 %v6805
        %v6807 = vand.u32 %v1683, 4294901760
        %6808 = vmatprep.subr.mxu0 %v6807
        %v6809 = vand.u32 %v1682, 4294901760
        %6810 = vmatpush1.msra.mxu0 %v6809
        %v6811 = vand.u32 %v1686, 4294901760
        %6812 = vmatprep.subr.mxu0 %v6811
        %v6813 = vand.u32 %v1685, 4294901760
        %6814 = vmatpush1.msra.mxu0 %v6813
        %v6815 = vand.u32 %v1689, 4294901760
        %6816 = vmatprep.subr.mxu0 %v6815
        %v6817 = vand.u32 %v1688, 4294901760
        %6818 = vmatpush1.msra.mxu0 %v6817
        %6819 = vmatprep.subr.mxu0 0.0
        %6820 = vmatpush1.msra.mxu0 0.0
        %6821 = vmatprep.subr.mxu0 0.0
        %6822 = vmatpush1.msra.mxu0 0.0
        %6823 = vmatprep.subr.mxu0 0.0
        %6824 = vmatpush1.msra.mxu0 0.0
        %6825 = vmatprep.subr.mxu0 0.0
        %6826 = vmatpush1.msra.mxu0 0.0
        %6827 = vmatprep.subr.mxu0 0.0
        %6828 = vmatpush1.msra.mxu0 0.0
        %6829 = vmatprep.subr.mxu0 0.0
        %6830 = vmatpush1.msra.mxu0 0.0
        %6831 = vmatprep.subr.mxu0 0.0
        %6832 = vmatpush1.msra.mxu0 0.0
        %6833 = vmatprep.subr.mxu0 0.0
        %6834 = vmatpush1.msra.mxu0 0.0
        %6835 = vmatprep.subr.mxu0 0.0
        %6836 = vmatpush1.msra.mxu0 0.0
        %6837 = vmatprep.subr.mxu0 0.0
        %6838 = vmatpush1.msra.mxu0 0.0
        %6839 = vmatprep.subr.mxu0 0.0
        %6840 = vmatpush1.msra.mxu0 0.0
        %6841 = vmatprep.subr.mxu0 0.0
        %6842 = vmatpush1.msra.mxu0 0.0
        %6843 = vmatprep.subr.mxu0 0.0
        %6844 = vmatpush1.msra.mxu0 0.0
        %6845 = vmatprep.subr.mxu0 0.0
        %6846 = vmatpush1.msra.mxu0 0.0
        %6847 = vmatprep.subr.mxu0 0.0
        %6848 = vmatpush1.msra.mxu0 0.0
        %6849 = vmatprep.subr.mxu0 0.0
        %6850 = vmatpush1.msra.mxu0 0.0
        %6851 = vmatprep.mubr.f32.mxu0 0.0
        %v6852 = vand.u32 %v6271, 4294901760
        %v6853 = vsub.f32 %v6271, %v6852
        %v6854 = vand.u32 %v6853, 4294901760
        %6855 = vmatmul.mubr.f32.gmra.mrb[0].mxu0 %v6854
        %v6856 = vpop.f32.mrb[0].mxu0
        %v6857 = vadd.f32 %v6751, %v6856
        %v6858 = vpop.f32.mrb[0].mxu0
        %v6859 = vadd.f32 %v6753, %v6858
        %6860 = vdwg.mxu0
        %v6861 = vand.u32 %v1644, 4294901760
        %v6862 = vsub.f32 %v1644, %v6861
        %v6863 = vand.u32 %v6862, 4294901760
        %6864 = vmatprep.subr.mxu0 %v6863
        %v6865 = vand.u32 %v1643, 4294901760
        %v6866 = vsub.f32 %v1643, %v6865
        %v6867 = vand.u32 %v6866, 4294901760
        %6868 = vmatpush1.msra.mxu0 %v6867
        %v6869 = vand.u32 %v1647, 4294901760
        %v6870 = vsub.f32 %v1647, %v6869
        %v6871 = vand.u32 %v6870, 4294901760
        %6872 = vmatprep.subr.mxu0 %v6871
        %v6873 = vand.u32 %v1646, 4294901760
        %v6874 = vsub.f32 %v1646, %v6873
        %v6875 = vand.u32 %v6874, 4294901760
        %6876 = vmatpush1.msra.mxu0 %v6875
        %v6877 = vand.u32 %v1650, 4294901760
        %v6878 = vsub.f32 %v1650, %v6877
        %v6879 = vand.u32 %v6878, 4294901760
        %6880 = vmatprep.subr.mxu0 %v6879
        %v6881 = vand.u32 %v1649, 4294901760
        %v6882 = vsub.f32 %v1649, %v6881
        %v6883 = vand.u32 %v6882, 4294901760
        %6884 = vmatpush1.msra.mxu0 %v6883
        %v6885 = vand.u32 %v1653, 4294901760
        %v6886 = vsub.f32 %v1653, %v6885
        %v6887 = vand.u32 %v6886, 4294901760
        %6888 = vmatprep.subr.mxu0 %v6887
        %v6889 = vand.u32 %v1652, 4294901760
        %v6890 = vsub.f32 %v1652, %v6889
        %v6891 = vand.u32 %v6890, 4294901760
        %6892 = vmatpush1.msra.mxu0 %v6891
        %v6893 = vand.u32 %v1656, 4294901760
        %v6894 = vsub.f32 %v1656, %v6893
        %v6895 = vand.u32 %v6894, 4294901760
        %6896 = vmatprep.subr.mxu0 %v6895
        %v6897 = vand.u32 %v1655, 4294901760
        %v6898 = vsub.f32 %v1655, %v6897
        %v6899 = vand.u32 %v6898, 4294901760
        %6900 = vmatpush1.msra.mxu0 %v6899
        %v6901 = vand.u32 %v1659, 4294901760
        %v6902 = vsub.f32 %v1659, %v6901
        %v6903 = vand.u32 %v6902, 4294901760
        %6904 = vmatprep.subr.mxu0 %v6903
        %v6905 = vand.u32 %v1658, 4294901760
        %v6906 = vsub.f32 %v1658, %v6905
        %v6907 = vand.u32 %v6906, 4294901760
        %6908 = vmatpush1.msra.mxu0 %v6907
        %v6909 = vand.u32 %v1662, 4294901760
        %v6910 = vsub.f32 %v1662, %v6909
        %v6911 = vand.u32 %v6910, 4294901760
        %6912 = vmatprep.subr.mxu0 %v6911
        %v6913 = vand.u32 %v1661, 4294901760
        %v6914 = vsub.f32 %v1661, %v6913
        %v6915 = vand.u32 %v6914, 4294901760
        %6916 = vmatpush1.msra.mxu0 %v6915
        %v6917 = vand.u32 %v1665, 4294901760
        %v6918 = vsub.f32 %v1665, %v6917
        %v6919 = vand.u32 %v6918, 4294901760
        %6920 = vmatprep.subr.mxu0 %v6919
        %v6921 = vand.u32 %v1664, 4294901760
        %v6922 = vsub.f32 %v1664, %v6921
        %v6923 = vand.u32 %v6922, 4294901760
        %6924 = vmatpush1.msra.mxu0 %v6923
        %v6925 = vand.u32 %v1668, 4294901760
        %v6926 = vsub.f32 %v1668, %v6925
        %v6927 = vand.u32 %v6926, 4294901760
        %6928 = vmatprep.subr.mxu0 %v6927
        %v6929 = vand.u32 %v1667, 4294901760
        %v6930 = vsub.f32 %v1667, %v6929
        %v6931 = vand.u32 %v6930, 4294901760
        %6932 = vmatpush1.msra.mxu0 %v6931
        %v6933 = vand.u32 %v1671, 4294901760
        %v6934 = vsub.f32 %v1671, %v6933
        %v6935 = vand.u32 %v6934, 4294901760
        %6936 = vmatprep.subr.mxu0 %v6935
        %v6937 = vand.u32 %v1670, 4294901760
        %v6938 = vsub.f32 %v1670, %v6937
        %v6939 = vand.u32 %v6938, 4294901760
        %6940 = vmatpush1.msra.mxu0 %v6939
        %v6941 = vand.u32 %v1674, 4294901760
        %v6942 = vsub.f32 %v1674, %v6941
        %v6943 = vand.u32 %v6942, 4294901760
        %6944 = vmatprep.subr.mxu0 %v6943
        %v6945 = vand.u32 %v1673, 4294901760
        %v6946 = vsub.f32 %v1673, %v6945
        %v6947 = vand.u32 %v6946, 4294901760
        %6948 = vmatpush1.msra.mxu0 %v6947
        %v6949 = vand.u32 %v1677, 4294901760
        %v6950 = vsub.f32 %v1677, %v6949
        %v6951 = vand.u32 %v6950, 4294901760
        %6952 = vmatprep.subr.mxu0 %v6951
        %v6953 = vand.u32 %v1676, 4294901760
        %v6954 = vsub.f32 %v1676, %v6953
        %v6955 = vand.u32 %v6954, 4294901760
        %6956 = vmatpush1.msra.mxu0 %v6955
        %v6957 = vand.u32 %v1680, 4294901760
        %v6958 = vsub.f32 %v1680, %v6957
        %v6959 = vand.u32 %v6958, 4294901760
        %6960 = vmatprep.subr.mxu0 %v6959
        %v6961 = vand.u32 %v1679, 4294901760
        %v6962 = vsub.f32 %v1679, %v6961
        %v6963 = vand.u32 %v6962, 4294901760
        %6964 = vmatpush1.msra.mxu0 %v6963
        %v6965 = vand.u32 %v1683, 4294901760
        %v6966 = vsub.f32 %v1683, %v6965
        %v6967 = vand.u32 %v6966, 4294901760
        %6968 = vmatprep.subr.mxu0 %v6967
        %v6969 = vand.u32 %v1682, 4294901760
        %v6970 = vsub.f32 %v1682, %v6969
        %v6971 = vand.u32 %v6970, 4294901760
        %6972 = vmatpush1.msra.mxu0 %v6971
        %v6973 = vand.u32 %v1686, 4294901760
        %v6974 = vsub.f32 %v1686, %v6973
        %v6975 = vand.u32 %v6974, 4294901760
        %6976 = vmatprep.subr.mxu0 %v6975
        %v6977 = vand.u32 %v1685, 4294901760
        %v6978 = vsub.f32 %v1685, %v6977
        %v6979 = vand.u32 %v6978, 4294901760
        %6980 = vmatpush1.msra.mxu0 %v6979
        %v6981 = vand.u32 %v1689, 4294901760
        %v6982 = vsub.f32 %v1689, %v6981
        %v6983 = vand.u32 %v6982, 4294901760
        %6984 = vmatprep.subr.mxu0 %v6983
        %v6985 = vand.u32 %v1688, 4294901760
        %v6986 = vsub.f32 %v1688, %v6985
        %v6987 = vand.u32 %v6986, 4294901760
        %6988 = vmatpush1.msra.mxu0 %v6987
        %6989 = vmatprep.subr.mxu0 0.0
        %6990 = vmatpush1.msra.mxu0 0.0
        %6991 = vmatprep.subr.mxu0 0.0
        %6992 = vmatpush1.msra.mxu0 0.0
        %6993 = vmatprep.subr.mxu0 0.0
        %6994 = vmatpush1.msra.mxu0 0.0
        %6995 = vmatprep.subr.mxu0 0.0
        %6996 = vmatpush1.msra.mxu0 0.0
        %6997 = vmatprep.subr.mxu0 0.0
        %6998 = vmatpush1.msra.mxu0 0.0
        %6999 = vmatprep.subr.mxu0 0.0
        %7000 = vmatpush1.msra.mxu0 0.0
        %7001 = vmatprep.subr.mxu0 0.0
        %7002 = vmatpush1.msra.mxu0 0.0
        %7003 = vmatprep.subr.mxu0 0.0
        %7004 = vmatpush1.msra.mxu0 0.0
        %7005 = vmatprep.subr.mxu0 0.0
        %7006 = vmatpush1.msra.mxu0 0.0
        %7007 = vmatprep.subr.mxu0 0.0
        %7008 = vmatpush1.msra.mxu0 0.0
        %7009 = vmatprep.subr.mxu0 0.0
        %7010 = vmatpush1.msra.mxu0 0.0
        %7011 = vmatprep.subr.mxu0 0.0
        %7012 = vmatpush1.msra.mxu0 0.0
        %7013 = vmatprep.subr.mxu0 0.0
        %7014 = vmatpush1.msra.mxu0 0.0
        %7015 = vmatprep.subr.mxu0 0.0
        %7016 = vmatpush1.msra.mxu0 0.0
        %7017 = vmatprep.subr.mxu0 0.0
        %7018 = vmatpush1.msra.mxu0 0.0
        %7019 = vmatprep.subr.mxu0 0.0
        %7020 = vmatpush1.msra.mxu0 0.0
        %7021 = vmatprep.mubr.f32.mxu0 0.0
        %v7022 = vand.u32 %v6271, 4294901760
        %7023 = vmatmul.mubr.f32.gmra.mrb[0].mxu0 %v7022
        %v7024 = vpop.f32.mrb[0].mxu0
        %v7025 = vadd.f32 %v6857, %v7024
        %v7026 = vpop.f32.mrb[0].mxu0
        %v7027 = vadd.f32 %v6859, %v7026
        %7028 = vdwg.mxu0
        %v7029 = vand.u32 %v1644, 4294901760
        %7030 = vmatprep.subr.mxu0 %v7029
        %v7031 = vand.u32 %v1643, 4294901760
        %7032 = vmatpush1.msra.mxu0 %v7031
        %v7033 = vand.u32 %v1647, 4294901760
        %7034 = vmatprep.subr.mxu0 %v7033
        %v7035 = vand.u32 %v1646, 4294901760
        %7036 = vmatpush1.msra.mxu0 %v7035
        %v7037 = vand.u32 %v1650, 4294901760
        %7038 = vmatprep.subr.mxu0 %v7037
        %v7039 = vand.u32 %v1649, 4294901760
        %7040 = vmatpush1.msra.mxu0 %v7039
        %v7041 = vand.u32 %v1653, 4294901760
        %7042 = vmatprep.subr.mxu0 %v7041
        %v7043 = vand.u32 %v1652, 4294901760
        %7044 = vmatpush1.msra.mxu0 %v7043
        %v7045 = vand.u32 %v1656, 4294901760
        %7046 = vmatprep.subr.mxu0 %v7045
        %v7047 = vand.u32 %v1655, 4294901760
        %7048 = vmatpush1.msra.mxu0 %v7047
        %v7049 = vand.u32 %v1659, 4294901760
        %7050 = vmatprep.subr.mxu0 %v7049
        %v7051 = vand.u32 %v1658, 4294901760
        %7052 = vmatpush1.msra.mxu0 %v7051
        %v7053 = vand.u32 %v1662, 4294901760
        %7054 = vmatprep.subr.mxu0 %v7053
        %v7055 = vand.u32 %v1661, 4294901760
        %7056 = vmatpush1.msra.mxu0 %v7055
        %v7057 = vand.u32 %v1665, 4294901760
        %7058 = vmatprep.subr.mxu0 %v7057
        %v7059 = vand.u32 %v1664, 4294901760
        %7060 = vmatpush1.msra.mxu0 %v7059
        %v7061 = vand.u32 %v1668, 4294901760
        %7062 = vmatprep.subr.mxu0 %v7061
        %v7063 = vand.u32 %v1667, 4294901760
        %7064 = vmatpush1.msra.mxu0 %v7063
        %v7065 = vand.u32 %v1671, 4294901760
        %7066 = vmatprep.subr.mxu0 %v7065
        %v7067 = vand.u32 %v1670, 4294901760
        %7068 = vmatpush1.msra.mxu0 %v7067
        %v7069 = vand.u32 %v1674, 4294901760
        %7070 = vmatprep.subr.mxu0 %v7069
        %v7071 = vand.u32 %v1673, 4294901760
        %7072 = vmatpush1.msra.mxu0 %v7071
        %v7073 = vand.u32 %v1677, 4294901760
        %7074 = vmatprep.subr.mxu0 %v7073
        %v7075 = vand.u32 %v1676, 4294901760
        %7076 = vmatpush1.msra.mxu0 %v7075
        %v7077 = vand.u32 %v1680, 4294901760
        %7078 = vmatprep.subr.mxu0 %v7077
        %v7079 = vand.u32 %v1679, 4294901760
        %7080 = vmatpush1.msra.mxu0 %v7079
        %v7081 = vand.u32 %v1683, 4294901760
        %7082 = vmatprep.subr.mxu0 %v7081
        %v7083 = vand.u32 %v1682, 4294901760
        %7084 = vmatpush1.msra.mxu0 %v7083
        %v7085 = vand.u32 %v1686, 4294901760
        %7086 = vmatprep.subr.mxu0 %v7085
        %v7087 = vand.u32 %v1685, 4294901760
        %7088 = vmatpush1.msra.mxu0 %v7087
        %v7089 = vand.u32 %v1689, 4294901760
        %7090 = vmatprep.subr.mxu0 %v7089
        %v7091 = vand.u32 %v1688, 4294901760
        %7092 = vmatpush1.msra.mxu0 %v7091
        %7093 = vmatprep.subr.mxu0 0.0
        %7094 = vmatpush1.msra.mxu0 0.0
        %7095 = vmatprep.subr.mxu0 0.0
        %7096 = vmatpush1.msra.mxu0 0.0
        %7097 = vmatprep.subr.mxu0 0.0
        %7098 = vmatpush1.msra.mxu0 0.0
        %7099 = vmatprep.subr.mxu0 0.0
        %7100 = vmatpush1.msra.mxu0 0.0
        %7101 = vmatprep.subr.mxu0 0.0
        %7102 = vmatpush1.msra.mxu0 0.0
        %7103 = vmatprep.subr.mxu0 0.0
        %7104 = vmatpush1.msra.mxu0 0.0
        %7105 = vmatprep.subr.mxu0 0.0
        %7106 = vmatpush1.msra.mxu0 0.0
        %7107 = vmatprep.subr.mxu0 0.0
        %7108 = vmatpush1.msra.mxu0 0.0
        %7109 = vmatprep.subr.mxu0 0.0
        %7110 = vmatpush1.msra.mxu0 0.0
        %7111 = vmatprep.subr.mxu0 0.0
        %7112 = vmatpush1.msra.mxu0 0.0
        %7113 = vmatprep.subr.mxu0 0.0
        %7114 = vmatpush1.msra.mxu0 0.0
        %7115 = vmatprep.subr.mxu0 0.0
        %7116 = vmatpush1.msra.mxu0 0.0
        %7117 = vmatprep.subr.mxu0 0.0
        %7118 = vmatpush1.msra.mxu0 0.0
        %7119 = vmatprep.subr.mxu0 0.0
        %7120 = vmatpush1.msra.mxu0 0.0
        %7121 = vmatprep.subr.mxu0 0.0
        %7122 = vmatpush1.msra.mxu0 0.0
        %7123 = vmatprep.subr.mxu0 0.0
        %7124 = vmatpush1.msra.mxu0 0.0
        %7125 = vmatprep.mubr.f32.mxu0 0.0
        %v7126 = vand.u32 %v6271, 4294901760
        %7127 = vmatmul.mubr.f32.gmra.mrb[0].mxu0 %v7126
        %v7128 = vpop.f32.mrb[0].mxu0
        %v7129 = vadd.f32 %v7025, %v7128
        %v7130 = vpop.f32.mrb[0].mxu0
        %v7131 = vadd.f32 %v7027, %v7130
        %7132 = vdwg.mxu0
        %7133 = vmatprep.subr.mxu0 0.0
        %v7134 = vand.u32 %v1645, 4294901760
        %7135 = vmatpush1.msra.mxu0 %v7134
        %7136 = vmatprep.subr.mxu0 0.0
        %v7137 = vand.u32 %v1648, 4294901760
        %7138 = vmatpush1.msra.mxu0 %v7137
        %7139 = vmatprep.subr.mxu0 0.0
        %v7140 = vand.u32 %v1651, 4294901760
        %7141 = vmatpush1.msra.mxu0 %v7140
        %7142 = vmatprep.subr.mxu0 0.0
        %v7143 = vand.u32 %v1654, 4294901760
        %7144 = vmatpush1.msra.mxu0 %v7143
        %7145 = vmatprep.subr.mxu0 0.0
        %v7146 = vand.u32 %v1657, 4294901760
        %7147 = vmatpush1.msra.mxu0 %v7146
        %7148 = vmatprep.subr.mxu0 0.0
        %v7149 = vand.u32 %v1660, 4294901760
        %7150 = vmatpush1.msra.mxu0 %v7149
        %7151 = vmatprep.subr.mxu0 0.0
        %v7152 = vand.u32 %v1663, 4294901760
        %7153 = vmatpush1.msra.mxu0 %v7152
        %7154 = vmatprep.subr.mxu0 0.0
        %v7155 = vand.u32 %v1666, 4294901760
        %7156 = vmatpush1.msra.mxu0 %v7155
        %7157 = vmatprep.subr.mxu0 0.0
        %v7158 = vand.u32 %v1669, 4294901760
        %7159 = vmatpush1.msra.mxu0 %v7158
        %7160 = vmatprep.subr.mxu0 0.0
        %v7161 = vand.u32 %v1672, 4294901760
        %7162 = vmatpush1.msra.mxu0 %v7161
        %7163 = vmatprep.subr.mxu0 0.0
        %v7164 = vand.u32 %v1675, 4294901760
        %7165 = vmatpush1.msra.mxu0 %v7164
        %7166 = vmatprep.subr.mxu0 0.0
        %v7167 = vand.u32 %v1678, 4294901760
        %7168 = vmatpush1.msra.mxu0 %v7167
        %7169 = vmatprep.subr.mxu0 0.0
        %v7170 = vand.u32 %v1681, 4294901760
        %7171 = vmatpush1.msra.mxu0 %v7170
        %7172 = vmatprep.subr.mxu0 0.0
        %v7173 = vand.u32 %v1684, 4294901760
        %7174 = vmatpush1.msra.mxu0 %v7173
        %7175 = vmatprep.subr.mxu0 0.0
        %v7176 = vand.u32 %v1687, 4294901760
        %7177 = vmatpush1.msra.mxu0 %v7176
        %7178 = vmatprep.subr.mxu0 0.0
        %v7179 = vand.u32 %v1690, 4294901760
        %7180 = vmatpush1.msra.mxu0 %v7179
        %7181 = vmatprep.subr.mxu0 0.0
        %7182 = vmatpush1.msra.mxu0 0.0
        %7183 = vmatprep.subr.mxu0 0.0
        %7184 = vmatpush1.msra.mxu0 0.0
        %7185 = vmatprep.subr.mxu0 0.0
        %7186 = vmatpush1.msra.mxu0 0.0
        %7187 = vmatprep.subr.mxu0 0.0
        %7188 = vmatpush1.msra.mxu0 0.0
        %7189 = vmatprep.subr.mxu0 0.0
        %7190 = vmatpush1.msra.mxu0 0.0
        %7191 = vmatprep.subr.mxu0 0.0
        %7192 = vmatpush1.msra.mxu0 0.0
        %7193 = vmatprep.subr.mxu0 0.0
        %7194 = vmatpush1.msra.mxu0 0.0
        %7195 = vmatprep.subr.mxu0 0.0
        %7196 = vmatpush1.msra.mxu0 0.0
        %7197 = vmatprep.subr.mxu0 0.0
        %7198 = vmatpush1.msra.mxu0 0.0
        %7199 = vmatprep.subr.mxu0 0.0
        %7200 = vmatpush1.msra.mxu0 0.0
        %7201 = vmatprep.subr.mxu0 0.0
        %7202 = vmatpush1.msra.mxu0 0.0
        %7203 = vmatprep.subr.mxu0 0.0
        %7204 = vmatpush1.msra.mxu0 0.0
        %7205 = vmatprep.subr.mxu0 0.0
        %7206 = vmatpush1.msra.mxu0 0.0
        %7207 = vmatprep.subr.mxu0 0.0
        %7208 = vmatpush1.msra.mxu0 0.0
        %7209 = vmatprep.subr.mxu0 0.0
        %7210 = vmatpush1.msra.mxu0 0.0
        %7211 = vmatprep.subr.mxu0 0.0
        %7212 = vmatpush1.msra.mxu0 0.0
        %7213 = vmatprep.mubr.f32.mxu0 0.0
        %v7214 = vand.u32 %v6271, 4294901760
        %v7215 = vsub.f32 %v6271, %v7214
        %v7216 = vand.u32 %v7215, 4294901760
        %v7217 = vsub.f32 %v7215, %v7216
        %v7218 = vand.u32 %v7217, 4294901760
        %7219 = vmatmul.mubr.f32.gmra.mrb[0].mxu0 %v7218
        %v7220 = vpop.f32.mrb[0].mxu0
        %v7221 = vadd.f32 %v1632, %v7220
        %v7222 = vpop.f32.mrb[0].mxu0
        %7223 = vdwg.mxu0
        %7224 = vmatprep.subr.mxu0 0.0
        %v7225 = vand.u32 %v1645, 4294901760
        %v7226 = vsub.f32 %v1645, %v7225
        %v7227 = vand.u32 %v7226, 4294901760
        %v7228 = vsub.f32 %v7226, %v7227
        %v7229 = vand.u32 %v7228, 4294901760
        %7230 = vmatpush1.msra.mxu0 %v7229
        %7231 = vmatprep.subr.mxu0 0.0
        %v7232 = vand.u32 %v1648, 4294901760
        %v7233 = vsub.f32 %v1648, %v7232
        %v7234 = vand.u32 %v7233, 4294901760
        %v7235 = vsub.f32 %v7233, %v7234
        %v7236 = vand.u32 %v7235, 4294901760
        %7237 = vmatpush1.msra.mxu0 %v7236
        %7238 = vmatprep.subr.mxu0 0.0
        %v7239 = vand.u32 %v1651, 4294901760
        %v7240 = vsub.f32 %v1651, %v7239
        %v7241 = vand.u32 %v7240, 4294901760
        %v7242 = vsub.f32 %v7240, %v7241
        %v7243 = vand.u32 %v7242, 4294901760
        %7244 = vmatpush1.msra.mxu0 %v7243
        %7245 = vmatprep.subr.mxu0 0.0
        %v7246 = vand.u32 %v1654, 4294901760
        %v7247 = vsub.f32 %v1654, %v7246
        %v7248 = vand.u32 %v7247, 4294901760
        %v7249 = vsub.f32 %v7247, %v7248
        %v7250 = vand.u32 %v7249, 4294901760
        %7251 = vmatpush1.msra.mxu0 %v7250
        %7252 = vmatprep.subr.mxu0 0.0
        %v7253 = vand.u32 %v1657, 4294901760
        %v7254 = vsub.f32 %v1657, %v7253
        %v7255 = vand.u32 %v7254, 4294901760
        %v7256 = vsub.f32 %v7254, %v7255
        %v7257 = vand.u32 %v7256, 4294901760
        %7258 = vmatpush1.msra.mxu0 %v7257
        %7259 = vmatprep.subr.mxu0 0.0
        %v7260 = vand.u32 %v1660, 4294901760
        %v7261 = vsub.f32 %v1660, %v7260
        %v7262 = vand.u32 %v7261, 4294901760
        %v7263 = vsub.f32 %v7261, %v7262
        %v7264 = vand.u32 %v7263, 4294901760
        %7265 = vmatpush1.msra.mxu0 %v7264
        %7266 = vmatprep.subr.mxu0 0.0
        %v7267 = vand.u32 %v1663, 4294901760
        %v7268 = vsub.f32 %v1663, %v7267
        %v7269 = vand.u32 %v7268, 4294901760
        %v7270 = vsub.f32 %v7268, %v7269
        %v7271 = vand.u32 %v7270, 4294901760
        %7272 = vmatpush1.msra.mxu0 %v7271
        %7273 = vmatprep.subr.mxu0 0.0
        %v7274 = vand.u32 %v1666, 4294901760
        %v7275 = vsub.f32 %v1666, %v7274
        %v7276 = vand.u32 %v7275, 4294901760
        %v7277 = vsub.f32 %v7275, %v7276
        %v7278 = vand.u32 %v7277, 4294901760
        %7279 = vmatpush1.msra.mxu0 %v7278
        %7280 = vmatprep.subr.mxu0 0.0
        %v7281 = vand.u32 %v1669, 4294901760
        %v7282 = vsub.f32 %v1669, %v7281
        %v7283 = vand.u32 %v7282, 4294901760
        %v7284 = vsub.f32 %v7282, %v7283
        %v7285 = vand.u32 %v7284, 4294901760
        %7286 = vmatpush1.msra.mxu0 %v7285
        %7287 = vmatprep.subr.mxu0 0.0
        %v7288 = vand.u32 %v1672, 4294901760
        %v7289 = vsub.f32 %v1672, %v7288
        %v7290 = vand.u32 %v7289, 4294901760
        %v7291 = vsub.f32 %v7289, %v7290
        %v7292 = vand.u32 %v7291, 4294901760
        %7293 = vmatpush1.msra.mxu0 %v7292
        %7294 = vmatprep.subr.mxu0 0.0
        %v7295 = vand.u32 %v1675, 4294901760
        %v7296 = vsub.f32 %v1675, %v7295
        %v7297 = vand.u32 %v7296, 4294901760
        %v7298 = vsub.f32 %v7296, %v7297
        %v7299 = vand.u32 %v7298, 4294901760
        %7300 = vmatpush1.msra.mxu0 %v7299
        %7301 = vmatprep.subr.mxu0 0.0
        %v7302 = vand.u32 %v1678, 4294901760
        %v7303 = vsub.f32 %v1678, %v7302
        %v7304 = vand.u32 %v7303, 4294901760
        %v7305 = vsub.f32 %v7303, %v7304
        %v7306 = vand.u32 %v7305, 4294901760
        %7307 = vmatpush1.msra.mxu0 %v7306
        %7308 = vmatprep.subr.mxu0 0.0
        %v7309 = vand.u32 %v1681, 4294901760
        %v7310 = vsub.f32 %v1681, %v7309
        %v7311 = vand.u32 %v7310, 4294901760
        %v7312 = vsub.f32 %v7310, %v7311
        %v7313 = vand.u32 %v7312, 4294901760
        %7314 = vmatpush1.msra.mxu0 %v7313
        %7315 = vmatprep.subr.mxu0 0.0
        %v7316 = vand.u32 %v1684, 4294901760
        %v7317 = vsub.f32 %v1684, %v7316
        %v7318 = vand.u32 %v7317, 4294901760
        %v7319 = vsub.f32 %v7317, %v7318
        %v7320 = vand.u32 %v7319, 4294901760
        %7321 = vmatpush1.msra.mxu0 %v7320
        %7322 = vmatprep.subr.mxu0 0.0
        %v7323 = vand.u32 %v1687, 4294901760
        %v7324 = vsub.f32 %v1687, %v7323
        %v7325 = vand.u32 %v7324, 4294901760
        %v7326 = vsub.f32 %v7324, %v7325
        %v7327 = vand.u32 %v7326, 4294901760
        %7328 = vmatpush1.msra.mxu0 %v7327
        %7329 = vmatprep.subr.mxu0 0.0
        %v7330 = vand.u32 %v1690, 4294901760
        %v7331 = vsub.f32 %v1690, %v7330
        %v7332 = vand.u32 %v7331, 4294901760
        %v7333 = vsub.f32 %v7331, %v7332
        %v7334 = vand.u32 %v7333, 4294901760
        %7335 = vmatpush1.msra.mxu0 %v7334
        %7336 = vmatprep.subr.mxu0 0.0
        %7337 = vmatpush1.msra.mxu0 0.0
        %7338 = vmatprep.subr.mxu0 0.0
        %7339 = vmatpush1.msra.mxu0 0.0
        %7340 = vmatprep.subr.mxu0 0.0
        %7341 = vmatpush1.msra.mxu0 0.0
        %7342 = vmatprep.subr.mxu0 0.0
        %7343 = vmatpush1.msra.mxu0 0.0
        %7344 = vmatprep.subr.mxu0 0.0
        %7345 = vmatpush1.msra.mxu0 0.0
        %7346 = vmatprep.subr.mxu0 0.0
        %7347 = vmatpush1.msra.mxu0 0.0
        %7348 = vmatprep.subr.mxu0 0.0
        %7349 = vmatpush1.msra.mxu0 0.0
        %7350 = vmatprep.subr.mxu0 0.0
        %7351 = vmatpush1.msra.mxu0 0.0
        %7352 = vmatprep.subr.mxu0 0.0
        %7353 = vmatpush1.msra.mxu0 0.0
        %7354 = vmatprep.subr.mxu0 0.0
        %7355 = vmatpush1.msra.mxu0 0.0
        %7356 = vmatprep.subr.mxu0 0.0
        %7357 = vmatpush1.msra.mxu0 0.0
        %7358 = vmatprep.subr.mxu0 0.0
        %7359 = vmatpush1.msra.mxu0 0.0
        %7360 = vmatprep.subr.mxu0 0.0
        %7361 = vmatpush1.msra.mxu0 0.0
        %7362 = vmatprep.subr.mxu0 0.0
        %7363 = vmatpush1.msra.mxu0 0.0
        %7364 = vmatprep.subr.mxu0 0.0
        %7365 = vmatpush1.msra.mxu0 0.0
        %7366 = vmatprep.subr.mxu0 0.0
        %7367 = vmatpush1.msra.mxu0 0.0
        %7368 = vmatprep.mubr.f32.mxu0 0.0
        %v7369 = vand.u32 %v6271, 4294901760
        %7370 = vmatmul.mubr.f32.gmra.mrb[0].mxu0 %v7369
        %v7371 = vpop.f32.mrb[0].mxu0
        %v7372 = vadd.f32 %v7221, %v7371
        %v7373 = vpop.f32.mrb[0].mxu0
        %7374 = vdwg.mxu0
        %7375 = vmatprep.subr.mxu0 0.0
        %v7376 = vand.u32 %v1645, 4294901760
        %v7377 = vsub.f32 %v1645, %v7376
        %7378 = vmatpush1.msra.mxu0 %v7377
        %7379 = vmatprep.subr.mxu0 0.0
        %v7380 = vand.u32 %v1648, 4294901760
        %v7381 = vsub.f32 %v1648, %v7380
        %7382 = vmatpush1.msra.mxu0 %v7381
        %7383 = vmatprep.subr.mxu0 0.0
        %v7384 = vand.u32 %v1651, 4294901760
        %v7385 = vsub.f32 %v1651, %v7384
        %7386 = vmatpush1.msra.mxu0 %v7385
        %7387 = vmatprep.subr.mxu0 0.0
        %v7388 = vand.u32 %v1654, 4294901760
        %v7389 = vsub.f32 %v1654, %v7388
        %7390 = vmatpush1.msra.mxu0 %v7389
        %7391 = vmatprep.subr.mxu0 0.0
        %v7392 = vand.u32 %v1657, 4294901760
        %v7393 = vsub.f32 %v1657, %v7392
        %7394 = vmatpush1.msra.mxu0 %v7393
        %7395 = vmatprep.subr.mxu0 0.0
        %v7396 = vand.u32 %v1660, 4294901760
        %v7397 = vsub.f32 %v1660, %v7396
        %7398 = vmatpush1.msra.mxu0 %v7397
        %7399 = vmatprep.subr.mxu0 0.0
        %v7400 = vand.u32 %v1663, 4294901760
        %v7401 = vsub.f32 %v1663, %v7400
        %7402 = vmatpush1.msra.mxu0 %v7401
        %7403 = vmatprep.subr.mxu0 0.0
        %v7404 = vand.u32 %v1666, 4294901760
        %v7405 = vsub.f32 %v1666, %v7404
        %7406 = vmatpush1.msra.mxu0 %v7405
        %7407 = vmatprep.subr.mxu0 0.0
        %v7408 = vand.u32 %v1669, 4294901760
        %v7409 = vsub.f32 %v1669, %v7408
        %7410 = vmatpush1.msra.mxu0 %v7409
        %7411 = vmatprep.subr.mxu0 0.0
        %v7412 = vand.u32 %v1672, 4294901760
        %v7413 = vsub.f32 %v1672, %v7412
        %7414 = vmatpush1.msra.mxu0 %v7413
        %7415 = vmatprep.subr.mxu0 0.0
        %v7416 = vand.u32 %v1675, 4294901760
        %v7417 = vsub.f32 %v1675, %v7416
        %7418 = vmatpush1.msra.mxu0 %v7417
        %7419 = vmatprep.subr.mxu0 0.0
        %v7420 = vand.u32 %v1678, 4294901760
        %v7421 = vsub.f32 %v1678, %v7420
        %7422 = vmatpush1.msra.mxu0 %v7421
        %7423 = vmatprep.subr.mxu0 0.0
        %v7424 = vand.u32 %v1681, 4294901760
        %v7425 = vsub.f32 %v1681, %v7424
        %7426 = vmatpush1.msra.mxu0 %v7425
        %7427 = vmatprep.subr.mxu0 0.0
        %v7428 = vand.u32 %v1684, 4294901760
        %v7429 = vsub.f32 %v1684, %v7428
        %7430 = vmatpush1.msra.mxu0 %v7429
        %7431 = vmatprep.subr.mxu0 0.0
        %v7432 = vand.u32 %v1687, 4294901760
        %v7433 = vsub.f32 %v1687, %v7432
        %7434 = vmatpush1.msra.mxu0 %v7433
        %7435 = vmatprep.subr.mxu0 0.0
        %v7436 = vand.u32 %v1690, 4294901760
        %v7437 = vsub.f32 %v1690, %v7436
        %7438 = vmatpush1.msra.mxu0 %v7437
        %7439 = vmatprep.subr.mxu0 0.0
        %7440 = vmatpush1.msra.mxu0 0.0
        %7441 = vmatprep.subr.mxu0 0.0
        %7442 = vmatpush1.msra.mxu0 0.0
        %7443 = vmatprep.subr.mxu0 0.0
        %7444 = vmatpush1.msra.mxu0 0.0
        %7445 = vmatprep.subr.mxu0 0.0
        %7446 = vmatpush1.msra.mxu0 0.0
        %7447 = vmatprep.subr.mxu0 0.0
        %7448 = vmatpush1.msra.mxu0 0.0
        %7449 = vmatprep.subr.mxu0 0.0
        %7450 = vmatpush1.msra.mxu0 0.0
        %7451 = vmatprep.subr.mxu0 0.0
        %7452 = vmatpush1.msra.mxu0 0.0
        %7453 = vmatprep.subr.mxu0 0.0
        %7454 = vmatpush1.msra.mxu0 0.0
        %7455 = vmatprep.subr.mxu0 0.0
        %7456 = vmatpush1.msra.mxu0 0.0
        %7457 = vmatprep.subr.mxu0 0.0
        %7458 = vmatpush1.msra.mxu0 0.0
        %7459 = vmatprep.subr.mxu0 0.0
        %7460 = vmatpush1.msra.mxu0 0.0
        %7461 = vmatprep.subr.mxu0 0.0
        %7462 = vmatpush1.msra.mxu0 0.0
        %7463 = vmatprep.subr.mxu0 0.0
        %7464 = vmatpush1.msra.mxu0 0.0
        %7465 = vmatprep.subr.mxu0 0.0
        %7466 = vmatpush1.msra.mxu0 0.0
        %7467 = vmatprep.subr.mxu0 0.0
        %7468 = vmatpush1.msra.mxu0 0.0
        %7469 = vmatprep.subr.mxu0 0.0
        %7470 = vmatpush1.msra.mxu0 0.0
        %7471 = vmatprep.mubr.f32.mxu0 0.0
        %v7472 = vand.u32 %v6271, 4294901760
        %v7473 = vsub.f32 %v6271, %v7472
        %7474 = vmatmul.mubr.f32.gmra.mrb[0].mxu0 %v7473
        %v7475 = vpop.f32.mrb[0].mxu0
        %v7476 = vadd.f32 %v7372, %v7475
        %v7477 = vpop.f32.mrb[0].mxu0
        %7478 = vdwg.mxu0
        %7479 = vmatprep.subr.mxu0 0.0
        %v7480 = vand.u32 %v1645, 4294901760
        %7481 = vmatpush1.msra.mxu0 %v7480
        %7482 = vmatprep.subr.mxu0 0.0
        %v7483 = vand.u32 %v1648, 4294901760
        %7484 = vmatpush1.msra.mxu0 %v7483
        %7485 = vmatprep.subr.mxu0 0.0
        %v7486 = vand.u32 %v1651, 4294901760
        %7487 = vmatpush1.msra.mxu0 %v7486
        %7488 = vmatprep.subr.mxu0 0.0
        %v7489 = vand.u32 %v1654, 4294901760
        %7490 = vmatpush1.msra.mxu0 %v7489
        %7491 = vmatprep.subr.mxu0 0.0
        %v7492 = vand.u32 %v1657, 4294901760
        %7493 = vmatpush1.msra.mxu0 %v7492
        %7494 = vmatprep.subr.mxu0 0.0
        %v7495 = vand.u32 %v1660, 4294901760
        %7496 = vmatpush1.msra.mxu0 %v7495
        %7497 = vmatprep.subr.mxu0 0.0
        %v7498 = vand.u32 %v1663, 4294901760
        %7499 = vmatpush1.msra.mxu0 %v7498
        %7500 = vmatprep.subr.mxu0 0.0
        %v7501 = vand.u32 %v1666, 4294901760
        %7502 = vmatpush1.msra.mxu0 %v7501
        %7503 = vmatprep.subr.mxu0 0.0
        %v7504 = vand.u32 %v1669, 4294901760
        %7505 = vmatpush1.msra.mxu0 %v7504
        %7506 = vmatprep.subr.mxu0 0.0
        %v7507 = vand.u32 %v1672, 4294901760
        %7508 = vmatpush1.msra.mxu0 %v7507
        %7509 = vmatprep.subr.mxu0 0.0
        %v7510 = vand.u32 %v1675, 4294901760
        %7511 = vmatpush1.msra.mxu0 %v7510
        %7512 = vmatprep.subr.mxu0 0.0
        %v7513 = vand.u32 %v1678, 4294901760
        %7514 = vmatpush1.msra.mxu0 %v7513
        %7515 = vmatprep.subr.mxu0 0.0
        %v7516 = vand.u32 %v1681, 4294901760
        %7517 = vmatpush1.msra.mxu0 %v7516
        %7518 = vmatprep.subr.mxu0 0.0
        %v7519 = vand.u32 %v1684, 4294901760
        %7520 = vmatpush1.msra.mxu0 %v7519
        %7521 = vmatprep.subr.mxu0 0.0
        %v7522 = vand.u32 %v1687, 4294901760
        %7523 = vmatpush1.msra.mxu0 %v7522
        %7524 = vmatprep.subr.mxu0 0.0
        %v7525 = vand.u32 %v1690, 4294901760
        %7526 = vmatpush1.msra.mxu0 %v7525
        %7527 = vmatprep.subr.mxu0 0.0
        %7528 = vmatpush1.msra.mxu0 0.0
        %7529 = vmatprep.subr.mxu0 0.0
        %7530 = vmatpush1.msra.mxu0 0.0
        %7531 = vmatprep.subr.mxu0 0.0
        %7532 = vmatpush1.msra.mxu0 0.0
        %7533 = vmatprep.subr.mxu0 0.0
        %7534 = vmatpush1.msra.mxu0 0.0
        %7535 = vmatprep.subr.mxu0 0.0
        %7536 = vmatpush1.msra.mxu0 0.0
        %7537 = vmatprep.subr.mxu0 0.0
        %7538 = vmatpush1.msra.mxu0 0.0
        %7539 = vmatprep.subr.mxu0 0.0
        %7540 = vmatpush1.msra.mxu0 0.0
        %7541 = vmatprep.subr.mxu0 0.0
        %7542 = vmatpush1.msra.mxu0 0.0
        %7543 = vmatprep.subr.mxu0 0.0
        %7544 = vmatpush1.msra.mxu0 0.0
        %7545 = vmatprep.subr.mxu0 0.0
        %7546 = vmatpush1.msra.mxu0 0.0
        %7547 = vmatprep.subr.mxu0 0.0
        %7548 = vmatpush1.msra.mxu0 0.0
        %7549 = vmatprep.subr.mxu0 0.0
        %7550 = vmatpush1.msra.mxu0 0.0
        %7551 = vmatprep.subr.mxu0 0.0
        %7552 = vmatpush1.msra.mxu0 0.0
        %7553 = vmatprep.subr.mxu0 0.0
        %7554 = vmatpush1.msra.mxu0 0.0
        %7555 = vmatprep.subr.mxu0 0.0
        %7556 = vmatpush1.msra.mxu0 0.0
        %7557 = vmatprep.subr.mxu0 0.0
        %7558 = vmatpush1.msra.mxu0 0.0
        %7559 = vmatprep.mubr.f32.mxu0 0.0
        %v7560 = vand.u32 %v6271, 4294901760
        %v7561 = vsub.f32 %v6271, %v7560
        %v7562 = vand.u32 %v7561, 4294901760
        %7563 = vmatmul.mubr.f32.gmra.mrb[0].mxu0 %v7562
        %v7564 = vpop.f32.mrb[0].mxu0
        %v7565 = vadd.f32 %v7476, %v7564
        %v7566 = vpop.f32.mrb[0].mxu0
        %7567 = vdwg.mxu0
        %7568 = vmatprep.subr.mxu0 0.0
        %v7569 = vand.u32 %v1645, 4294901760
        %v7570 = vsub.f32 %v1645, %v7569
        %v7571 = vand.u32 %v7570, 4294901760
        %7572 = vmatpush1.msra.mxu0 %v7571
        %7573 = vmatprep.subr.mxu0 0.0
        %v7574 = vand.u32 %v1648, 4294901760
        %v7575 = vsub.f32 %v1648, %v7574
        %v7576 = vand.u32 %v7575, 4294901760
        %7577 = vmatpush1.msra.mxu0 %v7576
        %7578 = vmatprep.subr.mxu0 0.0
        %v7579 = vand.u32 %v1651, 4294901760
        %v7580 = vsub.f32 %v1651, %v7579
        %v7581 = vand.u32 %v7580, 4294901760
        %7582 = vmatpush1.msra.mxu0 %v7581
        %7583 = vmatprep.subr.mxu0 0.0
        %v7584 = vand.u32 %v1654, 4294901760
        %v7585 = vsub.f32 %v1654, %v7584
        %v7586 = vand.u32 %v7585, 4294901760
        %7587 = vmatpush1.msra.mxu0 %v7586
        %7588 = vmatprep.subr.mxu0 0.0
        %v7589 = vand.u32 %v1657, 4294901760
        %v7590 = vsub.f32 %v1657, %v7589
        %v7591 = vand.u32 %v7590, 4294901760
        %7592 = vmatpush1.msra.mxu0 %v7591
        %7593 = vmatprep.subr.mxu0 0.0
        %v7594 = vand.u32 %v1660, 4294901760
        %v7595 = vsub.f32 %v1660, %v7594
        %v7596 = vand.u32 %v7595, 4294901760
        %7597 = vmatpush1.msra.mxu0 %v7596
        %7598 = vmatprep.subr.mxu0 0.0
        %v7599 = vand.u32 %v1663, 4294901760
        %v7600 = vsub.f32 %v1663, %v7599
        %v7601 = vand.u32 %v7600, 4294901760
        %7602 = vmatpush1.msra.mxu0 %v7601
        %7603 = vmatprep.subr.mxu0 0.0
        %v7604 = vand.u32 %v1666, 4294901760
        %v7605 = vsub.f32 %v1666, %v7604
        %v7606 = vand.u32 %v7605, 4294901760
        %7607 = vmatpush1.msra.mxu0 %v7606
        %7608 = vmatprep.subr.mxu0 0.0
        %v7609 = vand.u32 %v1669, 4294901760
        %v7610 = vsub.f32 %v1669, %v7609
        %v7611 = vand.u32 %v7610, 4294901760
        %7612 = vmatpush1.msra.mxu0 %v7611
        %7613 = vmatprep.subr.mxu0 0.0
        %v7614 = vand.u32 %v1672, 4294901760
        %v7615 = vsub.f32 %v1672, %v7614
        %v7616 = vand.u32 %v7615, 4294901760
        %7617 = vmatpush1.msra.mxu0 %v7616
        %7618 = vmatprep.subr.mxu0 0.0
        %v7619 = vand.u32 %v1675, 4294901760
        %v7620 = vsub.f32 %v1675, %v7619
        %v7621 = vand.u32 %v7620, 4294901760
        %7622 = vmatpush1.msra.mxu0 %v7621
        %7623 = vmatprep.subr.mxu0 0.0
        %v7624 = vand.u32 %v1678, 4294901760
        %v7625 = vsub.f32 %v1678, %v7624
        %v7626 = vand.u32 %v7625, 4294901760
        %7627 = vmatpush1.msra.mxu0 %v7626
        %7628 = vmatprep.subr.mxu0 0.0
        %v7629 = vand.u32 %v1681, 4294901760
        %v7630 = vsub.f32 %v1681, %v7629
        %v7631 = vand.u32 %v7630, 4294901760
        %7632 = vmatpush1.msra.mxu0 %v7631
        %7633 = vmatprep.subr.mxu0 0.0
        %v7634 = vand.u32 %v1684, 4294901760
        %v7635 = vsub.f32 %v1684, %v7634
        %v7636 = vand.u32 %v7635, 4294901760
        %7637 = vmatpush1.msra.mxu0 %v7636
        %7638 = vmatprep.subr.mxu0 0.0
        %v7639 = vand.u32 %v1687, 4294901760
        %v7640 = vsub.f32 %v1687, %v7639
        %v7641 = vand.u32 %v7640, 4294901760
        %7642 = vmatpush1.msra.mxu0 %v7641
        %7643 = vmatprep.subr.mxu0 0.0
        %v7644 = vand.u32 %v1690, 4294901760
        %v7645 = vsub.f32 %v1690, %v7644
        %v7646 = vand.u32 %v7645, 4294901760
        %7647 = vmatpush1.msra.mxu0 %v7646
        %7648 = vmatprep.subr.mxu0 0.0
        %7649 = vmatpush1.msra.mxu0 0.0
        %7650 = vmatprep.subr.mxu0 0.0
        %7651 = vmatpush1.msra.mxu0 0.0
        %7652 = vmatprep.subr.mxu0 0.0
        %7653 = vmatpush1.msra.mxu0 0.0
        %7654 = vmatprep.subr.mxu0 0.0
        %7655 = vmatpush1.msra.mxu0 0.0
        %7656 = vmatprep.subr.mxu0 0.0
        %7657 = vmatpush1.msra.mxu0 0.0
        %7658 = vmatprep.subr.mxu0 0.0
        %7659 = vmatpush1.msra.mxu0 0.0
        %7660 = vmatprep.subr.mxu0 0.0
        %7661 = vmatpush1.msra.mxu0 0.0
        %7662 = vmatprep.subr.mxu0 0.0
        %7663 = vmatpush1.msra.mxu0 0.0
        %7664 = vmatprep.subr.mxu0 0.0
        %7665 = vmatpush1.msra.mxu0 0.0
        %7666 = vmatprep.subr.mxu0 0.0
        %7667 = vmatpush1.msra.mxu0 0.0
        %7668 = vmatprep.subr.mxu0 0.0
        %7669 = vmatpush1.msra.mxu0 0.0
        %7670 = vmatprep.subr.mxu0 0.0
        %7671 = vmatpush1.msra.mxu0 0.0
        %7672 = vmatprep.subr.mxu0 0.0
        %7673 = vmatpush1.msra.mxu0 0.0
        %7674 = vmatprep.subr.mxu0 0.0
        %7675 = vmatpush1.msra.mxu0 0.0
        %7676 = vmatprep.subr.mxu0 0.0
        %7677 = vmatpush1.msra.mxu0 0.0
        %7678 = vmatprep.subr.mxu0 0.0
        %7679 = vmatpush1.msra.mxu0 0.0
        %7680 = vmatprep.mubr.f32.mxu0 0.0
        %v7681 = vand.u32 %v6271, 4294901760
        %7682 = vmatmul.mubr.f32.gmra.mrb[0].mxu0 %v7681
        %v7683 = vpop.f32.mrb[0].mxu0
        %v7684 = vadd.f32 %v7565, %v7683
        %v7685 = vpop.f32.mrb[0].mxu0
        %7686 = vdwg.mxu0
        %7687 = vmatprep.subr.mxu0 0.0
        %v7688 = vand.u32 %v1645, 4294901760
        %7689 = vmatpush1.msra.mxu0 %v7688
        %7690 = vmatprep.subr.mxu0 0.0
        %v7691 = vand.u32 %v1648, 4294901760
        %7692 = vmatpush1.msra.mxu0 %v7691
        %7693 = vmatprep.subr.mxu0 0.0
        %v7694 = vand.u32 %v1651, 4294901760
        %7695 = vmatpush1.msra.mxu0 %v7694
        %7696 = vmatprep.subr.mxu0 0.0
        %v7697 = vand.u32 %v1654, 4294901760
        %7698 = vmatpush1.msra.mxu0 %v7697
        %7699 = vmatprep.subr.mxu0 0.0
        %v7700 = vand.u32 %v1657, 4294901760
        %7701 = vmatpush1.msra.mxu0 %v7700
        %7702 = vmatprep.subr.mxu0 0.0
        %v7703 = vand.u32 %v1660, 4294901760
        %7704 = vmatpush1.msra.mxu0 %v7703
        %7705 = vmatprep.subr.mxu0 0.0
        %v7706 = vand.u32 %v1663, 4294901760
        %7707 = vmatpush1.msra.mxu0 %v7706
        %7708 = vmatprep.subr.mxu0 0.0
        %v7709 = vand.u32 %v1666, 4294901760
        %7710 = vmatpush1.msra.mxu0 %v7709
        %7711 = vmatprep.subr.mxu0 0.0
        %v7712 = vand.u32 %v1669, 4294901760
        %7713 = vmatpush1.msra.mxu0 %v7712
        %7714 = vmatprep.subr.mxu0 0.0
        %v7715 = vand.u32 %v1672, 4294901760
        %7716 = vmatpush1.msra.mxu0 %v7715
        %7717 = vmatprep.subr.mxu0 0.0
        %v7718 = vand.u32 %v1675, 4294901760
        %7719 = vmatpush1.msra.mxu0 %v7718
        %7720 = vmatprep.subr.mxu0 0.0
        %v7721 = vand.u32 %v1678, 4294901760
        %7722 = vmatpush1.msra.mxu0 %v7721
        %7723 = vmatprep.subr.mxu0 0.0
        %v7724 = vand.u32 %v1681, 4294901760
        %7725 = vmatpush1.msra.mxu0 %v7724
        %7726 = vmatprep.subr.mxu0 0.0
        %v7727 = vand.u32 %v1684, 4294901760
        %7728 = vmatpush1.msra.mxu0 %v7727
        %7729 = vmatprep.subr.mxu0 0.0
        %v7730 = vand.u32 %v1687, 4294901760
        %7731 = vmatpush1.msra.mxu0 %v7730
        %7732 = vmatprep.subr.mxu0 0.0
        %v7733 = vand.u32 %v1690, 4294901760
        %7734 = vmatpush1.msra.mxu0 %v7733
        %7735 = vmatprep.subr.mxu0 0.0
        %7736 = vmatpush1.msra.mxu0 0.0
        %7737 = vmatprep.subr.mxu0 0.0
        %7738 = vmatpush1.msra.mxu0 0.0
        %7739 = vmatprep.subr.mxu0 0.0
        %7740 = vmatpush1.msra.mxu0 0.0
        %7741 = vmatprep.subr.mxu0 0.0
        %7742 = vmatpush1.msra.mxu0 0.0
        %7743 = vmatprep.subr.mxu0 0.0
        %7744 = vmatpush1.msra.mxu0 0.0
        %7745 = vmatprep.subr.mxu0 0.0
        %7746 = vmatpush1.msra.mxu0 0.0
        %7747 = vmatprep.subr.mxu0 0.0
        %7748 = vmatpush1.msra.mxu0 0.0
        %7749 = vmatprep.subr.mxu0 0.0
        %7750 = vmatpush1.msra.mxu0 0.0
        %7751 = vmatprep.subr.mxu0 0.0
        %7752 = vmatpush1.msra.mxu0 0.0
        %7753 = vmatprep.subr.mxu0 0.0
        %7754 = vmatpush1.msra.mxu0 0.0
        %7755 = vmatprep.subr.mxu0 0.0
        %7756 = vmatpush1.msra.mxu0 0.0
        %7757 = vmatprep.subr.mxu0 0.0
        %7758 = vmatpush1.msra.mxu0 0.0
        %7759 = vmatprep.subr.mxu0 0.0
        %7760 = vmatpush1.msra.mxu0 0.0
        %7761 = vmatprep.subr.mxu0 0.0
        %7762 = vmatpush1.msra.mxu0 0.0
        %7763 = vmatprep.subr.mxu0 0.0
        %7764 = vmatpush1.msra.mxu0 0.0
        %7765 = vmatprep.subr.mxu0 0.0
        %7766 = vmatpush1.msra.mxu0 0.0
        %7767 = vmatprep.mubr.f32.mxu0 0.0
        %v7768 = vand.u32 %v6271, 4294901760
        %7769 = vmatmul.mubr.f32.gmra.mrb[0].mxu0 %v7768
        %v7770 = vpop.f32.mrb[0].mxu0
        %v7771 = vadd.f32 %v7684, %v7770
        %v7772 = vpop.f32.mrb[0].mxu0
        %7773 = vdwg.mxu0
        %v7774 = vadd.f32 %v6275, %v7129
        %v7775 = vadd.f32 %v6276, %v7131
        %v7776 = vxor.u32 %v7774, 2147483648
        %v7777 = vxor.u32 %v7775, 2147483648
        %v7778 = vmul.f32 %v7776, 1.442695
        %v7779 = vpow.pop %v7778
        %v7780 = vmul.f32 %v7777, 1.442695
        %v7781 = vpow.pop %v7780
        %v7782 = vadd.f32 %v7779, 1.0
        %v7783 = vadd.f32 %v7781, 1.0
        %v7784 = vrcp.pop %v7782
        %v7785 = vmul.f32 1.0, %v7784
        %v7786 = vrcp.pop %v7783
        %v7787 = vmul.f32 1.0, %v7786
        %v7788 = vmul.f32 %v7785, %v7771
        %v7789 = vadd.f32 %v6277, %v7788
        %v7790 = vtanh.pop %v7789
        %v7791 = vsub.f32 1.0, %v7787
        %v7792 = vmul.f32 %v7791, %v7790
        %v7793 = vmul.f32 %v7787, %v6271
        %v7794 = vadd.f32 %v7792, %v7793
        %s7795 = sadd.s32 %s3208, 3
        %p7796 = scmp.lt.s32.totalorder %s7795, 11
        %s7797 = scalar_select %p7796, 1, 0
        %v7798 = vstv %s7797
        %vm7799 = vcmp.eq.s32.totalorder %v7798, 1
        %v7800 = vsel %vm7799, %v7794, %v6271
        %7801 = vst [vmem:[#allocation3] sm:$0xff] %v7800
        %p7802 = scmp.eq.s32.totalorder %s27, 2
        // Predicated region
        $region65: #{tpu_custom_call.1} parent=55 // pred_check
          %p7803 = pneg %p7802
        $region66: #{tpu_custom_call.1} parent=55 // pred_check_branch
          %7805 = sbr.rel (%p7803) target = $region68
        $region67: #{tpu_custom_call.1} parent=55 // pred_region
          %v7806 = vld [vmem:[%s5] sm:$0xff]
          %v7807 = vld [vmem:[%s5 + $0x8] sm:$0xff]
          %v7808 = vld [vmem:[%s5 + $0x10] sm:$0xff]
          %v7809 = vld [vmem:[%s5 + $0x18] sm:$0xff]
          %v7810 = vld [vmem:[%s5 + $0x20] sm:$0xff]
          %v7811 = vld [vmem:[%s5 + $0x28] sm:$0xff]
          %v7812 = vld [vmem:[%s5 + $0x30] sm:$0xff]
          %v7813 = vld [vmem:[%s5 + $0x38] sm:$0xff]
          %v7814 = vld [vmem:[%s5 + $0x40] sm:$0xff]
          %v7815 = vld [vmem:[%s5 + $0x48] sm:$0xff]
          %v7816 = vld [vmem:[%s5 + $0x50] sm:$0xff]
          %v7817 = vld [vmem:[%s5 + $0x58] sm:$0xff]
          %v7818 = vld [vmem:[%s5 + $0x60] sm:$0xff]
          %v7819 = vld [vmem:[%s5 + $0x68] sm:$0xff]
          %v7820 = vld [vmem:[%s5 + $0x70] sm:$0xff]
          %v7821 = vld [vmem:[%s5 + $0x78] sm:$0xff]
          %v7822 = vld [vmem:[%s6] sm:$0x1]
          %v7824 = vlaneseq
          %v7825 = vshrl.u32 %v7824, 7
          %v7826 = vsub.s32 0, %v7825
          %v7827 = vrot.slane %v7822, %v7826
          %7829 = vmatprep.subr.mxu0 0.0
          %v7830 = vand.u32 %v7806, 4294901760
          %7831 = vmatpush1.msra.mxu0 %v7830
          %7832 = vmatprep.subr.mxu0 0.0
          %v7833 = vand.u32 %v7807, 4294901760
          %7834 = vmatpush1.msra.mxu0 %v7833
          %7835 = vmatprep.subr.mxu0 0.0
          %v7836 = vand.u32 %v7808, 4294901760
          %7837 = vmatpush1.msra.mxu0 %v7836
          %7838 = vmatprep.subr.mxu0 0.0
          %v7839 = vand.u32 %v7809, 4294901760
          %7840 = vmatpush1.msra.mxu0 %v7839
          %7841 = vmatprep.subr.mxu0 0.0
          %v7842 = vand.u32 %v7810, 4294901760
          %7843 = vmatpush1.msra.mxu0 %v7842
          %7844 = vmatprep.subr.mxu0 0.0
          %v7845 = vand.u32 %v7811, 4294901760
          %7846 = vmatpush1.msra.mxu0 %v7845
          %7847 = vmatprep.subr.mxu0 0.0
          %v7848 = vand.u32 %v7812, 4294901760
          %7849 = vmatpush1.msra.mxu0 %v7848
          %7850 = vmatprep.subr.mxu0 0.0
          %v7851 = vand.u32 %v7813, 4294901760
          %7852 = vmatpush1.msra.mxu0 %v7851
          %7853 = vmatprep.subr.mxu0 0.0
          %v7854 = vand.u32 %v7814, 4294901760
          %7855 = vmatpush1.msra.mxu0 %v7854
          %7856 = vmatprep.subr.mxu0 0.0
          %v7857 = vand.u32 %v7815, 4294901760
          %7858 = vmatpush1.msra.mxu0 %v7857
          %7859 = vmatprep.subr.mxu0 0.0
          %v7860 = vand.u32 %v7816, 4294901760
          %7861 = vmatpush1.msra.mxu0 %v7860
          %7862 = vmatprep.subr.mxu0 0.0
          %v7863 = vand.u32 %v7817, 4294901760
          %7864 = vmatpush1.msra.mxu0 %v7863
          %7865 = vmatprep.subr.mxu0 0.0
          %v7866 = vand.u32 %v7818, 4294901760
          %7867 = vmatpush1.msra.mxu0 %v7866
          %7868 = vmatprep.subr.mxu0 0.0
          %v7869 = vand.u32 %v7819, 4294901760
          %7870 = vmatpush1.msra.mxu0 %v7869
          %7871 = vmatprep.subr.mxu0 0.0
          %v7872 = vand.u32 %v7820, 4294901760
          %7873 = vmatpush1.msra.mxu0 %v7872
          %7874 = vmatprep.subr.mxu0 0.0
          %v7875 = vand.u32 %v7821, 4294901760
          %7876 = vmatpush1.msra.mxu0 %v7875
          %7877 = vmatprep.subr.mxu0 0.0
          %7878 = vmatpush1.msra.mxu0 0.0
          %7879 = vmatprep.subr.mxu0 0.0
          %7880 = vmatpush1.msra.mxu0 0.0
          %7881 = vmatprep.subr.mxu0 0.0
          %7882 = vmatpush1.msra.mxu0 0.0
          %7883 = vmatprep.subr.mxu0 0.0
          %7884 = vmatpush1.msra.mxu0 0.0
          %7885 = vmatprep.subr.mxu0 0.0
          %7886 = vmatpush1.msra.mxu0 0.0
          %7887 = vmatprep.subr.mxu0 0.0
          %7888 = vmatpush1.msra.mxu0 0.0
          %7889 = vmatprep.subr.mxu0 0.0
          %7890 = vmatpush1.msra.mxu0 0.0
          %7891 = vmatprep.subr.mxu0 0.0
          %7892 = vmatpush1.msra.mxu0 0.0
          %7893 = vmatprep.subr.mxu0 0.0
          %7894 = vmatpush1.msra.mxu0 0.0
          %7895 = vmatprep.subr.mxu0 0.0
          %7896 = vmatpush1.msra.mxu0 0.0
          %7897 = vmatprep.subr.mxu0 0.0
          %7898 = vmatpush1.msra.mxu0 0.0
          %7899 = vmatprep.subr.mxu0 0.0
          %7900 = vmatpush1.msra.mxu0 0.0
          %7901 = vmatprep.subr.mxu0 0.0
          %7902 = vmatpush1.msra.mxu0 0.0
          %7903 = vmatprep.subr.mxu0 0.0
          %7904 = vmatpush1.msra.mxu0 0.0
          %7905 = vmatprep.subr.mxu0 0.0
          %7906 = vmatpush1.msra.mxu0 0.0
          %7907 = vmatprep.subr.mxu0 0.0
          %7908 = vmatpush1.msra.mxu0 0.0
          %7909 = vmatprep.mubr.f32.mxu0 0.0
          %v7910 = vand.u32 %v7800, 4294901760
          %v7911 = vsub.f32 %v7800, %v7910
          %v7912 = vand.u32 %v7911, 4294901760
          %v7913 = vsub.f32 %v7911, %v7912
          %v7914 = vand.u32 %v7913, 4294901760
          %7915 = vmatmul.mubr.f32.gmra.mrb[0].mxu0 %v7914
          %v7916 = vpop.f32.mrb[0].mxu0
          %v7917 = vadd.f32 %v7827, %v7916
          %v7918 = vpop.f32.mrb[0].mxu0
          %7919 = vdwg.mxu0
          %7920 = vmatprep.subr.mxu0 0.0
          %v7921 = vand.u32 %v7806, 4294901760
          %v7922 = vsub.f32 %v7806, %v7921
          %v7923 = vand.u32 %v7922, 4294901760
          %v7924 = vsub.f32 %v7922, %v7923
          %v7925 = vand.u32 %v7924, 4294901760
          %7926 = vmatpush1.msra.mxu0 %v7925
          %7927 = vmatprep.subr.mxu0 0.0
          %v7928 = vand.u32 %v7807, 4294901760
          %v7929 = vsub.f32 %v7807, %v7928
          %v7930 = vand.u32 %v7929, 4294901760
          %v7931 = vsub.f32 %v7929, %v7930
          %v7932 = vand.u32 %v7931, 4294901760
          %7933 = vmatpush1.msra.mxu0 %v7932
          %7934 = vmatprep.subr.mxu0 0.0
          %v7935 = vand.u32 %v7808, 4294901760
          %v7936 = vsub.f32 %v7808, %v7935
          %v7937 = vand.u32 %v7936, 4294901760
          %v7938 = vsub.f32 %v7936, %v7937
          %v7939 = vand.u32 %v7938, 4294901760
          %7940 = vmatpush1.msra.mxu0 %v7939
          %7941 = vmatprep.subr.mxu0 0.0
          %v7942 = vand.u32 %v7809, 4294901760
          %v7943 = vsub.f32 %v7809, %v7942
          %v7944 = vand.u32 %v7943, 4294901760
          %v7945 = vsub.f32 %v7943, %v7944
          %v7946 = vand.u32 %v7945, 4294901760
          %7947 = vmatpush1.msra.mxu0 %v7946
          %7948 = vmatprep.subr.mxu0 0.0
          %v7949 = vand.u32 %v7810, 4294901760
          %v7950 = vsub.f32 %v7810, %v7949
          %v7951 = vand.u32 %v7950, 4294901760
          %v7952 = vsub.f32 %v7950, %v7951
          %v7953 = vand.u32 %v7952, 4294901760
          %7954 = vmatpush1.msra.mxu0 %v7953
          %7955 = vmatprep.subr.mxu0 0.0
          %v7956 = vand.u32 %v7811, 4294901760
          %v7957 = vsub.f32 %v7811, %v7956
          %v7958 = vand.u32 %v7957, 4294901760
          %v7959 = vsub.f32 %v7957, %v7958
          %v7960 = vand.u32 %v7959, 4294901760
          %7961 = vmatpush1.msra.mxu0 %v7960
          %7962 = vmatprep.subr.mxu0 0.0
          %v7963 = vand.u32 %v7812, 4294901760
          %v7964 = vsub.f32 %v7812, %v7963
          %v7965 = vand.u32 %v7964, 4294901760
          %v7966 = vsub.f32 %v7964, %v7965
          %v7967 = vand.u32 %v7966, 4294901760
          %7968 = vmatpush1.msra.mxu0 %v7967
          %7969 = vmatprep.subr.mxu0 0.0
          %v7970 = vand.u32 %v7813, 4294901760
          %v7971 = vsub.f32 %v7813, %v7970
          %v7972 = vand.u32 %v7971, 4294901760
          %v7973 = vsub.f32 %v7971, %v7972
          %v7974 = vand.u32 %v7973, 4294901760
          %7975 = vmatpush1.msra.mxu0 %v7974
          %7976 = vmatprep.subr.mxu0 0.0
          %v7977 = vand.u32 %v7814, 4294901760
          %v7978 = vsub.f32 %v7814, %v7977
          %v7979 = vand.u32 %v7978, 4294901760
          %v7980 = vsub.f32 %v7978, %v7979
          %v7981 = vand.u32 %v7980, 4294901760
          %7982 = vmatpush1.msra.mxu0 %v7981
          %7983 = vmatprep.subr.mxu0 0.0
          %v7984 = vand.u32 %v7815, 4294901760
          %v7985 = vsub.f32 %v7815, %v7984
          %v7986 = vand.u32 %v7985, 4294901760
          %v7987 = vsub.f32 %v7985, %v7986
          %v7988 = vand.u32 %v7987, 4294901760
          %7989 = vmatpush1.msra.mxu0 %v7988
          %7990 = vmatprep.subr.mxu0 0.0
          %v7991 = vand.u32 %v7816, 4294901760
          %v7992 = vsub.f32 %v7816, %v7991
          %v7993 = vand.u32 %v7992, 4294901760
          %v7994 = vsub.f32 %v7992, %v7993
          %v7995 = vand.u32 %v7994, 4294901760
          %7996 = vmatpush1.msra.mxu0 %v7995
          %7997 = vmatprep.subr.mxu0 0.0
          %v7998 = vand.u32 %v7817, 4294901760
          %v7999 = vsub.f32 %v7817, %v7998
          %v8000 = vand.u32 %v7999, 4294901760
          %v8001 = vsub.f32 %v7999, %v8000
          %v8002 = vand.u32 %v8001, 4294901760
          %8003 = vmatpush1.msra.mxu0 %v8002
          %8004 = vmatprep.subr.mxu0 0.0
          %v8005 = vand.u32 %v7818, 4294901760
          %v8006 = vsub.f32 %v7818, %v8005
          %v8007 = vand.u32 %v8006, 4294901760
          %v8008 = vsub.f32 %v8006, %v8007
          %v8009 = vand.u32 %v8008, 4294901760
          %8010 = vmatpush1.msra.mxu0 %v8009
          %8011 = vmatprep.subr.mxu0 0.0
          %v8012 = vand.u32 %v7819, 4294901760
          %v8013 = vsub.f32 %v7819, %v8012
          %v8014 = vand.u32 %v8013, 4294901760
          %v8015 = vsub.f32 %v8013, %v8014
          %v8016 = vand.u32 %v8015, 4294901760
          %8017 = vmatpush1.msra.mxu0 %v8016
          %8018 = vmatprep.subr.mxu0 0.0
          %v8019 = vand.u32 %v7820, 4294901760
          %v8020 = vsub.f32 %v7820, %v8019
          %v8021 = vand.u32 %v8020, 4294901760
          %v8022 = vsub.f32 %v8020, %v8021
          %v8023 = vand.u32 %v8022, 4294901760
          %8024 = vmatpush1.msra.mxu0 %v8023
          %8025 = vmatprep.subr.mxu0 0.0
          %v8026 = vand.u32 %v7821, 4294901760
          %v8027 = vsub.f32 %v7821, %v8026
          %v8028 = vand.u32 %v8027, 4294901760
          %v8029 = vsub.f32 %v8027, %v8028
          %v8030 = vand.u32 %v8029, 4294901760
          %8031 = vmatpush1.msra.mxu0 %v8030
          %8032 = vmatprep.subr.mxu0 0.0
          %8033 = vmatpush1.msra.mxu0 0.0
          %8034 = vmatprep.subr.mxu0 0.0
          %8035 = vmatpush1.msra.mxu0 0.0
          %8036 = vmatprep.subr.mxu0 0.0
          %8037 = vmatpush1.msra.mxu0 0.0
          %8038 = vmatprep.subr.mxu0 0.0
          %8039 = vmatpush1.msra.mxu0 0.0
          %8040 = vmatprep.subr.mxu0 0.0
          %8041 = vmatpush1.msra.mxu0 0.0
          %8042 = vmatprep.subr.mxu0 0.0
          %8043 = vmatpush1.msra.mxu0 0.0
          %8044 = vmatprep.subr.mxu0 0.0
          %8045 = vmatpush1.msra.mxu0 0.0
          %8046 = vmatprep.subr.mxu0 0.0
          %8047 = vmatpush1.msra.mxu0 0.0
          %8048 = vmatprep.subr.mxu0 0.0
          %8049 = vmatpush1.msra.mxu0 0.0
          %8050 = vmatprep.subr.mxu0 0.0
          %8051 = vmatpush1.msra.mxu0 0.0
          %8052 = vmatprep.subr.mxu0 0.0
          %8053 = vmatpush1.msra.mxu0 0.0
          %8054 = vmatprep.subr.mxu0 0.0
          %8055 = vmatpush1.msra.mxu0 0.0
          %8056 = vmatprep.subr.mxu0 0.0
          %8057 = vmatpush1.msra.mxu0 0.0
          %8058 = vmatprep.subr.mxu0 0.0
          %8059 = vmatpush1.msra.mxu0 0.0
          %8060 = vmatprep.subr.mxu0 0.0
          %8061 = vmatpush1.msra.mxu0 0.0
          %8062 = vmatprep.subr.mxu0 0.0
          %8063 = vmatpush1.msra.mxu0 0.0
          %8064 = vmatprep.mubr.f32.mxu0 0.0
          %v8065 = vand.u32 %v7800, 4294901760
          %8066 = vmatmul.mubr.f32.gmra.mrb[0].mxu0 %v8065
          %v8067 = vpop.f32.mrb[0].mxu0
          %v8068 = vadd.f32 %v7917, %v8067
          %v8069 = vpop.f32.mrb[0].mxu0
          %8070 = vdwg.mxu0
          %8071 = vmatprep.subr.mxu0 0.0
          %v8072 = vand.u32 %v7806, 4294901760
          %v8073 = vsub.f32 %v7806, %v8072
          %8074 = vmatpush1.msra.mxu0 %v8073
          %8075 = vmatprep.subr.mxu0 0.0
          %v8076 = vand.u32 %v7807, 4294901760
          %v8077 = vsub.f32 %v7807, %v8076
          %8078 = vmatpush1.msra.mxu0 %v8077
          %8079 = vmatprep.subr.mxu0 0.0
          %v8080 = vand.u32 %v7808, 4294901760
          %v8081 = vsub.f32 %v7808, %v8080
          %8082 = vmatpush1.msra.mxu0 %v8081
          %8083 = vmatprep.subr.mxu0 0.0
          %v8084 = vand.u32 %v7809, 4294901760
          %v8085 = vsub.f32 %v7809, %v8084
          %8086 = vmatpush1.msra.mxu0 %v8085
          %8087 = vmatprep.subr.mxu0 0.0
          %v8088 = vand.u32 %v7810, 4294901760
          %v8089 = vsub.f32 %v7810, %v8088
          %8090 = vmatpush1.msra.mxu0 %v8089
          %8091 = vmatprep.subr.mxu0 0.0
          %v8092 = vand.u32 %v7811, 4294901760
          %v8093 = vsub.f32 %v7811, %v8092
          %8094 = vmatpush1.msra.mxu0 %v8093
          %8095 = vmatprep.subr.mxu0 0.0
          %v8096 = vand.u32 %v7812, 4294901760
          %v8097 = vsub.f32 %v7812, %v8096
          %8098 = vmatpush1.msra.mxu0 %v8097
          %8099 = vmatprep.subr.mxu0 0.0
          %v8100 = vand.u32 %v7813, 4294901760
          %v8101 = vsub.f32 %v7813, %v8100
          %8102 = vmatpush1.msra.mxu0 %v8101
          %8103 = vmatprep.subr.mxu0 0.0
          %v8104 = vand.u32 %v7814, 4294901760
          %v8105 = vsub.f32 %v7814, %v8104
          %8106 = vmatpush1.msra.mxu0 %v8105
          %8107 = vmatprep.subr.mxu0 0.0
          %v8108 = vand.u32 %v7815, 4294901760
          %v8109 = vsub.f32 %v7815, %v8108
          %8110 = vmatpush1.msra.mxu0 %v8109
          %8111 = vmatprep.subr.mxu0 0.0
          %v8112 = vand.u32 %v7816, 4294901760
          %v8113 = vsub.f32 %v7816, %v8112
          %8114 = vmatpush1.msra.mxu0 %v8113
          %8115 = vmatprep.subr.mxu0 0.0
          %v8116 = vand.u32 %v7817, 4294901760
          %v8117 = vsub.f32 %v7817, %v8116
          %8118 = vmatpush1.msra.mxu0 %v8117
          %8119 = vmatprep.subr.mxu0 0.0
          %v8120 = vand.u32 %v7818, 4294901760
          %v8121 = vsub.f32 %v7818, %v8120
          %8122 = vmatpush1.msra.mxu0 %v8121
          %8123 = vmatprep.subr.mxu0 0.0
          %v8124 = vand.u32 %v7819, 4294901760
          %v8125 = vsub.f32 %v7819, %v8124
          %8126 = vmatpush1.msra.mxu0 %v8125
          %8127 = vmatprep.subr.mxu0 0.0
          %v8128 = vand.u32 %v7820, 4294901760
          %v8129 = vsub.f32 %v7820, %v8128
          %8130 = vmatpush1.msra.mxu0 %v8129
          %8131 = vmatprep.subr.mxu0 0.0
          %v8132 = vand.u32 %v7821, 4294901760
          %v8133 = vsub.f32 %v7821, %v8132
          %8134 = vmatpush1.msra.mxu0 %v8133
          %8135 = vmatprep.subr.mxu0 0.0
          %8136 = vmatpush1.msra.mxu0 0.0
          %8137 = vmatprep.subr.mxu0 0.0
          %8138 = vmatpush1.msra.mxu0 0.0
          %8139 = vmatprep.subr.mxu0 0.0
          %8140 = vmatpush1.msra.mxu0 0.0
          %8141 = vmatprep.subr.mxu0 0.0
          %8142 = vmatpush1.msra.mxu0 0.0
          %8143 = vmatprep.subr.mxu0 0.0
          %8144 = vmatpush1.msra.mxu0 0.0
          %8145 = vmatprep.subr.mxu0 0.0
          %8146 = vmatpush1.msra.mxu0 0.0
          %8147 = vmatprep.subr.mxu0 0.0
          %8148 = vmatpush1.msra.mxu0 0.0
          %8149 = vmatprep.subr.mxu0 0.0
          %8150 = vmatpush1.msra.mxu0 0.0
          %8151 = vmatprep.subr.mxu0 0.0
          %8152 = vmatpush1.msra.mxu0 0.0
          %8153 = vmatprep.subr.mxu0 0.0
          %8154 = vmatpush1.msra.mxu0 0.0
          %8155 = vmatprep.subr.mxu0 0.0
          %8156 = vmatpush1.msra.mxu0 0.0
          %8157 = vmatprep.subr.mxu0 0.0
          %8158 = vmatpush1.msra.mxu0 0.0
          %8159 = vmatprep.subr.mxu0 0.0
          %8160 = vmatpush1.msra.mxu0 0.0
          %8161 = vmatprep.subr.mxu0 0.0
          %8162 = vmatpush1.msra.mxu0 0.0
          %8163 = vmatprep.subr.mxu0 0.0
          %8164 = vmatpush1.msra.mxu0 0.0
          %8165 = vmatprep.subr.mxu0 0.0
          %8166 = vmatpush1.msra.mxu0 0.0
          %8167 = vmatprep.mubr.f32.mxu0 0.0
          %v8168 = vand.u32 %v7800, 4294901760
          %v8169 = vsub.f32 %v7800, %v8168
          %8170 = vmatmul.mubr.f32.gmra.mrb[0].mxu0 %v8169
          %v8171 = vpop.f32.mrb[0].mxu0
          %v8172 = vadd.f32 %v8068, %v8171
          %v8173 = vpop.f32.mrb[0].mxu0
          %8174 = vdwg.mxu0
          %8175 = vmatprep.subr.mxu0 0.0
          %v8176 = vand.u32 %v7806, 4294901760
          %8177 = vmatpush1.msra.mxu0 %v8176
          %8178 = vmatprep.subr.mxu0 0.0
          %v8179 = vand.u32 %v7807, 4294901760
          %8180 = vmatpush1.msra.mxu0 %v8179
          %8181 = vmatprep.subr.mxu0 0.0
          %v8182 = vand.u32 %v7808, 4294901760
          %8183 = vmatpush1.msra.mxu0 %v8182
          %8184 = vmatprep.subr.mxu0 0.0
          %v8185 = vand.u32 %v7809, 4294901760
          %8186 = vmatpush1.msra.mxu0 %v8185
          %8187 = vmatprep.subr.mxu0 0.0
          %v8188 = vand.u32 %v7810, 4294901760
          %8189 = vmatpush1.msra.mxu0 %v8188
          %8190 = vmatprep.subr.mxu0 0.0
          %v8191 = vand.u32 %v7811, 4294901760
          %8192 = vmatpush1.msra.mxu0 %v8191
          %8193 = vmatprep.subr.mxu0 0.0
          %v8194 = vand.u32 %v7812, 4294901760
          %8195 = vmatpush1.msra.mxu0 %v8194
          %8196 = vmatprep.subr.mxu0 0.0
          %v8197 = vand.u32 %v7813, 4294901760
          %8198 = vmatpush1.msra.mxu0 %v8197
          %8199 = vmatprep.subr.mxu0 0.0
          %v8200 = vand.u32 %v7814, 4294901760
          %8201 = vmatpush1.msra.mxu0 %v8200
          %8202 = vmatprep.subr.mxu0 0.0
          %v8203 = vand.u32 %v7815, 4294901760
          %8204 = vmatpush1.msra.mxu0 %v8203
          %8205 = vmatprep.subr.mxu0 0.0
          %v8206 = vand.u32 %v7816, 4294901760
          %8207 = vmatpush1.msra.mxu0 %v8206
          %8208 = vmatprep.subr.mxu0 0.0
          %v8209 = vand.u32 %v7817, 4294901760
          %8210 = vmatpush1.msra.mxu0 %v8209
          %8211 = vmatprep.subr.mxu0 0.0
          %v8212 = vand.u32 %v7818, 4294901760
          %8213 = vmatpush1.msra.mxu0 %v8212
          %8214 = vmatprep.subr.mxu0 0.0
          %v8215 = vand.u32 %v7819, 4294901760
          %8216 = vmatpush1.msra.mxu0 %v8215
          %8217 = vmatprep.subr.mxu0 0.0
          %v8218 = vand.u32 %v7820, 4294901760
          %8219 = vmatpush1.msra.mxu0 %v8218
          %8220 = vmatprep.subr.mxu0 0.0
          %v8221 = vand.u32 %v7821, 4294901760
          %8222 = vmatpush1.msra.mxu0 %v8221
          %8223 = vmatprep.subr.mxu0 0.0
          %8224 = vmatpush1.msra.mxu0 0.0
          %8225 = vmatprep.subr.mxu0 0.0
          %8226 = vmatpush1.msra.mxu0 0.0
          %8227 = vmatprep.subr.mxu0 0.0
          %8228 = vmatpush1.msra.mxu0 0.0
          %8229 = vmatprep.subr.mxu0 0.0
          %8230 = vmatpush1.msra.mxu0 0.0
          %8231 = vmatprep.subr.mxu0 0.0
          %8232 = vmatpush1.msra.mxu0 0.0
          %8233 = vmatprep.subr.mxu0 0.0
          %8234 = vmatpush1.msra.mxu0 0.0
          %8235 = vmatprep.subr.mxu0 0.0
          %8236 = vmatpush1.msra.mxu0 0.0
          %8237 = vmatprep.subr.mxu0 0.0
          %8238 = vmatpush1.msra.mxu0 0.0
          %8239 = vmatprep.subr.mxu0 0.0
          %8240 = vmatpush1.msra.mxu0 0.0
          %8241 = vmatprep.subr.mxu0 0.0
          %8242 = vmatpush1.msra.mxu0 0.0
          %8243 = vmatprep.subr.mxu0 0.0
          %8244 = vmatpush1.msra.mxu0 0.0
          %8245 = vmatprep.subr.mxu0 0.0
          %8246 = vmatpush1.msra.mxu0 0.0
          %8247 = vmatprep.subr.mxu0 0.0
          %8248 = vmatpush1.msra.mxu0 0.0
          %8249 = vmatprep.subr.mxu0 0.0
          %8250 = vmatpush1.msra.mxu0 0.0
          %8251 = vmatprep.subr.mxu0 0.0
          %8252 = vmatpush1.msra.mxu0 0.0
          %8253 = vmatprep.subr.mxu0 0.0
          %8254 = vmatpush1.msra.mxu0 0.0
          %8255 = vmatprep.mubr.f32.mxu0 0.0
          %v8256 = vand.u32 %v7800, 4294901760
          %v8257 = vsub.f32 %v7800, %v8256
          %v8258 = vand.u32 %v8257, 4294901760
          %8259 = vmatmul.mubr.f32.gmra.mrb[0].mxu0 %v8258
          %v8260 = vpop.f32.mrb[0].mxu0
          %v8261 = vadd.f32 %v8172, %v8260
          %v8262 = vpop.f32.mrb[0].mxu0
          %8263 = vdwg.mxu0
          %8264 = vmatprep.subr.mxu0 0.0
          %v8265 = vand.u32 %v7806, 4294901760
          %v8266 = vsub.f32 %v7806, %v8265
          %v8267 = vand.u32 %v8266, 4294901760
          %8268 = vmatpush1.msra.mxu0 %v8267
          %8269 = vmatprep.subr.mxu0 0.0
          %v8270 = vand.u32 %v7807, 4294901760
          %v8271 = vsub.f32 %v7807, %v8270
          %v8272 = vand.u32 %v8271, 4294901760
          %8273 = vmatpush1.msra.mxu0 %v8272
          %8274 = vmatprep.subr.mxu0 0.0
          %v8275 = vand.u32 %v7808, 4294901760
          %v8276 = vsub.f32 %v7808, %v8275
          %v8277 = vand.u32 %v8276, 4294901760
          %8278 = vmatpush1.msra.mxu0 %v8277
          %8279 = vmatprep.subr.mxu0 0.0
          %v8280 = vand.u32 %v7809, 4294901760
          %v8281 = vsub.f32 %v7809, %v8280
          %v8282 = vand.u32 %v8281, 4294901760
          %8283 = vmatpush1.msra.mxu0 %v8282
          %8284 = vmatprep.subr.mxu0 0.0
          %v8285 = vand.u32 %v7810, 4294901760
          %v8286 = vsub.f32 %v7810, %v8285
          %v8287 = vand.u32 %v8286, 4294901760
          %8288 = vmatpush1.msra.mxu0 %v8287
          %8289 = vmatprep.subr.mxu0 0.0
          %v8290 = vand.u32 %v7811, 4294901760
          %v8291 = vsub.f32 %v7811, %v8290
          %v8292 = vand.u32 %v8291, 4294901760
          %8293 = vmatpush1.msra.mxu0 %v8292
          %8294 = vmatprep.subr.mxu0 0.0
          %v8295 = vand.u32 %v7812, 4294901760
          %v8296 = vsub.f32 %v7812, %v8295
          %v8297 = vand.u32 %v8296, 4294901760
          %8298 = vmatpush1.msra.mxu0 %v8297
          %8299 = vmatprep.subr.mxu0 0.0
          %v8300 = vand.u32 %v7813, 4294901760
          %v8301 = vsub.f32 %v7813, %v8300
          %v8302 = vand.u32 %v8301, 4294901760
          %8303 = vmatpush1.msra.mxu0 %v8302
          %8304 = vmatprep.subr.mxu0 0.0
          %v8305 = vand.u32 %v7814, 4294901760
          %v8306 = vsub.f32 %v7814, %v8305
          %v8307 = vand.u32 %v8306, 4294901760
          %8308 = vmatpush1.msra.mxu0 %v8307
          %8309 = vmatprep.subr.mxu0 0.0
          %v8310 = vand.u32 %v7815, 4294901760
          %v8311 = vsub.f32 %v7815, %v8310
          %v8312 = vand.u32 %v8311, 4294901760
          %8313 = vmatpush1.msra.mxu0 %v8312
          %8314 = vmatprep.subr.mxu0 0.0
          %v8315 = vand.u32 %v7816, 4294901760
          %v8316 = vsub.f32 %v7816, %v8315
          %v8317 = vand.u32 %v8316, 4294901760
          %8318 = vmatpush1.msra.mxu0 %v8317
          %8319 = vmatprep.subr.mxu0 0.0
          %v8320 = vand.u32 %v7817, 4294901760
          %v8321 = vsub.f32 %v7817, %v8320
          %v8322 = vand.u32 %v8321, 4294901760
          %8323 = vmatpush1.msra.mxu0 %v8322
          %8324 = vmatprep.subr.mxu0 0.0
          %v8325 = vand.u32 %v7818, 4294901760
          %v8326 = vsub.f32 %v7818, %v8325
          %v8327 = vand.u32 %v8326, 4294901760
          %8328 = vmatpush1.msra.mxu0 %v8327
          %8329 = vmatprep.subr.mxu0 0.0
          %v8330 = vand.u32 %v7819, 4294901760
          %v8331 = vsub.f32 %v7819, %v8330
          %v8332 = vand.u32 %v8331, 4294901760
          %8333 = vmatpush1.msra.mxu0 %v8332
          %8334 = vmatprep.subr.mxu0 0.0
          %v8335 = vand.u32 %v7820, 4294901760
          %v8336 = vsub.f32 %v7820, %v8335
          %v8337 = vand.u32 %v8336, 4294901760
          %8338 = vmatpush1.msra.mxu0 %v8337
          %8339 = vmatprep.subr.mxu0 0.0
          %v8340 = vand.u32 %v7821, 4294901760
          %v8341 = vsub.f32 %v7821, %v8340
          %v8342 = vand.u32 %v8341, 4294901760
          %8343 = vmatpush1.msra.mxu0 %v8342
          %8344 = vmatprep.subr.mxu0 0.0
          %8345 = vmatpush1.msra.mxu0 0.0
          %8346 = vmatprep.subr.mxu0 0.0
          %8347 = vmatpush1.msra.mxu0 0.0
          %8348 = vmatprep.subr.mxu0 0.0
          %8349 = vmatpush1.msra.mxu0 0.0
          %8350 = vmatprep.subr.mxu0 0.0
          %8351 = vmatpush1.msra.mxu0 0.0
          %8352 = vmatprep.subr.mxu0 0.0
          %8353 = vmatpush1.msra.mxu0 0.0
          %8354 = vmatprep.subr.mxu0 0.0
          %8355 = vmatpush1.msra.mxu0 0.0
          %8356 = vmatprep.subr.mxu0 0.0
          %8357 = vmatpush1.msra.mxu0 0.0
          %8358 = vmatprep.subr.mxu0 0.0
          %8359 = vmatpush1.msra.mxu0 0.0
          %8360 = vmatprep.subr.mxu0 0.0
          %8361 = vmatpush1.msra.mxu0 0.0
          %8362 = vmatprep.subr.mxu0 0.0
          %8363 = vmatpush1.msra.mxu0 0.0
          %8364 = vmatprep.subr.mxu0 0.0
          %8365 = vmatpush1.msra.mxu0 0.0
          %8366 = vmatprep.subr.mxu0 0.0
          %8367 = vmatpush1.msra.mxu0 0.0
          %8368 = vmatprep.subr.mxu0 0.0
          %8369 = vmatpush1.msra.mxu0 0.0
          %8370 = vmatprep.subr.mxu0 0.0
          %8371 = vmatpush1.msra.mxu0 0.0
          %8372 = vmatprep.subr.mxu0 0.0
          %8373 = vmatpush1.msra.mxu0 0.0
          %8374 = vmatprep.subr.mxu0 0.0
          %8375 = vmatpush1.msra.mxu0 0.0
          %8376 = vmatprep.mubr.f32.mxu0 0.0
          %v8377 = vand.u32 %v7800, 4294901760
          %8378 = vmatmul.mubr.f32.gmra.mrb[0].mxu0 %v8377
          %v8379 = vpop.f32.mrb[0].mxu0
          %v8380 = vadd.f32 %v8261, %v8379
          %v8381 = vpop.f32.mrb[0].mxu0
          %8382 = vdwg.mxu0
          %8383 = vmatprep.subr.mxu0 0.0
          %v8384 = vand.u32 %v7806, 4294901760
          %8385 = vmatpush1.msra.mxu0 %v8384
          %8386 = vmatprep.subr.mxu0 0.0
          %v8387 = vand.u32 %v7807, 4294901760
          %8388 = vmatpush1.msra.mxu0 %v8387
          %8389 = vmatprep.subr.mxu0 0.0
          %v8390 = vand.u32 %v7808, 4294901760
          %8391 = vmatpush1.msra.mxu0 %v8390
          %8392 = vmatprep.subr.mxu0 0.0
          %v8393 = vand.u32 %v7809, 4294901760
          %8394 = vmatpush1.msra.mxu0 %v8393
          %8395 = vmatprep.subr.mxu0 0.0
          %v8396 = vand.u32 %v7810, 4294901760
          %8397 = vmatpush1.msra.mxu0 %v8396
          %8398 = vmatprep.subr.mxu0 0.0
          %v8399 = vand.u32 %v7811, 4294901760
          %8400 = vmatpush1.msra.mxu0 %v8399
          %8401 = vmatprep.subr.mxu0 0.0
          %v8402 = vand.u32 %v7812, 4294901760
          %8403 = vmatpush1.msra.mxu0 %v8402
          %8404 = vmatprep.subr.mxu0 0.0
          %v8405 = vand.u32 %v7813, 4294901760
          %8406 = vmatpush1.msra.mxu0 %v8405
          %8407 = vmatprep.subr.mxu0 0.0
          %v8408 = vand.u32 %v7814, 4294901760
          %8409 = vmatpush1.msra.mxu0 %v8408
          %8410 = vmatprep.subr.mxu0 0.0
          %v8411 = vand.u32 %v7815, 4294901760
          %8412 = vmatpush1.msra.mxu0 %v8411
          %8413 = vmatprep.subr.mxu0 0.0
          %v8414 = vand.u32 %v7816, 4294901760
          %8415 = vmatpush1.msra.mxu0 %v8414
          %8416 = vmatprep.subr.mxu0 0.0
          %v8417 = vand.u32 %v7817, 4294901760
          %8418 = vmatpush1.msra.mxu0 %v8417
          %8419 = vmatprep.subr.mxu0 0.0
          %v8420 = vand.u32 %v7818, 4294901760
          %8421 = vmatpush1.msra.mxu0 %v8420
          %8422 = vmatprep.subr.mxu0 0.0
          %v8423 = vand.u32 %v7819, 4294901760
          %8424 = vmatpush1.msra.mxu0 %v8423
          %8425 = vmatprep.subr.mxu0 0.0
          %v8426 = vand.u32 %v7820, 4294901760
          %8427 = vmatpush1.msra.mxu0 %v8426
          %8428 = vmatprep.subr.mxu0 0.0
          %v8429 = vand.u32 %v7821, 4294901760
          %8430 = vmatpush1.msra.mxu0 %v8429
          %8431 = vmatprep.subr.mxu0 0.0
          %8432 = vmatpush1.msra.mxu0 0.0
          %8433 = vmatprep.subr.mxu0 0.0
          %8434 = vmatpush1.msra.mxu0 0.0
          %8435 = vmatprep.subr.mxu0 0.0
          %8436 = vmatpush1.msra.mxu0 0.0
          %8437 = vmatprep.subr.mxu0 0.0
          %8438 = vmatpush1.msra.mxu0 0.0
          %8439 = vmatprep.subr.mxu0 0.0
          %8440 = vmatpush1.msra.mxu0 0.0
          %8441 = vmatprep.subr.mxu0 0.0
          %8442 = vmatpush1.msra.mxu0 0.0
          %8443 = vmatprep.subr.mxu0 0.0
          %8444 = vmatpush1.msra.mxu0 0.0
          %8445 = vmatprep.subr.mxu0 0.0
          %8446 = vmatpush1.msra.mxu0 0.0
          %8447 = vmatprep.subr.mxu0 0.0
          %8448 = vmatpush1.msra.mxu0 0.0
          %8449 = vmatprep.subr.mxu0 0.0
          %8450 = vmatpush1.msra.mxu0 0.0
          %8451 = vmatprep.subr.mxu0 0.0
          %8452 = vmatpush1.msra.mxu0 0.0
          %8453 = vmatprep.subr.mxu0 0.0
          %8454 = vmatpush1.msra.mxu0 0.0
          %8455 = vmatprep.subr.mxu0 0.0
          %8456 = vmatpush1.msra.mxu0 0.0
          %8457 = vmatprep.subr.mxu0 0.0
          %8458 = vmatpush1.msra.mxu0 0.0
          %8459 = vmatprep.subr.mxu0 0.0
          %8460 = vmatpush1.msra.mxu0 0.0
          %8461 = vmatprep.subr.mxu0 0.0
          %8462 = vmatpush1.msra.mxu0 0.0
          %8463 = vmatprep.mubr.f32.mxu0 0.0
          %v8464 = vand.u32 %v7800, 4294901760
          %8465 = vmatmul.mubr.f32.gmra.mrb[0].mxu0 %v8464
          %v8466 = vpop.f32.mrb[0].mxu0
          %v8467 = vadd.f32 %v8380, %v8466
          %v8468 = vpop.f32.mrb[0].mxu0
          %8469 = vdwg.mxu0
          %v8470 = vtanh.pop %v8467
          %v8471 = vld [vmem:[%s7] sm:$0xff]
          %v8472 = vld [vmem:[%s7 + $0x8] sm:$0xff]
          %v8473 = vld [vmem:[%s7 + $0x10] sm:$0xff]
          %v8474 = vld [vmem:[%s7 + $0x18] sm:$0xff]
          %v8475 = vld [vmem:[%s7 + $0x20] sm:$0xff]
          %v8476 = vld [vmem:[%s7 + $0x28] sm:$0xff]
          %v8477 = vld [vmem:[%s7 + $0x30] sm:$0x3]
          %v8478 = vld [vmem:[%s8] sm:$0x1]
          %v8480 = vlaneseq
          %v8481 = vshrl.u32 %v8480, 7
          %v8482 = vsub.s32 0, %v8481
          %v8483 = vrot.slane %v8478, %v8482
          %vm8485 = vcmask 408576
          %v8487 = vsel %vm8485, %v8470, 0
          %vm8489 = vcmask 1041408
          %v8491 = vsel %vm8489, %v8477, 0
          %8493 = vmatprep.subr.mxu0 0.0
          %v8494 = vand.u32 %v8471, 4294901760
          %8495 = vmatpush1.msra.mxu0 %v8494
          %8496 = vmatprep.subr.mxu0 0.0
          %v8497 = vand.u32 %v8472, 4294901760
          %8498 = vmatpush1.msra.mxu0 %v8497
          %8499 = vmatprep.subr.mxu0 0.0
          %v8500 = vand.u32 %v8473, 4294901760
          %8501 = vmatpush1.msra.mxu0 %v8500
          %8502 = vmatprep.subr.mxu0 0.0
          %v8503 = vand.u32 %v8474, 4294901760
          %8504 = vmatpush1.msra.mxu0 %v8503
          %8505 = vmatprep.subr.mxu0 0.0
          %v8506 = vand.u32 %v8475, 4294901760
          %8507 = vmatpush1.msra.mxu0 %v8506
          %8508 = vmatprep.subr.mxu0 0.0
          %v8509 = vand.u32 %v8476, 4294901760
          %8510 = vmatpush1.msra.mxu0 %v8509
          %8511 = vmatprep.subr.mxu0 0.0
          %v8512 = vand.u32 %v8491, 4294901760
          %8513 = vmatpush1.msra.mxu0 %v8512
          %8514 = vmatprep.subr.mxu0 0.0
          %8515 = vmatpush1.msra.mxu0 0.0
          %8516 = vmatprep.subr.mxu0 0.0
          %8517 = vmatpush1.msra.mxu0 0.0
          %8518 = vmatprep.subr.mxu0 0.0
          %8519 = vmatpush1.msra.mxu0 0.0
          %8520 = vmatprep.subr.mxu0 0.0
          %8521 = vmatpush1.msra.mxu0 0.0
          %8522 = vmatprep.subr.mxu0 0.0
          %8523 = vmatpush1.msra.mxu0 0.0
          %8524 = vmatprep.subr.mxu0 0.0
          %8525 = vmatpush1.msra.mxu0 0.0
          %8526 = vmatprep.subr.mxu0 0.0
          %8527 = vmatpush1.msra.mxu0 0.0
          %8528 = vmatprep.subr.mxu0 0.0
          %8529 = vmatpush1.msra.mxu0 0.0
          %8530 = vmatprep.subr.mxu0 0.0
          %8531 = vmatpush1.msra.mxu0 0.0
          %8532 = vmatprep.subr.mxu0 0.0
          %8533 = vmatpush1.msra.mxu0 0.0
          %8534 = vmatprep.subr.mxu0 0.0
          %8535 = vmatpush1.msra.mxu0 0.0
          %8536 = vmatprep.subr.mxu0 0.0
          %8537 = vmatpush1.msra.mxu0 0.0
          %8538 = vmatprep.subr.mxu0 0.0
          %8539 = vmatpush1.msra.mxu0 0.0
          %8540 = vmatprep.subr.mxu0 0.0
          %8541 = vmatpush1.msra.mxu0 0.0
          %8542 = vmatprep.subr.mxu0 0.0
          %8543 = vmatpush1.msra.mxu0 0.0
          %8544 = vmatprep.subr.mxu0 0.0
          %8545 = vmatpush1.msra.mxu0 0.0
          %8546 = vmatprep.subr.mxu0 0.0
          %8547 = vmatpush1.msra.mxu0 0.0
          %8548 = vmatprep.subr.mxu0 0.0
          %8549 = vmatpush1.msra.mxu0 0.0
          %8550 = vmatprep.subr.mxu0 0.0
          %8551 = vmatpush1.msra.mxu0 0.0
          %8552 = vmatprep.subr.mxu0 0.0
          %8553 = vmatpush1.msra.mxu0 0.0
          %8554 = vmatprep.subr.mxu0 0.0
          %8555 = vmatpush1.msra.mxu0 0.0
          %8556 = vmatprep.subr.mxu0 0.0
          %8557 = vmatpush1.msra.mxu0 0.0
          %8558 = vmatprep.subr.mxu0 0.0
          %8559 = vmatpush1.msra.mxu0 0.0
          %8560 = vmatprep.subr.mxu0 0.0
          %8561 = vmatpush1.msra.mxu0 0.0
          %8562 = vmatprep.subr.mxu0 0.0
          %8563 = vmatpush1.msra.mxu0 0.0
          %8564 = vmatprep.mubr.f32.mxu0 0.0
          %v8565 = vand.u32 %v8487, 4294901760
          %v8566 = vsub.f32 %v8487, %v8565
          %v8567 = vand.u32 %v8566, 4294901760
          %v8568 = vsub.f32 %v8566, %v8567
          %v8569 = vand.u32 %v8568, 4294901760
          %8570 = vmatmul.mubr.f32.gmra.mrb[0].mxu0 %v8569
          %v8571 = vpop.f32.mrb[0].mxu0
          %v8572 = vadd.f32 %v8483, %v8571
          %v8573 = vpop.f32.mrb[0].mxu0
          %8574 = vdwg.mxu0
          %8575 = vmatprep.subr.mxu0 0.0
          %v8576 = vand.u32 %v8471, 4294901760
          %v8577 = vsub.f32 %v8471, %v8576
          %v8578 = vand.u32 %v8577, 4294901760
          %v8579 = vsub.f32 %v8577, %v8578
          %v8580 = vand.u32 %v8579, 4294901760
          %8581 = vmatpush1.msra.mxu0 %v8580
          %8582 = vmatprep.subr.mxu0 0.0
          %v8583 = vand.u32 %v8472, 4294901760
          %v8584 = vsub.f32 %v8472, %v8583
          %v8585 = vand.u32 %v8584, 4294901760
          %v8586 = vsub.f32 %v8584, %v8585
          %v8587 = vand.u32 %v8586, 4294901760
          %8588 = vmatpush1.msra.mxu0 %v8587
          %8589 = vmatprep.subr.mxu0 0.0
          %v8590 = vand.u32 %v8473, 4294901760
          %v8591 = vsub.f32 %v8473, %v8590
          %v8592 = vand.u32 %v8591, 4294901760
          %v8593 = vsub.f32 %v8591, %v8592
          %v8594 = vand.u32 %v8593, 4294901760
          %8595 = vmatpush1.msra.mxu0 %v8594
          %8596 = vmatprep.subr.mxu0 0.0
          %v8597 = vand.u32 %v8474, 4294901760
          %v8598 = vsub.f32 %v8474, %v8597
          %v8599 = vand.u32 %v8598, 4294901760
          %v8600 = vsub.f32 %v8598, %v8599
          %v8601 = vand.u32 %v8600, 4294901760
          %8602 = vmatpush1.msra.mxu0 %v8601
          %8603 = vmatprep.subr.mxu0 0.0
          %v8604 = vand.u32 %v8475, 4294901760
          %v8605 = vsub.f32 %v8475, %v8604
          %v8606 = vand.u32 %v8605, 4294901760
          %v8607 = vsub.f32 %v8605, %v8606
          %v8608 = vand.u32 %v8607, 4294901760
          %8609 = vmatpush1.msra.mxu0 %v8608
          %8610 = vmatprep.subr.mxu0 0.0
          %v8611 = vand.u32 %v8476, 4294901760
          %v8612 = vsub.f32 %v8476, %v8611
          %v8613 = vand.u32 %v8612, 4294901760
          %v8614 = vsub.f32 %v8612, %v8613
          %v8615 = vand.u32 %v8614, 4294901760
          %8616 = vmatpush1.msra.mxu0 %v8615
          %8617 = vmatprep.subr.mxu0 0.0
          %v8618 = vand.u32 %v8491, 4294901760
          %v8619 = vsub.f32 %v8491, %v8618
          %v8620 = vand.u32 %v8619, 4294901760
          %v8621 = vsub.f32 %v8619, %v8620
          %v8622 = vand.u32 %v8621, 4294901760
          %8623 = vmatpush1.msra.mxu0 %v8622
          %8624 = vmatprep.subr.mxu0 0.0
          %8625 = vmatpush1.msra.mxu0 0.0
          %8626 = vmatprep.subr.mxu0 0.0
          %8627 = vmatpush1.msra.mxu0 0.0
          %8628 = vmatprep.subr.mxu0 0.0
          %8629 = vmatpush1.msra.mxu0 0.0
          %8630 = vmatprep.subr.mxu0 0.0
          %8631 = vmatpush1.msra.mxu0 0.0
          %8632 = vmatprep.subr.mxu0 0.0
          %8633 = vmatpush1.msra.mxu0 0.0
          %8634 = vmatprep.subr.mxu0 0.0
          %8635 = vmatpush1.msra.mxu0 0.0
          %8636 = vmatprep.subr.mxu0 0.0
          %8637 = vmatpush1.msra.mxu0 0.0
          %8638 = vmatprep.subr.mxu0 0.0
          %8639 = vmatpush1.msra.mxu0 0.0
          %8640 = vmatprep.subr.mxu0 0.0
          %8641 = vmatpush1.msra.mxu0 0.0
          %8642 = vmatprep.subr.mxu0 0.0
          %8643 = vmatpush1.msra.mxu0 0.0
          %8644 = vmatprep.subr.mxu0 0.0
          %8645 = vmatpush1.msra.mxu0 0.0
          %8646 = vmatprep.subr.mxu0 0.0
          %8647 = vmatpush1.msra.mxu0 0.0
          %8648 = vmatprep.subr.mxu0 0.0
          %8649 = vmatpush1.msra.mxu0 0.0
          %8650 = vmatprep.subr.mxu0 0.0
          %8651 = vmatpush1.msra.mxu0 0.0
          %8652 = vmatprep.subr.mxu0 0.0
          %8653 = vmatpush1.msra.mxu0 0.0
          %8654 = vmatprep.subr.mxu0 0.0
          %8655 = vmatpush1.msra.mxu0 0.0
          %8656 = vmatprep.subr.mxu0 0.0
          %8657 = vmatpush1.msra.mxu0 0.0
          %8658 = vmatprep.subr.mxu0 0.0
          %8659 = vmatpush1.msra.mxu0 0.0
          %8660 = vmatprep.subr.mxu0 0.0
          %8661 = vmatpush1.msra.mxu0 0.0
          %8662 = vmatprep.subr.mxu0 0.0
          %8663 = vmatpush1.msra.mxu0 0.0
          %8664 = vmatprep.subr.mxu0 0.0
          %8665 = vmatpush1.msra.mxu0 0.0
          %8666 = vmatprep.subr.mxu0 0.0
          %8667 = vmatpush1.msra.mxu0 0.0
          %8668 = vmatprep.subr.mxu0 0.0
          %8669 = vmatpush1.msra.mxu0 0.0
          %8670 = vmatprep.subr.mxu0 0.0
          %8671 = vmatpush1.msra.mxu0 0.0
          %8672 = vmatprep.subr.mxu0 0.0
          %8673 = vmatpush1.msra.mxu0 0.0
          %8674 = vmatprep.mubr.f32.mxu0 0.0
          %v8675 = vand.u32 %v8487, 4294901760
          %8676 = vmatmul.mubr.f32.gmra.mrb[0].mxu0 %v8675
          %v8677 = vpop.f32.mrb[0].mxu0
          %v8678 = vadd.f32 %v8572, %v8677
          %v8679 = vpop.f32.mrb[0].mxu0
          %8680 = vdwg.mxu0
          %8681 = vmatprep.subr.mxu0 0.0
          %v8682 = vand.u32 %v8471, 4294901760
          %v8683 = vsub.f32 %v8471, %v8682
          %8684 = vmatpush1.msra.mxu0 %v8683
          %8685 = vmatprep.subr.mxu0 0.0
          %v8686 = vand.u32 %v8472, 4294901760
          %v8687 = vsub.f32 %v8472, %v8686
          %8688 = vmatpush1.msra.mxu0 %v8687
          %8689 = vmatprep.subr.mxu0 0.0
          %v8690 = vand.u32 %v8473, 4294901760
          %v8691 = vsub.f32 %v8473, %v8690
          %8692 = vmatpush1.msra.mxu0 %v8691
          %8693 = vmatprep.subr.mxu0 0.0
          %v8694 = vand.u32 %v8474, 4294901760
          %v8695 = vsub.f32 %v8474, %v8694
          %8696 = vmatpush1.msra.mxu0 %v8695
          %8697 = vmatprep.subr.mxu0 0.0
          %v8698 = vand.u32 %v8475, 4294901760
          %v8699 = vsub.f32 %v8475, %v8698
          %8700 = vmatpush1.msra.mxu0 %v8699
          %8701 = vmatprep.subr.mxu0 0.0
          %v8702 = vand.u32 %v8476, 4294901760
          %v8703 = vsub.f32 %v8476, %v8702
          %8704 = vmatpush1.msra.mxu0 %v8703
          %8705 = vmatprep.subr.mxu0 0.0
          %v8706 = vand.u32 %v8491, 4294901760
          %v8707 = vsub.f32 %v8491, %v8706
          %8708 = vmatpush1.msra.mxu0 %v8707
          %8709 = vmatprep.subr.mxu0 0.0
          %8710 = vmatpush1.msra.mxu0 0.0
          %8711 = vmatprep.subr.mxu0 0.0
          %8712 = vmatpush1.msra.mxu0 0.0
          %8713 = vmatprep.subr.mxu0 0.0
          %8714 = vmatpush1.msra.mxu0 0.0
          %8715 = vmatprep.subr.mxu0 0.0
          %8716 = vmatpush1.msra.mxu0 0.0
          %8717 = vmatprep.subr.mxu0 0.0
          %8718 = vmatpush1.msra.mxu0 0.0
          %8719 = vmatprep.subr.mxu0 0.0
          %8720 = vmatpush1.msra.mxu0 0.0
          %8721 = vmatprep.subr.mxu0 0.0
          %8722 = vmatpush1.msra.mxu0 0.0
          %8723 = vmatprep.subr.mxu0 0.0
          %8724 = vmatpush1.msra.mxu0 0.0
          %8725 = vmatprep.subr.mxu0 0.0
          %8726 = vmatpush1.msra.mxu0 0.0
          %8727 = vmatprep.subr.mxu0 0.0
          %8728 = vmatpush1.msra.mxu0 0.0
          %8729 = vmatprep.subr.mxu0 0.0
          %8730 = vmatpush1.msra.mxu0 0.0
          %8731 = vmatprep.subr.mxu0 0.0
          %8732 = vmatpush1.msra.mxu0 0.0
          %8733 = vmatprep.subr.mxu0 0.0
          %8734 = vmatpush1.msra.mxu0 0.0
          %8735 = vmatprep.subr.mxu0 0.0
          %8736 = vmatpush1.msra.mxu0 0.0
          %8737 = vmatprep.subr.mxu0 0.0
          %8738 = vmatpush1.msra.mxu0 0.0
          %8739 = vmatprep.subr.mxu0 0.0
          %8740 = vmatpush1.msra.mxu0 0.0
          %8741 = vmatprep.subr.mxu0 0.0
          %8742 = vmatpush1.msra.mxu0 0.0
          %8743 = vmatprep.subr.mxu0 0.0
          %8744 = vmatpush1.msra.mxu0 0.0
          %8745 = vmatprep.subr.mxu0 0.0
          %8746 = vmatpush1.msra.mxu0 0.0
          %8747 = vmatprep.subr.mxu0 0.0
          %8748 = vmatpush1.msra.mxu0 0.0
          %8749 = vmatprep.subr.mxu0 0.0
          %8750 = vmatpush1.msra.mxu0 0.0
          %8751 = vmatprep.subr.mxu0 0.0
          %8752 = vmatpush1.msra.mxu0 0.0
          %8753 = vmatprep.subr.mxu0 0.0
          %8754 = vmatpush1.msra.mxu0 0.0
          %8755 = vmatprep.subr.mxu0 0.0
          %8756 = vmatpush1.msra.mxu0 0.0
          %8757 = vmatprep.subr.mxu0 0.0
          %8758 = vmatpush1.msra.mxu0 0.0
          %8759 = vmatprep.mubr.f32.mxu0 0.0
          %v8760 = vand.u32 %v8487, 4294901760
          %v8761 = vsub.f32 %v8487, %v8760
          %8762 = vmatmul.mubr.f32.gmra.mrb[0].mxu0 %v8761
          %v8763 = vpop.f32.mrb[0].mxu0
          %v8764 = vadd.f32 %v8678, %v8763
          %v8765 = vpop.f32.mrb[0].mxu0
          %8766 = vdwg.mxu0
          %8767 = vmatprep.subr.mxu0 0.0
          %v8768 = vand.u32 %v8471, 4294901760
          %8769 = vmatpush1.msra.mxu0 %v8768
          %8770 = vmatprep.subr.mxu0 0.0
          %v8771 = vand.u32 %v8472, 4294901760
          %8772 = vmatpush1.msra.mxu0 %v8771
          %8773 = vmatprep.subr.mxu0 0.0
          %v8774 = vand.u32 %v8473, 4294901760
          %8775 = vmatpush1.msra.mxu0 %v8774
          %8776 = vmatprep.subr.mxu0 0.0
          %v8777 = vand.u32 %v8474, 4294901760
          %8778 = vmatpush1.msra.mxu0 %v8777
          %8779 = vmatprep.subr.mxu0 0.0
          %v8780 = vand.u32 %v8475, 4294901760
          %8781 = vmatpush1.msra.mxu0 %v8780
          %8782 = vmatprep.subr.mxu0 0.0
          %v8783 = vand.u32 %v8476, 4294901760
          %8784 = vmatpush1.msra.mxu0 %v8783
          %8785 = vmatprep.subr.mxu0 0.0
          %v8786 = vand.u32 %v8491, 4294901760
          %8787 = vmatpush1.msra.mxu0 %v8786
          %8788 = vmatprep.subr.mxu0 0.0
          %8789 = vmatpush1.msra.mxu0 0.0
          %8790 = vmatprep.subr.mxu0 0.0
          %8791 = vmatpush1.msra.mxu0 0.0
          %8792 = vmatprep.subr.mxu0 0.0
          %8793 = vmatpush1.msra.mxu0 0.0
          %8794 = vmatprep.subr.mxu0 0.0
          %8795 = vmatpush1.msra.mxu0 0.0
          %8796 = vmatprep.subr.mxu0 0.0
          %8797 = vmatpush1.msra.mxu0 0.0
          %8798 = vmatprep.subr.mxu0 0.0
          %8799 = vmatpush1.msra.mxu0 0.0
          %8800 = vmatprep.subr.mxu0 0.0
          %8801 = vmatpush1.msra.mxu0 0.0
          %8802 = vmatprep.subr.mxu0 0.0
          %8803 = vmatpush1.msra.mxu0 0.0
          %8804 = vmatprep.subr.mxu0 0.0
          %8805 = vmatpush1.msra.mxu0 0.0
          %8806 = vmatprep.subr.mxu0 0.0
          %8807 = vmatpush1.msra.mxu0 0.0
          %8808 = vmatprep.subr.mxu0 0.0
          %8809 = vmatpush1.msra.mxu0 0.0
          %8810 = vmatprep.subr.mxu0 0.0
          %8811 = vmatpush1.msra.mxu0 0.0
          %8812 = vmatprep.subr.mxu0 0.0
          %8813 = vmatpush1.msra.mxu0 0.0
          %8814 = vmatprep.subr.mxu0 0.0
          %8815 = vmatpush1.msra.mxu0 0.0
          %8816 = vmatprep.subr.mxu0 0.0
          %8817 = vmatpush1.msra.mxu0 0.0
          %8818 = vmatprep.subr.mxu0 0.0
          %8819 = vmatpush1.msra.mxu0 0.0
          %8820 = vmatprep.subr.mxu0 0.0
          %8821 = vmatpush1.msra.mxu0 0.0
          %8822 = vmatprep.subr.mxu0 0.0
          %8823 = vmatpush1.msra.mxu0 0.0
          %8824 = vmatprep.subr.mxu0 0.0
          %8825 = vmatpush1.msra.mxu0 0.0
          %8826 = vmatprep.subr.mxu0 0.0
          %8827 = vmatpush1.msra.mxu0 0.0
          %8828 = vmatprep.subr.mxu0 0.0
          %8829 = vmatpush1.msra.mxu0 0.0
          %8830 = vmatprep.subr.mxu0 0.0
          %8831 = vmatpush1.msra.mxu0 0.0
          %8832 = vmatprep.subr.mxu0 0.0
          %8833 = vmatpush1.msra.mxu0 0.0
          %8834 = vmatprep.subr.mxu0 0.0
          %8835 = vmatpush1.msra.mxu0 0.0
          %8836 = vmatprep.subr.mxu0 0.0
          %8837 = vmatpush1.msra.mxu0 0.0
          %8838 = vmatprep.mubr.f32.mxu0 0.0
          %v8839 = vand.u32 %v8487, 4294901760
          %v8840 = vsub.f32 %v8487, %v8839
          %v8841 = vand.u32 %v8840, 4294901760
          %8842 = vmatmul.mubr.f32.gmra.mrb[0].mxu0 %v8841
          %v8843 = vpop.f32.mrb[0].mxu0
          %v8844 = vadd.f32 %v8764, %v8843
          %v8845 = vpop.f32.mrb[0].mxu0
          %8846 = vdwg.mxu0
          %8847 = vmatprep.subr.mxu0 0.0
          %v8848 = vand.u32 %v8471, 4294901760
          %v8849 = vsub.f32 %v8471, %v8848
          %v8850 = vand.u32 %v8849, 4294901760
          %8851 = vmatpush1.msra.mxu0 %v8850
          %8852 = vmatprep.subr.mxu0 0.0
          %v8853 = vand.u32 %v8472, 4294901760
          %v8854 = vsub.f32 %v8472, %v8853
          %v8855 = vand.u32 %v8854, 4294901760
          %8856 = vmatpush1.msra.mxu0 %v8855
          %8857 = vmatprep.subr.mxu0 0.0
          %v8858 = vand.u32 %v8473, 4294901760
          %v8859 = vsub.f32 %v8473, %v8858
          %v8860 = vand.u32 %v8859, 4294901760
          %8861 = vmatpush1.msra.mxu0 %v8860
          %8862 = vmatprep.subr.mxu0 0.0
          %v8863 = vand.u32 %v8474, 4294901760
          %v8864 = vsub.f32 %v8474, %v8863
          %v8865 = vand.u32 %v8864, 4294901760
          %8866 = vmatpush1.msra.mxu0 %v8865
          %8867 = vmatprep.subr.mxu0 0.0
          %v8868 = vand.u32 %v8475, 4294901760
          %v8869 = vsub.f32 %v8475, %v8868
          %v8870 = vand.u32 %v8869, 4294901760
          %8871 = vmatpush1.msra.mxu0 %v8870
          %8872 = vmatprep.subr.mxu0 0.0
          %v8873 = vand.u32 %v8476, 4294901760
          %v8874 = vsub.f32 %v8476, %v8873
          %v8875 = vand.u32 %v8874, 4294901760
          %8876 = vmatpush1.msra.mxu0 %v8875
          %8877 = vmatprep.subr.mxu0 0.0
          %v8878 = vand.u32 %v8491, 4294901760
          %v8879 = vsub.f32 %v8491, %v8878
          %v8880 = vand.u32 %v8879, 4294901760
          %8881 = vmatpush1.msra.mxu0 %v8880
          %8882 = vmatprep.subr.mxu0 0.0
          %8883 = vmatpush1.msra.mxu0 0.0
          %8884 = vmatprep.subr.mxu0 0.0
          %8885 = vmatpush1.msra.mxu0 0.0
          %8886 = vmatprep.subr.mxu0 0.0
          %8887 = vmatpush1.msra.mxu0 0.0
          %8888 = vmatprep.subr.mxu0 0.0
          %8889 = vmatpush1.msra.mxu0 0.0
          %8890 = vmatprep.subr.mxu0 0.0
          %8891 = vmatpush1.msra.mxu0 0.0
          %8892 = vmatprep.subr.mxu0 0.0
          %8893 = vmatpush1.msra.mxu0 0.0
          %8894 = vmatprep.subr.mxu0 0.0
          %8895 = vmatpush1.msra.mxu0 0.0
          %8896 = vmatprep.subr.mxu0 0.0
          %8897 = vmatpush1.msra.mxu0 0.0
          %8898 = vmatprep.subr.mxu0 0.0
          %8899 = vmatpush1.msra.mxu0 0.0
          %8900 = vmatprep.subr.mxu0 0.0
          %8901 = vmatpush1.msra.mxu0 0.0
          %8902 = vmatprep.subr.mxu0 0.0
          %8903 = vmatpush1.msra.mxu0 0.0
          %8904 = vmatprep.subr.mxu0 0.0
          %8905 = vmatpush1.msra.mxu0 0.0
          %8906 = vmatprep.subr.mxu0 0.0
          %8907 = vmatpush1.msra.mxu0 0.0
          %8908 = vmatprep.subr.mxu0 0.0
          %8909 = vmatpush1.msra.mxu0 0.0
          %8910 = vmatprep.subr.mxu0 0.0
          %8911 = vmatpush1.msra.mxu0 0.0
          %8912 = vmatprep.subr.mxu0 0.0
          %8913 = vmatpush1.msra.mxu0 0.0
          %8914 = vmatprep.subr.mxu0 0.0
          %8915 = vmatpush1.msra.mxu0 0.0
          %8916 = vmatprep.subr.mxu0 0.0
          %8917 = vmatpush1.msra.mxu0 0.0
          %8918 = vmatprep.subr.mxu0 0.0
          %8919 = vmatpush1.msra.mxu0 0.0
          %8920 = vmatprep.subr.mxu0 0.0
          %8921 = vmatpush1.msra.mxu0 0.0
          %8922 = vmatprep.subr.mxu0 0.0
          %8923 = vmatpush1.msra.mxu0 0.0
          %8924 = vmatprep.subr.mxu0 0.0
          %8925 = vmatpush1.msra.mxu0 0.0
          %8926 = vmatprep.subr.mxu0 0.0
          %8927 = vmatpush1.msra.mxu0 0.0
          %8928 = vmatprep.subr.mxu0 0.0
          %8929 = vmatpush1.msra.mxu0 0.0
          %8930 = vmatprep.subr.mxu0 0.0
          %8931 = vmatpush1.msra.mxu0 0.0
          %8932 = vmatprep.mubr.f32.mxu0 0.0
          %v8933 = vand.u32 %v8487, 4294901760
          %8934 = vmatmul.mubr.f32.gmra.mrb[0].mxu0 %v8933
          %v8935 = vpop.f32.mrb[0].mxu0
          %v8936 = vadd.f32 %v8844, %v8935
          %v8937 = vpop.f32.mrb[0].mxu0
          %8938 = vdwg.mxu0
          %8939 = vmatprep.subr.mxu0 0.0
          %v8940 = vand.u32 %v8471, 4294901760
          %8941 = vmatpush1.msra.mxu0 %v8940
          %8942 = vmatprep.subr.mxu0 0.0
          %v8943 = vand.u32 %v8472, 4294901760
          %8944 = vmatpush1.msra.mxu0 %v8943
          %8945 = vmatprep.subr.mxu0 0.0
          %v8946 = vand.u32 %v8473, 4294901760
          %8947 = vmatpush1.msra.mxu0 %v8946
          %8948 = vmatprep.subr.mxu0 0.0
          %v8949 = vand.u32 %v8474, 4294901760
          %8950 = vmatpush1.msra.mxu0 %v8949
          %8951 = vmatprep.subr.mxu0 0.0
          %v8952 = vand.u32 %v8475, 4294901760
          %8953 = vmatpush1.msra.mxu0 %v8952
          %8954 = vmatprep.subr.mxu0 0.0
          %v8955 = vand.u32 %v8476, 4294901760
          %8956 = vmatpush1.msra.mxu0 %v8955
          %8957 = vmatprep.subr.mxu0 0.0
          %v8958 = vand.u32 %v8491, 4294901760
          %8959 = vmatpush1.msra.mxu0 %v8958
          %8960 = vmatprep.subr.mxu0 0.0
          %8961 = vmatpush1.msra.mxu0 0.0
          %8962 = vmatprep.subr.mxu0 0.0
          %8963 = vmatpush1.msra.mxu0 0.0
          %8964 = vmatprep.subr.mxu0 0.0
          %8965 = vmatpush1.msra.mxu0 0.0
          %8966 = vmatprep.subr.mxu0 0.0
          %8967 = vmatpush1.msra.mxu0 0.0
          %8968 = vmatprep.subr.mxu0 0.0
          %8969 = vmatpush1.msra.mxu0 0.0
          %8970 = vmatprep.subr.mxu0 0.0
          %8971 = vmatpush1.msra.mxu0 0.0
          %8972 = vmatprep.subr.mxu0 0.0
          %8973 = vmatpush1.msra.mxu0 0.0
          %8974 = vmatprep.subr.mxu0 0.0
          %8975 = vmatpush1.msra.mxu0 0.0
          %8976 = vmatprep.subr.mxu0 0.0
          %8977 = vmatpush1.msra.mxu0 0.0
          %8978 = vmatprep.subr.mxu0 0.0
          %8979 = vmatpush1.msra.mxu0 0.0
          %8980 = vmatprep.subr.mxu0 0.0
          %8981 = vmatpush1.msra.mxu0 0.0
          %8982 = vmatprep.subr.mxu0 0.0
          %8983 = vmatpush1.msra.mxu0 0.0
          %8984 = vmatprep.subr.mxu0 0.0
          %8985 = vmatpush1.msra.mxu0 0.0
          %8986 = vmatprep.subr.mxu0 0.0
          %8987 = vmatpush1.msra.mxu0 0.0
          %8988 = vmatprep.subr.mxu0 0.0
          %8989 = vmatpush1.msra.mxu0 0.0
          %8990 = vmatprep.subr.mxu0 0.0
          %8991 = vmatpush1.msra.mxu0 0.0
          %8992 = vmatprep.subr.mxu0 0.0
          %8993 = vmatpush1.msra.mxu0 0.0
          %8994 = vmatprep.subr.mxu0 0.0
          %8995 = vmatpush1.msra.mxu0 0.0
          %8996 = vmatprep.subr.mxu0 0.0
          %8997 = vmatpush1.msra.mxu0 0.0
          %8998 = vmatprep.subr.mxu0 0.0
          %8999 = vmatpush1.msra.mxu0 0.0
          %9000 = vmatprep.subr.mxu0 0.0
          %9001 = vmatpush1.msra.mxu0 0.0
          %9002 = vmatprep.subr.mxu0 0.0
          %9003 = vmatpush1.msra.mxu0 0.0
          %9004 = vmatprep.subr.mxu0 0.0
          %9005 = vmatpush1.msra.mxu0 0.0
          %9006 = vmatprep.subr.mxu0 0.0
          %9007 = vmatpush1.msra.mxu0 0.0
          %9008 = vmatprep.subr.mxu0 0.0
          %9009 = vmatpush1.msra.mxu0 0.0
          %9010 = vmatprep.mubr.f32.mxu0 0.0
          %v9011 = vand.u32 %v8487, 4294901760
          %9012 = vmatmul.mubr.f32.gmra.mrb[0].mxu0 %v9011
          %v9013 = vpop.f32.mrb[0].mxu0
          %v9014 = vadd.f32 %v8936, %v9013
          %v9015 = vpop.f32.mrb[0].mxu0
          %9016 = vdwg.mxu0
          %vm9017 = vcmask 97280
          %9018 = vst.msk [vmem:[#allocation7] sm:$0xff] %vm9017, %v9014
        $region68: #{tpu_custom_call.1} parent=55 // pred_fallthru
          _
        // Predicated region
        $region69: #{tpu_custom_call.1} parent=55 // pred_check
          %p9019 = pneg %p250
        $region70: #{tpu_custom_call.1} parent=55 // pred_check_branch
          %9021 = sbr.rel (%p9019) target = $region72
        $region71: #{tpu_custom_call.1} parent=55 // pred_region
          %s9023 = ssub.s32 128, 128
          %9024 = vsyncadd [#allocation6], %s9023
          %s9025 = smul.addr %s26, 128
          %s9026 = scalar_lea.hbm %s9, %s9025
          %s9028 = sshll.u32 [#allocation7], 4
          %s9029 = int_to_ptr.vmem [resolvable:$true] %s9028
          %9031 = dma.vmem_to_hbm [thread:$0]  %s9029, 128, %s9026, [#allocation6]
        $region72: #{tpu_custom_call.1} parent=55 // pred_fallthru
          _
        // Predicated region
        $region73: #{tpu_custom_call.1} parent=55 // pred_check
          %p9032 = pneg %p250
        $region74: #{tpu_custom_call.1} parent=55 // pred_check_branch
          %9034 = sbr.rel (%p9032) target = $region76
        $region75: #{tpu_custom_call.1} parent=55 // pred_region
          %9035 = dma.done [#allocation6], 128
        $region76: #{tpu_custom_call.1} parent=55 // pred_fallthru
          _
      $region56: #{tpu_custom_call.1} parent=5 // pred_fallthru
        _
      %p9036 = scmp.le.s32.totalorder 2, %s17
      // Predicated region
      $region77: #{tpu_custom_call.1} parent=5 // pred_check
        %p9037 = pneg %p9036
      $region78: #{tpu_custom_call.1} parent=5 // pred_check_branch
        %9039 = sbr.rel (%p9037) target = $region80
      $region79: #{tpu_custom_call.1} parent=5 // pred_region
        %s9040 = ssub.s32 %s17, 2
      $region80: #{tpu_custom_call.1} parent=5 // pred_fallthru
        _
    $region6: #{tpu_custom_call.1} parent=1 // loop_footer
      %s21 = sadd.s32 1, %s17
    $region7: #{tpu_custom_call.1} parent=1 // loop_footer_branch
      %16 = sbr.rel target = $region3
    $region8: #{tpu_custom_call.1} parent=1 // loop_exit
      _
    %9041 = vsyncpa [#allocation5], 1
    %s9042 = scalar_lea.sflag [#allocation5], 1
    %9043 = vsyncpa %s9042, 1
    %9044 = vsyncpa [#allocation6], 1
    %s9045 = scalar_lea.sflag [#allocation6], 1
    %9046 = vsyncpa %s9045, 1

</llo_original>
